<compile_context>
chip_gen: v7x
topology: tpu7x:2x2x1
jax: 0.10.0
libtpu: 0.0.40
codegen_flags: <defaults>
</compile_context>

<pallas_src>
import jax
import jax.numpy as jnp
from jax.experimental import pallas as pl
from jax.experimental.pallas import tpu as pltpu

D_IN = 256
D_FF = 1024
D_OUT = 256
LN_EPS = 1e-12


def fused_kernel(x_ref, w1_ref, b1_ref, w2_ref, b2_ref, w3_ref, b3_ref, o_ref):
    x = x_ref[...].astype(jnp.float32)                          # (tm, 256), f32
    mx_dtype = w1_ref.dtype                                     # bf16 (fast) or f32 (strict)

    # linear53: 256 -> 1024 (MXU, f32 accumulate, f32 bias add)
    h = jnp.dot(x.astype(mx_dtype), w1_ref[...],
                preferred_element_type=jnp.float32) + b1_ref[...]

    # exact (erf-based) GELU, matching torch._C._nn.gelu default.
    # TODO(synk): tanh-GELU would move this off the VALU onto the EUP slot, but
    # it changes numerics vs the PyTorch module, so the exact form is kept.
    h = 0.5 * h * (1.0 + jax.lax.erf(h * jnp.float32(0.7071067811865476)))

    # linear54: 1024 -> 256
    y = jnp.dot(h.astype(mx_dtype), w2_ref[...],
                preferred_element_type=jnp.float32) + b2_ref[...]

    # dropout27 (p=0.1): inference-mode identity.
    # TODO(synk): training-mode dropout (pltpu.prng_seed / prng_random_bits) not implemented.

    # residual add (x kept in full f32)
    r = y + x

    # layernorm18 over last dim, eps=1e-12. Single-pass statistics:
    # var = E[r^2] - mean^2 (clamped at 0 against cancellation).
    mean = jnp.mean(r, axis=-1, keepdims=True)
    msq = jnp.mean(r * r, axis=-1, keepdims=True)
    var = jnp.maximum(msq - mean * mean, 0.0)
    ln = (r - mean) * jax.lax.rsqrt(var + LN_EPS)

    # linear55 with the LN affine (gamma, beta) pre-folded into w3_ref/b3_ref.
    out = jnp.dot(ln, w3_ref[...], preferred_element_type=jnp.float32) + b3_ref[...]
    o_ref[...] = out.astype(o_ref.dtype)


def _num_tensorcores() -> int:
    """Best-effort TensorCores-per-chip count (v7x/v4/v5p: 2; v5e/v6e: 1)."""
    try:
        info = pltpu.get_tpu_info()
        for attr in ("num_tensorcores", "tensorcore_count", "num_cores",
                     "cores_per_chip", "core_count"):
            n = getattr(info, attr, None)
            if isinstance(n, int) and 1 <= n <= 8:
                return n
    except Exception:
        pass
    try:
        kind = jax.devices()[0].device_kind.lower()
    except Exception:  # pragma: no cover - defensive
        kind = ""
    if any(tag in kind for tag in ("v7", "7x", "v5p", "v4")):
        return 2
    return 1


def _pick_tile(M: int, num_cores: int) -> int:
    """Row-tile size. One balanced tile per TensorCore on 2-TC chips; the whole
    problem in one grid step on single-TC chips. tm capped at 512 so the
    (tm, 1024) f32 GELU intermediate stays small in VMEM."""
    if num_cores > 1 and M % num_cores == 0:
        tm = M // num_cores
        if tm % 8 == 0 and tm <= 512:
            return tm
    if M % 8 == 0 and M <= 512:
        return M                              # grid=1 -> no per-step overhead
    for tm in (512, 384, 256, 192, 128, 64, 32, 16, 8):
        if M % tm == 0:
            return tm
    return M


def fused_forward(x, w1, b1, w2, b2, gamma, beta, w3, b3, *,
                  matmul_dtype=jnp.bfloat16, tm=None):
    B, S, D = x.shape
    assert D == D_IN
    M = B * S
    if tm is None:
        tm = _pick_tile(M, _num_tensorcores())
    assert M % tm == 0 and tm % 8 == 0
    x2 = x.reshape(M, D)

    # Cast the two big weight matrices to the MXU input dtype on the host.
    w1c = w1.astype(matmul_dtype)
    w2c = w2.astype(matmul_dtype)

    # Fold LayerNorm affine into the final Linear (numerically equivalent:
    # (z*g + b) @ W3 + b3 == z @ (g[:,None] * W3) + (b @ W3 + b3)).
    w3f = gamma.reshape(D_IN, 1) * w3
    b3f = jnp.dot(beta.reshape(1, D_IN), w3, precision="float32") + b3

    full = lambda shape: pl.BlockSpec(shape, lambda i: (0, 0))
    out2 = pl.pallas_call(
        fused_kernel,
        out_shape=jax.ShapeDtypeStruct((M, D_OUT), x.dtype),
        grid_spec=pltpu.PrefetchScalarGridSpec(
            num_scalar_prefetch=0,
            grid=(M // tm,),
            in_specs=[
                pl.BlockSpec((tm, D_IN), lambda i: (i, 0)),   # x tile
                full((D_IN, D_FF)),                           # W1 (matmul dtype)
                full((1, D_FF)),                              # b1 (f32)
                full((D_FF, D_IN)),                           # W2 (matmul dtype)
                full((1, D_IN)),                              # b2 (f32)
                full((D_IN, D_OUT)),                          # W3 (LN affine folded, f32)
                full((1, D_OUT)),                             # b3 (LN affine folded, f32)
            ],
            out_specs=pl.BlockSpec((tm, D_OUT), lambda i: (i, 0)),
        ),
        compiler_params=pltpu.CompilerParams(
            dimension_semantics=("parallel",)),
    )(x2, w1c, b1, w2c, b2, w3f, b3f)
    return out2.reshape(B, S, D_OUT)


def _init_params(key):
    ks = jax.random.split(key, 3)

    # deterministic, uniform(-1/sqrt(fan_in), 1/sqrt(fan_in)) like torch Linear
    def lin(k, fan_in, fan_out):
        kw, kb = jax.random.split(k)
        bound = 1.0 / jnp.sqrt(fan_in)
        w = jax.random.uniform(kw, (fan_in, fan_out), jnp.float32, -bound, bound)
        b = jax.random.uniform(kb, (1, fan_out), jnp.float32, -bound, bound)
        return w, b

    w1, b1 = lin(ks[0], D_IN, D_FF)
    w2, b2 = lin(ks[1], D_FF, D_IN)
    w3, b3 = lin(ks[2], D_IN, D_OUT)
    gamma = jnp.ones((1, D_IN), jnp.float32)
    beta = jnp.zeros((1, D_IN), jnp.float32)
    return w1, b1, w2, b2, gamma, beta, w3, b3


if __name__ == "__main__":
    key = jax.random.PRNGKey(0)
    kx, kp = jax.random.split(key)
    x = jax.random.normal(kx, (1, 384, 256), jnp.float32)
    params = _init_params(kp)

    # Fast path (default): bf16 MXU inputs for the two big matmuls.
    out_fast = fused_forward(x, *params)
    # Strict-parity path: all-f32 matmuls (matches PyTorch fp32 semantics).
    out_f32 = fused_forward(x, *params, matmul_dtype=jnp.float32)
    jax.block_until_ready((out_fast, out_f32))

    # Plain-JAX reference of the PyTorch module at float32 matmul precision.
    w1, b1, w2, b2, gamma, beta, w3, b3 = params
    with jax.default_matmul_precision("float32"):
        h = jax.nn.gelu(x @ w1 + b1, approximate=False)
        y = h @ w2 + b2
        r = y + x                                   # dropout27 eval-mode = identity
        mean = r.mean(-1, keepdims=True)
        var = ((r - mean) ** 2).mean(-1, keepdims=True)
        ln = (r - mean) / jnp.sqrt(var + LN_EPS) * gamma + beta
        ref = ln @ w3 + b3

    err_f32 = float(jnp.abs(out_f32 - ref).max())
    assert jnp.allclose(out_f32, ref, atol=1e-4, rtol=1e-4), err_f32
    err_bf16 = float(jnp.abs(out_fast - ref).max())
    assert jnp.allclose(out_fast, ref, atol=5e-3, rtol=5e-3), err_bf16

    print("KERNEL_OK")
</pallas_src>

<mosaic_0001>
module attributes {stable_mosaic.version = 11 : i64} {
  func.func @fused_kernel(%arg0: i32, %arg1: memref<384x256xf32, #tpu.memory_space<vmem>>, %arg2: memref<256x1024xbf16, #tpu.memory_space<vmem>>, %arg3: memref<1x1024xf32, #tpu.memory_space<vmem>>, %arg4: memref<1024x256xbf16, #tpu.memory_space<vmem>>, %arg5: memref<1x256xf32, #tpu.memory_space<vmem>>, %arg6: memref<256x256xf32, #tpu.memory_space<vmem>>, %arg7: memref<1x256xf32, #tpu.memory_space<vmem>>, %arg8: memref<384x256xf32, #tpu.memory_space<vmem>>) attributes {dimension_semantics = [#tpu.dimension_semantics<parallel>], iteration_bounds = array<i64: 1>, scalar_prefetch = 0 : i64, scratch_operands = 0 : i64, tpu.core_type = #tpu.core_type<tc>, window_params = [{transform_indices = @transform_0, window_bounds = array<i64: 384, 256>}, {pipeline_mode = #tpu.pipeline_mode<synchronous>, transform_indices = @transform_1, window_bounds = array<i64: 256, 1024>}, {pipeline_mode = #tpu.pipeline_mode<synchronous>, transform_indices = @transform_2, window_bounds = array<i64: 1, 1024>}, {pipeline_mode = #tpu.pipeline_mode<synchronous>, transform_indices = @transform_3, window_bounds = array<i64: 1024, 256>}, {pipeline_mode = #tpu.pipeline_mode<synchronous>, transform_indices = @transform_4, window_bounds = array<i64: 1, 256>}, {pipeline_mode = #tpu.pipeline_mode<synchronous>, transform_indices = @transform_5, window_bounds = array<i64: 256, 256>}, {pipeline_mode = #tpu.pipeline_mode<synchronous>, transform_indices = @transform_6, window_bounds = array<i64: 1, 256>}, {transform_indices = @transform_7, window_bounds = array<i64: 384, 256>}]} {
    %c0 = arith.constant 0 : index
    %c0_0 = arith.constant 0 : index
    %0 = vector.load %arg1[%c0, %c0_0] : memref<384x256xf32, #tpu.memory_space<vmem>>, vector<384x256xf32>
    %1 = arith.truncf %0 : vector<384x256xf32> to vector<384x256xbf16>
    %c0_1 = arith.constant 0 : index
    %c0_2 = arith.constant 0 : index
    %2 = vector.load %arg2[%c0_1, %c0_2] : memref<256x1024xbf16, #tpu.memory_space<vmem>>, vector<256x1024xbf16>
    %cst = arith.constant dense<0.000000e+00> : vector<384x1024xf32>
    %3 = tpu.matmul %1, %2, %cst {dimension_numbers = #tpu.dot_dimension_numbers<[1], [0], [0], [1], [0, 0, 1, 1], [], []>} : vector<384x256xbf16>, vector<256x1024xbf16>, vector<384x1024xf32> -> vector<384x1024xf32>
    %c0_3 = arith.constant 0 : index
    %c0_4 = arith.constant 0 : index
    %4 = vector.load %arg3[%c0_3, %c0_4] : memref<1x1024xf32, #tpu.memory_space<vmem>>, vector<1x1024xf32>
    %5 = vector.broadcast %4 : vector<1x1024xf32> to vector<384x1024xf32>
    %6 = arith.addf %3, %5 : vector<384x1024xf32>
    %cst_5 = arith.constant 5.000000e-01 : f32
    %7 = vector.broadcast %cst_5 : f32 to vector<384x1024xf32>
    %8 = arith.mulf %7, %6 : vector<384x1024xf32>
    %cst_6 = arith.constant 0.707106769 : f32
    %9 = vector.broadcast %cst_6 : f32 to vector<384x1024xf32>
    %10 = arith.mulf %6, %9 : vector<384x1024xf32>
    %11 = math.erf %10 : vector<384x1024xf32>
    %cst_7 = arith.constant 1.000000e+00 : f32
    %12 = vector.broadcast %cst_7 : f32 to vector<384x1024xf32>
    %13 = arith.addf %12, %11 : vector<384x1024xf32>
    %14 = arith.mulf %8, %13 : vector<384x1024xf32>
    %15 = arith.truncf %14 : vector<384x1024xf32> to vector<384x1024xbf16>
    %c0_8 = arith.constant 0 : index
    %c0_9 = arith.constant 0 : index
    %16 = vector.load %arg4[%c0_8, %c0_9] : memref<1024x256xbf16, #tpu.memory_space<vmem>>, vector<1024x256xbf16>
    %cst_10 = arith.constant dense<0.000000e+00> : vector<384x256xf32>
    %17 = tpu.matmul %15, %16, %cst_10 {dimension_numbers = #tpu.dot_dimension_numbers<[1], [0], [0], [1], [0, 0, 1, 1], [], []>} : vector<384x1024xbf16>, vector<1024x256xbf16>, vector<384x256xf32> -> vector<384x256xf32>
    %c0_11 = arith.constant 0 : index
    %c0_12 = arith.constant 0 : index
    %18 = vector.load %arg5[%c0_11, %c0_12] : memref<1x256xf32, #tpu.memory_space<vmem>>, vector<1x256xf32>
    %19 = vector.broadcast %18 : vector<1x256xf32> to vector<384x256xf32>
    %20 = arith.addf %17, %19 : vector<384x256xf32>
    %21 = arith.addf %20, %0 : vector<384x256xf32>
    %cst_13 = arith.constant dense<0.000000e+00> : vector<384xf32>
    %22 = vector.multi_reduction <add>, %21, %cst_13 [1] : vector<384x256xf32> to vector<384xf32>
    %23 = vector.shape_cast %22 : vector<384xf32> to vector<384x1xf32>
    %cst_14 = arith.constant 2.560000e+02 : f32
    %24 = vector.broadcast %cst_14 : f32 to vector<384x1xf32>
    %25 = arith.divf %23, %24 : vector<384x1xf32>
    %26 = arith.mulf %21, %21 : vector<384x256xf32>
    %cst_15 = arith.constant dense<0.000000e+00> : vector<384xf32>
    %27 = vector.multi_reduction <add>, %26, %cst_15 [1] : vector<384x256xf32> to vector<384xf32>
    %28 = vector.shape_cast %27 : vector<384xf32> to vector<384x1xf32>
    %cst_16 = arith.constant 2.560000e+02 : f32
    %29 = vector.broadcast %cst_16 : f32 to vector<384x1xf32>
    %30 = arith.divf %28, %29 : vector<384x1xf32>
    %31 = arith.mulf %25, %25 : vector<384x1xf32>
    %32 = arith.subf %30, %31 : vector<384x1xf32>
    %cst_17 = arith.constant 0.000000e+00 : f32
    %33 = vector.broadcast %cst_17 : f32 to vector<384x1xf32>
    %34 = arith.maximumf %32, %33 : vector<384x1xf32>
    %35 = vector.broadcast %25 : vector<384x1xf32> to vector<384x256xf32>
    %36 = arith.subf %21, %35 : vector<384x256xf32>
    %cst_18 = arith.constant 9.99999996E-13 : f32
    %37 = vector.broadcast %cst_18 : f32 to vector<384x1xf32>
    %38 = arith.addf %34, %37 : vector<384x1xf32>
    %39 = math.rsqrt %38 : vector<384x1xf32>
    %40 = vector.broadcast %39 : vector<384x1xf32> to vector<384x256xf32>
    %41 = arith.mulf %36, %40 : vector<384x256xf32>
    %c0_19 = arith.constant 0 : index
    %c0_20 = arith.constant 0 : index
    %42 = vector.load %arg6[%c0_19, %c0_20] : memref<256x256xf32, #tpu.memory_space<vmem>>, vector<256x256xf32>
    %cst_21 = arith.constant dense<0.000000e+00> : vector<384x256xf32>
    %43 = tpu.matmul %41, %42, %cst_21 {dimension_numbers = #tpu.dot_dimension_numbers<[1], [0], [0], [1], [0, 0, 1, 1], [], []>} : vector<384x256xf32>, vector<256x256xf32>, vector<384x256xf32> -> vector<384x256xf32>
    %c0_22 = arith.constant 0 : index
    %c0_23 = arith.constant 0 : index
    %44 = vector.load %arg7[%c0_22, %c0_23] : memref<1x256xf32, #tpu.memory_space<vmem>>, vector<1x256xf32>
    %45 = vector.broadcast %44 : vector<1x256xf32> to vector<384x256xf32>
    %46 = arith.addf %43, %45 : vector<384x256xf32>
    %c0_24 = arith.constant 0 : index
    %c0_25 = arith.constant 0 : index
    %47 = vector.load %arg8[%c0_24, %c0_25] : memref<384x256xf32, #tpu.memory_space<vmem>>, vector<384x256xf32>
    tpu.vector_store %arg8[%c0_24, %c0_25], %46 {strides = array<i32>} : memref<384x256xf32, #tpu.memory_space<vmem>>, vector<384x256xf32>,
    return
  }
  func.func @transform_0(%arg0: i32) -> (i32, i32) {
    %c0_i32 = arith.constant 0 : i32
    %c0_i32_0 = arith.constant 0 : i32
    return %arg0, %c0_i32 : i32, i32
  }
  func.func @transform_1(%arg0: i32) -> (i32, i32) {
    %c0_i32 = arith.constant 0 : i32
    %c0_i32_0 = arith.constant 0 : i32
    %c0_i32_1 = arith.constant 0 : i32
    return %c0_i32, %c0_i32_0 : i32, i32
  }
  func.func @transform_2(%arg0: i32) -> (i32, i32) {
    %c0_i32 = arith.constant 0 : i32
    %c0_i32_0 = arith.constant 0 : i32
    %c0_i32_1 = arith.constant 0 : i32
    return %c0_i32, %c0_i32_0 : i32, i32
  }
  func.func @transform_3(%arg0: i32) -> (i32, i32) {
    %c0_i32 = arith.constant 0 : i32
    %c0_i32_0 = arith.constant 0 : i32
    %c0_i32_1 = arith.constant 0 : i32
    return %c0_i32, %c0_i32_0 : i32, i32
  }
  func.func @transform_4(%arg0: i32) -> (i32, i32) {
    %c0_i32 = arith.constant 0 : i32
    %c0_i32_0 = arith.constant 0 : i32
    %c0_i32_1 = arith.constant 0 : i32
    return %c0_i32, %c0_i32_0 : i32, i32
  }
  func.func @transform_5(%arg0: i32) -> (i32, i32) {
    %c0_i32 = arith.constant 0 : i32
    %c0_i32_0 = arith.constant 0 : i32
    %c0_i32_1 = arith.constant 0 : i32
    return %c0_i32, %c0_i32_0 : i32, i32
  }
  func.func @transform_6(%arg0: i32) -> (i32, i32) {
    %c0_i32 = arith.constant 0 : i32
    %c0_i32_0 = arith.constant 0 : i32
    %c0_i32_1 = arith.constant 0 : i32
    return %c0_i32, %c0_i32_0 : i32, i32
  }
  func.func @transform_7(%arg0: i32) -> (i32, i32) {
    %c0_i32 = arith.constant 0 : i32
    %c0_i32_0 = arith.constant 0 : i32
    return %arg0, %c0_i32 : i32, i32
  }
}

</mosaic_0001>

<llo_original>
// kernel: tpu_custom_call.1
$region0: #{tpu_custom_call.1}
  #allocation0 [shape = 'u32[]', space=smem, size = 0x4, offset = 0x4, fixed_abs, tag = 'smem constant byte address 0x4 - core index']
  #allocation1 [shape = 'u32[144,128]{1,0:T(1,128)}', space=vmem, size = 0x12000, scoped, tag = 'internal scratch']
  %s0 = inlined_call_operand.hbm [shape: f32[384,256], index: 0, kind: input, shape index: {}]
  %s1 = inlined_call_operand.hbm [shape: bf16[256,1024], index: 1, kind: input, shape index: {}]
  %s2 = inlined_call_operand.hbm [shape: f32[1,1024], index: 2, kind: input, shape index: {}]
  %s3 = inlined_call_operand.hbm [shape: bf16[1024,256], index: 3, kind: input, shape index: {}]
  %s4 = inlined_call_operand.vmem [shape: f32[1,256], index: 4, kind: input, shape index: {}]
  %s5 = inlined_call_operand.hbm [shape: f32[256,256], index: 5, kind: input, shape index: {}]
  %s6 = inlined_call_operand.vmem [shape: f32[1,256], index: 6, kind: input, shape index: {}]
  %s7 = inlined_call_operand.hbm [shape: f32[384,256], index: 7, kind: output, shape index: {}]
  %s8 = sld [smem:[#allocation0]]
  $region58: #{tpu_custom_call.1} parent=0
    _
  %s10 = ssub.s32 1, %s8
  %s11 = scalar_select 0, %s10, %s8
  $region1: #{tpu_custom_call.1} parent=0
    #allocation2 [shape = 'u8[393216]{0}', space=vmem, size = 0x60000, scoped, tag = 'input window, operand 0, single buffered']
    #allocation3 [shape = 's32[1]{0}', space=sflag, size = 0x4, scoped, tag = 'scoped memory for tpu_custom_call.1']
    #allocation4 [shape = 's32[1]{0}', space=sflag, size = 0x4, scoped, tag = 'scoped memory for tpu_custom_call.1']
    #allocation5 [shape = 'u8[524288]{0}', space=vmem, size = 0x80000, scoped, tag = 'input window, operand 1, single buffered']
    #allocation6 [shape = 's32[1]{0}', space=sflag, size = 0x4, scoped, tag = 'scoped memory for tpu_custom_call.1']
    #allocation7 [shape = 'u8[4096]{0}', space=vmem, size = 0x1000, scoped, tag = 'input window, operand 2, single buffered']
    #allocation8 [shape = 'u8[524288]{0}', space=vmem, size = 0x80000, scoped, tag = 'input window, operand 3, single buffered']
    #allocation9 [shape = 's32[1]{0}', space=sflag, size = 0x4, scoped, tag = 'scoped memory for tpu_custom_call.1']
    #allocation10 [shape = 'u8[262144]{0}', space=vmem, size = 0x40000, scoped, tag = 'input window, operand 5, single buffered']
    #allocation11 [shape = 'u8[393216]{0}', space=vmem, size = 0x60000, scoped, tag = 'output window, operand 0, single buffered']
    %12 = vsyncpa [#allocation3], 0
    %13 = vsyncpa [#allocation6], 0
    %14 = vsyncpa [#allocation9], 0
    %15 = vsyncpa [#allocation4], 0
    // Predicated region
    $region2: #{tpu_custom_call.1} parent=1 // pred_check
      _
    $region3: #{tpu_custom_call.1} parent=1 // pred_check_branch
      %17 = sbr.rel (0) target = $region5
    $region4: #{tpu_custom_call.1} parent=1 // pred_region
      %s19 = ssub.s32 12288, 12288
      %20 = vsyncadd [#allocation3], %s19
      %s21 = sshll.u32 [#allocation2], 4
      %s22 = int_to_ptr.vmem [resolvable:$true] %s21
      %27 = dma.hbm_to_vmem [thread:$0]  %s0, 12288, %s22, [#allocation3], 256, 256, 16
    $region5: #{tpu_custom_call.1} parent=1 // pred_fallthru
      _
    // Predicated region
    $region6: #{tpu_custom_call.1} parent=1 // pred_check
      _
    $region7: #{tpu_custom_call.1} parent=1 // pred_check_branch
      %29 = sbr.rel (0) target = $region9
    $region8: #{tpu_custom_call.1} parent=1 // pred_region
      %s31 = ssub.s32 16384, 16384
      %32 = vsyncadd [#allocation6], %s31
      %s33 = sshll.u32 [#allocation5], 4
      %s34 = int_to_ptr.vmem [resolvable:$true] %s33
      %39 = dma.hbm_to_vmem [thread:$0]  %s1, 16384, %s34, [#allocation6], 512, 512, 32
    $region9: #{tpu_custom_call.1} parent=1 // pred_fallthru
      _
    // Predicated region
    $region10: #{tpu_custom_call.1} parent=1 // pred_check
      _
    $region11: #{tpu_custom_call.1} parent=1 // pred_check_branch
      %41 = sbr.rel (0) target = $region13
    $region12: #{tpu_custom_call.1} parent=1 // pred_region
      %s43 = ssub.s32 128, 128
      %44 = vsyncadd [#allocation6], %s43
      %s46 = sshll.u32 [#allocation7], 4
      %s47 = int_to_ptr.vmem [resolvable:$true] %s46
      %49 = dma.hbm_to_vmem [thread:$0]  %s2, 128, %s47, [#allocation6]
    $region13: #{tpu_custom_call.1} parent=1 // pred_fallthru
      _
    // Predicated region
    $region14: #{tpu_custom_call.1} parent=1 // pred_check
      _
    $region15: #{tpu_custom_call.1} parent=1 // pred_check_branch
      %51 = sbr.rel (0) target = $region17
    $region16: #{tpu_custom_call.1} parent=1 // pred_region
      %s53 = ssub.s32 16384, 16384
      %54 = vsyncadd [#allocation9], %s53
      %s55 = sshll.u32 [#allocation8], 4
      %s56 = int_to_ptr.vmem [resolvable:$true] %s55
      %61 = dma.hbm_to_vmem [thread:$0]  %s3, 16384, %s56, [#allocation9], 128, 128, 8
    $region17: #{tpu_custom_call.1} parent=1 // pred_fallthru
      _
    // Predicated region
    $region18: #{tpu_custom_call.1} parent=1 // pred_check
      _
    $region19: #{tpu_custom_call.1} parent=1 // pred_check_branch
      %63 = sbr.rel (0) target = $region21
    $region20: #{tpu_custom_call.1} parent=1 // pred_region
      _
    $region21: #{tpu_custom_call.1} parent=1 // pred_fallthru
      _
    // Predicated region
    $region22: #{tpu_custom_call.1} parent=1 // pred_check
      _
    $region23: #{tpu_custom_call.1} parent=1 // pred_check_branch
      %65 = sbr.rel (0) target = $region25
    $region24: #{tpu_custom_call.1} parent=1 // pred_region
      %s67 = ssub.s32 8192, 8192
      %68 = vsyncadd [#allocation9], %s67
      %s69 = sshll.u32 [#allocation10], 4
      %s70 = int_to_ptr.vmem [resolvable:$true] %s69
      %75 = dma.hbm_to_vmem [thread:$0]  %s5, 8192, %s70, [#allocation9], 256, 256, 16
    $region25: #{tpu_custom_call.1} parent=1 // pred_fallthru
      _
    // Predicated region
    $region26: #{tpu_custom_call.1} parent=1 // pred_check
      _
    $region27: #{tpu_custom_call.1} parent=1 // pred_check_branch
      %77 = sbr.rel (0) target = $region29
    $region28: #{tpu_custom_call.1} parent=1 // pred_region
      _
    $region29: #{tpu_custom_call.1} parent=1 // pred_fallthru
      _
    // Predicated region
    $region30: #{tpu_custom_call.1} parent=1 // pred_check
      _
    $region31: #{tpu_custom_call.1} parent=1 // pred_check_branch
      %79 = sbr.rel (0) target = $region33
    $region32: #{tpu_custom_call.1} parent=1 // pred_region
      %80 = dma.done [#allocation3], 12288
    $region33: #{tpu_custom_call.1} parent=1 // pred_fallthru
      _
    // Predicated region
    $region34: #{tpu_custom_call.1} parent=1 // pred_check
      _
    $region35: #{tpu_custom_call.1} parent=1 // pred_check_branch
      %82 = sbr.rel (0) target = $region37
    $region36: #{tpu_custom_call.1} parent=1 // pred_region
      %83 = dma.done [#allocation6], 16384
    $region37: #{tpu_custom_call.1} parent=1 // pred_fallthru
      _
    // Predicated region
    $region38: #{tpu_custom_call.1} parent=1 // pred_check
      _
    $region39: #{tpu_custom_call.1} parent=1 // pred_check_branch
      %85 = sbr.rel (0) target = $region41
    $region40: #{tpu_custom_call.1} parent=1 // pred_region
      %86 = dma.done [#allocation6], 128
    $region41: #{tpu_custom_call.1} parent=1 // pred_fallthru
      _
    // Predicated region
    $region42: #{tpu_custom_call.1} parent=1 // pred_check
      _
    $region43: #{tpu_custom_call.1} parent=1 // pred_check_branch
      %88 = sbr.rel (0) target = $region45
    $region44: #{tpu_custom_call.1} parent=1 // pred_region
      %89 = dma.done [#allocation9], 16384
    $region45: #{tpu_custom_call.1} parent=1 // pred_fallthru
      _
    // Predicated region
    $region46: #{tpu_custom_call.1} parent=1 // pred_check
      _
    $region47: #{tpu_custom_call.1} parent=1 // pred_check_branch
      %91 = sbr.rel (0) target = $region49
    $region48: #{tpu_custom_call.1} parent=1 // pred_region
      %92 = dma.done [#allocation9], 8192
    $region49: #{tpu_custom_call.1} parent=1 // pred_fallthru
      _
    %v93 = vld [vmem:[#allocation2] sm:$0xff]
    %v94 = vld [vmem:[#allocation2 + $0x8] sm:$0xff]
    %v95 = vld [vmem:[#allocation2 + $0x10] sm:$0xff]
    %v96 = vld [vmem:[#allocation2 + $0x18] sm:$0xff]
    %v97 = vld [vmem:[#allocation2 + $0x20] sm:$0xff]
    %v98 = vld [vmem:[#allocation2 + $0x28] sm:$0xff]
    %v99 = vld [vmem:[#allocation2 + $0x30] sm:$0xff]
    %v100 = vld [vmem:[#allocation2 + $0x38] sm:$0xff]
    %v101 = vld [vmem:[#allocation2 + $0x40] sm:$0xff]
    %v102 = vld [vmem:[#allocation2 + $0x48] sm:$0xff]
    %v103 = vld [vmem:[#allocation2 + $0x50] sm:$0xff]
    %v104 = vld [vmem:[#allocation2 + $0x58] sm:$0xff]
    %v105 = vld [vmem:[#allocation2 + $0x60] sm:$0xff]
    %v106 = vld [vmem:[#allocation2 + $0x68] sm:$0xff]
    %v107 = vld [vmem:[#allocation2 + $0x70] sm:$0xff]
    %v108 = vld [vmem:[#allocation2 + $0x78] sm:$0xff]
    %v109 = vld [vmem:[#allocation2 + $0x80] sm:$0xff]
    %v110 = vld [vmem:[#allocation2 + $0x88] sm:$0xff]
    %v111 = vld [vmem:[#allocation2 + $0x90] sm:$0xff]
    %v112 = vld [vmem:[#allocation2 + $0x98] sm:$0xff]
    %v113 = vld [vmem:[#allocation2 + $0xa0] sm:$0xff]
    %v114 = vld [vmem:[#allocation2 + $0xa8] sm:$0xff]
    %v115 = vld [vmem:[#allocation2 + $0xb0] sm:$0xff]
    %v116 = vld [vmem:[#allocation2 + $0xb8] sm:$0xff]
    %v117 = vld [vmem:[#allocation2 + $0xc0] sm:$0xff]
    %v118 = vld [vmem:[#allocation2 + $0xc8] sm:$0xff]
    %v119 = vld [vmem:[#allocation2 + $0xd0] sm:$0xff]
    %v120 = vld [vmem:[#allocation2 + $0xd8] sm:$0xff]
    %v121 = vld [vmem:[#allocation2 + $0xe0] sm:$0xff]
    %v122 = vld [vmem:[#allocation2 + $0xe8] sm:$0xff]
    %v123 = vld [vmem:[#allocation2 + $0xf0] sm:$0xff]
    %v124 = vld [vmem:[#allocation2 + $0xf8] sm:$0xff]
    %v125 = vld [vmem:[#allocation2 + $0x100] sm:$0xff]
    %v126 = vld [vmem:[#allocation2 + $0x108] sm:$0xff]
    %v127 = vld [vmem:[#allocation2 + $0x110] sm:$0xff]
    %v128 = vld [vmem:[#allocation2 + $0x118] sm:$0xff]
    %v129 = vld [vmem:[#allocation2 + $0x120] sm:$0xff]
    %v130 = vld [vmem:[#allocation2 + $0x128] sm:$0xff]
    %v131 = vld [vmem:[#allocation2 + $0x130] sm:$0xff]
    %v132 = vld [vmem:[#allocation2 + $0x138] sm:$0xff]
    %v133 = vld [vmem:[#allocation2 + $0x140] sm:$0xff]
    %v134 = vld [vmem:[#allocation2 + $0x148] sm:$0xff]
    %v135 = vld [vmem:[#allocation2 + $0x150] sm:$0xff]
    %v136 = vld [vmem:[#allocation2 + $0x158] sm:$0xff]
    %v137 = vld [vmem:[#allocation2 + $0x160] sm:$0xff]
    %v138 = vld [vmem:[#allocation2 + $0x168] sm:$0xff]
    %v139 = vld [vmem:[#allocation2 + $0x170] sm:$0xff]
    %v140 = vld [vmem:[#allocation2 + $0x178] sm:$0xff]
    %v141 = vld [vmem:[#allocation2 + $0x180] sm:$0xff]
    %v142 = vld [vmem:[#allocation2 + $0x188] sm:$0xff]
    %v143 = vld [vmem:[#allocation2 + $0x190] sm:$0xff]
    %v144 = vld [vmem:[#allocation2 + $0x198] sm:$0xff]
    %v145 = vld [vmem:[#allocation2 + $0x1a0] sm:$0xff]
    %v146 = vld [vmem:[#allocation2 + $0x1a8] sm:$0xff]
    %v147 = vld [vmem:[#allocation2 + $0x1b0] sm:$0xff]
    %v148 = vld [vmem:[#allocation2 + $0x1b8] sm:$0xff]
    %v149 = vld [vmem:[#allocation2 + $0x1c0] sm:$0xff]
    %v150 = vld [vmem:[#allocation2 + $0x1c8] sm:$0xff]
    %v151 = vld [vmem:[#allocation2 + $0x1d0] sm:$0xff]
    %v152 = vld [vmem:[#allocation2 + $0x1d8] sm:$0xff]
    %v153 = vld [vmem:[#allocation2 + $0x1e0] sm:$0xff]
    %v154 = vld [vmem:[#allocation2 + $0x1e8] sm:$0xff]
    %v155 = vld [vmem:[#allocation2 + $0x1f0] sm:$0xff]
    %v156 = vld [vmem:[#allocation2 + $0x1f8] sm:$0xff]
    %v157 = vld [vmem:[#allocation2 + $0x200] sm:$0xff]
    %v158 = vld [vmem:[#allocation2 + $0x208] sm:$0xff]
    %v159 = vld [vmem:[#allocation2 + $0x210] sm:$0xff]
    %v160 = vld [vmem:[#allocation2 + $0x218] sm:$0xff]
    %v161 = vld [vmem:[#allocation2 + $0x220] sm:$0xff]
    %v162 = vld [vmem:[#allocation2 + $0x228] sm:$0xff]
    %v163 = vld [vmem:[#allocation2 + $0x230] sm:$0xff]
    %v164 = vld [vmem:[#allocation2 + $0x238] sm:$0xff]
    %v165 = vld [vmem:[#allocation2 + $0x240] sm:$0xff]
    %v166 = vld [vmem:[#allocation2 + $0x248] sm:$0xff]
    %v167 = vld [vmem:[#allocation2 + $0x250] sm:$0xff]
    %v168 = vld [vmem:[#allocation2 + $0x258] sm:$0xff]
    %v169 = vld [vmem:[#allocation2 + $0x260] sm:$0xff]
    %v170 = vld [vmem:[#allocation2 + $0x268] sm:$0xff]
    %v171 = vld [vmem:[#allocation2 + $0x270] sm:$0xff]
    %v172 = vld [vmem:[#allocation2 + $0x278] sm:$0xff]
    %v173 = vld [vmem:[#allocation2 + $0x280] sm:$0xff]
    %v174 = vld [vmem:[#allocation2 + $0x288] sm:$0xff]
    %v175 = vld [vmem:[#allocation2 + $0x290] sm:$0xff]
    %v176 = vld [vmem:[#allocation2 + $0x298] sm:$0xff]
    %v177 = vld [vmem:[#allocation2 + $0x2a0] sm:$0xff]
    %v178 = vld [vmem:[#allocation2 + $0x2a8] sm:$0xff]
    %v179 = vld [vmem:[#allocation2 + $0x2b0] sm:$0xff]
    %v180 = vld [vmem:[#allocation2 + $0x2b8] sm:$0xff]
    %v181 = vld [vmem:[#allocation2 + $0x2c0] sm:$0xff]
    %v182 = vld [vmem:[#allocation2 + $0x2c8] sm:$0xff]
    %v183 = vld [vmem:[#allocation2 + $0x2d0] sm:$0xff]
    %v184 = vld [vmem:[#allocation2 + $0x2d8] sm:$0xff]
    %v185 = vld [vmem:[#allocation2 + $0x2e0] sm:$0xff]
    %v186 = vld [vmem:[#allocation2 + $0x2e8] sm:$0xff]
    %v187 = vld [vmem:[#allocation2 + $0x2f0] sm:$0xff]
    %v188 = vld [vmem:[#allocation2 + $0x2f8] sm:$0xff]
    %v189 = vpack.c.bf16 %v95, %v93
    %v190 = vpack.c.bf16 %v96, %v94
    %v191 = vpack.c.bf16 %v99, %v97
    %v192 = vpack.c.bf16 %v100, %v98
    %v193 = vpack.c.bf16 %v103, %v101
    %v194 = vpack.c.bf16 %v104, %v102
    %v195 = vpack.c.bf16 %v107, %v105
    %v196 = vpack.c.bf16 %v108, %v106
    %v197 = vpack.c.bf16 %v111, %v109
    %v198 = vpack.c.bf16 %v112, %v110
    %v199 = vpack.c.bf16 %v115, %v113
    %v200 = vpack.c.bf16 %v116, %v114
    %v201 = vpack.c.bf16 %v119, %v117
    %v202 = vpack.c.bf16 %v120, %v118
    %v203 = vpack.c.bf16 %v123, %v121
    %v204 = vpack.c.bf16 %v124, %v122
    %v205 = vpack.c.bf16 %v127, %v125
    %v206 = vpack.c.bf16 %v128, %v126
    %v207 = vpack.c.bf16 %v131, %v129
    %v208 = vpack.c.bf16 %v132, %v130
    %v209 = vpack.c.bf16 %v135, %v133
    %v210 = vpack.c.bf16 %v136, %v134
    %v211 = vpack.c.bf16 %v139, %v137
    %v212 = vpack.c.bf16 %v140, %v138
    %v213 = vpack.c.bf16 %v143, %v141
    %v214 = vpack.c.bf16 %v144, %v142
    %v215 = vpack.c.bf16 %v147, %v145
    %v216 = vpack.c.bf16 %v148, %v146
    %v217 = vpack.c.bf16 %v151, %v149
    %v218 = vpack.c.bf16 %v152, %v150
    %v219 = vpack.c.bf16 %v155, %v153
    %v220 = vpack.c.bf16 %v156, %v154
    %v221 = vpack.c.bf16 %v159, %v157
    %v222 = vpack.c.bf16 %v160, %v158
    %v223 = vpack.c.bf16 %v163, %v161
    %v224 = vpack.c.bf16 %v164, %v162
    %v225 = vpack.c.bf16 %v167, %v165
    %v226 = vpack.c.bf16 %v168, %v166
    %v227 = vpack.c.bf16 %v171, %v169
    %v228 = vpack.c.bf16 %v172, %v170
    %v229 = vpack.c.bf16 %v175, %v173
    %v230 = vpack.c.bf16 %v176, %v174
    %v231 = vpack.c.bf16 %v179, %v177
    %v232 = vpack.c.bf16 %v180, %v178
    %v233 = vpack.c.bf16 %v183, %v181
    %v234 = vpack.c.bf16 %v184, %v182
    %v235 = vpack.c.bf16 %v187, %v185
    %v236 = vpack.c.bf16 %v188, %v186
    %v237 = vld [vmem:[#allocation5] sm:$0xff]
    %v238 = vld [vmem:[#allocation5 + $0x8] sm:$0xff]
    %v239 = vld [vmem:[#allocation5 + $0x10] sm:$0xff]
    %v240 = vld [vmem:[#allocation5 + $0x18] sm:$0xff]
    %v241 = vld [vmem:[#allocation5 + $0x20] sm:$0xff]
    %v242 = vld [vmem:[#allocation5 + $0x28] sm:$0xff]
    %v243 = vld [vmem:[#allocation5 + $0x30] sm:$0xff]
    %v244 = vld [vmem:[#allocation5 + $0x38] sm:$0xff]
    %v245 = vld [vmem:[#allocation5 + $0x40] sm:$0xff]
    %v246 = vld [vmem:[#allocation5 + $0x48] sm:$0xff]
    %v247 = vld [vmem:[#allocation5 + $0x50] sm:$0xff]
    %v248 = vld [vmem:[#allocation5 + $0x58] sm:$0xff]
    %v249 = vld [vmem:[#allocation5 + $0x60] sm:$0xff]
    %v250 = vld [vmem:[#allocation5 + $0x68] sm:$0xff]
    %v251 = vld [vmem:[#allocation5 + $0x70] sm:$0xff]
    %v252 = vld [vmem:[#allocation5 + $0x78] sm:$0xff]
    %v253 = vld [vmem:[#allocation5 + $0x80] sm:$0xff]
    %v254 = vld [vmem:[#allocation5 + $0x88] sm:$0xff]
    %v255 = vld [vmem:[#allocation5 + $0x90] sm:$0xff]
    %v256 = vld [vmem:[#allocation5 + $0x98] sm:$0xff]
    %v257 = vld [vmem:[#allocation5 + $0xa0] sm:$0xff]
    %v258 = vld [vmem:[#allocation5 + $0xa8] sm:$0xff]
    %v259 = vld [vmem:[#allocation5 + $0xb0] sm:$0xff]
    %v260 = vld [vmem:[#allocation5 + $0xb8] sm:$0xff]
    %v261 = vld [vmem:[#allocation5 + $0xc0] sm:$0xff]
    %v262 = vld [vmem:[#allocation5 + $0xc8] sm:$0xff]
    %v263 = vld [vmem:[#allocation5 + $0xd0] sm:$0xff]
    %v264 = vld [vmem:[#allocation5 + $0xd8] sm:$0xff]
    %v265 = vld [vmem:[#allocation5 + $0xe0] sm:$0xff]
    %v266 = vld [vmem:[#allocation5 + $0xe8] sm:$0xff]
    %v267 = vld [vmem:[#allocation5 + $0xf0] sm:$0xff]
    %v268 = vld [vmem:[#allocation5 + $0xf8] sm:$0xff]
    %v269 = vld [vmem:[#allocation5 + $0x100] sm:$0xff]
    %v270 = vld [vmem:[#allocation5 + $0x108] sm:$0xff]
    %v271 = vld [vmem:[#allocation5 + $0x110] sm:$0xff]
    %v272 = vld [vmem:[#allocation5 + $0x118] sm:$0xff]
    %v273 = vld [vmem:[#allocation5 + $0x120] sm:$0xff]
    %v274 = vld [vmem:[#allocation5 + $0x128] sm:$0xff]
    %v275 = vld [vmem:[#allocation5 + $0x130] sm:$0xff]
    %v276 = vld [vmem:[#allocation5 + $0x138] sm:$0xff]
    %v277 = vld [vmem:[#allocation5 + $0x140] sm:$0xff]
    %v278 = vld [vmem:[#allocation5 + $0x148] sm:$0xff]
    %v279 = vld [vmem:[#allocation5 + $0x150] sm:$0xff]
    %v280 = vld [vmem:[#allocation5 + $0x158] sm:$0xff]
    %v281 = vld [vmem:[#allocation5 + $0x160] sm:$0xff]
    %v282 = vld [vmem:[#allocation5 + $0x168] sm:$0xff]
    %v283 = vld [vmem:[#allocation5 + $0x170] sm:$0xff]
    %v284 = vld [vmem:[#allocation5 + $0x178] sm:$0xff]
    %v285 = vld [vmem:[#allocation5 + $0x180] sm:$0xff]
    %v286 = vld [vmem:[#allocation5 + $0x188] sm:$0xff]
    %v287 = vld [vmem:[#allocation5 + $0x190] sm:$0xff]
    %v288 = vld [vmem:[#allocation5 + $0x198] sm:$0xff]
    %v289 = vld [vmem:[#allocation5 + $0x1a0] sm:$0xff]
    %v290 = vld [vmem:[#allocation5 + $0x1a8] sm:$0xff]
    %v291 = vld [vmem:[#allocation5 + $0x1b0] sm:$0xff]
    %v292 = vld [vmem:[#allocation5 + $0x1b8] sm:$0xff]
    %v293 = vld [vmem:[#allocation5 + $0x1c0] sm:$0xff]
    %v294 = vld [vmem:[#allocation5 + $0x1c8] sm:$0xff]
    %v295 = vld [vmem:[#allocation5 + $0x1d0] sm:$0xff]
    %v296 = vld [vmem:[#allocation5 + $0x1d8] sm:$0xff]
    %v297 = vld [vmem:[#allocation5 + $0x1e0] sm:$0xff]
    %v298 = vld [vmem:[#allocation5 + $0x1e8] sm:$0xff]
    %v299 = vld [vmem:[#allocation5 + $0x1f0] sm:$0xff]
    %v300 = vld [vmem:[#allocation5 + $0x1f8] sm:$0xff]
    %v301 = vld [vmem:[#allocation5 + $0x200] sm:$0xff]
    %v302 = vld [vmem:[#allocation5 + $0x208] sm:$0xff]
    %v303 = vld [vmem:[#allocation5 + $0x210] sm:$0xff]
    %v304 = vld [vmem:[#allocation5 + $0x218] sm:$0xff]
    %v305 = vld [vmem:[#allocation5 + $0x220] sm:$0xff]
    %v306 = vld [vmem:[#allocation5 + $0x228] sm:$0xff]
    %v307 = vld [vmem:[#allocation5 + $0x230] sm:$0xff]
    %v308 = vld [vmem:[#allocation5 + $0x238] sm:$0xff]
    %v309 = vld [vmem:[#allocation5 + $0x240] sm:$0xff]
    %v310 = vld [vmem:[#allocation5 + $0x248] sm:$0xff]
    %v311 = vld [vmem:[#allocation5 + $0x250] sm:$0xff]
    %v312 = vld [vmem:[#allocation5 + $0x258] sm:$0xff]
    %v313 = vld [vmem:[#allocation5 + $0x260] sm:$0xff]
    %v314 = vld [vmem:[#allocation5 + $0x268] sm:$0xff]
    %v315 = vld [vmem:[#allocation5 + $0x270] sm:$0xff]
    %v316 = vld [vmem:[#allocation5 + $0x278] sm:$0xff]
    %v317 = vld [vmem:[#allocation5 + $0x280] sm:$0xff]
    %v318 = vld [vmem:[#allocation5 + $0x288] sm:$0xff]
    %v319 = vld [vmem:[#allocation5 + $0x290] sm:$0xff]
    %v320 = vld [vmem:[#allocation5 + $0x298] sm:$0xff]
    %v321 = vld [vmem:[#allocation5 + $0x2a0] sm:$0xff]
    %v322 = vld [vmem:[#allocation5 + $0x2a8] sm:$0xff]
    %v323 = vld [vmem:[#allocation5 + $0x2b0] sm:$0xff]
    %v324 = vld [vmem:[#allocation5 + $0x2b8] sm:$0xff]
    %v325 = vld [vmem:[#allocation5 + $0x2c0] sm:$0xff]
    %v326 = vld [vmem:[#allocation5 + $0x2c8] sm:$0xff]
    %v327 = vld [vmem:[#allocation5 + $0x2d0] sm:$0xff]
    %v328 = vld [vmem:[#allocation5 + $0x2d8] sm:$0xff]
    %v329 = vld [vmem:[#allocation5 + $0x2e0] sm:$0xff]
    %v330 = vld [vmem:[#allocation5 + $0x2e8] sm:$0xff]
    %v331 = vld [vmem:[#allocation5 + $0x2f0] sm:$0xff]
    %v332 = vld [vmem:[#allocation5 + $0x2f8] sm:$0xff]
    %v333 = vld [vmem:[#allocation5 + $0x300] sm:$0xff]
    %v334 = vld [vmem:[#allocation5 + $0x308] sm:$0xff]
    %v335 = vld [vmem:[#allocation5 + $0x310] sm:$0xff]
    %v336 = vld [vmem:[#allocation5 + $0x318] sm:$0xff]
    %v337 = vld [vmem:[#allocation5 + $0x320] sm:$0xff]
    %v338 = vld [vmem:[#allocation5 + $0x328] sm:$0xff]
    %v339 = vld [vmem:[#allocation5 + $0x330] sm:$0xff]
    %v340 = vld [vmem:[#allocation5 + $0x338] sm:$0xff]
    %v341 = vld [vmem:[#allocation5 + $0x340] sm:$0xff]
    %v342 = vld [vmem:[#allocation5 + $0x348] sm:$0xff]
    %v343 = vld [vmem:[#allocation5 + $0x350] sm:$0xff]
    %v344 = vld [vmem:[#allocation5 + $0x358] sm:$0xff]
    %v345 = vld [vmem:[#allocation5 + $0x360] sm:$0xff]
    %v346 = vld [vmem:[#allocation5 + $0x368] sm:$0xff]
    %v347 = vld [vmem:[#allocation5 + $0x370] sm:$0xff]
    %v348 = vld [vmem:[#allocation5 + $0x378] sm:$0xff]
    %v349 = vld [vmem:[#allocation5 + $0x380] sm:$0xff]
    %v350 = vld [vmem:[#allocation5 + $0x388] sm:$0xff]
    %v351 = vld [vmem:[#allocation5 + $0x390] sm:$0xff]
    %v352 = vld [vmem:[#allocation5 + $0x398] sm:$0xff]
    %v353 = vld [vmem:[#allocation5 + $0x3a0] sm:$0xff]
    %v354 = vld [vmem:[#allocation5 + $0x3a8] sm:$0xff]
    %v355 = vld [vmem:[#allocation5 + $0x3b0] sm:$0xff]
    %v356 = vld [vmem:[#allocation5 + $0x3b8] sm:$0xff]
    %v357 = vld [vmem:[#allocation5 + $0x3c0] sm:$0xff]
    %v358 = vld [vmem:[#allocation5 + $0x3c8] sm:$0xff]
    %v359 = vld [vmem:[#allocation5 + $0x3d0] sm:$0xff]
    %v360 = vld [vmem:[#allocation5 + $0x3d8] sm:$0xff]
    %v361 = vld [vmem:[#allocation5 + $0x3e0] sm:$0xff]
    %v362 = vld [vmem:[#allocation5 + $0x3e8] sm:$0xff]
    %v363 = vld [vmem:[#allocation5 + $0x3f0] sm:$0xff]
    %v364 = vld [vmem:[#allocation5 + $0x3f8] sm:$0xff]
    %v365 = vld [vmem:[#allocation7] sm:$0xff]
    %v367 = vlaneseq
    %v368 = vshrl.u32 %v367, 7
    %v369 = vsub.s32 0, %v368
    %v370 = vrot.slane %v365, %v369
    %v371 = vlaneseq
    %v372 = vshrl.u32 %v371, 7
    %v373 = vsub.s32 1, %v372
    %v374 = vrot.slane %v365, %v373
    %v375 = vlaneseq
    %v376 = vshrl.u32 %v375, 7
    %v377 = vsub.s32 2, %v376
    %v378 = vrot.slane %v365, %v377
    %v379 = vlaneseq
    %v380 = vshrl.u32 %v379, 7
    %v381 = vsub.s32 3, %v380
    %v382 = vrot.slane %v365, %v381
    %v383 = vlaneseq
    %v384 = vshrl.u32 %v383, 7
    %v385 = vsub.s32 4, %v384
    %v386 = vrot.slane %v365, %v385
    %v387 = vlaneseq
    %v388 = vshrl.u32 %v387, 7
    %v389 = vsub.s32 5, %v388
    %v390 = vrot.slane %v365, %v389
    %v391 = vlaneseq
    %v392 = vshrl.u32 %v391, 7
    %v393 = vsub.s32 6, %v392
    %v394 = vrot.slane %v365, %v393
    %v395 = vlaneseq
    %v396 = vshrl.u32 %v395, 7
    %v397 = vsub.s32 7, %v396
    %v398 = vrot.slane %v365, %v397
    %v535 = vunpack.c.l.b16 %v237
    %v536 = vunpack.c.h.b16 %v237
    %v537 = vunpack.c.l.b16 %v238
    %v538 = vunpack.c.h.b16 %v238
    %v539 = vunpack.c.l.b16 %v239
    %v540 = vunpack.c.h.b16 %v239
    %v541 = vunpack.c.l.b16 %v240
    %v542 = vunpack.c.h.b16 %v240
    %v543 = vunpack.c.l.b16 %v241
    %v544 = vunpack.c.h.b16 %v241
    %v545 = vunpack.c.l.b16 %v242
    %v546 = vunpack.c.h.b16 %v242
    %v547 = vunpack.c.l.b16 %v243
    %v548 = vunpack.c.h.b16 %v243
    %v549 = vunpack.c.l.b16 %v244
    %v550 = vunpack.c.h.b16 %v244
    %v551 = vunpack.c.l.b16 %v245
    %v552 = vunpack.c.h.b16 %v245
    %v553 = vunpack.c.l.b16 %v246
    %v554 = vunpack.c.h.b16 %v246
    %v555 = vunpack.c.l.b16 %v247
    %v556 = vunpack.c.h.b16 %v247
    %v557 = vunpack.c.l.b16 %v248
    %v558 = vunpack.c.h.b16 %v248
    %v559 = vunpack.c.l.b16 %v249
    %v560 = vunpack.c.h.b16 %v249
    %v561 = vunpack.c.l.b16 %v250
    %v562 = vunpack.c.h.b16 %v250
    %v563 = vunpack.c.l.b16 %v251
    %v564 = vunpack.c.h.b16 %v251
    %v565 = vunpack.c.l.b16 %v252
    %v566 = vunpack.c.h.b16 %v252
    %v567 = vunpack.c.l.b16 %v253
    %v568 = vunpack.c.h.b16 %v253
    %v569 = vunpack.c.l.b16 %v254
    %v570 = vunpack.c.h.b16 %v254
    %v571 = vunpack.c.l.b16 %v255
    %v572 = vunpack.c.h.b16 %v255
    %v573 = vunpack.c.l.b16 %v256
    %v574 = vunpack.c.h.b16 %v256
    %v575 = vunpack.c.l.b16 %v257
    %v576 = vunpack.c.h.b16 %v257
    %v577 = vunpack.c.l.b16 %v258
    %v578 = vunpack.c.h.b16 %v258
    %v579 = vunpack.c.l.b16 %v259
    %v580 = vunpack.c.h.b16 %v259
    %v581 = vunpack.c.l.b16 %v260
    %v582 = vunpack.c.h.b16 %v260
    %v583 = vunpack.c.l.b16 %v261
    %v584 = vunpack.c.h.b16 %v261
    %v585 = vunpack.c.l.b16 %v262
    %v586 = vunpack.c.h.b16 %v262
    %v587 = vunpack.c.l.b16 %v263
    %v588 = vunpack.c.h.b16 %v263
    %v589 = vunpack.c.l.b16 %v264
    %v590 = vunpack.c.h.b16 %v264
    %v591 = vunpack.c.l.b16 %v265
    %v592 = vunpack.c.h.b16 %v265
    %v593 = vunpack.c.l.b16 %v266
    %v594 = vunpack.c.h.b16 %v266
    %v595 = vunpack.c.l.b16 %v267
    %v596 = vunpack.c.h.b16 %v267
    %v597 = vunpack.c.l.b16 %v268
    %v598 = vunpack.c.h.b16 %v268
    %v599 = vunpack.c.l.b16 %v269
    %v600 = vunpack.c.h.b16 %v269
    %v601 = vunpack.c.l.b16 %v270
    %v602 = vunpack.c.h.b16 %v270
    %v603 = vunpack.c.l.b16 %v271
    %v604 = vunpack.c.h.b16 %v271
    %v605 = vunpack.c.l.b16 %v272
    %v606 = vunpack.c.h.b16 %v272
    %v607 = vunpack.c.l.b16 %v273
    %v608 = vunpack.c.h.b16 %v273
    %v609 = vunpack.c.l.b16 %v274
    %v610 = vunpack.c.h.b16 %v274
    %v611 = vunpack.c.l.b16 %v275
    %v612 = vunpack.c.h.b16 %v275
    %v613 = vunpack.c.l.b16 %v276
    %v614 = vunpack.c.h.b16 %v276
    %v615 = vunpack.c.l.b16 %v277
    %v616 = vunpack.c.h.b16 %v277
    %v617 = vunpack.c.l.b16 %v278
    %v618 = vunpack.c.h.b16 %v278
    %v619 = vunpack.c.l.b16 %v279
    %v620 = vunpack.c.h.b16 %v279
    %v621 = vunpack.c.l.b16 %v280
    %v622 = vunpack.c.h.b16 %v280
    %v623 = vunpack.c.l.b16 %v281
    %v624 = vunpack.c.h.b16 %v281
    %v625 = vunpack.c.l.b16 %v282
    %v626 = vunpack.c.h.b16 %v282
    %v627 = vunpack.c.l.b16 %v283
    %v628 = vunpack.c.h.b16 %v283
    %v629 = vunpack.c.l.b16 %v284
    %v630 = vunpack.c.h.b16 %v284
    %v631 = vunpack.c.l.b16 %v285
    %v632 = vunpack.c.h.b16 %v285
    %v633 = vunpack.c.l.b16 %v286
    %v634 = vunpack.c.h.b16 %v286
    %v635 = vunpack.c.l.b16 %v287
    %v636 = vunpack.c.h.b16 %v287
    %v637 = vunpack.c.l.b16 %v288
    %v638 = vunpack.c.h.b16 %v288
    %v639 = vunpack.c.l.b16 %v289
    %v640 = vunpack.c.h.b16 %v289
    %v641 = vunpack.c.l.b16 %v290
    %v642 = vunpack.c.h.b16 %v290
    %v643 = vunpack.c.l.b16 %v291
    %v644 = vunpack.c.h.b16 %v291
    %v645 = vunpack.c.l.b16 %v292
    %v646 = vunpack.c.h.b16 %v292
    %v647 = vunpack.c.l.b16 %v293
    %v648 = vunpack.c.h.b16 %v293
    %v649 = vunpack.c.l.b16 %v294
    %v650 = vunpack.c.h.b16 %v294
    %v651 = vunpack.c.l.b16 %v295
    %v652 = vunpack.c.h.b16 %v295
    %v653 = vunpack.c.l.b16 %v296
    %v654 = vunpack.c.h.b16 %v296
    %v655 = vunpack.c.l.b16 %v297
    %v656 = vunpack.c.h.b16 %v297
    %v657 = vunpack.c.l.b16 %v298
    %v658 = vunpack.c.h.b16 %v298
    %v659 = vunpack.c.l.b16 %v299
    %v660 = vunpack.c.h.b16 %v299
    %v661 = vunpack.c.l.b16 %v300
    %v662 = vunpack.c.h.b16 %v300
    %v663 = vunpack.c.l.b16 %v301
    %v664 = vunpack.c.h.b16 %v301
    %v665 = vunpack.c.l.b16 %v302
    %v666 = vunpack.c.h.b16 %v302
    %v667 = vunpack.c.l.b16 %v303
    %v668 = vunpack.c.h.b16 %v303
    %v669 = vunpack.c.l.b16 %v304
    %v670 = vunpack.c.h.b16 %v304
    %v671 = vunpack.c.l.b16 %v305
    %v672 = vunpack.c.h.b16 %v305
    %v673 = vunpack.c.l.b16 %v306
    %v674 = vunpack.c.h.b16 %v306
    %v675 = vunpack.c.l.b16 %v307
    %v676 = vunpack.c.h.b16 %v307
    %v677 = vunpack.c.l.b16 %v308
    %v678 = vunpack.c.h.b16 %v308
    %v679 = vunpack.c.l.b16 %v309
    %v680 = vunpack.c.h.b16 %v309
    %v681 = vunpack.c.l.b16 %v310
    %v682 = vunpack.c.h.b16 %v310
    %v683 = vunpack.c.l.b16 %v311
    %v684 = vunpack.c.h.b16 %v311
    %v685 = vunpack.c.l.b16 %v312
    %v686 = vunpack.c.h.b16 %v312
    %v687 = vunpack.c.l.b16 %v313
    %v688 = vunpack.c.h.b16 %v313
    %v689 = vunpack.c.l.b16 %v314
    %v690 = vunpack.c.h.b16 %v314
    %v691 = vunpack.c.l.b16 %v315
    %v692 = vunpack.c.h.b16 %v315
    %v693 = vunpack.c.l.b16 %v316
    %v694 = vunpack.c.h.b16 %v316
    %v695 = vunpack.c.l.b16 %v317
    %v696 = vunpack.c.h.b16 %v317
    %v697 = vunpack.c.l.b16 %v318
    %v698 = vunpack.c.h.b16 %v318
    %v699 = vunpack.c.l.b16 %v319
    %v700 = vunpack.c.h.b16 %v319
    %v701 = vunpack.c.l.b16 %v320
    %v702 = vunpack.c.h.b16 %v320
    %v703 = vunpack.c.l.b16 %v321
    %v704 = vunpack.c.h.b16 %v321
    %v705 = vunpack.c.l.b16 %v322
    %v706 = vunpack.c.h.b16 %v322
    %v707 = vunpack.c.l.b16 %v323
    %v708 = vunpack.c.h.b16 %v323
    %v709 = vunpack.c.l.b16 %v324
    %v710 = vunpack.c.h.b16 %v324
    %v711 = vunpack.c.l.b16 %v325
    %v712 = vunpack.c.h.b16 %v325
    %v713 = vunpack.c.l.b16 %v326
    %v714 = vunpack.c.h.b16 %v326
    %v715 = vunpack.c.l.b16 %v327
    %v716 = vunpack.c.h.b16 %v327
    %v717 = vunpack.c.l.b16 %v328
    %v718 = vunpack.c.h.b16 %v328
    %v719 = vunpack.c.l.b16 %v329
    %v720 = vunpack.c.h.b16 %v329
    %v721 = vunpack.c.l.b16 %v330
    %v722 = vunpack.c.h.b16 %v330
    %v723 = vunpack.c.l.b16 %v331
    %v724 = vunpack.c.h.b16 %v331
    %v725 = vunpack.c.l.b16 %v332
    %v726 = vunpack.c.h.b16 %v332
    %v727 = vunpack.c.l.b16 %v333
    %v728 = vunpack.c.h.b16 %v333
    %v729 = vunpack.c.l.b16 %v334
    %v730 = vunpack.c.h.b16 %v334
    %v731 = vunpack.c.l.b16 %v335
    %v732 = vunpack.c.h.b16 %v335
    %v733 = vunpack.c.l.b16 %v336
    %v734 = vunpack.c.h.b16 %v336
    %v735 = vunpack.c.l.b16 %v337
    %v736 = vunpack.c.h.b16 %v337
    %v737 = vunpack.c.l.b16 %v338
    %v738 = vunpack.c.h.b16 %v338
    %v739 = vunpack.c.l.b16 %v339
    %v740 = vunpack.c.h.b16 %v339
    %v741 = vunpack.c.l.b16 %v340
    %v742 = vunpack.c.h.b16 %v340
    %v743 = vunpack.c.l.b16 %v341
    %v744 = vunpack.c.h.b16 %v341
    %v745 = vunpack.c.l.b16 %v342
    %v746 = vunpack.c.h.b16 %v342
    %v747 = vunpack.c.l.b16 %v343
    %v748 = vunpack.c.h.b16 %v343
    %v749 = vunpack.c.l.b16 %v344
    %v750 = vunpack.c.h.b16 %v344
    %v751 = vunpack.c.l.b16 %v345
    %v752 = vunpack.c.h.b16 %v345
    %v753 = vunpack.c.l.b16 %v346
    %v754 = vunpack.c.h.b16 %v346
    %v755 = vunpack.c.l.b16 %v347
    %v756 = vunpack.c.h.b16 %v347
    %v757 = vunpack.c.l.b16 %v348
    %v758 = vunpack.c.h.b16 %v348
    %v759 = vunpack.c.l.b16 %v349
    %v760 = vunpack.c.h.b16 %v349
    %v761 = vunpack.c.l.b16 %v350
    %v762 = vunpack.c.h.b16 %v350
    %v763 = vunpack.c.l.b16 %v351
    %v764 = vunpack.c.h.b16 %v351
    %v765 = vunpack.c.l.b16 %v352
    %v766 = vunpack.c.h.b16 %v352
    %v767 = vunpack.c.l.b16 %v353
    %v768 = vunpack.c.h.b16 %v353
    %v769 = vunpack.c.l.b16 %v354
    %v770 = vunpack.c.h.b16 %v354
    %v771 = vunpack.c.l.b16 %v355
    %v772 = vunpack.c.h.b16 %v355
    %v773 = vunpack.c.l.b16 %v356
    %v774 = vunpack.c.h.b16 %v356
    %v775 = vunpack.c.l.b16 %v357
    %v776 = vunpack.c.h.b16 %v357
    %v777 = vunpack.c.l.b16 %v358
    %v778 = vunpack.c.h.b16 %v358
    %v779 = vunpack.c.l.b16 %v359
    %v780 = vunpack.c.h.b16 %v359
    %v781 = vunpack.c.l.b16 %v360
    %v782 = vunpack.c.h.b16 %v360
    %v783 = vunpack.c.l.b16 %v361
    %v784 = vunpack.c.h.b16 %v361
    %v785 = vunpack.c.l.b16 %v362
    %v786 = vunpack.c.h.b16 %v362
    %v787 = vunpack.c.l.b16 %v363
    %v788 = vunpack.c.h.b16 %v363
    %v789 = vunpack.c.l.b16 %v364
    %v790 = vunpack.c.h.b16 %v364
    %v791 = vpack.c.b16 %v543, %v535
    %v792 = vpack.c.b16 %v544, %v536
    %v793 = vpack.c.b16 %v545, %v537
    %v794 = vpack.c.b16 %v546, %v538
    %v795 = vpack.c.b16 %v547, %v539
    %v796 = vpack.c.b16 %v548, %v540
    %v797 = vpack.c.b16 %v549, %v541
    %v798 = vpack.c.b16 %v550, %v542
    %v799 = vpack.c.b16 %v559, %v551
    %v800 = vpack.c.b16 %v560, %v552
    %v801 = vpack.c.b16 %v561, %v553
    %v802 = vpack.c.b16 %v562, %v554
    %v803 = vpack.c.b16 %v563, %v555
    %v804 = vpack.c.b16 %v564, %v556
    %v805 = vpack.c.b16 %v565, %v557
    %v806 = vpack.c.b16 %v566, %v558
    %v807 = vpack.c.b16 %v575, %v567
    %v808 = vpack.c.b16 %v576, %v568
    %v809 = vpack.c.b16 %v577, %v569
    %v810 = vpack.c.b16 %v578, %v570
    %v811 = vpack.c.b16 %v579, %v571
    %v812 = vpack.c.b16 %v580, %v572
    %v813 = vpack.c.b16 %v581, %v573
    %v814 = vpack.c.b16 %v582, %v574
    %v815 = vpack.c.b16 %v591, %v583
    %v816 = vpack.c.b16 %v592, %v584
    %v817 = vpack.c.b16 %v593, %v585
    %v818 = vpack.c.b16 %v594, %v586
    %v819 = vpack.c.b16 %v595, %v587
    %v820 = vpack.c.b16 %v596, %v588
    %v821 = vpack.c.b16 %v597, %v589
    %v822 = vpack.c.b16 %v598, %v590
    %v823 = vpack.c.b16 %v607, %v599
    %v824 = vpack.c.b16 %v608, %v600
    %v825 = vpack.c.b16 %v609, %v601
    %v826 = vpack.c.b16 %v610, %v602
    %v827 = vpack.c.b16 %v611, %v603
    %v828 = vpack.c.b16 %v612, %v604
    %v829 = vpack.c.b16 %v613, %v605
    %v830 = vpack.c.b16 %v614, %v606
    %v831 = vpack.c.b16 %v623, %v615
    %v832 = vpack.c.b16 %v624, %v616
    %v833 = vpack.c.b16 %v625, %v617
    %v834 = vpack.c.b16 %v626, %v618
    %v835 = vpack.c.b16 %v627, %v619
    %v836 = vpack.c.b16 %v628, %v620
    %v837 = vpack.c.b16 %v629, %v621
    %v838 = vpack.c.b16 %v630, %v622
    %v839 = vpack.c.b16 %v639, %v631
    %v840 = vpack.c.b16 %v640, %v632
    %v841 = vpack.c.b16 %v641, %v633
    %v842 = vpack.c.b16 %v642, %v634
    %v843 = vpack.c.b16 %v643, %v635
    %v844 = vpack.c.b16 %v644, %v636
    %v845 = vpack.c.b16 %v645, %v637
    %v846 = vpack.c.b16 %v646, %v638
    %v847 = vpack.c.b16 %v655, %v647
    %v848 = vpack.c.b16 %v656, %v648
    %v849 = vpack.c.b16 %v657, %v649
    %v850 = vpack.c.b16 %v658, %v650
    %v851 = vpack.c.b16 %v659, %v651
    %v852 = vpack.c.b16 %v660, %v652
    %v853 = vpack.c.b16 %v661, %v653
    %v854 = vpack.c.b16 %v662, %v654
    %v855 = vpack.c.b16 %v671, %v663
    %v856 = vpack.c.b16 %v672, %v664
    %v857 = vpack.c.b16 %v673, %v665
    %v858 = vpack.c.b16 %v674, %v666
    %v859 = vpack.c.b16 %v675, %v667
    %v860 = vpack.c.b16 %v676, %v668
    %v861 = vpack.c.b16 %v677, %v669
    %v862 = vpack.c.b16 %v678, %v670
    %v863 = vpack.c.b16 %v687, %v679
    %v864 = vpack.c.b16 %v688, %v680
    %v865 = vpack.c.b16 %v689, %v681
    %v866 = vpack.c.b16 %v690, %v682
    %v867 = vpack.c.b16 %v691, %v683
    %v868 = vpack.c.b16 %v692, %v684
    %v869 = vpack.c.b16 %v693, %v685
    %v870 = vpack.c.b16 %v694, %v686
    %v871 = vpack.c.b16 %v703, %v695
    %v872 = vpack.c.b16 %v704, %v696
    %v873 = vpack.c.b16 %v705, %v697
    %v874 = vpack.c.b16 %v706, %v698
    %v875 = vpack.c.b16 %v707, %v699
    %v876 = vpack.c.b16 %v708, %v700
    %v877 = vpack.c.b16 %v709, %v701
    %v878 = vpack.c.b16 %v710, %v702
    %v879 = vpack.c.b16 %v719, %v711
    %v880 = vpack.c.b16 %v720, %v712
    %v881 = vpack.c.b16 %v721, %v713
    %v882 = vpack.c.b16 %v722, %v714
    %v883 = vpack.c.b16 %v723, %v715
    %v884 = vpack.c.b16 %v724, %v716
    %v885 = vpack.c.b16 %v725, %v717
    %v886 = vpack.c.b16 %v726, %v718
    %v887 = vpack.c.b16 %v735, %v727
    %v888 = vpack.c.b16 %v736, %v728
    %v889 = vpack.c.b16 %v737, %v729
    %v890 = vpack.c.b16 %v738, %v730
    %v891 = vpack.c.b16 %v739, %v731
    %v892 = vpack.c.b16 %v740, %v732
    %v893 = vpack.c.b16 %v741, %v733
    %v894 = vpack.c.b16 %v742, %v734
    %v895 = vpack.c.b16 %v751, %v743
    %v896 = vpack.c.b16 %v752, %v744
    %v897 = vpack.c.b16 %v753, %v745
    %v898 = vpack.c.b16 %v754, %v746
    %v899 = vpack.c.b16 %v755, %v747
    %v900 = vpack.c.b16 %v756, %v748
    %v901 = vpack.c.b16 %v757, %v749
    %v902 = vpack.c.b16 %v758, %v750
    %v903 = vpack.c.b16 %v767, %v759
    %v904 = vpack.c.b16 %v768, %v760
    %v905 = vpack.c.b16 %v769, %v761
    %v906 = vpack.c.b16 %v770, %v762
    %v907 = vpack.c.b16 %v771, %v763
    %v908 = vpack.c.b16 %v772, %v764
    %v909 = vpack.c.b16 %v773, %v765
    %v910 = vpack.c.b16 %v774, %v766
    %v911 = vpack.c.b16 %v783, %v775
    %v912 = vpack.c.b16 %v784, %v776
    %v913 = vpack.c.b16 %v785, %v777
    %v914 = vpack.c.b16 %v786, %v778
    %v915 = vpack.c.b16 %v787, %v779
    %v916 = vpack.c.b16 %v788, %v780
    %v917 = vpack.c.b16 %v789, %v781
    %v918 = vpack.c.b16 %v790, %v782
    %1047 = vmatprep.subr.bf16.mxu0 %v792
    %1048 = vmatpush1.bf16.msra.mxu0 %v791
    %1049 = vmatprep.subr.bf16.mxu0 %v800
    %1050 = vmatpush1.bf16.msra.mxu0 %v799
    %1051 = vmatprep.subr.bf16.mxu0 %v808
    %1052 = vmatpush1.bf16.msra.mxu0 %v807
    %1053 = vmatprep.subr.bf16.mxu0 %v816
    %1054 = vmatpush1.bf16.msra.mxu0 %v815
    %1055 = vmatprep.subr.bf16.mxu0 %v824
    %1056 = vmatpush1.bf16.msra.mxu0 %v823
    %1057 = vmatprep.subr.bf16.mxu0 %v832
    %1058 = vmatpush1.bf16.msra.mxu0 %v831
    %1059 = vmatprep.subr.bf16.mxu0 %v840
    %1060 = vmatpush1.bf16.msra.mxu0 %v839
    %1061 = vmatprep.subr.bf16.mxu0 %v848
    %1062 = vmatpush1.bf16.msra.mxu0 %v847
    %1063 = vmatprep.subr.bf16.mxu0 %v856
    %1064 = vmatpush1.bf16.msra.mxu0 %v855
    %1065 = vmatprep.subr.bf16.mxu0 %v864
    %1066 = vmatpush1.bf16.msra.mxu0 %v863
    %1067 = vmatprep.subr.bf16.mxu0 %v872
    %1068 = vmatpush1.bf16.msra.mxu0 %v871
    %1069 = vmatprep.subr.bf16.mxu0 %v880
    %1070 = vmatpush1.bf16.msra.mxu0 %v879
    %1071 = vmatprep.subr.bf16.mxu0 %v888
    %1072 = vmatpush1.bf16.msra.mxu0 %v887
    %1073 = vmatprep.subr.bf16.mxu0 %v896
    %1074 = vmatpush1.bf16.msra.mxu0 %v895
    %1075 = vmatprep.subr.bf16.mxu0 %v904
    %1076 = vmatpush1.bf16.msra.mxu0 %v903
    %1077 = vmatprep.subr.bf16.mxu0 %v912
    %1078 = vmatpush1.bf16.msra.mxu0 %v911
    %1079 = vmatprep.mubr.bf16.mxu0 %v190
    %1080 = vmatmul.mubr.bf16.gmra.mrb[0].mxu0 %v189
    %v1081 = vpop.f32.mrb[0].mxu0
    %v1082 = vadd.f32 %v370, %v1081
    %v1083 = vpop.f32.mrb[0].mxu0
    %v1084 = vadd.f32 %v374, %v1083
    %v1085 = vpop.f32.mrb[0].mxu0
    %v1086 = vadd.f32 %v370, %v1085
    %v1087 = vpop.f32.mrb[0].mxu0
    %v1088 = vadd.f32 %v374, %v1087
    %1089 = vmatprep.mubr.bf16.mxu0 %v192
    %1090 = vmatmul.mubr.bf16.gmra.mrb[0].mxu0 %v191
    %v1091 = vpop.f32.mrb[0].mxu0
    %v1092 = vadd.f32 %v370, %v1091
    %v1093 = vpop.f32.mrb[0].mxu0
    %v1094 = vadd.f32 %v374, %v1093
    %v1095 = vpop.f32.mrb[0].mxu0
    %v1096 = vadd.f32 %v370, %v1095
    %v1097 = vpop.f32.mrb[0].mxu0
    %v1098 = vadd.f32 %v374, %v1097
    %1099 = vmatprep.mubr.bf16.mxu0 %v194
    %1100 = vmatmul.mubr.bf16.gmra.mrb[0].mxu0 %v193
    %v1101 = vpop.f32.mrb[0].mxu0
    %v1102 = vadd.f32 %v370, %v1101
    %v1103 = vpop.f32.mrb[0].mxu0
    %v1104 = vadd.f32 %v374, %v1103
    %v1105 = vpop.f32.mrb[0].mxu0
    %v1106 = vadd.f32 %v370, %v1105
    %v1107 = vpop.f32.mrb[0].mxu0
    %v1108 = vadd.f32 %v374, %v1107
    %1109 = vmatprep.mubr.bf16.mxu0 %v196
    %1110 = vmatmul.mubr.bf16.gmra.mrb[0].mxu0 %v195
    %v1111 = vpop.f32.mrb[0].mxu0
    %v1112 = vadd.f32 %v370, %v1111
    %v1113 = vpop.f32.mrb[0].mxu0
    %v1114 = vadd.f32 %v374, %v1113
    %v1115 = vpop.f32.mrb[0].mxu0
    %v1116 = vadd.f32 %v370, %v1115
    %v1117 = vpop.f32.mrb[0].mxu0
    %v1118 = vadd.f32 %v374, %v1117
    %1119 = vmatprep.mubr.bf16.mxu0 %v198
    %1120 = vmatmul.mubr.bf16.gmra.mrb[0].mxu0 %v197
    %v1121 = vpop.f32.mrb[0].mxu0
    %v1122 = vadd.f32 %v370, %v1121
    %v1123 = vpop.f32.mrb[0].mxu0
    %v1124 = vadd.f32 %v374, %v1123
    %v1125 = vpop.f32.mrb[0].mxu0
    %v1126 = vadd.f32 %v370, %v1125
    %v1127 = vpop.f32.mrb[0].mxu0
    %v1128 = vadd.f32 %v374, %v1127
    %1129 = vmatprep.mubr.bf16.mxu0 %v200
    %1130 = vmatmul.mubr.bf16.gmra.mrb[0].mxu0 %v199
    %v1131 = vpop.f32.mrb[0].mxu0
    %v1132 = vadd.f32 %v370, %v1131
    %v1133 = vpop.f32.mrb[0].mxu0
    %v1134 = vadd.f32 %v374, %v1133
    %v1135 = vpop.f32.mrb[0].mxu0
    %v1136 = vadd.f32 %v370, %v1135
    %v1137 = vpop.f32.mrb[0].mxu0
    %v1138 = vadd.f32 %v374, %v1137
    %1139 = vmatprep.mubr.bf16.mxu0 %v202
    %1140 = vmatmul.mubr.bf16.gmra.mrb[0].mxu0 %v201
    %v1141 = vpop.f32.mrb[0].mxu0
    %v1142 = vadd.f32 %v370, %v1141
    %v1143 = vpop.f32.mrb[0].mxu0
    %v1144 = vadd.f32 %v374, %v1143
    %v1145 = vpop.f32.mrb[0].mxu0
    %v1146 = vadd.f32 %v370, %v1145
    %v1147 = vpop.f32.mrb[0].mxu0
    %v1148 = vadd.f32 %v374, %v1147
    %1149 = vmatprep.mubr.bf16.mxu0 %v204
    %1150 = vmatmul.mubr.bf16.gmra.mrb[0].mxu0 %v203
    %v1151 = vpop.f32.mrb[0].mxu0
    %v1152 = vadd.f32 %v370, %v1151
    %v1153 = vpop.f32.mrb[0].mxu0
    %v1154 = vadd.f32 %v374, %v1153
    %v1155 = vpop.f32.mrb[0].mxu0
    %v1156 = vadd.f32 %v370, %v1155
    %v1157 = vpop.f32.mrb[0].mxu0
    %v1158 = vadd.f32 %v374, %v1157
    %1159 = vmatprep.mubr.bf16.mxu0 %v206
    %1160 = vmatmul.mubr.bf16.gmra.mrb[0].mxu0 %v205
    %v1161 = vpop.f32.mrb[0].mxu0
    %v1162 = vadd.f32 %v370, %v1161
    %v1163 = vpop.f32.mrb[0].mxu0
    %v1164 = vadd.f32 %v374, %v1163
    %v1165 = vpop.f32.mrb[0].mxu0
    %v1166 = vadd.f32 %v370, %v1165
    %v1167 = vpop.f32.mrb[0].mxu0
    %v1168 = vadd.f32 %v374, %v1167
    %1169 = vmatprep.mubr.bf16.mxu0 %v208
    %1170 = vmatmul.mubr.bf16.gmra.mrb[0].mxu0 %v207
    %v1171 = vpop.f32.mrb[0].mxu0
    %v1172 = vadd.f32 %v370, %v1171
    %v1173 = vpop.f32.mrb[0].mxu0
    %v1174 = vadd.f32 %v374, %v1173
    %v1175 = vpop.f32.mrb[0].mxu0
    %v1176 = vadd.f32 %v370, %v1175
    %v1177 = vpop.f32.mrb[0].mxu0
    %v1178 = vadd.f32 %v374, %v1177
    %1179 = vmatprep.mubr.bf16.mxu0 %v210
    %1180 = vmatmul.mubr.bf16.gmra.mrb[0].mxu0 %v209
    %v1181 = vpop.f32.mrb[0].mxu0
    %v1182 = vadd.f32 %v370, %v1181
    %v1183 = vpop.f32.mrb[0].mxu0
    %v1184 = vadd.f32 %v374, %v1183
    %v1185 = vpop.f32.mrb[0].mxu0
    %v1186 = vadd.f32 %v370, %v1185
    %v1187 = vpop.f32.mrb[0].mxu0
    %v1188 = vadd.f32 %v374, %v1187
    %1189 = vmatprep.mubr.bf16.mxu0 %v212
    %1190 = vmatmul.mubr.bf16.gmra.mrb[0].mxu0 %v211
    %v1191 = vpop.f32.mrb[0].mxu0
    %v1192 = vadd.f32 %v370, %v1191
    %v1193 = vpop.f32.mrb[0].mxu0
    %v1194 = vadd.f32 %v374, %v1193
    %v1195 = vpop.f32.mrb[0].mxu0
    %v1196 = vadd.f32 %v370, %v1195
    %v1197 = vpop.f32.mrb[0].mxu0
    %v1198 = vadd.f32 %v374, %v1197
    %1199 = vmatprep.mubr.bf16.mxu0 %v214
    %1200 = vmatmul.mubr.bf16.gmra.mrb[0].mxu0 %v213
    %v1201 = vpop.f32.mrb[0].mxu0
    %v1202 = vadd.f32 %v370, %v1201
    %v1203 = vpop.f32.mrb[0].mxu0
    %v1204 = vadd.f32 %v374, %v1203
    %v1205 = vpop.f32.mrb[0].mxu0
    %v1206 = vadd.f32 %v370, %v1205
    %v1207 = vpop.f32.mrb[0].mxu0
    %v1208 = vadd.f32 %v374, %v1207
    %1209 = vmatprep.mubr.bf16.mxu0 %v216
    %1210 = vmatmul.mubr.bf16.gmra.mrb[0].mxu0 %v215
    %v1211 = vpop.f32.mrb[0].mxu0
    %v1212 = vadd.f32 %v370, %v1211
    %v1213 = vpop.f32.mrb[0].mxu0
    %v1214 = vadd.f32 %v374, %v1213
    %v1215 = vpop.f32.mrb[0].mxu0
    %v1216 = vadd.f32 %v370, %v1215
    %v1217 = vpop.f32.mrb[0].mxu0
    %v1218 = vadd.f32 %v374, %v1217
    %1219 = vmatprep.mubr.bf16.mxu0 %v218
    %1220 = vmatmul.mubr.bf16.gmra.mrb[0].mxu0 %v217
    %v1221 = vpop.f32.mrb[0].mxu0
    %v1222 = vadd.f32 %v370, %v1221
    %v1223 = vpop.f32.mrb[0].mxu0
    %v1224 = vadd.f32 %v374, %v1223
    %v1225 = vpop.f32.mrb[0].mxu0
    %v1226 = vadd.f32 %v370, %v1225
    %v1227 = vpop.f32.mrb[0].mxu0
    %v1228 = vadd.f32 %v374, %v1227
    %1229 = vmatprep.mubr.bf16.mxu0 %v220
    %1230 = vmatmul.mubr.bf16.gmra.mrb[0].mxu0 %v219
    %v1231 = vpop.f32.mrb[0].mxu0
    %v1232 = vadd.f32 %v370, %v1231
    %v1233 = vpop.f32.mrb[0].mxu0
    %v1234 = vadd.f32 %v374, %v1233
    %v1235 = vpop.f32.mrb[0].mxu0
    %v1236 = vadd.f32 %v370, %v1235
    %v1237 = vpop.f32.mrb[0].mxu0
    %v1238 = vadd.f32 %v374, %v1237
    %1239 = vmatprep.mubr.bf16.mxu0 %v222
    %1240 = vmatmul.mubr.bf16.gmra.mrb[0].mxu0 %v221
    %v1241 = vpop.f32.mrb[0].mxu0
    %v1242 = vadd.f32 %v370, %v1241
    %v1243 = vpop.f32.mrb[0].mxu0
    %v1244 = vadd.f32 %v374, %v1243
    %v1245 = vpop.f32.mrb[0].mxu0
    %v1246 = vadd.f32 %v370, %v1245
    %v1247 = vpop.f32.mrb[0].mxu0
    %v1248 = vadd.f32 %v374, %v1247
    %1249 = vmatprep.mubr.bf16.mxu0 %v224
    %1250 = vmatmul.mubr.bf16.gmra.mrb[0].mxu0 %v223
    %v1251 = vpop.f32.mrb[0].mxu0
    %v1252 = vadd.f32 %v370, %v1251
    %v1253 = vpop.f32.mrb[0].mxu0
    %v1254 = vadd.f32 %v374, %v1253
    %v1255 = vpop.f32.mrb[0].mxu0
    %v1256 = vadd.f32 %v370, %v1255
    %v1257 = vpop.f32.mrb[0].mxu0
    %v1258 = vadd.f32 %v374, %v1257
    %1259 = vmatprep.mubr.bf16.mxu0 %v226
    %1260 = vmatmul.mubr.bf16.gmra.mrb[0].mxu0 %v225
    %v1261 = vpop.f32.mrb[0].mxu0
    %v1262 = vadd.f32 %v370, %v1261
    %v1263 = vpop.f32.mrb[0].mxu0
    %v1264 = vadd.f32 %v374, %v1263
    %v1265 = vpop.f32.mrb[0].mxu0
    %v1266 = vadd.f32 %v370, %v1265
    %v1267 = vpop.f32.mrb[0].mxu0
    %v1268 = vadd.f32 %v374, %v1267
    %1269 = vmatprep.mubr.bf16.mxu0 %v228
    %1270 = vmatmul.mubr.bf16.gmra.mrb[0].mxu0 %v227
    %v1271 = vpop.f32.mrb[0].mxu0
    %v1272 = vadd.f32 %v370, %v1271
    %v1273 = vpop.f32.mrb[0].mxu0
    %v1274 = vadd.f32 %v374, %v1273
    %v1275 = vpop.f32.mrb[0].mxu0
    %v1276 = vadd.f32 %v370, %v1275
    %v1277 = vpop.f32.mrb[0].mxu0
    %v1278 = vadd.f32 %v374, %v1277
    %1279 = vmatprep.mubr.bf16.mxu0 %v230
    %1280 = vmatmul.mubr.bf16.gmra.mrb[0].mxu0 %v229
    %v1281 = vpop.f32.mrb[0].mxu0
    %v1282 = vadd.f32 %v370, %v1281
    %v1283 = vpop.f32.mrb[0].mxu0
    %v1284 = vadd.f32 %v374, %v1283
    %v1285 = vpop.f32.mrb[0].mxu0
    %v1286 = vadd.f32 %v370, %v1285
    %v1287 = vpop.f32.mrb[0].mxu0
    %v1288 = vadd.f32 %v374, %v1287
    %1289 = vmatprep.mubr.bf16.mxu0 %v232
    %1290 = vmatmul.mubr.bf16.gmra.mrb[0].mxu0 %v231
    %v1291 = vpop.f32.mrb[0].mxu0
    %v1292 = vadd.f32 %v370, %v1291
    %v1293 = vpop.f32.mrb[0].mxu0
    %v1294 = vadd.f32 %v374, %v1293
    %v1295 = vpop.f32.mrb[0].mxu0
    %v1296 = vadd.f32 %v370, %v1295
    %v1297 = vpop.f32.mrb[0].mxu0
    %v1298 = vadd.f32 %v374, %v1297
    %1299 = vmatprep.mubr.bf16.mxu0 %v234
    %1300 = vmatmul.mubr.bf16.gmra.mrb[0].mxu0 %v233
    %v1301 = vpop.f32.mrb[0].mxu0
    %v1302 = vadd.f32 %v370, %v1301
    %v1303 = vpop.f32.mrb[0].mxu0
    %v1304 = vadd.f32 %v374, %v1303
    %v1305 = vpop.f32.mrb[0].mxu0
    %v1306 = vadd.f32 %v370, %v1305
    %v1307 = vpop.f32.mrb[0].mxu0
    %v1308 = vadd.f32 %v374, %v1307
    %1309 = vmatprep.mubr.bf16.mxu0 %v236
    %1310 = vmatmul.mubr.bf16.gmra.mrb[0].mxu0 %v235
    %v1311 = vpop.f32.mrb[0].mxu0
    %v1312 = vadd.f32 %v370, %v1311
    %v1313 = vpop.f32.mrb[0].mxu0
    %v1314 = vadd.f32 %v374, %v1313
    %v1315 = vpop.f32.mrb[0].mxu0
    %v1316 = vadd.f32 %v370, %v1315
    %v1317 = vpop.f32.mrb[0].mxu0
    %v1318 = vadd.f32 %v374, %v1317
    %1319 = vdwg.mxu0
    %1320 = vmatprep.subr.bf16.mxu0 %v794
    %1321 = vmatpush1.bf16.msra.mxu0 %v793
    %1322 = vmatprep.subr.bf16.mxu0 %v802
    %1323 = vmatpush1.bf16.msra.mxu0 %v801
    %1324 = vmatprep.subr.bf16.mxu0 %v810
    %1325 = vmatpush1.bf16.msra.mxu0 %v809
    %1326 = vmatprep.subr.bf16.mxu0 %v818
    %1327 = vmatpush1.bf16.msra.mxu0 %v817
    %1328 = vmatprep.subr.bf16.mxu0 %v826
    %1329 = vmatpush1.bf16.msra.mxu0 %v825
    %1330 = vmatprep.subr.bf16.mxu0 %v834
    %1331 = vmatpush1.bf16.msra.mxu0 %v833
    %1332 = vmatprep.subr.bf16.mxu0 %v842
    %1333 = vmatpush1.bf16.msra.mxu0 %v841
    %1334 = vmatprep.subr.bf16.mxu0 %v850
    %1335 = vmatpush1.bf16.msra.mxu0 %v849
    %1336 = vmatprep.subr.bf16.mxu0 %v858
    %1337 = vmatpush1.bf16.msra.mxu0 %v857
    %1338 = vmatprep.subr.bf16.mxu0 %v866
    %1339 = vmatpush1.bf16.msra.mxu0 %v865
    %1340 = vmatprep.subr.bf16.mxu0 %v874
    %1341 = vmatpush1.bf16.msra.mxu0 %v873
    %1342 = vmatprep.subr.bf16.mxu0 %v882
    %1343 = vmatpush1.bf16.msra.mxu0 %v881
    %1344 = vmatprep.subr.bf16.mxu0 %v890
    %1345 = vmatpush1.bf16.msra.mxu0 %v889
    %1346 = vmatprep.subr.bf16.mxu0 %v898
    %1347 = vmatpush1.bf16.msra.mxu0 %v897
    %1348 = vmatprep.subr.bf16.mxu0 %v906
    %1349 = vmatpush1.bf16.msra.mxu0 %v905
    %1350 = vmatprep.subr.bf16.mxu0 %v914
    %1351 = vmatpush1.bf16.msra.mxu0 %v913
    %1352 = vmatprep.mubr.bf16.mxu0 %v190
    %1353 = vmatmul.mubr.bf16.gmra.mrb[0].mxu0 %v189
    %v1354 = vpop.f32.mrb[0].mxu0
    %v1355 = vadd.f32 %v378, %v1354
    %v1356 = vpop.f32.mrb[0].mxu0
    %v1357 = vadd.f32 %v382, %v1356
    %v1358 = vpop.f32.mrb[0].mxu0
    %v1359 = vadd.f32 %v378, %v1358
    %v1360 = vpop.f32.mrb[0].mxu0
    %v1361 = vadd.f32 %v382, %v1360
    %1362 = vmatprep.mubr.bf16.mxu0 %v192
    %1363 = vmatmul.mubr.bf16.gmra.mrb[0].mxu0 %v191
    %v1364 = vpop.f32.mrb[0].mxu0
    %v1365 = vadd.f32 %v378, %v1364
    %v1366 = vpop.f32.mrb[0].mxu0
    %v1367 = vadd.f32 %v382, %v1366
    %v1368 = vpop.f32.mrb[0].mxu0
    %v1369 = vadd.f32 %v378, %v1368
    %v1370 = vpop.f32.mrb[0].mxu0
    %v1371 = vadd.f32 %v382, %v1370
    %1372 = vmatprep.mubr.bf16.mxu0 %v194
    %1373 = vmatmul.mubr.bf16.gmra.mrb[0].mxu0 %v193
    %v1374 = vpop.f32.mrb[0].mxu0
    %v1375 = vadd.f32 %v378, %v1374
    %v1376 = vpop.f32.mrb[0].mxu0
    %v1377 = vadd.f32 %v382, %v1376
    %v1378 = vpop.f32.mrb[0].mxu0
    %v1379 = vadd.f32 %v378, %v1378
    %v1380 = vpop.f32.mrb[0].mxu0
    %v1381 = vadd.f32 %v382, %v1380
    %1382 = vmatprep.mubr.bf16.mxu0 %v196
    %1383 = vmatmul.mubr.bf16.gmra.mrb[0].mxu0 %v195
    %v1384 = vpop.f32.mrb[0].mxu0
    %v1385 = vadd.f32 %v378, %v1384
    %v1386 = vpop.f32.mrb[0].mxu0
    %v1387 = vadd.f32 %v382, %v1386
    %v1388 = vpop.f32.mrb[0].mxu0
    %v1389 = vadd.f32 %v378, %v1388
    %v1390 = vpop.f32.mrb[0].mxu0
    %v1391 = vadd.f32 %v382, %v1390
    %1392 = vmatprep.mubr.bf16.mxu0 %v198
    %1393 = vmatmul.mubr.bf16.gmra.mrb[0].mxu0 %v197
    %v1394 = vpop.f32.mrb[0].mxu0
    %v1395 = vadd.f32 %v378, %v1394
    %v1396 = vpop.f32.mrb[0].mxu0
    %v1397 = vadd.f32 %v382, %v1396
    %v1398 = vpop.f32.mrb[0].mxu0
    %v1399 = vadd.f32 %v378, %v1398
    %v1400 = vpop.f32.mrb[0].mxu0
    %v1401 = vadd.f32 %v382, %v1400
    %1402 = vmatprep.mubr.bf16.mxu0 %v200
    %1403 = vmatmul.mubr.bf16.gmra.mrb[0].mxu0 %v199
    %v1404 = vpop.f32.mrb[0].mxu0
    %v1405 = vadd.f32 %v378, %v1404
    %v1406 = vpop.f32.mrb[0].mxu0
    %v1407 = vadd.f32 %v382, %v1406
    %v1408 = vpop.f32.mrb[0].mxu0
    %v1409 = vadd.f32 %v378, %v1408
    %v1410 = vpop.f32.mrb[0].mxu0
    %v1411 = vadd.f32 %v382, %v1410
    %1412 = vmatprep.mubr.bf16.mxu0 %v202
    %1413 = vmatmul.mubr.bf16.gmra.mrb[0].mxu0 %v201
    %v1414 = vpop.f32.mrb[0].mxu0
    %v1415 = vadd.f32 %v378, %v1414
    %v1416 = vpop.f32.mrb[0].mxu0
    %v1417 = vadd.f32 %v382, %v1416
    %v1418 = vpop.f32.mrb[0].mxu0
    %v1419 = vadd.f32 %v378, %v1418
    %v1420 = vpop.f32.mrb[0].mxu0
    %v1421 = vadd.f32 %v382, %v1420
    %1422 = vmatprep.mubr.bf16.mxu0 %v204
    %1423 = vmatmul.mubr.bf16.gmra.mrb[0].mxu0 %v203
    %v1424 = vpop.f32.mrb[0].mxu0
    %v1425 = vadd.f32 %v378, %v1424
    %v1426 = vpop.f32.mrb[0].mxu0
    %v1427 = vadd.f32 %v382, %v1426
    %v1428 = vpop.f32.mrb[0].mxu0
    %v1429 = vadd.f32 %v378, %v1428
    %v1430 = vpop.f32.mrb[0].mxu0
    %v1431 = vadd.f32 %v382, %v1430
    %1432 = vmatprep.mubr.bf16.mxu0 %v206
    %1433 = vmatmul.mubr.bf16.gmra.mrb[0].mxu0 %v205
    %v1434 = vpop.f32.mrb[0].mxu0
    %v1435 = vadd.f32 %v378, %v1434
    %v1436 = vpop.f32.mrb[0].mxu0
    %v1437 = vadd.f32 %v382, %v1436
    %v1438 = vpop.f32.mrb[0].mxu0
    %v1439 = vadd.f32 %v378, %v1438
    %v1440 = vpop.f32.mrb[0].mxu0
    %v1441 = vadd.f32 %v382, %v1440
    %1442 = vmatprep.mubr.bf16.mxu0 %v208
    %1443 = vmatmul.mubr.bf16.gmra.mrb[0].mxu0 %v207
    %v1444 = vpop.f32.mrb[0].mxu0
    %v1445 = vadd.f32 %v378, %v1444
    %v1446 = vpop.f32.mrb[0].mxu0
    %v1447 = vadd.f32 %v382, %v1446
    %v1448 = vpop.f32.mrb[0].mxu0
    %v1449 = vadd.f32 %v378, %v1448
    %v1450 = vpop.f32.mrb[0].mxu0
    %v1451 = vadd.f32 %v382, %v1450
    %1452 = vmatprep.mubr.bf16.mxu0 %v210
    %1453 = vmatmul.mubr.bf16.gmra.mrb[0].mxu0 %v209
    %v1454 = vpop.f32.mrb[0].mxu0
    %v1455 = vadd.f32 %v378, %v1454
    %v1456 = vpop.f32.mrb[0].mxu0
    %v1457 = vadd.f32 %v382, %v1456
    %v1458 = vpop.f32.mrb[0].mxu0
    %v1459 = vadd.f32 %v378, %v1458
    %v1460 = vpop.f32.mrb[0].mxu0
    %v1461 = vadd.f32 %v382, %v1460
    %1462 = vmatprep.mubr.bf16.mxu0 %v212
    %1463 = vmatmul.mubr.bf16.gmra.mrb[0].mxu0 %v211
    %v1464 = vpop.f32.mrb[0].mxu0
    %v1465 = vadd.f32 %v378, %v1464
    %v1466 = vpop.f32.mrb[0].mxu0
    %v1467 = vadd.f32 %v382, %v1466
    %v1468 = vpop.f32.mrb[0].mxu0
    %v1469 = vadd.f32 %v378, %v1468
    %v1470 = vpop.f32.mrb[0].mxu0
    %v1471 = vadd.f32 %v382, %v1470
    %1472 = vmatprep.mubr.bf16.mxu0 %v214
    %1473 = vmatmul.mubr.bf16.gmra.mrb[0].mxu0 %v213
    %v1474 = vpop.f32.mrb[0].mxu0
    %v1475 = vadd.f32 %v378, %v1474
    %v1476 = vpop.f32.mrb[0].mxu0
    %v1477 = vadd.f32 %v382, %v1476
    %v1478 = vpop.f32.mrb[0].mxu0
    %v1479 = vadd.f32 %v378, %v1478
    %v1480 = vpop.f32.mrb[0].mxu0
    %v1481 = vadd.f32 %v382, %v1480
    %1482 = vmatprep.mubr.bf16.mxu0 %v216
    %1483 = vmatmul.mubr.bf16.gmra.mrb[0].mxu0 %v215
    %v1484 = vpop.f32.mrb[0].mxu0
    %v1485 = vadd.f32 %v378, %v1484
    %v1486 = vpop.f32.mrb[0].mxu0
    %v1487 = vadd.f32 %v382, %v1486
    %v1488 = vpop.f32.mrb[0].mxu0
    %v1489 = vadd.f32 %v378, %v1488
    %v1490 = vpop.f32.mrb[0].mxu0
    %v1491 = vadd.f32 %v382, %v1490
    %1492 = vmatprep.mubr.bf16.mxu0 %v218
    %1493 = vmatmul.mubr.bf16.gmra.mrb[0].mxu0 %v217
    %v1494 = vpop.f32.mrb[0].mxu0
    %v1495 = vadd.f32 %v378, %v1494
    %v1496 = vpop.f32.mrb[0].mxu0
    %v1497 = vadd.f32 %v382, %v1496
    %v1498 = vpop.f32.mrb[0].mxu0
    %v1499 = vadd.f32 %v378, %v1498
    %v1500 = vpop.f32.mrb[0].mxu0
    %v1501 = vadd.f32 %v382, %v1500
    %1502 = vmatprep.mubr.bf16.mxu0 %v220
    %1503 = vmatmul.mubr.bf16.gmra.mrb[0].mxu0 %v219
    %v1504 = vpop.f32.mrb[0].mxu0
    %v1505 = vadd.f32 %v378, %v1504
    %v1506 = vpop.f32.mrb[0].mxu0
    %v1507 = vadd.f32 %v382, %v1506
    %v1508 = vpop.f32.mrb[0].mxu0
    %v1509 = vadd.f32 %v378, %v1508
    %v1510 = vpop.f32.mrb[0].mxu0
    %v1511 = vadd.f32 %v382, %v1510
    %1512 = vmatprep.mubr.bf16.mxu0 %v222
    %1513 = vmatmul.mubr.bf16.gmra.mrb[0].mxu0 %v221
    %v1514 = vpop.f32.mrb[0].mxu0
    %v1515 = vadd.f32 %v378, %v1514
    %v1516 = vpop.f32.mrb[0].mxu0
    %v1517 = vadd.f32 %v382, %v1516
    %v1518 = vpop.f32.mrb[0].mxu0
    %v1519 = vadd.f32 %v378, %v1518
    %v1520 = vpop.f32.mrb[0].mxu0
    %v1521 = vadd.f32 %v382, %v1520
    %1522 = vmatprep.mubr.bf16.mxu0 %v224
    %1523 = vmatmul.mubr.bf16.gmra.mrb[0].mxu0 %v223
    %v1524 = vpop.f32.mrb[0].mxu0
    %v1525 = vadd.f32 %v378, %v1524
    %v1526 = vpop.f32.mrb[0].mxu0
    %v1527 = vadd.f32 %v382, %v1526
    %v1528 = vpop.f32.mrb[0].mxu0
    %v1529 = vadd.f32 %v378, %v1528
    %v1530 = vpop.f32.mrb[0].mxu0
    %v1531 = vadd.f32 %v382, %v1530
    %1532 = vmatprep.mubr.bf16.mxu0 %v226
    %1533 = vmatmul.mubr.bf16.gmra.mrb[0].mxu0 %v225
    %v1534 = vpop.f32.mrb[0].mxu0
    %v1535 = vadd.f32 %v378, %v1534
    %v1536 = vpop.f32.mrb[0].mxu0
    %v1537 = vadd.f32 %v382, %v1536
    %v1538 = vpop.f32.mrb[0].mxu0
    %v1539 = vadd.f32 %v378, %v1538
    %v1540 = vpop.f32.mrb[0].mxu0
    %v1541 = vadd.f32 %v382, %v1540
    %1542 = vmatprep.mubr.bf16.mxu0 %v228
    %1543 = vmatmul.mubr.bf16.gmra.mrb[0].mxu0 %v227
    %v1544 = vpop.f32.mrb[0].mxu0
    %v1545 = vadd.f32 %v378, %v1544
    %v1546 = vpop.f32.mrb[0].mxu0
    %v1547 = vadd.f32 %v382, %v1546
    %v1548 = vpop.f32.mrb[0].mxu0
    %v1549 = vadd.f32 %v378, %v1548
    %v1550 = vpop.f32.mrb[0].mxu0
    %v1551 = vadd.f32 %v382, %v1550
    %1552 = vmatprep.mubr.bf16.mxu0 %v230
    %1553 = vmatmul.mubr.bf16.gmra.mrb[0].mxu0 %v229
    %v1554 = vpop.f32.mrb[0].mxu0
    %v1555 = vadd.f32 %v378, %v1554
    %v1556 = vpop.f32.mrb[0].mxu0
    %v1557 = vadd.f32 %v382, %v1556
    %v1558 = vpop.f32.mrb[0].mxu0
    %v1559 = vadd.f32 %v378, %v1558
    %v1560 = vpop.f32.mrb[0].mxu0
    %v1561 = vadd.f32 %v382, %v1560
    %1562 = vmatprep.mubr.bf16.mxu0 %v232
    %1563 = vmatmul.mubr.bf16.gmra.mrb[0].mxu0 %v231
    %v1564 = vpop.f32.mrb[0].mxu0
    %v1565 = vadd.f32 %v378, %v1564
    %v1566 = vpop.f32.mrb[0].mxu0
    %v1567 = vadd.f32 %v382, %v1566
    %v1568 = vpop.f32.mrb[0].mxu0
    %v1569 = vadd.f32 %v378, %v1568
    %v1570 = vpop.f32.mrb[0].mxu0
    %v1571 = vadd.f32 %v382, %v1570
    %1572 = vmatprep.mubr.bf16.mxu0 %v234
    %1573 = vmatmul.mubr.bf16.gmra.mrb[0].mxu0 %v233
    %v1574 = vpop.f32.mrb[0].mxu0
    %v1575 = vadd.f32 %v378, %v1574
    %v1576 = vpop.f32.mrb[0].mxu0
    %v1577 = vadd.f32 %v382, %v1576
    %v1578 = vpop.f32.mrb[0].mxu0
    %v1579 = vadd.f32 %v378, %v1578
    %v1580 = vpop.f32.mrb[0].mxu0
    %v1581 = vadd.f32 %v382, %v1580
    %1582 = vmatprep.mubr.bf16.mxu0 %v236
    %1583 = vmatmul.mubr.bf16.gmra.mrb[0].mxu0 %v235
    %v1584 = vpop.f32.mrb[0].mxu0
    %v1585 = vadd.f32 %v378, %v1584
    %v1586 = vpop.f32.mrb[0].mxu0
    %v1587 = vadd.f32 %v382, %v1586
    %v1588 = vpop.f32.mrb[0].mxu0
    %v1589 = vadd.f32 %v378, %v1588
    %v1590 = vpop.f32.mrb[0].mxu0
    %v1591 = vadd.f32 %v382, %v1590
    %1592 = vdwg.mxu0
    %1593 = vmatprep.subr.bf16.mxu0 %v796
    %1594 = vmatpush1.bf16.msra.mxu0 %v795
    %1595 = vmatprep.subr.bf16.mxu0 %v804
    %1596 = vmatpush1.bf16.msra.mxu0 %v803
    %1597 = vmatprep.subr.bf16.mxu0 %v812
    %1598 = vmatpush1.bf16.msra.mxu0 %v811
    %1599 = vmatprep.subr.bf16.mxu0 %v820
    %1600 = vmatpush1.bf16.msra.mxu0 %v819
    %1601 = vmatprep.subr.bf16.mxu0 %v828
    %1602 = vmatpush1.bf16.msra.mxu0 %v827
    %1603 = vmatprep.subr.bf16.mxu0 %v836
    %1604 = vmatpush1.bf16.msra.mxu0 %v835
    %1605 = vmatprep.subr.bf16.mxu0 %v844
    %1606 = vmatpush1.bf16.msra.mxu0 %v843
    %1607 = vmatprep.subr.bf16.mxu0 %v852
    %1608 = vmatpush1.bf16.msra.mxu0 %v851
    %1609 = vmatprep.subr.bf16.mxu0 %v860
    %1610 = vmatpush1.bf16.msra.mxu0 %v859
    %1611 = vmatprep.subr.bf16.mxu0 %v868
    %1612 = vmatpush1.bf16.msra.mxu0 %v867
    %1613 = vmatprep.subr.bf16.mxu0 %v876
    %1614 = vmatpush1.bf16.msra.mxu0 %v875
    %1615 = vmatprep.subr.bf16.mxu0 %v884
    %1616 = vmatpush1.bf16.msra.mxu0 %v883
    %1617 = vmatprep.subr.bf16.mxu0 %v892
    %1618 = vmatpush1.bf16.msra.mxu0 %v891
    %1619 = vmatprep.subr.bf16.mxu0 %v900
    %1620 = vmatpush1.bf16.msra.mxu0 %v899
    %1621 = vmatprep.subr.bf16.mxu0 %v908
    %1622 = vmatpush1.bf16.msra.mxu0 %v907
    %1623 = vmatprep.subr.bf16.mxu0 %v916
    %1624 = vmatpush1.bf16.msra.mxu0 %v915
    %1625 = vmatprep.mubr.bf16.mxu0 %v190
    %1626 = vmatmul.mubr.bf16.gmra.mrb[0].mxu0 %v189
    %v1627 = vpop.f32.mrb[0].mxu0
    %v1628 = vadd.f32 %v386, %v1627
    %v1629 = vpop.f32.mrb[0].mxu0
    %v1630 = vadd.f32 %v390, %v1629
    %v1631 = vpop.f32.mrb[0].mxu0
    %v1632 = vadd.f32 %v386, %v1631
    %v1633 = vpop.f32.mrb[0].mxu0
    %v1634 = vadd.f32 %v390, %v1633
    %1635 = vmatprep.mubr.bf16.mxu0 %v192
    %1636 = vmatmul.mubr.bf16.gmra.mrb[0].mxu0 %v191
    %v1637 = vpop.f32.mrb[0].mxu0
    %v1638 = vadd.f32 %v386, %v1637
    %v1639 = vpop.f32.mrb[0].mxu0
    %v1640 = vadd.f32 %v390, %v1639
    %v1641 = vpop.f32.mrb[0].mxu0
    %v1642 = vadd.f32 %v386, %v1641
    %v1643 = vpop.f32.mrb[0].mxu0
    %v1644 = vadd.f32 %v390, %v1643
    %1645 = vmatprep.mubr.bf16.mxu0 %v194
    %1646 = vmatmul.mubr.bf16.gmra.mrb[0].mxu0 %v193
    %v1647 = vpop.f32.mrb[0].mxu0
    %v1648 = vadd.f32 %v386, %v1647
    %v1649 = vpop.f32.mrb[0].mxu0
    %v1650 = vadd.f32 %v390, %v1649
    %v1651 = vpop.f32.mrb[0].mxu0
    %v1652 = vadd.f32 %v386, %v1651
    %v1653 = vpop.f32.mrb[0].mxu0
    %v1654 = vadd.f32 %v390, %v1653
    %1655 = vmatprep.mubr.bf16.mxu0 %v196
    %1656 = vmatmul.mubr.bf16.gmra.mrb[0].mxu0 %v195
    %v1657 = vpop.f32.mrb[0].mxu0
    %v1658 = vadd.f32 %v386, %v1657
    %v1659 = vpop.f32.mrb[0].mxu0
    %v1660 = vadd.f32 %v390, %v1659
    %v1661 = vpop.f32.mrb[0].mxu0
    %v1662 = vadd.f32 %v386, %v1661
    %v1663 = vpop.f32.mrb[0].mxu0
    %v1664 = vadd.f32 %v390, %v1663
    %1665 = vmatprep.mubr.bf16.mxu0 %v198
    %1666 = vmatmul.mubr.bf16.gmra.mrb[0].mxu0 %v197
    %v1667 = vpop.f32.mrb[0].mxu0
    %v1668 = vadd.f32 %v386, %v1667
    %v1669 = vpop.f32.mrb[0].mxu0
    %v1670 = vadd.f32 %v390, %v1669
    %v1671 = vpop.f32.mrb[0].mxu0
    %v1672 = vadd.f32 %v386, %v1671
    %v1673 = vpop.f32.mrb[0].mxu0
    %v1674 = vadd.f32 %v390, %v1673
    %1675 = vmatprep.mubr.bf16.mxu0 %v200
    %1676 = vmatmul.mubr.bf16.gmra.mrb[0].mxu0 %v199
    %v1677 = vpop.f32.mrb[0].mxu0
    %v1678 = vadd.f32 %v386, %v1677
    %v1679 = vpop.f32.mrb[0].mxu0
    %v1680 = vadd.f32 %v390, %v1679
    %v1681 = vpop.f32.mrb[0].mxu0
    %v1682 = vadd.f32 %v386, %v1681
    %v1683 = vpop.f32.mrb[0].mxu0
    %v1684 = vadd.f32 %v390, %v1683
    %1685 = vmatprep.mubr.bf16.mxu0 %v202
    %1686 = vmatmul.mubr.bf16.gmra.mrb[0].mxu0 %v201
    %v1687 = vpop.f32.mrb[0].mxu0
    %v1688 = vadd.f32 %v386, %v1687
    %v1689 = vpop.f32.mrb[0].mxu0
    %v1690 = vadd.f32 %v390, %v1689
    %v1691 = vpop.f32.mrb[0].mxu0
    %v1692 = vadd.f32 %v386, %v1691
    %v1693 = vpop.f32.mrb[0].mxu0
    %v1694 = vadd.f32 %v390, %v1693
    %1695 = vmatprep.mubr.bf16.mxu0 %v204
    %1696 = vmatmul.mubr.bf16.gmra.mrb[0].mxu0 %v203
    %v1697 = vpop.f32.mrb[0].mxu0
    %v1698 = vadd.f32 %v386, %v1697
    %v1699 = vpop.f32.mrb[0].mxu0
    %v1700 = vadd.f32 %v390, %v1699
    %v1701 = vpop.f32.mrb[0].mxu0
    %v1702 = vadd.f32 %v386, %v1701
    %v1703 = vpop.f32.mrb[0].mxu0
    %v1704 = vadd.f32 %v390, %v1703
    %1705 = vmatprep.mubr.bf16.mxu0 %v206
    %1706 = vmatmul.mubr.bf16.gmra.mrb[0].mxu0 %v205
    %v1707 = vpop.f32.mrb[0].mxu0
    %v1708 = vadd.f32 %v386, %v1707
    %v1709 = vpop.f32.mrb[0].mxu0
    %v1710 = vadd.f32 %v390, %v1709
    %v1711 = vpop.f32.mrb[0].mxu0
    %v1712 = vadd.f32 %v386, %v1711
    %v1713 = vpop.f32.mrb[0].mxu0
    %v1714 = vadd.f32 %v390, %v1713
    %1715 = vmatprep.mubr.bf16.mxu0 %v208
    %1716 = vmatmul.mubr.bf16.gmra.mrb[0].mxu0 %v207
    %v1717 = vpop.f32.mrb[0].mxu0
    %v1718 = vadd.f32 %v386, %v1717
    %v1719 = vpop.f32.mrb[0].mxu0
    %v1720 = vadd.f32 %v390, %v1719
    %v1721 = vpop.f32.mrb[0].mxu0
    %v1722 = vadd.f32 %v386, %v1721
    %v1723 = vpop.f32.mrb[0].mxu0
    %v1724 = vadd.f32 %v390, %v1723
    %1725 = vmatprep.mubr.bf16.mxu0 %v210
    %1726 = vmatmul.mubr.bf16.gmra.mrb[0].mxu0 %v209
    %v1727 = vpop.f32.mrb[0].mxu0
    %v1728 = vadd.f32 %v386, %v1727
    %v1729 = vpop.f32.mrb[0].mxu0
    %v1730 = vadd.f32 %v390, %v1729
    %v1731 = vpop.f32.mrb[0].mxu0
    %v1732 = vadd.f32 %v386, %v1731
    %v1733 = vpop.f32.mrb[0].mxu0
    %v1734 = vadd.f32 %v390, %v1733
    %1735 = vmatprep.mubr.bf16.mxu0 %v212
    %1736 = vmatmul.mubr.bf16.gmra.mrb[0].mxu0 %v211
    %v1737 = vpop.f32.mrb[0].mxu0
    %v1738 = vadd.f32 %v386, %v1737
    %v1739 = vpop.f32.mrb[0].mxu0
    %v1740 = vadd.f32 %v390, %v1739
    %v1741 = vpop.f32.mrb[0].mxu0
    %v1742 = vadd.f32 %v386, %v1741
    %v1743 = vpop.f32.mrb[0].mxu0
    %v1744 = vadd.f32 %v390, %v1743
    %1745 = vmatprep.mubr.bf16.mxu0 %v214
    %1746 = vmatmul.mubr.bf16.gmra.mrb[0].mxu0 %v213
    %v1747 = vpop.f32.mrb[0].mxu0
    %v1748 = vadd.f32 %v386, %v1747
    %v1749 = vpop.f32.mrb[0].mxu0
    %v1750 = vadd.f32 %v390, %v1749
    %v1751 = vpop.f32.mrb[0].mxu0
    %v1752 = vadd.f32 %v386, %v1751
    %v1753 = vpop.f32.mrb[0].mxu0
    %v1754 = vadd.f32 %v390, %v1753
    %1755 = vmatprep.mubr.bf16.mxu0 %v216
    %1756 = vmatmul.mubr.bf16.gmra.mrb[0].mxu0 %v215
    %v1757 = vpop.f32.mrb[0].mxu0
    %v1758 = vadd.f32 %v386, %v1757
    %v1759 = vpop.f32.mrb[0].mxu0
    %v1760 = vadd.f32 %v390, %v1759
    %v1761 = vpop.f32.mrb[0].mxu0
    %v1762 = vadd.f32 %v386, %v1761
    %v1763 = vpop.f32.mrb[0].mxu0
    %v1764 = vadd.f32 %v390, %v1763
    %1765 = vmatprep.mubr.bf16.mxu0 %v218
    %1766 = vmatmul.mubr.bf16.gmra.mrb[0].mxu0 %v217
    %v1767 = vpop.f32.mrb[0].mxu0
    %v1768 = vadd.f32 %v386, %v1767
    %v1769 = vpop.f32.mrb[0].mxu0
    %v1770 = vadd.f32 %v390, %v1769
    %v1771 = vpop.f32.mrb[0].mxu0
    %v1772 = vadd.f32 %v386, %v1771
    %v1773 = vpop.f32.mrb[0].mxu0
    %v1774 = vadd.f32 %v390, %v1773
    %1775 = vmatprep.mubr.bf16.mxu0 %v220
    %1776 = vmatmul.mubr.bf16.gmra.mrb[0].mxu0 %v219
    %v1777 = vpop.f32.mrb[0].mxu0
    %v1778 = vadd.f32 %v386, %v1777
    %v1779 = vpop.f32.mrb[0].mxu0
    %v1780 = vadd.f32 %v390, %v1779
    %v1781 = vpop.f32.mrb[0].mxu0
    %v1782 = vadd.f32 %v386, %v1781
    %v1783 = vpop.f32.mrb[0].mxu0
    %v1784 = vadd.f32 %v390, %v1783
    %1785 = vmatprep.mubr.bf16.mxu0 %v222
    %1786 = vmatmul.mubr.bf16.gmra.mrb[0].mxu0 %v221
    %v1787 = vpop.f32.mrb[0].mxu0
    %v1788 = vadd.f32 %v386, %v1787
    %v1789 = vpop.f32.mrb[0].mxu0
    %v1790 = vadd.f32 %v390, %v1789
    %v1791 = vpop.f32.mrb[0].mxu0
    %v1792 = vadd.f32 %v386, %v1791
    %v1793 = vpop.f32.mrb[0].mxu0
    %v1794 = vadd.f32 %v390, %v1793
    %1795 = vmatprep.mubr.bf16.mxu0 %v224
    %1796 = vmatmul.mubr.bf16.gmra.mrb[0].mxu0 %v223
    %v1797 = vpop.f32.mrb[0].mxu0
    %v1798 = vadd.f32 %v386, %v1797
    %v1799 = vpop.f32.mrb[0].mxu0
    %v1800 = vadd.f32 %v390, %v1799
    %v1801 = vpop.f32.mrb[0].mxu0
    %v1802 = vadd.f32 %v386, %v1801
    %v1803 = vpop.f32.mrb[0].mxu0
    %v1804 = vadd.f32 %v390, %v1803
    %1805 = vmatprep.mubr.bf16.mxu0 %v226
    %1806 = vmatmul.mubr.bf16.gmra.mrb[0].mxu0 %v225
    %v1807 = vpop.f32.mrb[0].mxu0
    %v1808 = vadd.f32 %v386, %v1807
    %v1809 = vpop.f32.mrb[0].mxu0
    %v1810 = vadd.f32 %v390, %v1809
    %v1811 = vpop.f32.mrb[0].mxu0
    %v1812 = vadd.f32 %v386, %v1811
    %v1813 = vpop.f32.mrb[0].mxu0
    %v1814 = vadd.f32 %v390, %v1813
    %1815 = vmatprep.mubr.bf16.mxu0 %v228
    %1816 = vmatmul.mubr.bf16.gmra.mrb[0].mxu0 %v227
    %v1817 = vpop.f32.mrb[0].mxu0
    %v1818 = vadd.f32 %v386, %v1817
    %v1819 = vpop.f32.mrb[0].mxu0
    %v1820 = vadd.f32 %v390, %v1819
    %v1821 = vpop.f32.mrb[0].mxu0
    %v1822 = vadd.f32 %v386, %v1821
    %v1823 = vpop.f32.mrb[0].mxu0
    %v1824 = vadd.f32 %v390, %v1823
    %1825 = vmatprep.mubr.bf16.mxu0 %v230
    %1826 = vmatmul.mubr.bf16.gmra.mrb[0].mxu0 %v229
    %v1827 = vpop.f32.mrb[0].mxu0
    %v1828 = vadd.f32 %v386, %v1827
    %v1829 = vpop.f32.mrb[0].mxu0
    %v1830 = vadd.f32 %v390, %v1829
    %v1831 = vpop.f32.mrb[0].mxu0
    %v1832 = vadd.f32 %v386, %v1831
    %v1833 = vpop.f32.mrb[0].mxu0
    %v1834 = vadd.f32 %v390, %v1833
    %1835 = vmatprep.mubr.bf16.mxu0 %v232
    %1836 = vmatmul.mubr.bf16.gmra.mrb[0].mxu0 %v231
    %v1837 = vpop.f32.mrb[0].mxu0
    %v1838 = vadd.f32 %v386, %v1837
    %v1839 = vpop.f32.mrb[0].mxu0
    %v1840 = vadd.f32 %v390, %v1839
    %v1841 = vpop.f32.mrb[0].mxu0
    %v1842 = vadd.f32 %v386, %v1841
    %v1843 = vpop.f32.mrb[0].mxu0
    %v1844 = vadd.f32 %v390, %v1843
    %1845 = vmatprep.mubr.bf16.mxu0 %v234
    %1846 = vmatmul.mubr.bf16.gmra.mrb[0].mxu0 %v233
    %v1847 = vpop.f32.mrb[0].mxu0
    %v1848 = vadd.f32 %v386, %v1847
    %v1849 = vpop.f32.mrb[0].mxu0
    %v1850 = vadd.f32 %v390, %v1849
    %v1851 = vpop.f32.mrb[0].mxu0
    %v1852 = vadd.f32 %v386, %v1851
    %v1853 = vpop.f32.mrb[0].mxu0
    %v1854 = vadd.f32 %v390, %v1853
    %1855 = vmatprep.mubr.bf16.mxu0 %v236
    %1856 = vmatmul.mubr.bf16.gmra.mrb[0].mxu0 %v235
    %v1857 = vpop.f32.mrb[0].mxu0
    %v1858 = vadd.f32 %v386, %v1857
    %v1859 = vpop.f32.mrb[0].mxu0
    %v1860 = vadd.f32 %v390, %v1859
    %v1861 = vpop.f32.mrb[0].mxu0
    %v1862 = vadd.f32 %v386, %v1861
    %v1863 = vpop.f32.mrb[0].mxu0
    %v1864 = vadd.f32 %v390, %v1863
    %1865 = vdwg.mxu0
    %1866 = vmatprep.subr.bf16.mxu0 %v798
    %1867 = vmatpush1.bf16.msra.mxu0 %v797
    %1868 = vmatprep.subr.bf16.mxu0 %v806
    %1869 = vmatpush1.bf16.msra.mxu0 %v805
    %1870 = vmatprep.subr.bf16.mxu0 %v814
    %1871 = vmatpush1.bf16.msra.mxu0 %v813
    %1872 = vmatprep.subr.bf16.mxu0 %v822
    %1873 = vmatpush1.bf16.msra.mxu0 %v821
    %1874 = vmatprep.subr.bf16.mxu0 %v830
    %1875 = vmatpush1.bf16.msra.mxu0 %v829
    %1876 = vmatprep.subr.bf16.mxu0 %v838
    %1877 = vmatpush1.bf16.msra.mxu0 %v837
    %1878 = vmatprep.subr.bf16.mxu0 %v846
    %1879 = vmatpush1.bf16.msra.mxu0 %v845
    %1880 = vmatprep.subr.bf16.mxu0 %v854
    %1881 = vmatpush1.bf16.msra.mxu0 %v853
    %1882 = vmatprep.subr.bf16.mxu0 %v862
    %1883 = vmatpush1.bf16.msra.mxu0 %v861
    %1884 = vmatprep.subr.bf16.mxu0 %v870
    %1885 = vmatpush1.bf16.msra.mxu0 %v869
    %1886 = vmatprep.subr.bf16.mxu0 %v878
    %1887 = vmatpush1.bf16.msra.mxu0 %v877
    %1888 = vmatprep.subr.bf16.mxu0 %v886
    %1889 = vmatpush1.bf16.msra.mxu0 %v885
    %1890 = vmatprep.subr.bf16.mxu0 %v894
    %1891 = vmatpush1.bf16.msra.mxu0 %v893
    %1892 = vmatprep.subr.bf16.mxu0 %v902
    %1893 = vmatpush1.bf16.msra.mxu0 %v901
    %1894 = vmatprep.subr.bf16.mxu0 %v910
    %1895 = vmatpush1.bf16.msra.mxu0 %v909
    %1896 = vmatprep.subr.bf16.mxu0 %v918
    %1897 = vmatpush1.bf16.msra.mxu0 %v917
    %1898 = vmatprep.mubr.bf16.mxu0 %v190
    %1899 = vmatmul.mubr.bf16.gmra.mrb[0].mxu0 %v189
    %v1900 = vpop.f32.mrb[0].mxu0
    %v1901 = vadd.f32 %v394, %v1900
    %v1902 = vpop.f32.mrb[0].mxu0
    %v1903 = vadd.f32 %v398, %v1902
    %v1904 = vpop.f32.mrb[0].mxu0
    %v1905 = vadd.f32 %v394, %v1904
    %v1906 = vpop.f32.mrb[0].mxu0
    %v1907 = vadd.f32 %v398, %v1906
    %1908 = vmatprep.mubr.bf16.mxu0 %v192
    %1909 = vmatmul.mubr.bf16.gmra.mrb[0].mxu0 %v191
    %v1910 = vpop.f32.mrb[0].mxu0
    %v1911 = vadd.f32 %v394, %v1910
    %v1912 = vpop.f32.mrb[0].mxu0
    %v1913 = vadd.f32 %v398, %v1912
    %v1914 = vpop.f32.mrb[0].mxu0
    %v1915 = vadd.f32 %v394, %v1914
    %v1916 = vpop.f32.mrb[0].mxu0
    %v1917 = vadd.f32 %v398, %v1916
    %1918 = vmatprep.mubr.bf16.mxu0 %v194
    %1919 = vmatmul.mubr.bf16.gmra.mrb[0].mxu0 %v193
    %v1920 = vpop.f32.mrb[0].mxu0
    %v1921 = vadd.f32 %v394, %v1920
    %v1922 = vpop.f32.mrb[0].mxu0
    %v1923 = vadd.f32 %v398, %v1922
    %v1924 = vpop.f32.mrb[0].mxu0
    %v1925 = vadd.f32 %v394, %v1924
    %v1926 = vpop.f32.mrb[0].mxu0
    %v1927 = vadd.f32 %v398, %v1926
    %1928 = vmatprep.mubr.bf16.mxu0 %v196
    %1929 = vmatmul.mubr.bf16.gmra.mrb[0].mxu0 %v195
    %v1930 = vpop.f32.mrb[0].mxu0
    %v1931 = vadd.f32 %v394, %v1930
    %v1932 = vpop.f32.mrb[0].mxu0
    %v1933 = vadd.f32 %v398, %v1932
    %v1934 = vpop.f32.mrb[0].mxu0
    %v1935 = vadd.f32 %v394, %v1934
    %v1936 = vpop.f32.mrb[0].mxu0
    %v1937 = vadd.f32 %v398, %v1936
    %1938 = vmatprep.mubr.bf16.mxu0 %v198
    %1939 = vmatmul.mubr.bf16.gmra.mrb[0].mxu0 %v197
    %v1940 = vpop.f32.mrb[0].mxu0
    %v1941 = vadd.f32 %v394, %v1940
    %v1942 = vpop.f32.mrb[0].mxu0
    %v1943 = vadd.f32 %v398, %v1942
    %v1944 = vpop.f32.mrb[0].mxu0
    %v1945 = vadd.f32 %v394, %v1944
    %v1946 = vpop.f32.mrb[0].mxu0
    %v1947 = vadd.f32 %v398, %v1946
    %1948 = vmatprep.mubr.bf16.mxu0 %v200
    %1949 = vmatmul.mubr.bf16.gmra.mrb[0].mxu0 %v199
    %v1950 = vpop.f32.mrb[0].mxu0
    %v1951 = vadd.f32 %v394, %v1950
    %v1952 = vpop.f32.mrb[0].mxu0
    %v1953 = vadd.f32 %v398, %v1952
    %v1954 = vpop.f32.mrb[0].mxu0
    %v1955 = vadd.f32 %v394, %v1954
    %v1956 = vpop.f32.mrb[0].mxu0
    %v1957 = vadd.f32 %v398, %v1956
    %1958 = vmatprep.mubr.bf16.mxu0 %v202
    %1959 = vmatmul.mubr.bf16.gmra.mrb[0].mxu0 %v201
    %v1960 = vpop.f32.mrb[0].mxu0
    %v1961 = vadd.f32 %v394, %v1960
    %v1962 = vpop.f32.mrb[0].mxu0
    %v1963 = vadd.f32 %v398, %v1962
    %v1964 = vpop.f32.mrb[0].mxu0
    %v1965 = vadd.f32 %v394, %v1964
    %v1966 = vpop.f32.mrb[0].mxu0
    %v1967 = vadd.f32 %v398, %v1966
    %1968 = vmatprep.mubr.bf16.mxu0 %v204
    %1969 = vmatmul.mubr.bf16.gmra.mrb[0].mxu0 %v203
    %v1970 = vpop.f32.mrb[0].mxu0
    %v1971 = vadd.f32 %v394, %v1970
    %v1972 = vpop.f32.mrb[0].mxu0
    %v1973 = vadd.f32 %v398, %v1972
    %v1974 = vpop.f32.mrb[0].mxu0
    %v1975 = vadd.f32 %v394, %v1974
    %v1976 = vpop.f32.mrb[0].mxu0
    %v1977 = vadd.f32 %v398, %v1976
    %1978 = vmatprep.mubr.bf16.mxu0 %v206
    %1979 = vmatmul.mubr.bf16.gmra.mrb[0].mxu0 %v205
    %v1980 = vpop.f32.mrb[0].mxu0
    %v1981 = vadd.f32 %v394, %v1980
    %v1982 = vpop.f32.mrb[0].mxu0
    %v1983 = vadd.f32 %v398, %v1982
    %v1984 = vpop.f32.mrb[0].mxu0
    %v1985 = vadd.f32 %v394, %v1984
    %v1986 = vpop.f32.mrb[0].mxu0
    %v1987 = vadd.f32 %v398, %v1986
    %1988 = vmatprep.mubr.bf16.mxu0 %v208
    %1989 = vmatmul.mubr.bf16.gmra.mrb[0].mxu0 %v207
    %v1990 = vpop.f32.mrb[0].mxu0
    %v1991 = vadd.f32 %v394, %v1990
    %v1992 = vpop.f32.mrb[0].mxu0
    %v1993 = vadd.f32 %v398, %v1992
    %v1994 = vpop.f32.mrb[0].mxu0
    %v1995 = vadd.f32 %v394, %v1994
    %v1996 = vpop.f32.mrb[0].mxu0
    %v1997 = vadd.f32 %v398, %v1996
    %1998 = vmatprep.mubr.bf16.mxu0 %v210
    %1999 = vmatmul.mubr.bf16.gmra.mrb[0].mxu0 %v209
    %v2000 = vpop.f32.mrb[0].mxu0
    %v2001 = vadd.f32 %v394, %v2000
    %v2002 = vpop.f32.mrb[0].mxu0
    %v2003 = vadd.f32 %v398, %v2002
    %v2004 = vpop.f32.mrb[0].mxu0
    %v2005 = vadd.f32 %v394, %v2004
    %v2006 = vpop.f32.mrb[0].mxu0
    %v2007 = vadd.f32 %v398, %v2006
    %2008 = vmatprep.mubr.bf16.mxu0 %v212
    %2009 = vmatmul.mubr.bf16.gmra.mrb[0].mxu0 %v211
    %v2010 = vpop.f32.mrb[0].mxu0
    %v2011 = vadd.f32 %v394, %v2010
    %v2012 = vpop.f32.mrb[0].mxu0
    %v2013 = vadd.f32 %v398, %v2012
    %v2014 = vpop.f32.mrb[0].mxu0
    %v2015 = vadd.f32 %v394, %v2014
    %v2016 = vpop.f32.mrb[0].mxu0
    %v2017 = vadd.f32 %v398, %v2016
    %2018 = vmatprep.mubr.bf16.mxu0 %v214
    %2019 = vmatmul.mubr.bf16.gmra.mrb[0].mxu0 %v213
    %v2020 = vpop.f32.mrb[0].mxu0
    %v2021 = vadd.f32 %v394, %v2020
    %v2022 = vpop.f32.mrb[0].mxu0
    %v2023 = vadd.f32 %v398, %v2022
    %v2024 = vpop.f32.mrb[0].mxu0
    %v2025 = vadd.f32 %v394, %v2024
    %v2026 = vpop.f32.mrb[0].mxu0
    %v2027 = vadd.f32 %v398, %v2026
    %2028 = vmatprep.mubr.bf16.mxu0 %v216
    %2029 = vmatmul.mubr.bf16.gmra.mrb[0].mxu0 %v215
    %v2030 = vpop.f32.mrb[0].mxu0
    %v2031 = vadd.f32 %v394, %v2030
    %v2032 = vpop.f32.mrb[0].mxu0
    %v2033 = vadd.f32 %v398, %v2032
    %v2034 = vpop.f32.mrb[0].mxu0
    %v2035 = vadd.f32 %v394, %v2034
    %v2036 = vpop.f32.mrb[0].mxu0
    %v2037 = vadd.f32 %v398, %v2036
    %2038 = vmatprep.mubr.bf16.mxu0 %v218
    %2039 = vmatmul.mubr.bf16.gmra.mrb[0].mxu0 %v217
    %v2040 = vpop.f32.mrb[0].mxu0
    %v2041 = vadd.f32 %v394, %v2040
    %v2042 = vpop.f32.mrb[0].mxu0
    %v2043 = vadd.f32 %v398, %v2042
    %v2044 = vpop.f32.mrb[0].mxu0
    %v2045 = vadd.f32 %v394, %v2044
    %v2046 = vpop.f32.mrb[0].mxu0
    %v2047 = vadd.f32 %v398, %v2046
    %2048 = vmatprep.mubr.bf16.mxu0 %v220
    %2049 = vmatmul.mubr.bf16.gmra.mrb[0].mxu0 %v219
    %v2050 = vpop.f32.mrb[0].mxu0
    %v2051 = vadd.f32 %v394, %v2050
    %v2052 = vpop.f32.mrb[0].mxu0
    %v2053 = vadd.f32 %v398, %v2052
    %v2054 = vpop.f32.mrb[0].mxu0
    %v2055 = vadd.f32 %v394, %v2054
    %v2056 = vpop.f32.mrb[0].mxu0
    %v2057 = vadd.f32 %v398, %v2056
    %2058 = vmatprep.mubr.bf16.mxu0 %v222
    %2059 = vmatmul.mubr.bf16.gmra.mrb[0].mxu0 %v221
    %v2060 = vpop.f32.mrb[0].mxu0
    %v2061 = vadd.f32 %v394, %v2060
    %v2062 = vpop.f32.mrb[0].mxu0
    %v2063 = vadd.f32 %v398, %v2062
    %v2064 = vpop.f32.mrb[0].mxu0
    %v2065 = vadd.f32 %v394, %v2064
    %v2066 = vpop.f32.mrb[0].mxu0
    %v2067 = vadd.f32 %v398, %v2066
    %2068 = vmatprep.mubr.bf16.mxu0 %v224
    %2069 = vmatmul.mubr.bf16.gmra.mrb[0].mxu0 %v223
    %v2070 = vpop.f32.mrb[0].mxu0
    %v2071 = vadd.f32 %v394, %v2070
    %v2072 = vpop.f32.mrb[0].mxu0
    %v2073 = vadd.f32 %v398, %v2072
    %v2074 = vpop.f32.mrb[0].mxu0
    %v2075 = vadd.f32 %v394, %v2074
    %v2076 = vpop.f32.mrb[0].mxu0
    %v2077 = vadd.f32 %v398, %v2076
    %2078 = vmatprep.mubr.bf16.mxu0 %v226
    %2079 = vmatmul.mubr.bf16.gmra.mrb[0].mxu0 %v225
    %v2080 = vpop.f32.mrb[0].mxu0
    %v2081 = vadd.f32 %v394, %v2080
    %v2082 = vpop.f32.mrb[0].mxu0
    %v2083 = vadd.f32 %v398, %v2082
    %v2084 = vpop.f32.mrb[0].mxu0
    %v2085 = vadd.f32 %v394, %v2084
    %v2086 = vpop.f32.mrb[0].mxu0
    %v2087 = vadd.f32 %v398, %v2086
    %2088 = vmatprep.mubr.bf16.mxu0 %v228
    %2089 = vmatmul.mubr.bf16.gmra.mrb[0].mxu0 %v227
    %v2090 = vpop.f32.mrb[0].mxu0
    %v2091 = vadd.f32 %v394, %v2090
    %v2092 = vpop.f32.mrb[0].mxu0
    %v2093 = vadd.f32 %v398, %v2092
    %v2094 = vpop.f32.mrb[0].mxu0
    %v2095 = vadd.f32 %v394, %v2094
    %v2096 = vpop.f32.mrb[0].mxu0
    %v2097 = vadd.f32 %v398, %v2096
    %2098 = vmatprep.mubr.bf16.mxu0 %v230
    %2099 = vmatmul.mubr.bf16.gmra.mrb[0].mxu0 %v229
    %v2100 = vpop.f32.mrb[0].mxu0
    %v2101 = vadd.f32 %v394, %v2100
    %v2102 = vpop.f32.mrb[0].mxu0
    %v2103 = vadd.f32 %v398, %v2102
    %v2104 = vpop.f32.mrb[0].mxu0
    %v2105 = vadd.f32 %v394, %v2104
    %v2106 = vpop.f32.mrb[0].mxu0
    %v2107 = vadd.f32 %v398, %v2106
    %2108 = vmatprep.mubr.bf16.mxu0 %v232
    %2109 = vmatmul.mubr.bf16.gmra.mrb[0].mxu0 %v231
    %v2110 = vpop.f32.mrb[0].mxu0
    %v2111 = vadd.f32 %v394, %v2110
    %v2112 = vpop.f32.mrb[0].mxu0
    %v2113 = vadd.f32 %v398, %v2112
    %v2114 = vpop.f32.mrb[0].mxu0
    %v2115 = vadd.f32 %v394, %v2114
    %v2116 = vpop.f32.mrb[0].mxu0
    %v2117 = vadd.f32 %v398, %v2116
    %2118 = vmatprep.mubr.bf16.mxu0 %v234
    %2119 = vmatmul.mubr.bf16.gmra.mrb[0].mxu0 %v233
    %v2120 = vpop.f32.mrb[0].mxu0
    %v2121 = vadd.f32 %v394, %v2120
    %v2122 = vpop.f32.mrb[0].mxu0
    %v2123 = vadd.f32 %v398, %v2122
    %v2124 = vpop.f32.mrb[0].mxu0
    %v2125 = vadd.f32 %v394, %v2124
    %v2126 = vpop.f32.mrb[0].mxu0
    %v2127 = vadd.f32 %v398, %v2126
    %2128 = vmatprep.mubr.bf16.mxu0 %v236
    %2129 = vmatmul.mubr.bf16.gmra.mrb[0].mxu0 %v235
    %v2130 = vpop.f32.mrb[0].mxu0
    %v2131 = vadd.f32 %v394, %v2130
    %v2132 = vpop.f32.mrb[0].mxu0
    %v2133 = vadd.f32 %v398, %v2132
    %v2134 = vpop.f32.mrb[0].mxu0
    %v2135 = vadd.f32 %v394, %v2134
    %v2136 = vpop.f32.mrb[0].mxu0
    %v2137 = vadd.f32 %v398, %v2136
    %2138 = vdwg.mxu0
    %v2139 = vmul.f32 %v1082, 0.5
    %v2140 = vmul.f32 %v1084, 0.5
    %v2141 = vmul.f32 %v1355, 0.5
    %v2142 = vmul.f32 %v1357, 0.5
    %v2143 = vmul.f32 %v1628, 0.5
    %v2144 = vmul.f32 %v1630, 0.5
    %v2145 = vmul.f32 %v1901, 0.5
    %v2146 = vmul.f32 %v1903, 0.5
    %v2147 = vmul.f32 %v1086, 0.5
    %v2148 = vmul.f32 %v1088, 0.5
    %v2149 = vmul.f32 %v1359, 0.5
    %v2150 = vmul.f32 %v1361, 0.5
    %v2151 = vmul.f32 %v1632, 0.5
    %v2152 = vmul.f32 %v1634, 0.5
    %v2153 = vmul.f32 %v1905, 0.5
    %v2154 = vmul.f32 %v1907, 0.5
    %v2155 = vmul.f32 %v1092, 0.5
    %v2156 = vmul.f32 %v1094, 0.5
    %v2157 = vmul.f32 %v1365, 0.5
    %v2158 = vmul.f32 %v1367, 0.5
    %v2159 = vmul.f32 %v1638, 0.5
    %v2160 = vmul.f32 %v1640, 0.5
    %v2161 = vmul.f32 %v1911, 0.5
    %v2162 = vmul.f32 %v1913, 0.5
    %v2163 = vmul.f32 %v1096, 0.5
    %v2164 = vmul.f32 %v1098, 0.5
    %v2165 = vmul.f32 %v1369, 0.5
    %v2166 = vmul.f32 %v1371, 0.5
    %v2167 = vmul.f32 %v1642, 0.5
    %v2168 = vmul.f32 %v1644, 0.5
    %v2169 = vmul.f32 %v1915, 0.5
    %v2170 = vmul.f32 %v1917, 0.5
    %v2171 = vmul.f32 %v1102, 0.5
    %v2172 = vmul.f32 %v1104, 0.5
    %v2173 = vmul.f32 %v1375, 0.5
    %v2174 = vmul.f32 %v1377, 0.5
    %v2175 = vmul.f32 %v1648, 0.5
    %v2176 = vmul.f32 %v1650, 0.5
    %v2177 = vmul.f32 %v1921, 0.5
    %v2178 = vmul.f32 %v1923, 0.5
    %v2179 = vmul.f32 %v1106, 0.5
    %v2180 = vmul.f32 %v1108, 0.5
    %v2181 = vmul.f32 %v1379, 0.5
    %v2182 = vmul.f32 %v1381, 0.5
    %v2183 = vmul.f32 %v1652, 0.5
    %v2184 = vmul.f32 %v1654, 0.5
    %v2185 = vmul.f32 %v1925, 0.5
    %v2186 = vmul.f32 %v1927, 0.5
    %v2187 = vmul.f32 %v1112, 0.5
    %v2188 = vmul.f32 %v1114, 0.5
    %v2189 = vmul.f32 %v1385, 0.5
    %v2190 = vmul.f32 %v1387, 0.5
    %v2191 = vmul.f32 %v1658, 0.5
    %v2192 = vmul.f32 %v1660, 0.5
    %v2193 = vmul.f32 %v1931, 0.5
    %v2194 = vmul.f32 %v1933, 0.5
    %v2195 = vmul.f32 %v1116, 0.5
    %v2196 = vmul.f32 %v1118, 0.5
    %v2197 = vmul.f32 %v1389, 0.5
    %v2198 = vmul.f32 %v1391, 0.5
    %v2199 = vmul.f32 %v1662, 0.5
    %v2200 = vmul.f32 %v1664, 0.5
    %v2201 = vmul.f32 %v1935, 0.5
    %v2202 = vmul.f32 %v1937, 0.5
    %v2203 = vmul.f32 %v1122, 0.5
    %v2204 = vmul.f32 %v1124, 0.5
    %v2205 = vmul.f32 %v1395, 0.5
    %v2206 = vmul.f32 %v1397, 0.5
    %v2207 = vmul.f32 %v1668, 0.5
    %v2208 = vmul.f32 %v1670, 0.5
    %v2209 = vmul.f32 %v1941, 0.5
    %v2210 = vmul.f32 %v1943, 0.5
    %v2211 = vmul.f32 %v1126, 0.5
    %v2212 = vmul.f32 %v1128, 0.5
    %v2213 = vmul.f32 %v1399, 0.5
    %v2214 = vmul.f32 %v1401, 0.5
    %v2215 = vmul.f32 %v1672, 0.5
    %v2216 = vmul.f32 %v1674, 0.5
    %v2217 = vmul.f32 %v1945, 0.5
    %v2218 = vmul.f32 %v1947, 0.5
    %v2219 = vmul.f32 %v1132, 0.5
    %v2220 = vmul.f32 %v1134, 0.5
    %v2221 = vmul.f32 %v1405, 0.5
    %v2222 = vmul.f32 %v1407, 0.5
    %v2223 = vmul.f32 %v1678, 0.5
    %v2224 = vmul.f32 %v1680, 0.5
    %v2225 = vmul.f32 %v1951, 0.5
    %v2226 = vmul.f32 %v1953, 0.5
    %v2227 = vmul.f32 %v1136, 0.5
    %v2228 = vmul.f32 %v1138, 0.5
    %v2229 = vmul.f32 %v1409, 0.5
    %v2230 = vmul.f32 %v1411, 0.5
    %v2231 = vmul.f32 %v1682, 0.5
    %v2232 = vmul.f32 %v1684, 0.5
    %v2233 = vmul.f32 %v1955, 0.5
    %v2234 = vmul.f32 %v1957, 0.5
    %v2235 = vmul.f32 %v1142, 0.5
    %v2236 = vmul.f32 %v1144, 0.5
    %v2237 = vmul.f32 %v1415, 0.5
    %v2238 = vmul.f32 %v1417, 0.5
    %v2239 = vmul.f32 %v1688, 0.5
    %v2240 = vmul.f32 %v1690, 0.5
    %v2241 = vmul.f32 %v1961, 0.5
    %v2242 = vmul.f32 %v1963, 0.5
    %v2243 = vmul.f32 %v1146, 0.5
    %v2244 = vmul.f32 %v1148, 0.5
    %v2245 = vmul.f32 %v1419, 0.5
    %v2246 = vmul.f32 %v1421, 0.5
    %v2247 = vmul.f32 %v1692, 0.5
    %v2248 = vmul.f32 %v1694, 0.5
    %v2249 = vmul.f32 %v1965, 0.5
    %v2250 = vmul.f32 %v1967, 0.5
    %v2251 = vmul.f32 %v1152, 0.5
    %v2252 = vmul.f32 %v1154, 0.5
    %v2253 = vmul.f32 %v1425, 0.5
    %v2254 = vmul.f32 %v1427, 0.5
    %v2255 = vmul.f32 %v1698, 0.5
    %v2256 = vmul.f32 %v1700, 0.5
    %v2257 = vmul.f32 %v1971, 0.5
    %v2258 = vmul.f32 %v1973, 0.5
    %v2259 = vmul.f32 %v1156, 0.5
    %v2260 = vmul.f32 %v1158, 0.5
    %v2261 = vmul.f32 %v1429, 0.5
    %v2262 = vmul.f32 %v1431, 0.5
    %v2263 = vmul.f32 %v1702, 0.5
    %v2264 = vmul.f32 %v1704, 0.5
    %v2265 = vmul.f32 %v1975, 0.5
    %v2266 = vmul.f32 %v1977, 0.5
    %v2267 = vmul.f32 %v1162, 0.5
    %v2268 = vmul.f32 %v1164, 0.5
    %v2269 = vmul.f32 %v1435, 0.5
    %v2270 = vmul.f32 %v1437, 0.5
    %v2271 = vmul.f32 %v1708, 0.5
    %v2272 = vmul.f32 %v1710, 0.5
    %v2273 = vmul.f32 %v1981, 0.5
    %v2274 = vmul.f32 %v1983, 0.5
    %v2275 = vmul.f32 %v1166, 0.5
    %v2276 = vmul.f32 %v1168, 0.5
    %v2277 = vmul.f32 %v1439, 0.5
    %v2278 = vmul.f32 %v1441, 0.5
    %v2279 = vmul.f32 %v1712, 0.5
    %v2280 = vmul.f32 %v1714, 0.5
    %v2281 = vmul.f32 %v1985, 0.5
    %v2282 = vmul.f32 %v1987, 0.5
    %v2283 = vmul.f32 %v1172, 0.5
    %v2284 = vmul.f32 %v1174, 0.5
    %v2285 = vmul.f32 %v1445, 0.5
    %v2286 = vmul.f32 %v1447, 0.5
    %v2287 = vmul.f32 %v1718, 0.5
    %v2288 = vmul.f32 %v1720, 0.5
    %v2289 = vmul.f32 %v1991, 0.5
    %v2290 = vmul.f32 %v1993, 0.5
    %v2291 = vmul.f32 %v1176, 0.5
    %v2292 = vmul.f32 %v1178, 0.5
    %v2293 = vmul.f32 %v1449, 0.5
    %v2294 = vmul.f32 %v1451, 0.5
    %v2295 = vmul.f32 %v1722, 0.5
    %v2296 = vmul.f32 %v1724, 0.5
    %v2297 = vmul.f32 %v1995, 0.5
    %v2298 = vmul.f32 %v1997, 0.5
    %v2299 = vmul.f32 %v1182, 0.5
    %v2300 = vmul.f32 %v1184, 0.5
    %v2301 = vmul.f32 %v1455, 0.5
    %v2302 = vmul.f32 %v1457, 0.5
    %v2303 = vmul.f32 %v1728, 0.5
    %v2304 = vmul.f32 %v1730, 0.5
    %v2305 = vmul.f32 %v2001, 0.5
    %v2306 = vmul.f32 %v2003, 0.5
    %v2307 = vmul.f32 %v1186, 0.5
    %v2308 = vmul.f32 %v1188, 0.5
    %v2309 = vmul.f32 %v1459, 0.5
    %v2310 = vmul.f32 %v1461, 0.5
    %v2311 = vmul.f32 %v1732, 0.5
    %v2312 = vmul.f32 %v1734, 0.5
    %v2313 = vmul.f32 %v2005, 0.5
    %v2314 = vmul.f32 %v2007, 0.5
    %v2315 = vmul.f32 %v1192, 0.5
    %v2316 = vmul.f32 %v1194, 0.5
    %v2317 = vmul.f32 %v1465, 0.5
    %v2318 = vmul.f32 %v1467, 0.5
    %v2319 = vmul.f32 %v1738, 0.5
    %v2320 = vmul.f32 %v1740, 0.5
    %v2321 = vmul.f32 %v2011, 0.5
    %v2322 = vmul.f32 %v2013, 0.5
    %v2323 = vmul.f32 %v1196, 0.5
    %v2324 = vmul.f32 %v1198, 0.5
    %v2325 = vmul.f32 %v1469, 0.5
    %v2326 = vmul.f32 %v1471, 0.5
    %v2327 = vmul.f32 %v1742, 0.5
    %v2328 = vmul.f32 %v1744, 0.5
    %v2329 = vmul.f32 %v2015, 0.5
    %v2330 = vmul.f32 %v2017, 0.5
    %v2331 = vmul.f32 %v1202, 0.5
    %v2332 = vmul.f32 %v1204, 0.5
    %v2333 = vmul.f32 %v1475, 0.5
    %v2334 = vmul.f32 %v1477, 0.5
    %v2335 = vmul.f32 %v1748, 0.5
    %v2336 = vmul.f32 %v1750, 0.5
    %v2337 = vmul.f32 %v2021, 0.5
    %v2338 = vmul.f32 %v2023, 0.5
    %v2339 = vmul.f32 %v1206, 0.5
    %v2340 = vmul.f32 %v1208, 0.5
    %v2341 = vmul.f32 %v1479, 0.5
    %v2342 = vmul.f32 %v1481, 0.5
    %v2343 = vmul.f32 %v1752, 0.5
    %v2344 = vmul.f32 %v1754, 0.5
    %v2345 = vmul.f32 %v2025, 0.5
    %v2346 = vmul.f32 %v2027, 0.5
    %v2347 = vmul.f32 %v1212, 0.5
    %v2348 = vmul.f32 %v1214, 0.5
    %v2349 = vmul.f32 %v1485, 0.5
    %v2350 = vmul.f32 %v1487, 0.5
    %v2351 = vmul.f32 %v1758, 0.5
    %v2352 = vmul.f32 %v1760, 0.5
    %v2353 = vmul.f32 %v2031, 0.5
    %v2354 = vmul.f32 %v2033, 0.5
    %v2355 = vmul.f32 %v1216, 0.5
    %v2356 = vmul.f32 %v1218, 0.5
    %v2357 = vmul.f32 %v1489, 0.5
    %v2358 = vmul.f32 %v1491, 0.5
    %v2359 = vmul.f32 %v1762, 0.5
    %v2360 = vmul.f32 %v1764, 0.5
    %v2361 = vmul.f32 %v2035, 0.5
    %v2362 = vmul.f32 %v2037, 0.5
    %v2363 = vmul.f32 %v1222, 0.5
    %v2364 = vmul.f32 %v1224, 0.5
    %v2365 = vmul.f32 %v1495, 0.5
    %v2366 = vmul.f32 %v1497, 0.5
    %v2367 = vmul.f32 %v1768, 0.5
    %v2368 = vmul.f32 %v1770, 0.5
    %v2369 = vmul.f32 %v2041, 0.5
    %v2370 = vmul.f32 %v2043, 0.5
    %v2371 = vmul.f32 %v1226, 0.5
    %v2372 = vmul.f32 %v1228, 0.5
    %v2373 = vmul.f32 %v1499, 0.5
    %v2374 = vmul.f32 %v1501, 0.5
    %v2375 = vmul.f32 %v1772, 0.5
    %v2376 = vmul.f32 %v1774, 0.5
    %v2377 = vmul.f32 %v2045, 0.5
    %v2378 = vmul.f32 %v2047, 0.5
    %v2379 = vmul.f32 %v1232, 0.5
    %v2380 = vmul.f32 %v1234, 0.5
    %v2381 = vmul.f32 %v1505, 0.5
    %v2382 = vmul.f32 %v1507, 0.5
    %v2383 = vmul.f32 %v1778, 0.5
    %v2384 = vmul.f32 %v1780, 0.5
    %v2385 = vmul.f32 %v2051, 0.5
    %v2386 = vmul.f32 %v2053, 0.5
    %v2387 = vmul.f32 %v1236, 0.5
    %v2388 = vmul.f32 %v1238, 0.5
    %v2389 = vmul.f32 %v1509, 0.5
    %v2390 = vmul.f32 %v1511, 0.5
    %v2391 = vmul.f32 %v1782, 0.5
    %v2392 = vmul.f32 %v1784, 0.5
    %v2393 = vmul.f32 %v2055, 0.5
    %v2394 = vmul.f32 %v2057, 0.5
    %v2395 = vmul.f32 %v1242, 0.5
    %v2396 = vmul.f32 %v1244, 0.5
    %v2397 = vmul.f32 %v1515, 0.5
    %v2398 = vmul.f32 %v1517, 0.5
    %v2399 = vmul.f32 %v1788, 0.5
    %v2400 = vmul.f32 %v1790, 0.5
    %v2401 = vmul.f32 %v2061, 0.5
    %v2402 = vmul.f32 %v2063, 0.5
    %v2403 = vmul.f32 %v1246, 0.5
    %v2404 = vmul.f32 %v1248, 0.5
    %v2405 = vmul.f32 %v1519, 0.5
    %v2406 = vmul.f32 %v1521, 0.5
    %v2407 = vmul.f32 %v1792, 0.5
    %v2408 = vmul.f32 %v1794, 0.5
    %v2409 = vmul.f32 %v2065, 0.5
    %v2410 = vmul.f32 %v2067, 0.5
    %v2411 = vmul.f32 %v1252, 0.5
    %v2412 = vmul.f32 %v1254, 0.5
    %v2413 = vmul.f32 %v1525, 0.5
    %v2414 = vmul.f32 %v1527, 0.5
    %v2415 = vmul.f32 %v1798, 0.5
    %v2416 = vmul.f32 %v1800, 0.5
    %v2417 = vmul.f32 %v2071, 0.5
    %v2418 = vmul.f32 %v2073, 0.5
    %v2419 = vmul.f32 %v1256, 0.5
    %v2420 = vmul.f32 %v1258, 0.5
    %v2421 = vmul.f32 %v1529, 0.5
    %v2422 = vmul.f32 %v1531, 0.5
    %v2423 = vmul.f32 %v1802, 0.5
    %v2424 = vmul.f32 %v1804, 0.5
    %v2425 = vmul.f32 %v2075, 0.5
    %v2426 = vmul.f32 %v2077, 0.5
    %v2427 = vmul.f32 %v1262, 0.5
    %v2428 = vmul.f32 %v1264, 0.5
    %v2429 = vmul.f32 %v1535, 0.5
    %v2430 = vmul.f32 %v1537, 0.5
    %v2431 = vmul.f32 %v1808, 0.5
    %v2432 = vmul.f32 %v1810, 0.5
    %v2433 = vmul.f32 %v2081, 0.5
    %v2434 = vmul.f32 %v2083, 0.5
    %v2435 = vmul.f32 %v1266, 0.5
    %v2436 = vmul.f32 %v1268, 0.5
    %v2437 = vmul.f32 %v1539, 0.5
    %v2438 = vmul.f32 %v1541, 0.5
    %v2439 = vmul.f32 %v1812, 0.5
    %v2440 = vmul.f32 %v1814, 0.5
    %v2441 = vmul.f32 %v2085, 0.5
    %v2442 = vmul.f32 %v2087, 0.5
    %v2443 = vmul.f32 %v1272, 0.5
    %v2444 = vmul.f32 %v1274, 0.5
    %v2445 = vmul.f32 %v1545, 0.5
    %v2446 = vmul.f32 %v1547, 0.5
    %v2447 = vmul.f32 %v1818, 0.5
    %v2448 = vmul.f32 %v1820, 0.5
    %v2449 = vmul.f32 %v2091, 0.5
    %v2450 = vmul.f32 %v2093, 0.5
    %v2451 = vmul.f32 %v1276, 0.5
    %v2452 = vmul.f32 %v1278, 0.5
    %v2453 = vmul.f32 %v1549, 0.5
    %v2454 = vmul.f32 %v1551, 0.5
    %v2455 = vmul.f32 %v1822, 0.5
    %v2456 = vmul.f32 %v1824, 0.5
    %v2457 = vmul.f32 %v2095, 0.5
    %v2458 = vmul.f32 %v2097, 0.5
    %v2459 = vmul.f32 %v1282, 0.5
    %v2460 = vmul.f32 %v1284, 0.5
    %v2461 = vmul.f32 %v1555, 0.5
    %v2462 = vmul.f32 %v1557, 0.5
    %v2463 = vmul.f32 %v1828, 0.5
    %v2464 = vmul.f32 %v1830, 0.5
    %v2465 = vmul.f32 %v2101, 0.5
    %v2466 = vmul.f32 %v2103, 0.5
    %v2467 = vmul.f32 %v1286, 0.5
    %v2468 = vmul.f32 %v1288, 0.5
    %v2469 = vmul.f32 %v1559, 0.5
    %v2470 = vmul.f32 %v1561, 0.5
    %v2471 = vmul.f32 %v1832, 0.5
    %v2472 = vmul.f32 %v1834, 0.5
    %v2473 = vmul.f32 %v2105, 0.5
    %v2474 = vmul.f32 %v2107, 0.5
    %v2475 = vmul.f32 %v1292, 0.5
    %v2476 = vmul.f32 %v1294, 0.5
    %v2477 = vmul.f32 %v1565, 0.5
    %v2478 = vmul.f32 %v1567, 0.5
    %v2479 = vmul.f32 %v1838, 0.5
    %v2480 = vmul.f32 %v1840, 0.5
    %v2481 = vmul.f32 %v2111, 0.5
    %v2482 = vmul.f32 %v2113, 0.5
    %v2483 = vmul.f32 %v1296, 0.5
    %v2484 = vmul.f32 %v1298, 0.5
    %v2485 = vmul.f32 %v1569, 0.5
    %v2486 = vmul.f32 %v1571, 0.5
    %v2487 = vmul.f32 %v1842, 0.5
    %v2488 = vmul.f32 %v1844, 0.5
    %v2489 = vmul.f32 %v2115, 0.5
    %v2490 = vmul.f32 %v2117, 0.5
    %v2491 = vmul.f32 %v1302, 0.5
    %v2492 = vmul.f32 %v1304, 0.5
    %v2493 = vmul.f32 %v1575, 0.5
    %v2494 = vmul.f32 %v1577, 0.5
    %v2495 = vmul.f32 %v1848, 0.5
    %v2496 = vmul.f32 %v1850, 0.5
    %v2497 = vmul.f32 %v2121, 0.5
    %v2498 = vmul.f32 %v2123, 0.5
    %v2499 = vmul.f32 %v1306, 0.5
    %v2500 = vmul.f32 %v1308, 0.5
    %v2501 = vmul.f32 %v1579, 0.5
    %v2502 = vmul.f32 %v1581, 0.5
    %v2503 = vmul.f32 %v1852, 0.5
    %v2504 = vmul.f32 %v1854, 0.5
    %v2505 = vmul.f32 %v2125, 0.5
    %v2506 = vmul.f32 %v2127, 0.5
    %v2507 = vmul.f32 %v1312, 0.5
    %v2508 = vmul.f32 %v1314, 0.5
    %v2509 = vmul.f32 %v1585, 0.5
    %v2510 = vmul.f32 %v1587, 0.5
    %v2511 = vmul.f32 %v1858, 0.5
    %v2512 = vmul.f32 %v1860, 0.5
    %v2513 = vmul.f32 %v2131, 0.5
    %v2514 = vmul.f32 %v2133, 0.5
    %v2515 = vmul.f32 %v1316, 0.5
    %v2516 = vmul.f32 %v1318, 0.5
    %v2517 = vmul.f32 %v1589, 0.5
    %v2518 = vmul.f32 %v1591, 0.5
    %v2519 = vmul.f32 %v1862, 0.5
    %v2520 = vmul.f32 %v1864, 0.5
    %v2521 = vmul.f32 %v2135, 0.5
    %v2522 = vmul.f32 %v2137, 0.5
    %v2523 = vmul.f32 %v1082, 0.70710677
    %v2524 = vmul.f32 %v1084, 0.70710677
    %v2525 = vmul.f32 %v1355, 0.70710677
    %v2526 = vmul.f32 %v1357, 0.70710677
    %v2527 = vmul.f32 %v1628, 0.70710677
    %v2528 = vmul.f32 %v1630, 0.70710677
    %v2529 = vmul.f32 %v1901, 0.70710677
    %v2530 = vmul.f32 %v1903, 0.70710677
    %v2531 = vmul.f32 %v1086, 0.70710677
    %v2532 = vmul.f32 %v1088, 0.70710677
    %v2533 = vmul.f32 %v1359, 0.70710677
    %v2534 = vmul.f32 %v1361, 0.70710677
    %v2535 = vmul.f32 %v1632, 0.70710677
    %v2536 = vmul.f32 %v1634, 0.70710677
    %v2537 = vmul.f32 %v1905, 0.70710677
    %v2538 = vmul.f32 %v1907, 0.70710677
    %v2539 = vmul.f32 %v1092, 0.70710677
    %v2540 = vmul.f32 %v1094, 0.70710677
    %v2541 = vmul.f32 %v1365, 0.70710677
    %v2542 = vmul.f32 %v1367, 0.70710677
    %v2543 = vmul.f32 %v1638, 0.70710677
    %v2544 = vmul.f32 %v1640, 0.70710677
    %v2545 = vmul.f32 %v1911, 0.70710677
    %v2546 = vmul.f32 %v1913, 0.70710677
    %v2547 = vmul.f32 %v1096, 0.70710677
    %v2548 = vmul.f32 %v1098, 0.70710677
    %v2549 = vmul.f32 %v1369, 0.70710677
    %v2550 = vmul.f32 %v1371, 0.70710677
    %v2551 = vmul.f32 %v1642, 0.70710677
    %v2552 = vmul.f32 %v1644, 0.70710677
    %v2553 = vmul.f32 %v1915, 0.70710677
    %v2554 = vmul.f32 %v1917, 0.70710677
    %v2555 = vmul.f32 %v1102, 0.70710677
    %v2556 = vmul.f32 %v1104, 0.70710677
    %v2557 = vmul.f32 %v1375, 0.70710677
    %v2558 = vmul.f32 %v1377, 0.70710677
    %v2559 = vmul.f32 %v1648, 0.70710677
    %v2560 = vmul.f32 %v1650, 0.70710677
    %v2561 = vmul.f32 %v1921, 0.70710677
    %v2562 = vmul.f32 %v1923, 0.70710677
    %v2563 = vmul.f32 %v1106, 0.70710677
    %v2564 = vmul.f32 %v1108, 0.70710677
    %v2565 = vmul.f32 %v1379, 0.70710677
    %v2566 = vmul.f32 %v1381, 0.70710677
    %v2567 = vmul.f32 %v1652, 0.70710677
    %v2568 = vmul.f32 %v1654, 0.70710677
    %v2569 = vmul.f32 %v1925, 0.70710677
    %v2570 = vmul.f32 %v1927, 0.70710677
    %v2571 = vmul.f32 %v1112, 0.70710677
    %v2572 = vmul.f32 %v1114, 0.70710677
    %v2573 = vmul.f32 %v1385, 0.70710677
    %v2574 = vmul.f32 %v1387, 0.70710677
    %v2575 = vmul.f32 %v1658, 0.70710677
    %v2576 = vmul.f32 %v1660, 0.70710677
    %v2577 = vmul.f32 %v1931, 0.70710677
    %v2578 = vmul.f32 %v1933, 0.70710677
    %v2579 = vmul.f32 %v1116, 0.70710677
    %v2580 = vmul.f32 %v1118, 0.70710677
    %v2581 = vmul.f32 %v1389, 0.70710677
    %v2582 = vmul.f32 %v1391, 0.70710677
    %v2583 = vmul.f32 %v1662, 0.70710677
    %v2584 = vmul.f32 %v1664, 0.70710677
    %v2585 = vmul.f32 %v1935, 0.70710677
    %v2586 = vmul.f32 %v1937, 0.70710677
    %v2587 = vmul.f32 %v1122, 0.70710677
    %v2588 = vmul.f32 %v1124, 0.70710677
    %v2589 = vmul.f32 %v1395, 0.70710677
    %v2590 = vmul.f32 %v1397, 0.70710677
    %v2591 = vmul.f32 %v1668, 0.70710677
    %v2592 = vmul.f32 %v1670, 0.70710677
    %v2593 = vmul.f32 %v1941, 0.70710677
    %v2594 = vmul.f32 %v1943, 0.70710677
    %v2595 = vmul.f32 %v1126, 0.70710677
    %v2596 = vmul.f32 %v1128, 0.70710677
    %v2597 = vmul.f32 %v1399, 0.70710677
    %v2598 = vmul.f32 %v1401, 0.70710677
    %v2599 = vmul.f32 %v1672, 0.70710677
    %v2600 = vmul.f32 %v1674, 0.70710677
    %v2601 = vmul.f32 %v1945, 0.70710677
    %v2602 = vmul.f32 %v1947, 0.70710677
    %v2603 = vmul.f32 %v1132, 0.70710677
    %v2604 = vmul.f32 %v1134, 0.70710677
    %v2605 = vmul.f32 %v1405, 0.70710677
    %v2606 = vmul.f32 %v1407, 0.70710677
    %v2607 = vmul.f32 %v1678, 0.70710677
    %v2608 = vmul.f32 %v1680, 0.70710677
    %v2609 = vmul.f32 %v1951, 0.70710677
    %v2610 = vmul.f32 %v1953, 0.70710677
    %v2611 = vmul.f32 %v1136, 0.70710677
    %v2612 = vmul.f32 %v1138, 0.70710677
    %v2613 = vmul.f32 %v1409, 0.70710677
    %v2614 = vmul.f32 %v1411, 0.70710677
    %v2615 = vmul.f32 %v1682, 0.70710677
    %v2616 = vmul.f32 %v1684, 0.70710677
    %v2617 = vmul.f32 %v1955, 0.70710677
    %v2618 = vmul.f32 %v1957, 0.70710677
    %v2619 = vmul.f32 %v1142, 0.70710677
    %v2620 = vmul.f32 %v1144, 0.70710677
    %v2621 = vmul.f32 %v1415, 0.70710677
    %v2622 = vmul.f32 %v1417, 0.70710677
    %v2623 = vmul.f32 %v1688, 0.70710677
    %v2624 = vmul.f32 %v1690, 0.70710677
    %v2625 = vmul.f32 %v1961, 0.70710677
    %v2626 = vmul.f32 %v1963, 0.70710677
    %v2627 = vmul.f32 %v1146, 0.70710677
    %v2628 = vmul.f32 %v1148, 0.70710677
    %v2629 = vmul.f32 %v1419, 0.70710677
    %v2630 = vmul.f32 %v1421, 0.70710677
    %v2631 = vmul.f32 %v1692, 0.70710677
    %v2632 = vmul.f32 %v1694, 0.70710677
    %v2633 = vmul.f32 %v1965, 0.70710677
    %v2634 = vmul.f32 %v1967, 0.70710677
    %v2635 = vmul.f32 %v1152, 0.70710677
    %v2636 = vmul.f32 %v1154, 0.70710677
    %v2637 = vmul.f32 %v1425, 0.70710677
    %v2638 = vmul.f32 %v1427, 0.70710677
    %v2639 = vmul.f32 %v1698, 0.70710677
    %v2640 = vmul.f32 %v1700, 0.70710677
    %v2641 = vmul.f32 %v1971, 0.70710677
    %v2642 = vmul.f32 %v1973, 0.70710677
    %v2643 = vmul.f32 %v1156, 0.70710677
    %v2644 = vmul.f32 %v1158, 0.70710677
    %v2645 = vmul.f32 %v1429, 0.70710677
    %v2646 = vmul.f32 %v1431, 0.70710677
    %v2647 = vmul.f32 %v1702, 0.70710677
    %v2648 = vmul.f32 %v1704, 0.70710677
    %v2649 = vmul.f32 %v1975, 0.70710677
    %v2650 = vmul.f32 %v1977, 0.70710677
    %v2651 = vmul.f32 %v1162, 0.70710677
    %v2652 = vmul.f32 %v1164, 0.70710677
    %v2653 = vmul.f32 %v1435, 0.70710677
    %v2654 = vmul.f32 %v1437, 0.70710677
    %v2655 = vmul.f32 %v1708, 0.70710677
    %v2656 = vmul.f32 %v1710, 0.70710677
    %v2657 = vmul.f32 %v1981, 0.70710677
    %v2658 = vmul.f32 %v1983, 0.70710677
    %v2659 = vmul.f32 %v1166, 0.70710677
    %v2660 = vmul.f32 %v1168, 0.70710677
    %v2661 = vmul.f32 %v1439, 0.70710677
    %v2662 = vmul.f32 %v1441, 0.70710677
    %v2663 = vmul.f32 %v1712, 0.70710677
    %v2664 = vmul.f32 %v1714, 0.70710677
    %v2665 = vmul.f32 %v1985, 0.70710677
    %v2666 = vmul.f32 %v1987, 0.70710677
    %v2667 = vmul.f32 %v1172, 0.70710677
    %v2668 = vmul.f32 %v1174, 0.70710677
    %v2669 = vmul.f32 %v1445, 0.70710677
    %v2670 = vmul.f32 %v1447, 0.70710677
    %v2671 = vmul.f32 %v1718, 0.70710677
    %v2672 = vmul.f32 %v1720, 0.70710677
    %v2673 = vmul.f32 %v1991, 0.70710677
    %v2674 = vmul.f32 %v1993, 0.70710677
    %v2675 = vmul.f32 %v1176, 0.70710677
    %v2676 = vmul.f32 %v1178, 0.70710677
    %v2677 = vmul.f32 %v1449, 0.70710677
    %v2678 = vmul.f32 %v1451, 0.70710677
    %v2679 = vmul.f32 %v1722, 0.70710677
    %v2680 = vmul.f32 %v1724, 0.70710677
    %v2681 = vmul.f32 %v1995, 0.70710677
    %v2682 = vmul.f32 %v1997, 0.70710677
    %v2683 = vmul.f32 %v1182, 0.70710677
    %v2684 = vmul.f32 %v1184, 0.70710677
    %v2685 = vmul.f32 %v1455, 0.70710677
    %v2686 = vmul.f32 %v1457, 0.70710677
    %v2687 = vmul.f32 %v1728, 0.70710677
    %v2688 = vmul.f32 %v1730, 0.70710677
    %v2689 = vmul.f32 %v2001, 0.70710677
    %v2690 = vmul.f32 %v2003, 0.70710677
    %v2691 = vmul.f32 %v1186, 0.70710677
    %v2692 = vmul.f32 %v1188, 0.70710677
    %v2693 = vmul.f32 %v1459, 0.70710677
    %v2694 = vmul.f32 %v1461, 0.70710677
    %v2695 = vmul.f32 %v1732, 0.70710677
    %v2696 = vmul.f32 %v1734, 0.70710677
    %v2697 = vmul.f32 %v2005, 0.70710677
    %v2698 = vmul.f32 %v2007, 0.70710677
    %v2699 = vmul.f32 %v1192, 0.70710677
    %v2700 = vmul.f32 %v1194, 0.70710677
    %v2701 = vmul.f32 %v1465, 0.70710677
    %v2702 = vmul.f32 %v1467, 0.70710677
    %v2703 = vmul.f32 %v1738, 0.70710677
    %v2704 = vmul.f32 %v1740, 0.70710677
    %v2705 = vmul.f32 %v2011, 0.70710677
    %v2706 = vmul.f32 %v2013, 0.70710677
    %v2707 = vmul.f32 %v1196, 0.70710677
    %v2708 = vmul.f32 %v1198, 0.70710677
    %v2709 = vmul.f32 %v1469, 0.70710677
    %v2710 = vmul.f32 %v1471, 0.70710677
    %v2711 = vmul.f32 %v1742, 0.70710677
    %v2712 = vmul.f32 %v1744, 0.70710677
    %v2713 = vmul.f32 %v2015, 0.70710677
    %v2714 = vmul.f32 %v2017, 0.70710677
    %v2715 = vmul.f32 %v1202, 0.70710677
    %v2716 = vmul.f32 %v1204, 0.70710677
    %v2717 = vmul.f32 %v1475, 0.70710677
    %v2718 = vmul.f32 %v1477, 0.70710677
    %v2719 = vmul.f32 %v1748, 0.70710677
    %v2720 = vmul.f32 %v1750, 0.70710677
    %v2721 = vmul.f32 %v2021, 0.70710677
    %v2722 = vmul.f32 %v2023, 0.70710677
    %v2723 = vmul.f32 %v1206, 0.70710677
    %v2724 = vmul.f32 %v1208, 0.70710677
    %v2725 = vmul.f32 %v1479, 0.70710677
    %v2726 = vmul.f32 %v1481, 0.70710677
    %v2727 = vmul.f32 %v1752, 0.70710677
    %v2728 = vmul.f32 %v1754, 0.70710677
    %v2729 = vmul.f32 %v2025, 0.70710677
    %v2730 = vmul.f32 %v2027, 0.70710677
    %v2731 = vmul.f32 %v1212, 0.70710677
    %v2732 = vmul.f32 %v1214, 0.70710677
    %v2733 = vmul.f32 %v1485, 0.70710677
    %v2734 = vmul.f32 %v1487, 0.70710677
    %v2735 = vmul.f32 %v1758, 0.70710677
    %v2736 = vmul.f32 %v1760, 0.70710677
    %v2737 = vmul.f32 %v2031, 0.70710677
    %v2738 = vmul.f32 %v2033, 0.70710677
    %v2739 = vmul.f32 %v1216, 0.70710677
    %v2740 = vmul.f32 %v1218, 0.70710677
    %v2741 = vmul.f32 %v1489, 0.70710677
    %v2742 = vmul.f32 %v1491, 0.70710677
    %v2743 = vmul.f32 %v1762, 0.70710677
    %v2744 = vmul.f32 %v1764, 0.70710677
    %v2745 = vmul.f32 %v2035, 0.70710677
    %v2746 = vmul.f32 %v2037, 0.70710677
    %v2747 = vmul.f32 %v1222, 0.70710677
    %v2748 = vmul.f32 %v1224, 0.70710677
    %v2749 = vmul.f32 %v1495, 0.70710677
    %v2750 = vmul.f32 %v1497, 0.70710677
    %v2751 = vmul.f32 %v1768, 0.70710677
    %v2752 = vmul.f32 %v1770, 0.70710677
    %v2753 = vmul.f32 %v2041, 0.70710677
    %v2754 = vmul.f32 %v2043, 0.70710677
    %v2755 = vmul.f32 %v1226, 0.70710677
    %v2756 = vmul.f32 %v1228, 0.70710677
    %v2757 = vmul.f32 %v1499, 0.70710677
    %v2758 = vmul.f32 %v1501, 0.70710677
    %v2759 = vmul.f32 %v1772, 0.70710677
    %v2760 = vmul.f32 %v1774, 0.70710677
    %v2761 = vmul.f32 %v2045, 0.70710677
    %v2762 = vmul.f32 %v2047, 0.70710677
    %v2763 = vmul.f32 %v1232, 0.70710677
    %v2764 = vmul.f32 %v1234, 0.70710677
    %v2765 = vmul.f32 %v1505, 0.70710677
    %v2766 = vmul.f32 %v1507, 0.70710677
    %v2767 = vmul.f32 %v1778, 0.70710677
    %v2768 = vmul.f32 %v1780, 0.70710677
    %v2769 = vmul.f32 %v2051, 0.70710677
    %v2770 = vmul.f32 %v2053, 0.70710677
    %v2771 = vmul.f32 %v1236, 0.70710677
    %v2772 = vmul.f32 %v1238, 0.70710677
    %v2773 = vmul.f32 %v1509, 0.70710677
    %v2774 = vmul.f32 %v1511, 0.70710677
    %v2775 = vmul.f32 %v1782, 0.70710677
    %v2776 = vmul.f32 %v1784, 0.70710677
    %v2777 = vmul.f32 %v2055, 0.70710677
    %v2778 = vmul.f32 %v2057, 0.70710677
    %v2779 = vmul.f32 %v1242, 0.70710677
    %v2780 = vmul.f32 %v1244, 0.70710677
    %v2781 = vmul.f32 %v1515, 0.70710677
    %v2782 = vmul.f32 %v1517, 0.70710677
    %v2783 = vmul.f32 %v1788, 0.70710677
    %v2784 = vmul.f32 %v1790, 0.70710677
    %v2785 = vmul.f32 %v2061, 0.70710677
    %v2786 = vmul.f32 %v2063, 0.70710677
    %v2787 = vmul.f32 %v1246, 0.70710677
    %v2788 = vmul.f32 %v1248, 0.70710677
    %v2789 = vmul.f32 %v1519, 0.70710677
    %v2790 = vmul.f32 %v1521, 0.70710677
    %v2791 = vmul.f32 %v1792, 0.70710677
    %v2792 = vmul.f32 %v1794, 0.70710677
    %v2793 = vmul.f32 %v2065, 0.70710677
    %v2794 = vmul.f32 %v2067, 0.70710677
    %v2795 = vmul.f32 %v1252, 0.70710677
    %v2796 = vmul.f32 %v1254, 0.70710677
    %v2797 = vmul.f32 %v1525, 0.70710677
    %v2798 = vmul.f32 %v1527, 0.70710677
    %v2799 = vmul.f32 %v1798, 0.70710677
    %v2800 = vmul.f32 %v1800, 0.70710677
    %v2801 = vmul.f32 %v2071, 0.70710677
    %v2802 = vmul.f32 %v2073, 0.70710677
    %v2803 = vmul.f32 %v1256, 0.70710677
    %v2804 = vmul.f32 %v1258, 0.70710677
    %v2805 = vmul.f32 %v1529, 0.70710677
    %v2806 = vmul.f32 %v1531, 0.70710677
    %v2807 = vmul.f32 %v1802, 0.70710677
    %v2808 = vmul.f32 %v1804, 0.70710677
    %v2809 = vmul.f32 %v2075, 0.70710677
    %v2810 = vmul.f32 %v2077, 0.70710677
    %v2811 = vmul.f32 %v1262, 0.70710677
    %v2812 = vmul.f32 %v1264, 0.70710677
    %v2813 = vmul.f32 %v1535, 0.70710677
    %v2814 = vmul.f32 %v1537, 0.70710677
    %v2815 = vmul.f32 %v1808, 0.70710677
    %v2816 = vmul.f32 %v1810, 0.70710677
    %v2817 = vmul.f32 %v2081, 0.70710677
    %v2818 = vmul.f32 %v2083, 0.70710677
    %v2819 = vmul.f32 %v1266, 0.70710677
    %v2820 = vmul.f32 %v1268, 0.70710677
    %v2821 = vmul.f32 %v1539, 0.70710677
    %v2822 = vmul.f32 %v1541, 0.70710677
    %v2823 = vmul.f32 %v1812, 0.70710677
    %v2824 = vmul.f32 %v1814, 0.70710677
    %v2825 = vmul.f32 %v2085, 0.70710677
    %v2826 = vmul.f32 %v2087, 0.70710677
    %v2827 = vmul.f32 %v1272, 0.70710677
    %v2828 = vmul.f32 %v1274, 0.70710677
    %v2829 = vmul.f32 %v1545, 0.70710677
    %v2830 = vmul.f32 %v1547, 0.70710677
    %v2831 = vmul.f32 %v1818, 0.70710677
    %v2832 = vmul.f32 %v1820, 0.70710677
    %v2833 = vmul.f32 %v2091, 0.70710677
    %v2834 = vmul.f32 %v2093, 0.70710677
    %v2835 = vmul.f32 %v1276, 0.70710677
    %v2836 = vmul.f32 %v1278, 0.70710677
    %v2837 = vmul.f32 %v1549, 0.70710677
    %v2838 = vmul.f32 %v1551, 0.70710677
    %v2839 = vmul.f32 %v1822, 0.70710677
    %v2840 = vmul.f32 %v1824, 0.70710677
    %v2841 = vmul.f32 %v2095, 0.70710677
    %v2842 = vmul.f32 %v2097, 0.70710677
    %v2843 = vmul.f32 %v1282, 0.70710677
    %v2844 = vmul.f32 %v1284, 0.70710677
    %v2845 = vmul.f32 %v1555, 0.70710677
    %v2846 = vmul.f32 %v1557, 0.70710677
    %v2847 = vmul.f32 %v1828, 0.70710677
    %v2848 = vmul.f32 %v1830, 0.70710677
    %v2849 = vmul.f32 %v2101, 0.70710677
    %v2850 = vmul.f32 %v2103, 0.70710677
    %v2851 = vmul.f32 %v1286, 0.70710677
    %v2852 = vmul.f32 %v1288, 0.70710677
    %v2853 = vmul.f32 %v1559, 0.70710677
    %v2854 = vmul.f32 %v1561, 0.70710677
    %v2855 = vmul.f32 %v1832, 0.70710677
    %v2856 = vmul.f32 %v1834, 0.70710677
    %v2857 = vmul.f32 %v2105, 0.70710677
    %v2858 = vmul.f32 %v2107, 0.70710677
    %v2859 = vmul.f32 %v1292, 0.70710677
    %v2860 = vmul.f32 %v1294, 0.70710677
    %v2861 = vmul.f32 %v1565, 0.70710677
    %v2862 = vmul.f32 %v1567, 0.70710677
    %v2863 = vmul.f32 %v1838, 0.70710677
    %v2864 = vmul.f32 %v1840, 0.70710677
    %v2865 = vmul.f32 %v2111, 0.70710677
    %v2866 = vmul.f32 %v2113, 0.70710677
    %v2867 = vmul.f32 %v1296, 0.70710677
    %v2868 = vmul.f32 %v1298, 0.70710677
    %v2869 = vmul.f32 %v1569, 0.70710677
    %v2870 = vmul.f32 %v1571, 0.70710677
    %v2871 = vmul.f32 %v1842, 0.70710677
    %v2872 = vmul.f32 %v1844, 0.70710677
    %v2873 = vmul.f32 %v2115, 0.70710677
    %v2874 = vmul.f32 %v2117, 0.70710677
    %v2875 = vmul.f32 %v1302, 0.70710677
    %v2876 = vmul.f32 %v1304, 0.70710677
    %v2877 = vmul.f32 %v1575, 0.70710677
    %v2878 = vmul.f32 %v1577, 0.70710677
    %v2879 = vmul.f32 %v1848, 0.70710677
    %v2880 = vmul.f32 %v1850, 0.70710677
    %v2881 = vmul.f32 %v2121, 0.70710677
    %v2882 = vmul.f32 %v2123, 0.70710677
    %v2883 = vmul.f32 %v1306, 0.70710677
    %v2884 = vmul.f32 %v1308, 0.70710677
    %v2885 = vmul.f32 %v1579, 0.70710677
    %v2886 = vmul.f32 %v1581, 0.70710677
    %v2887 = vmul.f32 %v1852, 0.70710677
    %v2888 = vmul.f32 %v1854, 0.70710677
    %v2889 = vmul.f32 %v2125, 0.70710677
    %v2890 = vmul.f32 %v2127, 0.70710677
    %v2891 = vmul.f32 %v1312, 0.70710677
    %v2892 = vmul.f32 %v1314, 0.70710677
    %v2893 = vmul.f32 %v1585, 0.70710677
    %v2894 = vmul.f32 %v1587, 0.70710677
    %v2895 = vmul.f32 %v1858, 0.70710677
    %v2896 = vmul.f32 %v1860, 0.70710677
    %v2897 = vmul.f32 %v2131, 0.70710677
    %v2898 = vmul.f32 %v2133, 0.70710677
    %v2899 = vmul.f32 %v1316, 0.70710677
    %v2900 = vmul.f32 %v1318, 0.70710677
    %v2901 = vmul.f32 %v1589, 0.70710677
    %v2902 = vmul.f32 %v1591, 0.70710677
    %v2903 = vmul.f32 %v1862, 0.70710677
    %v2904 = vmul.f32 %v1864, 0.70710677
    %v2905 = vmul.f32 %v2135, 0.70710677
    %v2906 = vmul.f32 %v2137, 0.70710677
    %v2907 = verf.f32.pop %v2523
    %v2908 = verf.f32.pop %v2524
    %v2909 = verf.f32.pop %v2525
    %v2910 = verf.f32.pop %v2526
    %v2911 = verf.f32.pop %v2527
    %v2912 = verf.f32.pop %v2528
    %v2913 = verf.f32.pop %v2529
    %v2914 = verf.f32.pop %v2530
    %v2915 = verf.f32.pop %v2531
    %v2916 = verf.f32.pop %v2532
    %v2917 = verf.f32.pop %v2533
    %v2918 = verf.f32.pop %v2534
    %v2919 = verf.f32.pop %v2535
    %v2920 = verf.f32.pop %v2536
    %v2921 = verf.f32.pop %v2537
    %v2922 = verf.f32.pop %v2538
    %v2923 = verf.f32.pop %v2539
    %v2924 = verf.f32.pop %v2540
    %v2925 = verf.f32.pop %v2541
    %v2926 = verf.f32.pop %v2542
    %v2927 = verf.f32.pop %v2543
    %v2928 = verf.f32.pop %v2544
    %v2929 = verf.f32.pop %v2545
    %v2930 = verf.f32.pop %v2546
    %v2931 = verf.f32.pop %v2547
    %v2932 = verf.f32.pop %v2548
    %v2933 = verf.f32.pop %v2549
    %v2934 = verf.f32.pop %v2550
    %v2935 = verf.f32.pop %v2551
    %v2936 = verf.f32.pop %v2552
    %v2937 = verf.f32.pop %v2553
    %v2938 = verf.f32.pop %v2554
    %v2939 = verf.f32.pop %v2555
    %v2940 = verf.f32.pop %v2556
    %v2941 = verf.f32.pop %v2557
    %v2942 = verf.f32.pop %v2558
    %v2943 = verf.f32.pop %v2559
    %v2944 = verf.f32.pop %v2560
    %v2945 = verf.f32.pop %v2561
    %v2946 = verf.f32.pop %v2562
    %v2947 = verf.f32.pop %v2563
    %v2948 = verf.f32.pop %v2564
    %v2949 = verf.f32.pop %v2565
    %v2950 = verf.f32.pop %v2566
    %v2951 = verf.f32.pop %v2567
    %v2952 = verf.f32.pop %v2568
    %v2953 = verf.f32.pop %v2569
    %v2954 = verf.f32.pop %v2570
    %v2955 = verf.f32.pop %v2571
    %v2956 = verf.f32.pop %v2572
    %v2957 = verf.f32.pop %v2573
    %v2958 = verf.f32.pop %v2574
    %v2959 = verf.f32.pop %v2575
    %v2960 = verf.f32.pop %v2576
    %v2961 = verf.f32.pop %v2577
    %v2962 = verf.f32.pop %v2578
    %v2963 = verf.f32.pop %v2579
    %v2964 = verf.f32.pop %v2580
    %v2965 = verf.f32.pop %v2581
    %v2966 = verf.f32.pop %v2582
    %v2967 = verf.f32.pop %v2583
    %v2968 = verf.f32.pop %v2584
    %v2969 = verf.f32.pop %v2585
    %v2970 = verf.f32.pop %v2586
    %v2971 = verf.f32.pop %v2587
    %v2972 = verf.f32.pop %v2588
    %v2973 = verf.f32.pop %v2589
    %v2974 = verf.f32.pop %v2590
    %v2975 = verf.f32.pop %v2591
    %v2976 = verf.f32.pop %v2592
    %v2977 = verf.f32.pop %v2593
    %v2978 = verf.f32.pop %v2594
    %v2979 = verf.f32.pop %v2595
    %v2980 = verf.f32.pop %v2596
    %v2981 = verf.f32.pop %v2597
    %v2982 = verf.f32.pop %v2598
    %v2983 = verf.f32.pop %v2599
    %v2984 = verf.f32.pop %v2600
    %v2985 = verf.f32.pop %v2601
    %v2986 = verf.f32.pop %v2602
    %v2987 = verf.f32.pop %v2603
    %v2988 = verf.f32.pop %v2604
    %v2989 = verf.f32.pop %v2605
    %v2990 = verf.f32.pop %v2606
    %v2991 = verf.f32.pop %v2607
    %v2992 = verf.f32.pop %v2608
    %v2993 = verf.f32.pop %v2609
    %v2994 = verf.f32.pop %v2610
    %v2995 = verf.f32.pop %v2611
    %v2996 = verf.f32.pop %v2612
    %v2997 = verf.f32.pop %v2613
    %v2998 = verf.f32.pop %v2614
    %v2999 = verf.f32.pop %v2615
    %v3000 = verf.f32.pop %v2616
    %v3001 = verf.f32.pop %v2617
    %v3002 = verf.f32.pop %v2618
    %v3003 = verf.f32.pop %v2619
    %v3004 = verf.f32.pop %v2620
    %v3005 = verf.f32.pop %v2621
    %v3006 = verf.f32.pop %v2622
    %v3007 = verf.f32.pop %v2623
    %v3008 = verf.f32.pop %v2624
    %v3009 = verf.f32.pop %v2625
    %v3010 = verf.f32.pop %v2626
    %v3011 = verf.f32.pop %v2627
    %v3012 = verf.f32.pop %v2628
    %v3013 = verf.f32.pop %v2629
    %v3014 = verf.f32.pop %v2630
    %v3015 = verf.f32.pop %v2631
    %v3016 = verf.f32.pop %v2632
    %v3017 = verf.f32.pop %v2633
    %v3018 = verf.f32.pop %v2634
    %v3019 = verf.f32.pop %v2635
    %v3020 = verf.f32.pop %v2636
    %v3021 = verf.f32.pop %v2637
    %v3022 = verf.f32.pop %v2638
    %v3023 = verf.f32.pop %v2639
    %v3024 = verf.f32.pop %v2640
    %v3025 = verf.f32.pop %v2641
    %v3026 = verf.f32.pop %v2642
    %v3027 = verf.f32.pop %v2643
    %v3028 = verf.f32.pop %v2644
    %v3029 = verf.f32.pop %v2645
    %v3030 = verf.f32.pop %v2646
    %v3031 = verf.f32.pop %v2647
    %v3032 = verf.f32.pop %v2648
    %v3033 = verf.f32.pop %v2649
    %v3034 = verf.f32.pop %v2650
    %v3035 = verf.f32.pop %v2651
    %v3036 = verf.f32.pop %v2652
    %v3037 = verf.f32.pop %v2653
    %v3038 = verf.f32.pop %v2654
    %v3039 = verf.f32.pop %v2655
    %v3040 = verf.f32.pop %v2656
    %v3041 = verf.f32.pop %v2657
    %v3042 = verf.f32.pop %v2658
    %v3043 = verf.f32.pop %v2659
    %v3044 = verf.f32.pop %v2660
    %v3045 = verf.f32.pop %v2661
    %v3046 = verf.f32.pop %v2662
    %v3047 = verf.f32.pop %v2663
    %v3048 = verf.f32.pop %v2664
    %v3049 = verf.f32.pop %v2665
    %v3050 = verf.f32.pop %v2666
    %v3051 = verf.f32.pop %v2667
    %v3052 = verf.f32.pop %v2668
    %v3053 = verf.f32.pop %v2669
    %v3054 = verf.f32.pop %v2670
    %v3055 = verf.f32.pop %v2671
    %v3056 = verf.f32.pop %v2672
    %v3057 = verf.f32.pop %v2673
    %v3058 = verf.f32.pop %v2674
    %v3059 = verf.f32.pop %v2675
    %v3060 = verf.f32.pop %v2676
    %v3061 = verf.f32.pop %v2677
    %v3062 = verf.f32.pop %v2678
    %v3063 = verf.f32.pop %v2679
    %v3064 = verf.f32.pop %v2680
    %v3065 = verf.f32.pop %v2681
    %v3066 = verf.f32.pop %v2682
    %v3067 = verf.f32.pop %v2683
    %v3068 = verf.f32.pop %v2684
    %v3069 = verf.f32.pop %v2685
    %v3070 = verf.f32.pop %v2686
    %v3071 = verf.f32.pop %v2687
    %v3072 = verf.f32.pop %v2688
    %v3073 = verf.f32.pop %v2689
    %v3074 = verf.f32.pop %v2690
    %v3075 = verf.f32.pop %v2691
    %v3076 = verf.f32.pop %v2692
    %v3077 = verf.f32.pop %v2693
    %v3078 = verf.f32.pop %v2694
    %v3079 = verf.f32.pop %v2695
    %v3080 = verf.f32.pop %v2696
    %v3081 = verf.f32.pop %v2697
    %v3082 = verf.f32.pop %v2698
    %v3083 = verf.f32.pop %v2699
    %v3084 = verf.f32.pop %v2700
    %v3085 = verf.f32.pop %v2701
    %v3086 = verf.f32.pop %v2702
    %v3087 = verf.f32.pop %v2703
    %v3088 = verf.f32.pop %v2704
    %v3089 = verf.f32.pop %v2705
    %v3090 = verf.f32.pop %v2706
    %v3091 = verf.f32.pop %v2707
    %v3092 = verf.f32.pop %v2708
    %v3093 = verf.f32.pop %v2709
    %v3094 = verf.f32.pop %v2710
    %v3095 = verf.f32.pop %v2711
    %v3096 = verf.f32.pop %v2712
    %v3097 = verf.f32.pop %v2713
    %v3098 = verf.f32.pop %v2714
    %v3099 = verf.f32.pop %v2715
    %v3100 = verf.f32.pop %v2716
    %v3101 = verf.f32.pop %v2717
    %v3102 = verf.f32.pop %v2718
    %v3103 = verf.f32.pop %v2719
    %v3104 = verf.f32.pop %v2720
    %v3105 = verf.f32.pop %v2721
    %v3106 = verf.f32.pop %v2722
    %v3107 = verf.f32.pop %v2723
    %v3108 = verf.f32.pop %v2724
    %v3109 = verf.f32.pop %v2725
    %v3110 = verf.f32.pop %v2726
    %v3111 = verf.f32.pop %v2727
    %v3112 = verf.f32.pop %v2728
    %v3113 = verf.f32.pop %v2729
    %v3114 = verf.f32.pop %v2730
    %v3115 = verf.f32.pop %v2731
    %v3116 = verf.f32.pop %v2732
    %v3117 = verf.f32.pop %v2733
    %v3118 = verf.f32.pop %v2734
    %v3119 = verf.f32.pop %v2735
    %v3120 = verf.f32.pop %v2736
    %v3121 = verf.f32.pop %v2737
    %v3122 = verf.f32.pop %v2738
    %v3123 = verf.f32.pop %v2739
    %v3124 = verf.f32.pop %v2740
    %v3125 = verf.f32.pop %v2741
    %v3126 = verf.f32.pop %v2742
    %v3127 = verf.f32.pop %v2743
    %v3128 = verf.f32.pop %v2744
    %v3129 = verf.f32.pop %v2745
    %v3130 = verf.f32.pop %v2746
    %v3131 = verf.f32.pop %v2747
    %v3132 = verf.f32.pop %v2748
    %v3133 = verf.f32.pop %v2749
    %v3134 = verf.f32.pop %v2750
    %v3135 = verf.f32.pop %v2751
    %v3136 = verf.f32.pop %v2752
    %v3137 = verf.f32.pop %v2753
    %v3138 = verf.f32.pop %v2754
    %v3139 = verf.f32.pop %v2755
    %v3140 = verf.f32.pop %v2756
    %v3141 = verf.f32.pop %v2757
    %v3142 = verf.f32.pop %v2758
    %v3143 = verf.f32.pop %v2759
    %v3144 = verf.f32.pop %v2760
    %v3145 = verf.f32.pop %v2761
    %v3146 = verf.f32.pop %v2762
    %v3147 = verf.f32.pop %v2763
    %v3148 = verf.f32.pop %v2764
    %v3149 = verf.f32.pop %v2765
    %v3150 = verf.f32.pop %v2766
    %v3151 = verf.f32.pop %v2767
    %v3152 = verf.f32.pop %v2768
    %v3153 = verf.f32.pop %v2769
    %v3154 = verf.f32.pop %v2770
    %v3155 = verf.f32.pop %v2771
    %v3156 = verf.f32.pop %v2772
    %v3157 = verf.f32.pop %v2773
    %v3158 = verf.f32.pop %v2774
    %v3159 = verf.f32.pop %v2775
    %v3160 = verf.f32.pop %v2776
    %v3161 = verf.f32.pop %v2777
    %v3162 = verf.f32.pop %v2778
    %v3163 = verf.f32.pop %v2779
    %v3164 = verf.f32.pop %v2780
    %v3165 = verf.f32.pop %v2781
    %v3166 = verf.f32.pop %v2782
    %v3167 = verf.f32.pop %v2783
    %v3168 = verf.f32.pop %v2784
    %v3169 = verf.f32.pop %v2785
    %v3170 = verf.f32.pop %v2786
    %v3171 = verf.f32.pop %v2787
    %v3172 = verf.f32.pop %v2788
    %v3173 = verf.f32.pop %v2789
    %v3174 = verf.f32.pop %v2790
    %v3175 = verf.f32.pop %v2791
    %v3176 = verf.f32.pop %v2792
    %v3177 = verf.f32.pop %v2793
    %v3178 = verf.f32.pop %v2794
    %v3179 = verf.f32.pop %v2795
    %v3180 = verf.f32.pop %v2796
    %v3181 = verf.f32.pop %v2797
    %v3182 = verf.f32.pop %v2798
    %v3183 = verf.f32.pop %v2799
    %v3184 = verf.f32.pop %v2800
    %v3185 = verf.f32.pop %v2801
    %v3186 = verf.f32.pop %v2802
    %v3187 = verf.f32.pop %v2803
    %v3188 = verf.f32.pop %v2804
    %v3189 = verf.f32.pop %v2805
    %v3190 = verf.f32.pop %v2806
    %v3191 = verf.f32.pop %v2807
    %v3192 = verf.f32.pop %v2808
    %v3193 = verf.f32.pop %v2809
    %v3194 = verf.f32.pop %v2810
    %v3195 = verf.f32.pop %v2811
    %v3196 = verf.f32.pop %v2812
    %v3197 = verf.f32.pop %v2813
    %v3198 = verf.f32.pop %v2814
    %v3199 = verf.f32.pop %v2815
    %v3200 = verf.f32.pop %v2816
    %v3201 = verf.f32.pop %v2817
    %v3202 = verf.f32.pop %v2818
    %v3203 = verf.f32.pop %v2819
    %v3204 = verf.f32.pop %v2820
    %v3205 = verf.f32.pop %v2821
    %v3206 = verf.f32.pop %v2822
    %v3207 = verf.f32.pop %v2823
    %v3208 = verf.f32.pop %v2824
    %v3209 = verf.f32.pop %v2825
    %v3210 = verf.f32.pop %v2826
    %v3211 = verf.f32.pop %v2827
    %v3212 = verf.f32.pop %v2828
    %v3213 = verf.f32.pop %v2829
    %v3214 = verf.f32.pop %v2830
    %v3215 = verf.f32.pop %v2831
    %v3216 = verf.f32.pop %v2832
    %v3217 = verf.f32.pop %v2833
    %v3218 = verf.f32.pop %v2834
    %v3219 = verf.f32.pop %v2835
    %v3220 = verf.f32.pop %v2836
    %v3221 = verf.f32.pop %v2837
    %v3222 = verf.f32.pop %v2838
    %v3223 = verf.f32.pop %v2839
    %v3224 = verf.f32.pop %v2840
    %v3225 = verf.f32.pop %v2841
    %v3226 = verf.f32.pop %v2842
    %v3227 = verf.f32.pop %v2843
    %v3228 = verf.f32.pop %v2844
    %v3229 = verf.f32.pop %v2845
    %v3230 = verf.f32.pop %v2846
    %v3231 = verf.f32.pop %v2847
    %v3232 = verf.f32.pop %v2848
    %v3233 = verf.f32.pop %v2849
    %v3234 = verf.f32.pop %v2850
    %v3235 = verf.f32.pop %v2851
    %v3236 = verf.f32.pop %v2852
    %v3237 = verf.f32.pop %v2853
    %v3238 = verf.f32.pop %v2854
    %v3239 = verf.f32.pop %v2855
    %v3240 = verf.f32.pop %v2856
    %v3241 = verf.f32.pop %v2857
    %v3242 = verf.f32.pop %v2858
    %v3243 = verf.f32.pop %v2859
    %v3244 = verf.f32.pop %v2860
    %v3245 = verf.f32.pop %v2861
    %v3246 = verf.f32.pop %v2862
    %v3247 = verf.f32.pop %v2863
    %v3248 = verf.f32.pop %v2864
    %v3249 = verf.f32.pop %v2865
    %v3250 = verf.f32.pop %v2866
    %v3251 = verf.f32.pop %v2867
    %v3252 = verf.f32.pop %v2868
    %v3253 = verf.f32.pop %v2869
    %v3254 = verf.f32.pop %v2870
    %v3255 = verf.f32.pop %v2871
    %v3256 = verf.f32.pop %v2872
    %v3257 = verf.f32.pop %v2873
    %v3258 = verf.f32.pop %v2874
    %v3259 = verf.f32.pop %v2875
    %v3260 = verf.f32.pop %v2876
    %v3261 = verf.f32.pop %v2877
    %v3262 = verf.f32.pop %v2878
    %v3263 = verf.f32.pop %v2879
    %v3264 = verf.f32.pop %v2880
    %v3265 = verf.f32.pop %v2881
    %v3266 = verf.f32.pop %v2882
    %v3267 = verf.f32.pop %v2883
    %v3268 = verf.f32.pop %v2884
    %v3269 = verf.f32.pop %v2885
    %v3270 = verf.f32.pop %v2886
    %v3271 = verf.f32.pop %v2887
    %v3272 = verf.f32.pop %v2888
    %v3273 = verf.f32.pop %v2889
    %v3274 = verf.f32.pop %v2890
    %v3275 = verf.f32.pop %v2891
    %v3276 = verf.f32.pop %v2892
    %v3277 = verf.f32.pop %v2893
    %v3278 = verf.f32.pop %v2894
    %v3279 = verf.f32.pop %v2895
    %v3280 = verf.f32.pop %v2896
    %v3281 = verf.f32.pop %v2897
    %v3282 = verf.f32.pop %v2898
    %v3283 = verf.f32.pop %v2899
    %v3284 = verf.f32.pop %v2900
    %v3285 = verf.f32.pop %v2901
    %v3286 = verf.f32.pop %v2902
    %v3287 = verf.f32.pop %v2903
    %v3288 = verf.f32.pop %v2904
    %v3289 = verf.f32.pop %v2905
    %v3290 = verf.f32.pop %v2906
    %v3291 = vadd.f32 %v2907, 1.0
    %v3292 = vadd.f32 %v2908, 1.0
    %v3293 = vadd.f32 %v2909, 1.0
    %v3294 = vadd.f32 %v2910, 1.0
    %v3295 = vadd.f32 %v2911, 1.0
    %v3296 = vadd.f32 %v2912, 1.0
    %v3297 = vadd.f32 %v2913, 1.0
    %v3298 = vadd.f32 %v2914, 1.0
    %v3299 = vadd.f32 %v2915, 1.0
    %v3300 = vadd.f32 %v2916, 1.0
    %v3301 = vadd.f32 %v2917, 1.0
    %v3302 = vadd.f32 %v2918, 1.0
    %v3303 = vadd.f32 %v2919, 1.0
    %v3304 = vadd.f32 %v2920, 1.0
    %v3305 = vadd.f32 %v2921, 1.0
    %v3306 = vadd.f32 %v2922, 1.0
    %v3307 = vadd.f32 %v2923, 1.0
    %v3308 = vadd.f32 %v2924, 1.0
    %v3309 = vadd.f32 %v2925, 1.0
    %v3310 = vadd.f32 %v2926, 1.0
    %v3311 = vadd.f32 %v2927, 1.0
    %v3312 = vadd.f32 %v2928, 1.0
    %v3313 = vadd.f32 %v2929, 1.0
    %v3314 = vadd.f32 %v2930, 1.0
    %v3315 = vadd.f32 %v2931, 1.0
    %v3316 = vadd.f32 %v2932, 1.0
    %v3317 = vadd.f32 %v2933, 1.0
    %v3318 = vadd.f32 %v2934, 1.0
    %v3319 = vadd.f32 %v2935, 1.0
    %v3320 = vadd.f32 %v2936, 1.0
    %v3321 = vadd.f32 %v2937, 1.0
    %v3322 = vadd.f32 %v2938, 1.0
    %v3323 = vadd.f32 %v2939, 1.0
    %v3324 = vadd.f32 %v2940, 1.0
    %v3325 = vadd.f32 %v2941, 1.0
    %v3326 = vadd.f32 %v2942, 1.0
    %v3327 = vadd.f32 %v2943, 1.0
    %v3328 = vadd.f32 %v2944, 1.0
    %v3329 = vadd.f32 %v2945, 1.0
    %v3330 = vadd.f32 %v2946, 1.0
    %v3331 = vadd.f32 %v2947, 1.0
    %v3332 = vadd.f32 %v2948, 1.0
    %v3333 = vadd.f32 %v2949, 1.0
    %v3334 = vadd.f32 %v2950, 1.0
    %v3335 = vadd.f32 %v2951, 1.0
    %v3336 = vadd.f32 %v2952, 1.0
    %v3337 = vadd.f32 %v2953, 1.0
    %v3338 = vadd.f32 %v2954, 1.0
    %v3339 = vadd.f32 %v2955, 1.0
    %v3340 = vadd.f32 %v2956, 1.0
    %v3341 = vadd.f32 %v2957, 1.0
    %v3342 = vadd.f32 %v2958, 1.0
    %v3343 = vadd.f32 %v2959, 1.0
    %v3344 = vadd.f32 %v2960, 1.0
    %v3345 = vadd.f32 %v2961, 1.0
    %v3346 = vadd.f32 %v2962, 1.0
    %v3347 = vadd.f32 %v2963, 1.0
    %v3348 = vadd.f32 %v2964, 1.0
    %v3349 = vadd.f32 %v2965, 1.0
    %v3350 = vadd.f32 %v2966, 1.0
    %v3351 = vadd.f32 %v2967, 1.0
    %v3352 = vadd.f32 %v2968, 1.0
    %v3353 = vadd.f32 %v2969, 1.0
    %v3354 = vadd.f32 %v2970, 1.0
    %v3355 = vadd.f32 %v2971, 1.0
    %v3356 = vadd.f32 %v2972, 1.0
    %v3357 = vadd.f32 %v2973, 1.0
    %v3358 = vadd.f32 %v2974, 1.0
    %v3359 = vadd.f32 %v2975, 1.0
    %v3360 = vadd.f32 %v2976, 1.0
    %v3361 = vadd.f32 %v2977, 1.0
    %v3362 = vadd.f32 %v2978, 1.0
    %v3363 = vadd.f32 %v2979, 1.0
    %v3364 = vadd.f32 %v2980, 1.0
    %v3365 = vadd.f32 %v2981, 1.0
    %v3366 = vadd.f32 %v2982, 1.0
    %v3367 = vadd.f32 %v2983, 1.0
    %v3368 = vadd.f32 %v2984, 1.0
    %v3369 = vadd.f32 %v2985, 1.0
    %v3370 = vadd.f32 %v2986, 1.0
    %v3371 = vadd.f32 %v2987, 1.0
    %v3372 = vadd.f32 %v2988, 1.0
    %v3373 = vadd.f32 %v2989, 1.0
    %v3374 = vadd.f32 %v2990, 1.0
    %v3375 = vadd.f32 %v2991, 1.0
    %v3376 = vadd.f32 %v2992, 1.0
    %v3377 = vadd.f32 %v2993, 1.0
    %v3378 = vadd.f32 %v2994, 1.0
    %v3379 = vadd.f32 %v2995, 1.0
    %v3380 = vadd.f32 %v2996, 1.0
    %v3381 = vadd.f32 %v2997, 1.0
    %v3382 = vadd.f32 %v2998, 1.0
    %v3383 = vadd.f32 %v2999, 1.0
    %v3384 = vadd.f32 %v3000, 1.0
    %v3385 = vadd.f32 %v3001, 1.0
    %v3386 = vadd.f32 %v3002, 1.0
    %v3387 = vadd.f32 %v3003, 1.0
    %v3388 = vadd.f32 %v3004, 1.0
    %v3389 = vadd.f32 %v3005, 1.0
    %v3390 = vadd.f32 %v3006, 1.0
    %v3391 = vadd.f32 %v3007, 1.0
    %v3392 = vadd.f32 %v3008, 1.0
    %v3393 = vadd.f32 %v3009, 1.0
    %v3394 = vadd.f32 %v3010, 1.0
    %v3395 = vadd.f32 %v3011, 1.0
    %v3396 = vadd.f32 %v3012, 1.0
    %v3397 = vadd.f32 %v3013, 1.0
    %v3398 = vadd.f32 %v3014, 1.0
    %v3399 = vadd.f32 %v3015, 1.0
    %v3400 = vadd.f32 %v3016, 1.0
    %v3401 = vadd.f32 %v3017, 1.0
    %v3402 = vadd.f32 %v3018, 1.0
    %v3403 = vadd.f32 %v3019, 1.0
    %v3404 = vadd.f32 %v3020, 1.0
    %v3405 = vadd.f32 %v3021, 1.0
    %v3406 = vadd.f32 %v3022, 1.0
    %v3407 = vadd.f32 %v3023, 1.0
    %v3408 = vadd.f32 %v3024, 1.0
    %v3409 = vadd.f32 %v3025, 1.0
    %v3410 = vadd.f32 %v3026, 1.0
    %v3411 = vadd.f32 %v3027, 1.0
    %v3412 = vadd.f32 %v3028, 1.0
    %v3413 = vadd.f32 %v3029, 1.0
    %v3414 = vadd.f32 %v3030, 1.0
    %v3415 = vadd.f32 %v3031, 1.0
    %v3416 = vadd.f32 %v3032, 1.0
    %v3417 = vadd.f32 %v3033, 1.0
    %v3418 = vadd.f32 %v3034, 1.0
    %v3419 = vadd.f32 %v3035, 1.0
    %v3420 = vadd.f32 %v3036, 1.0
    %v3421 = vadd.f32 %v3037, 1.0
    %v3422 = vadd.f32 %v3038, 1.0
    %v3423 = vadd.f32 %v3039, 1.0
    %v3424 = vadd.f32 %v3040, 1.0
    %v3425 = vadd.f32 %v3041, 1.0
    %v3426 = vadd.f32 %v3042, 1.0
    %v3427 = vadd.f32 %v3043, 1.0
    %v3428 = vadd.f32 %v3044, 1.0
    %v3429 = vadd.f32 %v3045, 1.0
    %v3430 = vadd.f32 %v3046, 1.0
    %v3431 = vadd.f32 %v3047, 1.0
    %v3432 = vadd.f32 %v3048, 1.0
    %v3433 = vadd.f32 %v3049, 1.0
    %v3434 = vadd.f32 %v3050, 1.0
    %v3435 = vadd.f32 %v3051, 1.0
    %v3436 = vadd.f32 %v3052, 1.0
    %v3437 = vadd.f32 %v3053, 1.0
    %v3438 = vadd.f32 %v3054, 1.0
    %v3439 = vadd.f32 %v3055, 1.0
    %v3440 = vadd.f32 %v3056, 1.0
    %v3441 = vadd.f32 %v3057, 1.0
    %v3442 = vadd.f32 %v3058, 1.0
    %v3443 = vadd.f32 %v3059, 1.0
    %v3444 = vadd.f32 %v3060, 1.0
    %v3445 = vadd.f32 %v3061, 1.0
    %v3446 = vadd.f32 %v3062, 1.0
    %v3447 = vadd.f32 %v3063, 1.0
    %v3448 = vadd.f32 %v3064, 1.0
    %v3449 = vadd.f32 %v3065, 1.0
    %v3450 = vadd.f32 %v3066, 1.0
    %v3451 = vadd.f32 %v3067, 1.0
    %v3452 = vadd.f32 %v3068, 1.0
    %v3453 = vadd.f32 %v3069, 1.0
    %v3454 = vadd.f32 %v3070, 1.0
    %v3455 = vadd.f32 %v3071, 1.0
    %v3456 = vadd.f32 %v3072, 1.0
    %v3457 = vadd.f32 %v3073, 1.0
    %v3458 = vadd.f32 %v3074, 1.0
    %v3459 = vadd.f32 %v3075, 1.0
    %v3460 = vadd.f32 %v3076, 1.0
    %v3461 = vadd.f32 %v3077, 1.0
    %v3462 = vadd.f32 %v3078, 1.0
    %v3463 = vadd.f32 %v3079, 1.0
    %v3464 = vadd.f32 %v3080, 1.0
    %v3465 = vadd.f32 %v3081, 1.0
    %v3466 = vadd.f32 %v3082, 1.0
    %v3467 = vadd.f32 %v3083, 1.0
    %v3468 = vadd.f32 %v3084, 1.0
    %v3469 = vadd.f32 %v3085, 1.0
    %v3470 = vadd.f32 %v3086, 1.0
    %v3471 = vadd.f32 %v3087, 1.0
    %v3472 = vadd.f32 %v3088, 1.0
    %v3473 = vadd.f32 %v3089, 1.0
    %v3474 = vadd.f32 %v3090, 1.0
    %v3475 = vadd.f32 %v3091, 1.0
    %v3476 = vadd.f32 %v3092, 1.0
    %v3477 = vadd.f32 %v3093, 1.0
    %v3478 = vadd.f32 %v3094, 1.0
    %v3479 = vadd.f32 %v3095, 1.0
    %v3480 = vadd.f32 %v3096, 1.0
    %v3481 = vadd.f32 %v3097, 1.0
    %v3482 = vadd.f32 %v3098, 1.0
    %v3483 = vadd.f32 %v3099, 1.0
    %v3484 = vadd.f32 %v3100, 1.0
    %v3485 = vadd.f32 %v3101, 1.0
    %v3486 = vadd.f32 %v3102, 1.0
    %v3487 = vadd.f32 %v3103, 1.0
    %v3488 = vadd.f32 %v3104, 1.0
    %v3489 = vadd.f32 %v3105, 1.0
    %v3490 = vadd.f32 %v3106, 1.0
    %v3491 = vadd.f32 %v3107, 1.0
    %v3492 = vadd.f32 %v3108, 1.0
    %v3493 = vadd.f32 %v3109, 1.0
    %v3494 = vadd.f32 %v3110, 1.0
    %v3495 = vadd.f32 %v3111, 1.0
    %v3496 = vadd.f32 %v3112, 1.0
    %v3497 = vadd.f32 %v3113, 1.0
    %v3498 = vadd.f32 %v3114, 1.0
    %v3499 = vadd.f32 %v3115, 1.0
    %v3500 = vadd.f32 %v3116, 1.0
    %v3501 = vadd.f32 %v3117, 1.0
    %v3502 = vadd.f32 %v3118, 1.0
    %v3503 = vadd.f32 %v3119, 1.0
    %v3504 = vadd.f32 %v3120, 1.0
    %v3505 = vadd.f32 %v3121, 1.0
    %v3506 = vadd.f32 %v3122, 1.0
    %v3507 = vadd.f32 %v3123, 1.0
    %v3508 = vadd.f32 %v3124, 1.0
    %v3509 = vadd.f32 %v3125, 1.0
    %v3510 = vadd.f32 %v3126, 1.0
    %v3511 = vadd.f32 %v3127, 1.0
    %v3512 = vadd.f32 %v3128, 1.0
    %v3513 = vadd.f32 %v3129, 1.0
    %v3514 = vadd.f32 %v3130, 1.0
    %v3515 = vadd.f32 %v3131, 1.0
    %v3516 = vadd.f32 %v3132, 1.0
    %v3517 = vadd.f32 %v3133, 1.0
    %v3518 = vadd.f32 %v3134, 1.0
    %v3519 = vadd.f32 %v3135, 1.0
    %v3520 = vadd.f32 %v3136, 1.0
    %v3521 = vadd.f32 %v3137, 1.0
    %v3522 = vadd.f32 %v3138, 1.0
    %v3523 = vadd.f32 %v3139, 1.0
    %v3524 = vadd.f32 %v3140, 1.0
    %v3525 = vadd.f32 %v3141, 1.0
    %v3526 = vadd.f32 %v3142, 1.0
    %v3527 = vadd.f32 %v3143, 1.0
    %v3528 = vadd.f32 %v3144, 1.0
    %v3529 = vadd.f32 %v3145, 1.0
    %v3530 = vadd.f32 %v3146, 1.0
    %v3531 = vadd.f32 %v3147, 1.0
    %v3532 = vadd.f32 %v3148, 1.0
    %v3533 = vadd.f32 %v3149, 1.0
    %v3534 = vadd.f32 %v3150, 1.0
    %v3535 = vadd.f32 %v3151, 1.0
    %v3536 = vadd.f32 %v3152, 1.0
    %v3537 = vadd.f32 %v3153, 1.0
    %v3538 = vadd.f32 %v3154, 1.0
    %v3539 = vadd.f32 %v3155, 1.0
    %v3540 = vadd.f32 %v3156, 1.0
    %v3541 = vadd.f32 %v3157, 1.0
    %v3542 = vadd.f32 %v3158, 1.0
    %v3543 = vadd.f32 %v3159, 1.0
    %v3544 = vadd.f32 %v3160, 1.0
    %v3545 = vadd.f32 %v3161, 1.0
    %v3546 = vadd.f32 %v3162, 1.0
    %v3547 = vadd.f32 %v3163, 1.0
    %v3548 = vadd.f32 %v3164, 1.0
    %v3549 = vadd.f32 %v3165, 1.0
    %v3550 = vadd.f32 %v3166, 1.0
    %v3551 = vadd.f32 %v3167, 1.0
    %v3552 = vadd.f32 %v3168, 1.0
    %v3553 = vadd.f32 %v3169, 1.0
    %v3554 = vadd.f32 %v3170, 1.0
    %v3555 = vadd.f32 %v3171, 1.0
    %v3556 = vadd.f32 %v3172, 1.0
    %v3557 = vadd.f32 %v3173, 1.0
    %v3558 = vadd.f32 %v3174, 1.0
    %v3559 = vadd.f32 %v3175, 1.0
    %v3560 = vadd.f32 %v3176, 1.0
    %v3561 = vadd.f32 %v3177, 1.0
    %v3562 = vadd.f32 %v3178, 1.0
    %v3563 = vadd.f32 %v3179, 1.0
    %v3564 = vadd.f32 %v3180, 1.0
    %v3565 = vadd.f32 %v3181, 1.0
    %v3566 = vadd.f32 %v3182, 1.0
    %v3567 = vadd.f32 %v3183, 1.0
    %v3568 = vadd.f32 %v3184, 1.0
    %v3569 = vadd.f32 %v3185, 1.0
    %v3570 = vadd.f32 %v3186, 1.0
    %v3571 = vadd.f32 %v3187, 1.0
    %v3572 = vadd.f32 %v3188, 1.0
    %v3573 = vadd.f32 %v3189, 1.0
    %v3574 = vadd.f32 %v3190, 1.0
    %v3575 = vadd.f32 %v3191, 1.0
    %v3576 = vadd.f32 %v3192, 1.0
    %v3577 = vadd.f32 %v3193, 1.0
    %v3578 = vadd.f32 %v3194, 1.0
    %v3579 = vadd.f32 %v3195, 1.0
    %v3580 = vadd.f32 %v3196, 1.0
    %v3581 = vadd.f32 %v3197, 1.0
    %v3582 = vadd.f32 %v3198, 1.0
    %v3583 = vadd.f32 %v3199, 1.0
    %v3584 = vadd.f32 %v3200, 1.0
    %v3585 = vadd.f32 %v3201, 1.0
    %v3586 = vadd.f32 %v3202, 1.0
    %v3587 = vadd.f32 %v3203, 1.0
    %v3588 = vadd.f32 %v3204, 1.0
    %v3589 = vadd.f32 %v3205, 1.0
    %v3590 = vadd.f32 %v3206, 1.0
    %v3591 = vadd.f32 %v3207, 1.0
    %v3592 = vadd.f32 %v3208, 1.0
    %v3593 = vadd.f32 %v3209, 1.0
    %v3594 = vadd.f32 %v3210, 1.0
    %v3595 = vadd.f32 %v3211, 1.0
    %v3596 = vadd.f32 %v3212, 1.0
    %v3597 = vadd.f32 %v3213, 1.0
    %v3598 = vadd.f32 %v3214, 1.0
    %v3599 = vadd.f32 %v3215, 1.0
    %v3600 = vadd.f32 %v3216, 1.0
    %v3601 = vadd.f32 %v3217, 1.0
    %v3602 = vadd.f32 %v3218, 1.0
    %v3603 = vadd.f32 %v3219, 1.0
    %v3604 = vadd.f32 %v3220, 1.0
    %v3605 = vadd.f32 %v3221, 1.0
    %v3606 = vadd.f32 %v3222, 1.0
    %v3607 = vadd.f32 %v3223, 1.0
    %v3608 = vadd.f32 %v3224, 1.0
    %v3609 = vadd.f32 %v3225, 1.0
    %v3610 = vadd.f32 %v3226, 1.0
    %v3611 = vadd.f32 %v3227, 1.0
    %v3612 = vadd.f32 %v3228, 1.0
    %v3613 = vadd.f32 %v3229, 1.0
    %v3614 = vadd.f32 %v3230, 1.0
    %v3615 = vadd.f32 %v3231, 1.0
    %v3616 = vadd.f32 %v3232, 1.0
    %v3617 = vadd.f32 %v3233, 1.0
    %v3618 = vadd.f32 %v3234, 1.0
    %v3619 = vadd.f32 %v3235, 1.0
    %v3620 = vadd.f32 %v3236, 1.0
    %v3621 = vadd.f32 %v3237, 1.0
    %v3622 = vadd.f32 %v3238, 1.0
    %v3623 = vadd.f32 %v3239, 1.0
    %v3624 = vadd.f32 %v3240, 1.0
    %v3625 = vadd.f32 %v3241, 1.0
    %v3626 = vadd.f32 %v3242, 1.0
    %v3627 = vadd.f32 %v3243, 1.0
    %v3628 = vadd.f32 %v3244, 1.0
    %v3629 = vadd.f32 %v3245, 1.0
    %v3630 = vadd.f32 %v3246, 1.0
    %v3631 = vadd.f32 %v3247, 1.0
    %v3632 = vadd.f32 %v3248, 1.0
    %v3633 = vadd.f32 %v3249, 1.0
    %v3634 = vadd.f32 %v3250, 1.0
    %v3635 = vadd.f32 %v3251, 1.0
    %v3636 = vadd.f32 %v3252, 1.0
    %v3637 = vadd.f32 %v3253, 1.0
    %v3638 = vadd.f32 %v3254, 1.0
    %v3639 = vadd.f32 %v3255, 1.0
    %v3640 = vadd.f32 %v3256, 1.0
    %v3641 = vadd.f32 %v3257, 1.0
    %v3642 = vadd.f32 %v3258, 1.0
    %v3643 = vadd.f32 %v3259, 1.0
    %v3644 = vadd.f32 %v3260, 1.0
    %v3645 = vadd.f32 %v3261, 1.0
    %v3646 = vadd.f32 %v3262, 1.0
    %v3647 = vadd.f32 %v3263, 1.0
    %v3648 = vadd.f32 %v3264, 1.0
    %v3649 = vadd.f32 %v3265, 1.0
    %v3650 = vadd.f32 %v3266, 1.0
    %v3651 = vadd.f32 %v3267, 1.0
    %v3652 = vadd.f32 %v3268, 1.0
    %v3653 = vadd.f32 %v3269, 1.0
    %v3654 = vadd.f32 %v3270, 1.0
    %v3655 = vadd.f32 %v3271, 1.0
    %v3656 = vadd.f32 %v3272, 1.0
    %v3657 = vadd.f32 %v3273, 1.0
    %v3658 = vadd.f32 %v3274, 1.0
    %v3659 = vadd.f32 %v3275, 1.0
    %v3660 = vadd.f32 %v3276, 1.0
    %v3661 = vadd.f32 %v3277, 1.0
    %v3662 = vadd.f32 %v3278, 1.0
    %v3663 = vadd.f32 %v3279, 1.0
    %v3664 = vadd.f32 %v3280, 1.0
    %v3665 = vadd.f32 %v3281, 1.0
    %v3666 = vadd.f32 %v3282, 1.0
    %v3667 = vadd.f32 %v3283, 1.0
    %v3668 = vadd.f32 %v3284, 1.0
    %v3669 = vadd.f32 %v3285, 1.0
    %v3670 = vadd.f32 %v3286, 1.0
    %v3671 = vadd.f32 %v3287, 1.0
    %v3672 = vadd.f32 %v3288, 1.0
    %v3673 = vadd.f32 %v3289, 1.0
    %v3674 = vadd.f32 %v3290, 1.0
    %v3675 = vmul.f32 %v2139, %v3291
    %v3676 = vmul.f32 %v2140, %v3292
    %v3677 = vmul.f32 %v2141, %v3293
    %v3678 = vmul.f32 %v2142, %v3294
    %v3679 = vmul.f32 %v2143, %v3295
    %v3680 = vmul.f32 %v2144, %v3296
    %v3681 = vmul.f32 %v2145, %v3297
    %v3682 = vmul.f32 %v2146, %v3298
    %v3683 = vmul.f32 %v2147, %v3299
    %v3684 = vmul.f32 %v2148, %v3300
    %v3685 = vmul.f32 %v2149, %v3301
    %v3686 = vmul.f32 %v2150, %v3302
    %v3687 = vmul.f32 %v2151, %v3303
    %v3688 = vmul.f32 %v2152, %v3304
    %v3689 = vmul.f32 %v2153, %v3305
    %v3690 = vmul.f32 %v2154, %v3306
    %v3691 = vmul.f32 %v2155, %v3307
    %v3692 = vmul.f32 %v2156, %v3308
    %v3693 = vmul.f32 %v2157, %v3309
    %v3694 = vmul.f32 %v2158, %v3310
    %v3695 = vmul.f32 %v2159, %v3311
    %v3696 = vmul.f32 %v2160, %v3312
    %v3697 = vmul.f32 %v2161, %v3313
    %v3698 = vmul.f32 %v2162, %v3314
    %v3699 = vmul.f32 %v2163, %v3315
    %v3700 = vmul.f32 %v2164, %v3316
    %v3701 = vmul.f32 %v2165, %v3317
    %v3702 = vmul.f32 %v2166, %v3318
    %v3703 = vmul.f32 %v2167, %v3319
    %v3704 = vmul.f32 %v2168, %v3320
    %v3705 = vmul.f32 %v2169, %v3321
    %v3706 = vmul.f32 %v2170, %v3322
    %v3707 = vmul.f32 %v2171, %v3323
    %v3708 = vmul.f32 %v2172, %v3324
    %v3709 = vmul.f32 %v2173, %v3325
    %v3710 = vmul.f32 %v2174, %v3326
    %v3711 = vmul.f32 %v2175, %v3327
    %v3712 = vmul.f32 %v2176, %v3328
    %v3713 = vmul.f32 %v2177, %v3329
    %v3714 = vmul.f32 %v2178, %v3330
    %v3715 = vmul.f32 %v2179, %v3331
    %v3716 = vmul.f32 %v2180, %v3332
    %v3717 = vmul.f32 %v2181, %v3333
    %v3718 = vmul.f32 %v2182, %v3334
    %v3719 = vmul.f32 %v2183, %v3335
    %v3720 = vmul.f32 %v2184, %v3336
    %v3721 = vmul.f32 %v2185, %v3337
    %v3722 = vmul.f32 %v2186, %v3338
    %v3723 = vmul.f32 %v2187, %v3339
    %v3724 = vmul.f32 %v2188, %v3340
    %v3725 = vmul.f32 %v2189, %v3341
    %v3726 = vmul.f32 %v2190, %v3342
    %v3727 = vmul.f32 %v2191, %v3343
    %v3728 = vmul.f32 %v2192, %v3344
    %v3729 = vmul.f32 %v2193, %v3345
    %v3730 = vmul.f32 %v2194, %v3346
    %v3731 = vmul.f32 %v2195, %v3347
    %v3732 = vmul.f32 %v2196, %v3348
    %v3733 = vmul.f32 %v2197, %v3349
    %v3734 = vmul.f32 %v2198, %v3350
    %v3735 = vmul.f32 %v2199, %v3351
    %v3736 = vmul.f32 %v2200, %v3352
    %v3737 = vmul.f32 %v2201, %v3353
    %v3738 = vmul.f32 %v2202, %v3354
    %v3739 = vmul.f32 %v2203, %v3355
    %v3740 = vmul.f32 %v2204, %v3356
    %v3741 = vmul.f32 %v2205, %v3357
    %v3742 = vmul.f32 %v2206, %v3358
    %v3743 = vmul.f32 %v2207, %v3359
    %v3744 = vmul.f32 %v2208, %v3360
    %v3745 = vmul.f32 %v2209, %v3361
    %v3746 = vmul.f32 %v2210, %v3362
    %v3747 = vmul.f32 %v2211, %v3363
    %v3748 = vmul.f32 %v2212, %v3364
    %v3749 = vmul.f32 %v2213, %v3365
    %v3750 = vmul.f32 %v2214, %v3366
    %v3751 = vmul.f32 %v2215, %v3367
    %v3752 = vmul.f32 %v2216, %v3368
    %v3753 = vmul.f32 %v2217, %v3369
    %v3754 = vmul.f32 %v2218, %v3370
    %v3755 = vmul.f32 %v2219, %v3371
    %v3756 = vmul.f32 %v2220, %v3372
    %v3757 = vmul.f32 %v2221, %v3373
    %v3758 = vmul.f32 %v2222, %v3374
    %v3759 = vmul.f32 %v2223, %v3375
    %v3760 = vmul.f32 %v2224, %v3376
    %v3761 = vmul.f32 %v2225, %v3377
    %v3762 = vmul.f32 %v2226, %v3378
    %v3763 = vmul.f32 %v2227, %v3379
    %v3764 = vmul.f32 %v2228, %v3380
    %v3765 = vmul.f32 %v2229, %v3381
    %v3766 = vmul.f32 %v2230, %v3382
    %v3767 = vmul.f32 %v2231, %v3383
    %v3768 = vmul.f32 %v2232, %v3384
    %v3769 = vmul.f32 %v2233, %v3385
    %v3770 = vmul.f32 %v2234, %v3386
    %v3771 = vmul.f32 %v2235, %v3387
    %v3772 = vmul.f32 %v2236, %v3388
    %v3773 = vmul.f32 %v2237, %v3389
    %v3774 = vmul.f32 %v2238, %v3390
    %v3775 = vmul.f32 %v2239, %v3391
    %v3776 = vmul.f32 %v2240, %v3392
    %v3777 = vmul.f32 %v2241, %v3393
    %v3778 = vmul.f32 %v2242, %v3394
    %v3779 = vmul.f32 %v2243, %v3395
    %v3780 = vmul.f32 %v2244, %v3396
    %v3781 = vmul.f32 %v2245, %v3397
    %v3782 = vmul.f32 %v2246, %v3398
    %v3783 = vmul.f32 %v2247, %v3399
    %v3784 = vmul.f32 %v2248, %v3400
    %v3785 = vmul.f32 %v2249, %v3401
    %v3786 = vmul.f32 %v2250, %v3402
    %v3787 = vmul.f32 %v2251, %v3403
    %v3788 = vmul.f32 %v2252, %v3404
    %v3789 = vmul.f32 %v2253, %v3405
    %v3790 = vmul.f32 %v2254, %v3406
    %v3791 = vmul.f32 %v2255, %v3407
    %v3792 = vmul.f32 %v2256, %v3408
    %v3793 = vmul.f32 %v2257, %v3409
    %v3794 = vmul.f32 %v2258, %v3410
    %v3795 = vmul.f32 %v2259, %v3411
    %v3796 = vmul.f32 %v2260, %v3412
    %v3797 = vmul.f32 %v2261, %v3413
    %v3798 = vmul.f32 %v2262, %v3414
    %v3799 = vmul.f32 %v2263, %v3415
    %v3800 = vmul.f32 %v2264, %v3416
    %v3801 = vmul.f32 %v2265, %v3417
    %v3802 = vmul.f32 %v2266, %v3418
    %v3803 = vmul.f32 %v2267, %v3419
    %v3804 = vmul.f32 %v2268, %v3420
    %v3805 = vmul.f32 %v2269, %v3421
    %v3806 = vmul.f32 %v2270, %v3422
    %v3807 = vmul.f32 %v2271, %v3423
    %v3808 = vmul.f32 %v2272, %v3424
    %v3809 = vmul.f32 %v2273, %v3425
    %v3810 = vmul.f32 %v2274, %v3426
    %v3811 = vmul.f32 %v2275, %v3427
    %v3812 = vmul.f32 %v2276, %v3428
    %v3813 = vmul.f32 %v2277, %v3429
    %v3814 = vmul.f32 %v2278, %v3430
    %v3815 = vmul.f32 %v2279, %v3431
    %v3816 = vmul.f32 %v2280, %v3432
    %v3817 = vmul.f32 %v2281, %v3433
    %v3818 = vmul.f32 %v2282, %v3434
    %v3819 = vmul.f32 %v2283, %v3435
    %v3820 = vmul.f32 %v2284, %v3436
    %v3821 = vmul.f32 %v2285, %v3437
    %v3822 = vmul.f32 %v2286, %v3438
    %v3823 = vmul.f32 %v2287, %v3439
    %v3824 = vmul.f32 %v2288, %v3440
    %v3825 = vmul.f32 %v2289, %v3441
    %v3826 = vmul.f32 %v2290, %v3442
    %v3827 = vmul.f32 %v2291, %v3443
    %v3828 = vmul.f32 %v2292, %v3444
    %v3829 = vmul.f32 %v2293, %v3445
    %v3830 = vmul.f32 %v2294, %v3446
    %v3831 = vmul.f32 %v2295, %v3447
    %v3832 = vmul.f32 %v2296, %v3448
    %v3833 = vmul.f32 %v2297, %v3449
    %v3834 = vmul.f32 %v2298, %v3450
    %v3835 = vmul.f32 %v2299, %v3451
    %v3836 = vmul.f32 %v2300, %v3452
    %v3837 = vmul.f32 %v2301, %v3453
    %v3838 = vmul.f32 %v2302, %v3454
    %v3839 = vmul.f32 %v2303, %v3455
    %v3840 = vmul.f32 %v2304, %v3456
    %v3841 = vmul.f32 %v2305, %v3457
    %v3842 = vmul.f32 %v2306, %v3458
    %v3843 = vmul.f32 %v2307, %v3459
    %v3844 = vmul.f32 %v2308, %v3460
    %v3845 = vmul.f32 %v2309, %v3461
    %v3846 = vmul.f32 %v2310, %v3462
    %v3847 = vmul.f32 %v2311, %v3463
    %v3848 = vmul.f32 %v2312, %v3464
    %v3849 = vmul.f32 %v2313, %v3465
    %v3850 = vmul.f32 %v2314, %v3466
    %v3851 = vmul.f32 %v2315, %v3467
    %v3852 = vmul.f32 %v2316, %v3468
    %v3853 = vmul.f32 %v2317, %v3469
    %v3854 = vmul.f32 %v2318, %v3470
    %v3855 = vmul.f32 %v2319, %v3471
    %v3856 = vmul.f32 %v2320, %v3472
    %v3857 = vmul.f32 %v2321, %v3473
    %v3858 = vmul.f32 %v2322, %v3474
    %v3859 = vmul.f32 %v2323, %v3475
    %v3860 = vmul.f32 %v2324, %v3476
    %v3861 = vmul.f32 %v2325, %v3477
    %v3862 = vmul.f32 %v2326, %v3478
    %v3863 = vmul.f32 %v2327, %v3479
    %v3864 = vmul.f32 %v2328, %v3480
    %v3865 = vmul.f32 %v2329, %v3481
    %v3866 = vmul.f32 %v2330, %v3482
    %v3867 = vmul.f32 %v2331, %v3483
    %v3868 = vmul.f32 %v2332, %v3484
    %v3869 = vmul.f32 %v2333, %v3485
    %v3870 = vmul.f32 %v2334, %v3486
    %v3871 = vmul.f32 %v2335, %v3487
    %v3872 = vmul.f32 %v2336, %v3488
    %v3873 = vmul.f32 %v2337, %v3489
    %v3874 = vmul.f32 %v2338, %v3490
    %v3875 = vmul.f32 %v2339, %v3491
    %v3876 = vmul.f32 %v2340, %v3492
    %v3877 = vmul.f32 %v2341, %v3493
    %v3878 = vmul.f32 %v2342, %v3494
    %v3879 = vmul.f32 %v2343, %v3495
    %v3880 = vmul.f32 %v2344, %v3496
    %v3881 = vmul.f32 %v2345, %v3497
    %v3882 = vmul.f32 %v2346, %v3498
    %v3883 = vmul.f32 %v2347, %v3499
    %v3884 = vmul.f32 %v2348, %v3500
    %v3885 = vmul.f32 %v2349, %v3501
    %v3886 = vmul.f32 %v2350, %v3502
    %v3887 = vmul.f32 %v2351, %v3503
    %v3888 = vmul.f32 %v2352, %v3504
    %v3889 = vmul.f32 %v2353, %v3505
    %v3890 = vmul.f32 %v2354, %v3506
    %v3891 = vmul.f32 %v2355, %v3507
    %v3892 = vmul.f32 %v2356, %v3508
    %v3893 = vmul.f32 %v2357, %v3509
    %v3894 = vmul.f32 %v2358, %v3510
    %v3895 = vmul.f32 %v2359, %v3511
    %v3896 = vmul.f32 %v2360, %v3512
    %v3897 = vmul.f32 %v2361, %v3513
    %v3898 = vmul.f32 %v2362, %v3514
    %v3899 = vmul.f32 %v2363, %v3515
    %v3900 = vmul.f32 %v2364, %v3516
    %v3901 = vmul.f32 %v2365, %v3517
    %v3902 = vmul.f32 %v2366, %v3518
    %v3903 = vmul.f32 %v2367, %v3519
    %v3904 = vmul.f32 %v2368, %v3520
    %v3905 = vmul.f32 %v2369, %v3521
    %v3906 = vmul.f32 %v2370, %v3522
    %v3907 = vmul.f32 %v2371, %v3523
    %v3908 = vmul.f32 %v2372, %v3524
    %v3909 = vmul.f32 %v2373, %v3525
    %v3910 = vmul.f32 %v2374, %v3526
    %v3911 = vmul.f32 %v2375, %v3527
    %v3912 = vmul.f32 %v2376, %v3528
    %v3913 = vmul.f32 %v2377, %v3529
    %v3914 = vmul.f32 %v2378, %v3530
    %v3915 = vmul.f32 %v2379, %v3531
    %v3916 = vmul.f32 %v2380, %v3532
    %v3917 = vmul.f32 %v2381, %v3533
    %v3918 = vmul.f32 %v2382, %v3534
    %v3919 = vmul.f32 %v2383, %v3535
    %v3920 = vmul.f32 %v2384, %v3536
    %v3921 = vmul.f32 %v2385, %v3537
    %v3922 = vmul.f32 %v2386, %v3538
    %v3923 = vmul.f32 %v2387, %v3539
    %v3924 = vmul.f32 %v2388, %v3540
    %v3925 = vmul.f32 %v2389, %v3541
    %v3926 = vmul.f32 %v2390, %v3542
    %v3927 = vmul.f32 %v2391, %v3543
    %v3928 = vmul.f32 %v2392, %v3544
    %v3929 = vmul.f32 %v2393, %v3545
    %v3930 = vmul.f32 %v2394, %v3546
    %v3931 = vmul.f32 %v2395, %v3547
    %v3932 = vmul.f32 %v2396, %v3548
    %v3933 = vmul.f32 %v2397, %v3549
    %v3934 = vmul.f32 %v2398, %v3550
    %v3935 = vmul.f32 %v2399, %v3551
    %v3936 = vmul.f32 %v2400, %v3552
    %v3937 = vmul.f32 %v2401, %v3553
    %v3938 = vmul.f32 %v2402, %v3554
    %v3939 = vmul.f32 %v2403, %v3555
    %v3940 = vmul.f32 %v2404, %v3556
    %v3941 = vmul.f32 %v2405, %v3557
    %v3942 = vmul.f32 %v2406, %v3558
    %v3943 = vmul.f32 %v2407, %v3559
    %v3944 = vmul.f32 %v2408, %v3560
    %v3945 = vmul.f32 %v2409, %v3561
    %v3946 = vmul.f32 %v2410, %v3562
    %v3947 = vmul.f32 %v2411, %v3563
    %v3948 = vmul.f32 %v2412, %v3564
    %v3949 = vmul.f32 %v2413, %v3565
    %v3950 = vmul.f32 %v2414, %v3566
    %v3951 = vmul.f32 %v2415, %v3567
    %v3952 = vmul.f32 %v2416, %v3568
    %v3953 = vmul.f32 %v2417, %v3569
    %v3954 = vmul.f32 %v2418, %v3570
    %v3955 = vmul.f32 %v2419, %v3571
    %v3956 = vmul.f32 %v2420, %v3572
    %v3957 = vmul.f32 %v2421, %v3573
    %v3958 = vmul.f32 %v2422, %v3574
    %v3959 = vmul.f32 %v2423, %v3575
    %v3960 = vmul.f32 %v2424, %v3576
    %v3961 = vmul.f32 %v2425, %v3577
    %v3962 = vmul.f32 %v2426, %v3578
    %v3963 = vmul.f32 %v2427, %v3579
    %v3964 = vmul.f32 %v2428, %v3580
    %v3965 = vmul.f32 %v2429, %v3581
    %v3966 = vmul.f32 %v2430, %v3582
    %v3967 = vmul.f32 %v2431, %v3583
    %v3968 = vmul.f32 %v2432, %v3584
    %v3969 = vmul.f32 %v2433, %v3585
    %v3970 = vmul.f32 %v2434, %v3586
    %v3971 = vmul.f32 %v2435, %v3587
    %v3972 = vmul.f32 %v2436, %v3588
    %v3973 = vmul.f32 %v2437, %v3589
    %v3974 = vmul.f32 %v2438, %v3590
    %v3975 = vmul.f32 %v2439, %v3591
    %v3976 = vmul.f32 %v2440, %v3592
    %v3977 = vmul.f32 %v2441, %v3593
    %v3978 = vmul.f32 %v2442, %v3594
    %v3979 = vmul.f32 %v2443, %v3595
    %v3980 = vmul.f32 %v2444, %v3596
    %v3981 = vmul.f32 %v2445, %v3597
    %v3982 = vmul.f32 %v2446, %v3598
    %v3983 = vmul.f32 %v2447, %v3599
    %v3984 = vmul.f32 %v2448, %v3600
    %v3985 = vmul.f32 %v2449, %v3601
    %v3986 = vmul.f32 %v2450, %v3602
    %v3987 = vmul.f32 %v2451, %v3603
    %v3988 = vmul.f32 %v2452, %v3604
    %v3989 = vmul.f32 %v2453, %v3605
    %v3990 = vmul.f32 %v2454, %v3606
    %v3991 = vmul.f32 %v2455, %v3607
    %v3992 = vmul.f32 %v2456, %v3608
    %v3993 = vmul.f32 %v2457, %v3609
    %v3994 = vmul.f32 %v2458, %v3610
    %v3995 = vmul.f32 %v2459, %v3611
    %v3996 = vmul.f32 %v2460, %v3612
    %v3997 = vmul.f32 %v2461, %v3613
    %v3998 = vmul.f32 %v2462, %v3614
    %v3999 = vmul.f32 %v2463, %v3615
    %v4000 = vmul.f32 %v2464, %v3616
    %v4001 = vmul.f32 %v2465, %v3617
    %v4002 = vmul.f32 %v2466, %v3618
    %v4003 = vmul.f32 %v2467, %v3619
    %v4004 = vmul.f32 %v2468, %v3620
    %v4005 = vmul.f32 %v2469, %v3621
    %v4006 = vmul.f32 %v2470, %v3622
    %v4007 = vmul.f32 %v2471, %v3623
    %v4008 = vmul.f32 %v2472, %v3624
    %v4009 = vmul.f32 %v2473, %v3625
    %v4010 = vmul.f32 %v2474, %v3626
    %v4011 = vmul.f32 %v2475, %v3627
    %v4012 = vmul.f32 %v2476, %v3628
    %v4013 = vmul.f32 %v2477, %v3629
    %v4014 = vmul.f32 %v2478, %v3630
    %v4015 = vmul.f32 %v2479, %v3631
    %v4016 = vmul.f32 %v2480, %v3632
    %v4017 = vmul.f32 %v2481, %v3633
    %v4018 = vmul.f32 %v2482, %v3634
    %v4019 = vmul.f32 %v2483, %v3635
    %v4020 = vmul.f32 %v2484, %v3636
    %v4021 = vmul.f32 %v2485, %v3637
    %v4022 = vmul.f32 %v2486, %v3638
    %v4023 = vmul.f32 %v2487, %v3639
    %v4024 = vmul.f32 %v2488, %v3640
    %v4025 = vmul.f32 %v2489, %v3641
    %v4026 = vmul.f32 %v2490, %v3642
    %v4027 = vmul.f32 %v2491, %v3643
    %v4028 = vmul.f32 %v2492, %v3644
    %v4029 = vmul.f32 %v2493, %v3645
    %v4030 = vmul.f32 %v2494, %v3646
    %v4031 = vmul.f32 %v2495, %v3647
    %v4032 = vmul.f32 %v2496, %v3648
    %v4033 = vmul.f32 %v2497, %v3649
    %v4034 = vmul.f32 %v2498, %v3650
    %v4035 = vmul.f32 %v2499, %v3651
    %v4036 = vmul.f32 %v2500, %v3652
    %v4037 = vmul.f32 %v2501, %v3653
    %v4038 = vmul.f32 %v2502, %v3654
    %v4039 = vmul.f32 %v2503, %v3655
    %v4040 = vmul.f32 %v2504, %v3656
    %v4041 = vmul.f32 %v2505, %v3657
    %v4042 = vmul.f32 %v2506, %v3658
    %v4043 = vmul.f32 %v2507, %v3659
    %v4044 = vmul.f32 %v2508, %v3660
    %v4045 = vmul.f32 %v2509, %v3661
    %v4046 = vmul.f32 %v2510, %v3662
    %v4047 = vmul.f32 %v2511, %v3663
    %v4048 = vmul.f32 %v2512, %v3664
    %v4049 = vmul.f32 %v2513, %v3665
    %v4050 = vmul.f32 %v2514, %v3666
    %v4051 = vmul.f32 %v2515, %v3667
    %v4052 = vmul.f32 %v2516, %v3668
    %v4053 = vmul.f32 %v2517, %v3669
    %v4054 = vmul.f32 %v2518, %v3670
    %v4055 = vmul.f32 %v2519, %v3671
    %v4056 = vmul.f32 %v2520, %v3672
    %v4057 = vmul.f32 %v2521, %v3673
    %v4058 = vmul.f32 %v2522, %v3674
    %v4059 = vpack.c.bf16 %v3683, %v3675
    %v4060 = vpack.c.bf16 %v3684, %v3676
    %v4061 = vpack.c.bf16 %v3685, %v3677
    %v4062 = vpack.c.bf16 %v3686, %v3678
    %v4063 = vpack.c.bf16 %v3687, %v3679
    %v4064 = vpack.c.bf16 %v3688, %v3680
    %v4065 = vpack.c.bf16 %v3689, %v3681
    %v4066 = vpack.c.bf16 %v3690, %v3682
    %v4067 = vpack.c.bf16 %v3699, %v3691
    %v4068 = vpack.c.bf16 %v3700, %v3692
    %v4069 = vpack.c.bf16 %v3701, %v3693
    %v4070 = vpack.c.bf16 %v3702, %v3694
    %v4071 = vpack.c.bf16 %v3703, %v3695
    %v4072 = vpack.c.bf16 %v3704, %v3696
    %v4073 = vpack.c.bf16 %v3705, %v3697
    %v4074 = vpack.c.bf16 %v3706, %v3698
    %v4075 = vpack.c.bf16 %v3715, %v3707
    %v4076 = vpack.c.bf16 %v3716, %v3708
    %v4077 = vpack.c.bf16 %v3717, %v3709
    %v4078 = vpack.c.bf16 %v3718, %v3710
    %v4079 = vpack.c.bf16 %v3719, %v3711
    %v4080 = vpack.c.bf16 %v3720, %v3712
    %v4081 = vpack.c.bf16 %v3721, %v3713
    %v4082 = vpack.c.bf16 %v3722, %v3714
    %v4083 = vpack.c.bf16 %v3731, %v3723
    %v4084 = vpack.c.bf16 %v3732, %v3724
    %v4085 = vpack.c.bf16 %v3733, %v3725
    %v4086 = vpack.c.bf16 %v3734, %v3726
    %v4087 = vpack.c.bf16 %v3735, %v3727
    %v4088 = vpack.c.bf16 %v3736, %v3728
    %v4089 = vpack.c.bf16 %v3737, %v3729
    %v4090 = vpack.c.bf16 %v3738, %v3730
    %v4091 = vpack.c.bf16 %v3747, %v3739
    %v4092 = vpack.c.bf16 %v3748, %v3740
    %v4093 = vpack.c.bf16 %v3749, %v3741
    %v4094 = vpack.c.bf16 %v3750, %v3742
    %v4095 = vpack.c.bf16 %v3751, %v3743
    %v4096 = vpack.c.bf16 %v3752, %v3744
    %v4097 = vpack.c.bf16 %v3753, %v3745
    %v4098 = vpack.c.bf16 %v3754, %v3746
    %v4099 = vpack.c.bf16 %v3763, %v3755
    %v4100 = vpack.c.bf16 %v3764, %v3756
    %v4101 = vpack.c.bf16 %v3765, %v3757
    %v4102 = vpack.c.bf16 %v3766, %v3758
    %v4103 = vpack.c.bf16 %v3767, %v3759
    %v4104 = vpack.c.bf16 %v3768, %v3760
    %v4105 = vpack.c.bf16 %v3769, %v3761
    %v4106 = vpack.c.bf16 %v3770, %v3762
    %v4107 = vpack.c.bf16 %v3779, %v3771
    %v4108 = vpack.c.bf16 %v3780, %v3772
    %v4109 = vpack.c.bf16 %v3781, %v3773
    %v4110 = vpack.c.bf16 %v3782, %v3774
    %v4111 = vpack.c.bf16 %v3783, %v3775
    %v4112 = vpack.c.bf16 %v3784, %v3776
    %v4113 = vpack.c.bf16 %v3785, %v3777
    %v4114 = vpack.c.bf16 %v3786, %v3778
    %v4115 = vpack.c.bf16 %v3795, %v3787
    %v4116 = vpack.c.bf16 %v3796, %v3788
    %v4117 = vpack.c.bf16 %v3797, %v3789
    %v4118 = vpack.c.bf16 %v3798, %v3790
    %v4119 = vpack.c.bf16 %v3799, %v3791
    %v4120 = vpack.c.bf16 %v3800, %v3792
    %v4121 = vpack.c.bf16 %v3801, %v3793
    %v4122 = vpack.c.bf16 %v3802, %v3794
    %v4123 = vpack.c.bf16 %v3811, %v3803
    %v4124 = vpack.c.bf16 %v3812, %v3804
    %v4125 = vpack.c.bf16 %v3813, %v3805
    %v4126 = vpack.c.bf16 %v3814, %v3806
    %v4127 = vpack.c.bf16 %v3815, %v3807
    %v4128 = vpack.c.bf16 %v3816, %v3808
    %v4129 = vpack.c.bf16 %v3817, %v3809
    %v4130 = vpack.c.bf16 %v3818, %v3810
    %v4131 = vpack.c.bf16 %v3827, %v3819
    %v4132 = vpack.c.bf16 %v3828, %v3820
    %v4133 = vpack.c.bf16 %v3829, %v3821
    %v4134 = vpack.c.bf16 %v3830, %v3822
    %v4135 = vpack.c.bf16 %v3831, %v3823
    %v4136 = vpack.c.bf16 %v3832, %v3824
    %v4137 = vpack.c.bf16 %v3833, %v3825
    %v4138 = vpack.c.bf16 %v3834, %v3826
    %v4139 = vpack.c.bf16 %v3843, %v3835
    %v4140 = vpack.c.bf16 %v3844, %v3836
    %v4141 = vpack.c.bf16 %v3845, %v3837
    %v4142 = vpack.c.bf16 %v3846, %v3838
    %v4143 = vpack.c.bf16 %v3847, %v3839
    %v4144 = vpack.c.bf16 %v3848, %v3840
    %v4145 = vpack.c.bf16 %v3849, %v3841
    %v4146 = vpack.c.bf16 %v3850, %v3842
    %v4147 = vpack.c.bf16 %v3859, %v3851
    %v4148 = vpack.c.bf16 %v3860, %v3852
    %v4149 = vpack.c.bf16 %v3861, %v3853
    %v4150 = vpack.c.bf16 %v3862, %v3854
    %v4151 = vpack.c.bf16 %v3863, %v3855
    %v4152 = vpack.c.bf16 %v3864, %v3856
    %v4153 = vpack.c.bf16 %v3865, %v3857
    %v4154 = vpack.c.bf16 %v3866, %v3858
    %v4155 = vpack.c.bf16 %v3875, %v3867
    %v4156 = vpack.c.bf16 %v3876, %v3868
    %v4157 = vpack.c.bf16 %v3877, %v3869
    %v4158 = vpack.c.bf16 %v3878, %v3870
    %v4159 = vpack.c.bf16 %v3879, %v3871
    %v4160 = vpack.c.bf16 %v3880, %v3872
    %v4161 = vpack.c.bf16 %v3881, %v3873
    %v4162 = vpack.c.bf16 %v3882, %v3874
    %v4163 = vpack.c.bf16 %v3891, %v3883
    %v4164 = vpack.c.bf16 %v3892, %v3884
    %v4165 = vpack.c.bf16 %v3893, %v3885
    %v4166 = vpack.c.bf16 %v3894, %v3886
    %v4167 = vpack.c.bf16 %v3895, %v3887
    %v4168 = vpack.c.bf16 %v3896, %v3888
    %v4169 = vpack.c.bf16 %v3897, %v3889
    %v4170 = vpack.c.bf16 %v3898, %v3890
    %v4171 = vpack.c.bf16 %v3907, %v3899
    %v4172 = vpack.c.bf16 %v3908, %v3900
    %v4173 = vpack.c.bf16 %v3909, %v3901
    %v4174 = vpack.c.bf16 %v3910, %v3902
    %v4175 = vpack.c.bf16 %v3911, %v3903
    %v4176 = vpack.c.bf16 %v3912, %v3904
    %v4177 = vpack.c.bf16 %v3913, %v3905
    %v4178 = vpack.c.bf16 %v3914, %v3906
    %v4179 = vpack.c.bf16 %v3923, %v3915
    %v4180 = vpack.c.bf16 %v3924, %v3916
    %v4181 = vpack.c.bf16 %v3925, %v3917
    %v4182 = vpack.c.bf16 %v3926, %v3918
    %v4183 = vpack.c.bf16 %v3927, %v3919
    %v4184 = vpack.c.bf16 %v3928, %v3920
    %v4185 = vpack.c.bf16 %v3929, %v3921
    %v4186 = vpack.c.bf16 %v3930, %v3922
    %v4187 = vpack.c.bf16 %v3939, %v3931
    %v4188 = vpack.c.bf16 %v3940, %v3932
    %v4189 = vpack.c.bf16 %v3941, %v3933
    %v4190 = vpack.c.bf16 %v3942, %v3934
    %v4191 = vpack.c.bf16 %v3943, %v3935
    %v4192 = vpack.c.bf16 %v3944, %v3936
    %v4193 = vpack.c.bf16 %v3945, %v3937
    %v4194 = vpack.c.bf16 %v3946, %v3938
    %v4195 = vpack.c.bf16 %v3955, %v3947
    %v4196 = vpack.c.bf16 %v3956, %v3948
    %v4197 = vpack.c.bf16 %v3957, %v3949
    %v4198 = vpack.c.bf16 %v3958, %v3950
    %v4199 = vpack.c.bf16 %v3959, %v3951
    %v4200 = vpack.c.bf16 %v3960, %v3952
    %v4201 = vpack.c.bf16 %v3961, %v3953
    %v4202 = vpack.c.bf16 %v3962, %v3954
    %v4203 = vpack.c.bf16 %v3971, %v3963
    %v4204 = vpack.c.bf16 %v3972, %v3964
    %v4205 = vpack.c.bf16 %v3973, %v3965
    %v4206 = vpack.c.bf16 %v3974, %v3966
    %v4207 = vpack.c.bf16 %v3975, %v3967
    %v4208 = vpack.c.bf16 %v3976, %v3968
    %v4209 = vpack.c.bf16 %v3977, %v3969
    %v4210 = vpack.c.bf16 %v3978, %v3970
    %v4211 = vpack.c.bf16 %v3987, %v3979
    %v4212 = vpack.c.bf16 %v3988, %v3980
    %v4213 = vpack.c.bf16 %v3989, %v3981
    %v4214 = vpack.c.bf16 %v3990, %v3982
    %v4215 = vpack.c.bf16 %v3991, %v3983
    %v4216 = vpack.c.bf16 %v3992, %v3984
    %v4217 = vpack.c.bf16 %v3993, %v3985
    %v4218 = vpack.c.bf16 %v3994, %v3986
    %v4219 = vpack.c.bf16 %v4003, %v3995
    %v4220 = vpack.c.bf16 %v4004, %v3996
    %v4221 = vpack.c.bf16 %v4005, %v3997
    %v4222 = vpack.c.bf16 %v4006, %v3998
    %v4223 = vpack.c.bf16 %v4007, %v3999
    %v4224 = vpack.c.bf16 %v4008, %v4000
    %v4225 = vpack.c.bf16 %v4009, %v4001
    %v4226 = vpack.c.bf16 %v4010, %v4002
    %v4227 = vpack.c.bf16 %v4019, %v4011
    %v4228 = vpack.c.bf16 %v4020, %v4012
    %v4229 = vpack.c.bf16 %v4021, %v4013
    %v4230 = vpack.c.bf16 %v4022, %v4014
    %v4231 = vpack.c.bf16 %v4023, %v4015
    %v4232 = vpack.c.bf16 %v4024, %v4016
    %v4233 = vpack.c.bf16 %v4025, %v4017
    %v4234 = vpack.c.bf16 %v4026, %v4018
    %v4235 = vpack.c.bf16 %v4035, %v4027
    %v4236 = vpack.c.bf16 %v4036, %v4028
    %v4237 = vpack.c.bf16 %v4037, %v4029
    %v4238 = vpack.c.bf16 %v4038, %v4030
    %v4239 = vpack.c.bf16 %v4039, %v4031
    %v4240 = vpack.c.bf16 %v4040, %v4032
    %v4241 = vpack.c.bf16 %v4041, %v4033
    %v4242 = vpack.c.bf16 %v4042, %v4034
    %v4243 = vpack.c.bf16 %v4051, %v4043
    %v4244 = vpack.c.bf16 %v4052, %v4044
    %v4245 = vpack.c.bf16 %v4053, %v4045
    %v4246 = vpack.c.bf16 %v4054, %v4046
    %v4247 = vpack.c.bf16 %v4055, %v4047
    %v4248 = vpack.c.bf16 %v4056, %v4048
    %v4249 = vpack.c.bf16 %v4057, %v4049
    %v4250 = vpack.c.bf16 %v4058, %v4050
    %v4251 = vld [vmem:[#allocation8] sm:$0xff]
    %v4252 = vld [vmem:[#allocation8 + $0x8] sm:$0xff]
    %v4253 = vld [vmem:[#allocation8 + $0x10] sm:$0xff]
    %v4254 = vld [vmem:[#allocation8 + $0x18] sm:$0xff]
    %v4255 = vld [vmem:[#allocation8 + $0x20] sm:$0xff]
    %v4256 = vld [vmem:[#allocation8 + $0x28] sm:$0xff]
    %v4257 = vld [vmem:[#allocation8 + $0x30] sm:$0xff]
    %v4258 = vld [vmem:[#allocation8 + $0x38] sm:$0xff]
    %v4259 = vld [vmem:[#allocation8 + $0x40] sm:$0xff]
    %v4260 = vld [vmem:[#allocation8 + $0x48] sm:$0xff]
    %v4261 = vld [vmem:[#allocation8 + $0x50] sm:$0xff]
    %v4262 = vld [vmem:[#allocation8 + $0x58] sm:$0xff]
    %v4263 = vld [vmem:[#allocation8 + $0x60] sm:$0xff]
    %v4264 = vld [vmem:[#allocation8 + $0x68] sm:$0xff]
    %v4265 = vld [vmem:[#allocation8 + $0x70] sm:$0xff]
    %v4266 = vld [vmem:[#allocation8 + $0x78] sm:$0xff]
    %v4267 = vld [vmem:[#allocation8 + $0x80] sm:$0xff]
    %v4268 = vld [vmem:[#allocation8 + $0x88] sm:$0xff]
    %v4269 = vld [vmem:[#allocation8 + $0x90] sm:$0xff]
    %v4270 = vld [vmem:[#allocation8 + $0x98] sm:$0xff]
    %v4271 = vld [vmem:[#allocation8 + $0xa0] sm:$0xff]
    %v4272 = vld [vmem:[#allocation8 + $0xa8] sm:$0xff]
    %v4273 = vld [vmem:[#allocation8 + $0xb0] sm:$0xff]
    %v4274 = vld [vmem:[#allocation8 + $0xb8] sm:$0xff]
    %v4275 = vld [vmem:[#allocation8 + $0xc0] sm:$0xff]
    %v4276 = vld [vmem:[#allocation8 + $0xc8] sm:$0xff]
    %v4277 = vld [vmem:[#allocation8 + $0xd0] sm:$0xff]
    %v4278 = vld [vmem:[#allocation8 + $0xd8] sm:$0xff]
    %v4279 = vld [vmem:[#allocation8 + $0xe0] sm:$0xff]
    %v4280 = vld [vmem:[#allocation8 + $0xe8] sm:$0xff]
    %v4281 = vld [vmem:[#allocation8 + $0xf0] sm:$0xff]
    %v4282 = vld [vmem:[#allocation8 + $0xf8] sm:$0xff]
    %v4283 = vld [vmem:[#allocation8 + $0x100] sm:$0xff]
    %v4284 = vld [vmem:[#allocation8 + $0x108] sm:$0xff]
    %v4285 = vld [vmem:[#allocation8 + $0x110] sm:$0xff]
    %v4286 = vld [vmem:[#allocation8 + $0x118] sm:$0xff]
    %v4287 = vld [vmem:[#allocation8 + $0x120] sm:$0xff]
    %v4288 = vld [vmem:[#allocation8 + $0x128] sm:$0xff]
    %v4289 = vld [vmem:[#allocation8 + $0x130] sm:$0xff]
    %v4290 = vld [vmem:[#allocation8 + $0x138] sm:$0xff]
    %v4291 = vld [vmem:[#allocation8 + $0x140] sm:$0xff]
    %v4292 = vld [vmem:[#allocation8 + $0x148] sm:$0xff]
    %v4293 = vld [vmem:[#allocation8 + $0x150] sm:$0xff]
    %v4294 = vld [vmem:[#allocation8 + $0x158] sm:$0xff]
    %v4295 = vld [vmem:[#allocation8 + $0x160] sm:$0xff]
    %v4296 = vld [vmem:[#allocation8 + $0x168] sm:$0xff]
    %v4297 = vld [vmem:[#allocation8 + $0x170] sm:$0xff]
    %v4298 = vld [vmem:[#allocation8 + $0x178] sm:$0xff]
    %v4299 = vld [vmem:[#allocation8 + $0x180] sm:$0xff]
    %v4300 = vld [vmem:[#allocation8 + $0x188] sm:$0xff]
    %v4301 = vld [vmem:[#allocation8 + $0x190] sm:$0xff]
    %v4302 = vld [vmem:[#allocation8 + $0x198] sm:$0xff]
    %v4303 = vld [vmem:[#allocation8 + $0x1a0] sm:$0xff]
    %v4304 = vld [vmem:[#allocation8 + $0x1a8] sm:$0xff]
    %v4305 = vld [vmem:[#allocation8 + $0x1b0] sm:$0xff]
    %v4306 = vld [vmem:[#allocation8 + $0x1b8] sm:$0xff]
    %v4307 = vld [vmem:[#allocation8 + $0x1c0] sm:$0xff]
    %v4308 = vld [vmem:[#allocation8 + $0x1c8] sm:$0xff]
    %v4309 = vld [vmem:[#allocation8 + $0x1d0] sm:$0xff]
    %v4310 = vld [vmem:[#allocation8 + $0x1d8] sm:$0xff]
    %v4311 = vld [vmem:[#allocation8 + $0x1e0] sm:$0xff]
    %v4312 = vld [vmem:[#allocation8 + $0x1e8] sm:$0xff]
    %v4313 = vld [vmem:[#allocation8 + $0x1f0] sm:$0xff]
    %v4314 = vld [vmem:[#allocation8 + $0x1f8] sm:$0xff]
    %v4315 = vld [vmem:[#allocation8 + $0x200] sm:$0xff]
    %v4316 = vld [vmem:[#allocation8 + $0x208] sm:$0xff]
    %v4317 = vld [vmem:[#allocation8 + $0x210] sm:$0xff]
    %v4318 = vld [vmem:[#allocation8 + $0x218] sm:$0xff]
    %v4319 = vld [vmem:[#allocation8 + $0x220] sm:$0xff]
    %v4320 = vld [vmem:[#allocation8 + $0x228] sm:$0xff]
    %v4321 = vld [vmem:[#allocation8 + $0x230] sm:$0xff]
    %v4322 = vld [vmem:[#allocation8 + $0x238] sm:$0xff]
    %v4323 = vld [vmem:[#allocation8 + $0x240] sm:$0xff]
    %v4324 = vld [vmem:[#allocation8 + $0x248] sm:$0xff]
    %v4325 = vld [vmem:[#allocation8 + $0x250] sm:$0xff]
    %v4326 = vld [vmem:[#allocation8 + $0x258] sm:$0xff]
    %v4327 = vld [vmem:[#allocation8 + $0x260] sm:$0xff]
    %v4328 = vld [vmem:[#allocation8 + $0x268] sm:$0xff]
    %v4329 = vld [vmem:[#allocation8 + $0x270] sm:$0xff]
    %v4330 = vld [vmem:[#allocation8 + $0x278] sm:$0xff]
    %v4331 = vld [vmem:[#allocation8 + $0x280] sm:$0xff]
    %v4332 = vld [vmem:[#allocation8 + $0x288] sm:$0xff]
    %v4333 = vld [vmem:[#allocation8 + $0x290] sm:$0xff]
    %v4334 = vld [vmem:[#allocation8 + $0x298] sm:$0xff]
    %v4335 = vld [vmem:[#allocation8 + $0x2a0] sm:$0xff]
    %v4336 = vld [vmem:[#allocation8 + $0x2a8] sm:$0xff]
    %v4337 = vld [vmem:[#allocation8 + $0x2b0] sm:$0xff]
    %v4338 = vld [vmem:[#allocation8 + $0x2b8] sm:$0xff]
    %v4339 = vld [vmem:[#allocation8 + $0x2c0] sm:$0xff]
    %v4340 = vld [vmem:[#allocation8 + $0x2c8] sm:$0xff]
    %v4341 = vld [vmem:[#allocation8 + $0x2d0] sm:$0xff]
    %v4342 = vld [vmem:[#allocation8 + $0x2d8] sm:$0xff]
    %v4343 = vld [vmem:[#allocation8 + $0x2e0] sm:$0xff]
    %v4344 = vld [vmem:[#allocation8 + $0x2e8] sm:$0xff]
    %v4345 = vld [vmem:[#allocation8 + $0x2f0] sm:$0xff]
    %v4346 = vld [vmem:[#allocation8 + $0x2f8] sm:$0xff]
    %v4347 = vld [vmem:[#allocation8 + $0x300] sm:$0xff]
    %v4348 = vld [vmem:[#allocation8 + $0x308] sm:$0xff]
    %v4349 = vld [vmem:[#allocation8 + $0x310] sm:$0xff]
    %v4350 = vld [vmem:[#allocation8 + $0x318] sm:$0xff]
    %v4351 = vld [vmem:[#allocation8 + $0x320] sm:$0xff]
    %v4352 = vld [vmem:[#allocation8 + $0x328] sm:$0xff]
    %v4353 = vld [vmem:[#allocation8 + $0x330] sm:$0xff]
    %v4354 = vld [vmem:[#allocation8 + $0x338] sm:$0xff]
    %v4355 = vld [vmem:[#allocation8 + $0x340] sm:$0xff]
    %v4356 = vld [vmem:[#allocation8 + $0x348] sm:$0xff]
    %v4357 = vld [vmem:[#allocation8 + $0x350] sm:$0xff]
    %v4358 = vld [vmem:[#allocation8 + $0x358] sm:$0xff]
    %v4359 = vld [vmem:[#allocation8 + $0x360] sm:$0xff]
    %v4360 = vld [vmem:[#allocation8 + $0x368] sm:$0xff]
    %v4361 = vld [vmem:[#allocation8 + $0x370] sm:$0xff]
    %v4362 = vld [vmem:[#allocation8 + $0x378] sm:$0xff]
    %v4363 = vld [vmem:[#allocation8 + $0x380] sm:$0xff]
    %v4364 = vld [vmem:[#allocation8 + $0x388] sm:$0xff]
    %v4365 = vld [vmem:[#allocation8 + $0x390] sm:$0xff]
    %v4366 = vld [vmem:[#allocation8 + $0x398] sm:$0xff]
    %v4367 = vld [vmem:[#allocation8 + $0x3a0] sm:$0xff]
    %v4368 = vld [vmem:[#allocation8 + $0x3a8] sm:$0xff]
    %v4369 = vld [vmem:[#allocation8 + $0x3b0] sm:$0xff]
    %v4370 = vld [vmem:[#allocation8 + $0x3b8] sm:$0xff]
    %v4371 = vld [vmem:[#allocation8 + $0x3c0] sm:$0xff]
    %v4372 = vld [vmem:[#allocation8 + $0x3c8] sm:$0xff]
    %v4373 = vld [vmem:[#allocation8 + $0x3d0] sm:$0xff]
    %v4374 = vld [vmem:[#allocation8 + $0x3d8] sm:$0xff]
    %v4375 = vld [vmem:[#allocation8 + $0x3e0] sm:$0xff]
    %v4376 = vld [vmem:[#allocation8 + $0x3e8] sm:$0xff]
    %v4377 = vld [vmem:[#allocation8 + $0x3f0] sm:$0xff]
    %v4378 = vld [vmem:[#allocation8 + $0x3f8] sm:$0xff]
    %v4379 = vld [vmem:[%s4] sm:$0x3]
    %v4381 = vlaneseq
    %v4382 = vshrl.u32 %v4381, 7
    %v4383 = vsub.s32 0, %v4382
    %v4384 = vrot.slane %v4379, %v4383
    %v4385 = vlaneseq
    %v4386 = vshrl.u32 %v4385, 7
    %v4387 = vsub.s32 1, %v4386
    %v4388 = vrot.slane %v4379, %v4387
    %v4519 = vunpack.c.l.b16 %v4251
    %v4520 = vunpack.c.h.b16 %v4251
    %v4521 = vunpack.c.l.b16 %v4252
    %v4522 = vunpack.c.h.b16 %v4252
    %v4523 = vunpack.c.l.b16 %v4253
    %v4524 = vunpack.c.h.b16 %v4253
    %v4525 = vunpack.c.l.b16 %v4254
    %v4526 = vunpack.c.h.b16 %v4254
    %v4527 = vunpack.c.l.b16 %v4255
    %v4528 = vunpack.c.h.b16 %v4255
    %v4529 = vunpack.c.l.b16 %v4256
    %v4530 = vunpack.c.h.b16 %v4256
    %v4531 = vunpack.c.l.b16 %v4257
    %v4532 = vunpack.c.h.b16 %v4257
    %v4533 = vunpack.c.l.b16 %v4258
    %v4534 = vunpack.c.h.b16 %v4258
    %v4535 = vunpack.c.l.b16 %v4259
    %v4536 = vunpack.c.h.b16 %v4259
    %v4537 = vunpack.c.l.b16 %v4260
    %v4538 = vunpack.c.h.b16 %v4260
    %v4539 = vunpack.c.l.b16 %v4261
    %v4540 = vunpack.c.h.b16 %v4261
    %v4541 = vunpack.c.l.b16 %v4262
    %v4542 = vunpack.c.h.b16 %v4262
    %v4543 = vunpack.c.l.b16 %v4263
    %v4544 = vunpack.c.h.b16 %v4263
    %v4545 = vunpack.c.l.b16 %v4264
    %v4546 = vunpack.c.h.b16 %v4264
    %v4547 = vunpack.c.l.b16 %v4265
    %v4548 = vunpack.c.h.b16 %v4265
    %v4549 = vunpack.c.l.b16 %v4266
    %v4550 = vunpack.c.h.b16 %v4266
    %v4551 = vunpack.c.l.b16 %v4267
    %v4552 = vunpack.c.h.b16 %v4267
    %v4553 = vunpack.c.l.b16 %v4268
    %v4554 = vunpack.c.h.b16 %v4268
    %v4555 = vunpack.c.l.b16 %v4269
    %v4556 = vunpack.c.h.b16 %v4269
    %v4557 = vunpack.c.l.b16 %v4270
    %v4558 = vunpack.c.h.b16 %v4270
    %v4559 = vunpack.c.l.b16 %v4271
    %v4560 = vunpack.c.h.b16 %v4271
    %v4561 = vunpack.c.l.b16 %v4272
    %v4562 = vunpack.c.h.b16 %v4272
    %v4563 = vunpack.c.l.b16 %v4273
    %v4564 = vunpack.c.h.b16 %v4273
    %v4565 = vunpack.c.l.b16 %v4274
    %v4566 = vunpack.c.h.b16 %v4274
    %v4567 = vunpack.c.l.b16 %v4275
    %v4568 = vunpack.c.h.b16 %v4275
    %v4569 = vunpack.c.l.b16 %v4276
    %v4570 = vunpack.c.h.b16 %v4276
    %v4571 = vunpack.c.l.b16 %v4277
    %v4572 = vunpack.c.h.b16 %v4277
    %v4573 = vunpack.c.l.b16 %v4278
    %v4574 = vunpack.c.h.b16 %v4278
    %v4575 = vunpack.c.l.b16 %v4279
    %v4576 = vunpack.c.h.b16 %v4279
    %v4577 = vunpack.c.l.b16 %v4280
    %v4578 = vunpack.c.h.b16 %v4280
    %v4579 = vunpack.c.l.b16 %v4281
    %v4580 = vunpack.c.h.b16 %v4281
    %v4581 = vunpack.c.l.b16 %v4282
    %v4582 = vunpack.c.h.b16 %v4282
    %v4583 = vunpack.c.l.b16 %v4283
    %v4584 = vunpack.c.h.b16 %v4283
    %v4585 = vunpack.c.l.b16 %v4284
    %v4586 = vunpack.c.h.b16 %v4284
    %v4587 = vunpack.c.l.b16 %v4285
    %v4588 = vunpack.c.h.b16 %v4285
    %v4589 = vunpack.c.l.b16 %v4286
    %v4590 = vunpack.c.h.b16 %v4286
    %v4591 = vunpack.c.l.b16 %v4287
    %v4592 = vunpack.c.h.b16 %v4287
    %v4593 = vunpack.c.l.b16 %v4288
    %v4594 = vunpack.c.h.b16 %v4288
    %v4595 = vunpack.c.l.b16 %v4289
    %v4596 = vunpack.c.h.b16 %v4289
    %v4597 = vunpack.c.l.b16 %v4290
    %v4598 = vunpack.c.h.b16 %v4290
    %v4599 = vunpack.c.l.b16 %v4291
    %v4600 = vunpack.c.h.b16 %v4291
    %v4601 = vunpack.c.l.b16 %v4292
    %v4602 = vunpack.c.h.b16 %v4292
    %v4603 = vunpack.c.l.b16 %v4293
    %v4604 = vunpack.c.h.b16 %v4293
    %v4605 = vunpack.c.l.b16 %v4294
    %v4606 = vunpack.c.h.b16 %v4294
    %v4607 = vunpack.c.l.b16 %v4295
    %v4608 = vunpack.c.h.b16 %v4295
    %v4609 = vunpack.c.l.b16 %v4296
    %v4610 = vunpack.c.h.b16 %v4296
    %v4611 = vunpack.c.l.b16 %v4297
    %v4612 = vunpack.c.h.b16 %v4297
    %v4613 = vunpack.c.l.b16 %v4298
    %v4614 = vunpack.c.h.b16 %v4298
    %v4615 = vunpack.c.l.b16 %v4299
    %v4616 = vunpack.c.h.b16 %v4299
    %v4617 = vunpack.c.l.b16 %v4300
    %v4618 = vunpack.c.h.b16 %v4300
    %v4619 = vunpack.c.l.b16 %v4301
    %v4620 = vunpack.c.h.b16 %v4301
    %v4621 = vunpack.c.l.b16 %v4302
    %v4622 = vunpack.c.h.b16 %v4302
    %v4623 = vunpack.c.l.b16 %v4303
    %v4624 = vunpack.c.h.b16 %v4303
    %v4625 = vunpack.c.l.b16 %v4304
    %v4626 = vunpack.c.h.b16 %v4304
    %v4627 = vunpack.c.l.b16 %v4305
    %v4628 = vunpack.c.h.b16 %v4305
    %v4629 = vunpack.c.l.b16 %v4306
    %v4630 = vunpack.c.h.b16 %v4306
    %v4631 = vunpack.c.l.b16 %v4307
    %v4632 = vunpack.c.h.b16 %v4307
    %v4633 = vunpack.c.l.b16 %v4308
    %v4634 = vunpack.c.h.b16 %v4308
    %v4635 = vunpack.c.l.b16 %v4309
    %v4636 = vunpack.c.h.b16 %v4309
    %v4637 = vunpack.c.l.b16 %v4310
    %v4638 = vunpack.c.h.b16 %v4310
    %v4639 = vunpack.c.l.b16 %v4311
    %v4640 = vunpack.c.h.b16 %v4311
    %v4641 = vunpack.c.l.b16 %v4312
    %v4642 = vunpack.c.h.b16 %v4312
    %v4643 = vunpack.c.l.b16 %v4313
    %v4644 = vunpack.c.h.b16 %v4313
    %v4645 = vunpack.c.l.b16 %v4314
    %v4646 = vunpack.c.h.b16 %v4314
    %v4647 = vunpack.c.l.b16 %v4315
    %v4648 = vunpack.c.h.b16 %v4315
    %v4649 = vunpack.c.l.b16 %v4316
    %v4650 = vunpack.c.h.b16 %v4316
    %v4651 = vunpack.c.l.b16 %v4317
    %v4652 = vunpack.c.h.b16 %v4317
    %v4653 = vunpack.c.l.b16 %v4318
    %v4654 = vunpack.c.h.b16 %v4318
    %v4655 = vunpack.c.l.b16 %v4319
    %v4656 = vunpack.c.h.b16 %v4319
    %v4657 = vunpack.c.l.b16 %v4320
    %v4658 = vunpack.c.h.b16 %v4320
    %v4659 = vunpack.c.l.b16 %v4321
    %v4660 = vunpack.c.h.b16 %v4321
    %v4661 = vunpack.c.l.b16 %v4322
    %v4662 = vunpack.c.h.b16 %v4322
    %v4663 = vunpack.c.l.b16 %v4323
    %v4664 = vunpack.c.h.b16 %v4323
    %v4665 = vunpack.c.l.b16 %v4324
    %v4666 = vunpack.c.h.b16 %v4324
    %v4667 = vunpack.c.l.b16 %v4325
    %v4668 = vunpack.c.h.b16 %v4325
    %v4669 = vunpack.c.l.b16 %v4326
    %v4670 = vunpack.c.h.b16 %v4326
    %v4671 = vunpack.c.l.b16 %v4327
    %v4672 = vunpack.c.h.b16 %v4327
    %v4673 = vunpack.c.l.b16 %v4328
    %v4674 = vunpack.c.h.b16 %v4328
    %v4675 = vunpack.c.l.b16 %v4329
    %v4676 = vunpack.c.h.b16 %v4329
    %v4677 = vunpack.c.l.b16 %v4330
    %v4678 = vunpack.c.h.b16 %v4330
    %v4679 = vunpack.c.l.b16 %v4331
    %v4680 = vunpack.c.h.b16 %v4331
    %v4681 = vunpack.c.l.b16 %v4332
    %v4682 = vunpack.c.h.b16 %v4332
    %v4683 = vunpack.c.l.b16 %v4333
    %v4684 = vunpack.c.h.b16 %v4333
    %v4685 = vunpack.c.l.b16 %v4334
    %v4686 = vunpack.c.h.b16 %v4334
    %v4687 = vunpack.c.l.b16 %v4335
    %v4688 = vunpack.c.h.b16 %v4335
    %v4689 = vunpack.c.l.b16 %v4336
    %v4690 = vunpack.c.h.b16 %v4336
    %v4691 = vunpack.c.l.b16 %v4337
    %v4692 = vunpack.c.h.b16 %v4337
    %v4693 = vunpack.c.l.b16 %v4338
    %v4694 = vunpack.c.h.b16 %v4338
    %v4695 = vunpack.c.l.b16 %v4339
    %v4696 = vunpack.c.h.b16 %v4339
    %v4697 = vunpack.c.l.b16 %v4340
    %v4698 = vunpack.c.h.b16 %v4340
    %v4699 = vunpack.c.l.b16 %v4341
    %v4700 = vunpack.c.h.b16 %v4341
    %v4701 = vunpack.c.l.b16 %v4342
    %v4702 = vunpack.c.h.b16 %v4342
    %v4703 = vunpack.c.l.b16 %v4343
    %v4704 = vunpack.c.h.b16 %v4343
    %v4705 = vunpack.c.l.b16 %v4344
    %v4706 = vunpack.c.h.b16 %v4344
    %v4707 = vunpack.c.l.b16 %v4345
    %v4708 = vunpack.c.h.b16 %v4345
    %v4709 = vunpack.c.l.b16 %v4346
    %v4710 = vunpack.c.h.b16 %v4346
    %v4711 = vunpack.c.l.b16 %v4347
    %v4712 = vunpack.c.h.b16 %v4347
    %v4713 = vunpack.c.l.b16 %v4348
    %v4714 = vunpack.c.h.b16 %v4348
    %v4715 = vunpack.c.l.b16 %v4349
    %v4716 = vunpack.c.h.b16 %v4349
    %v4717 = vunpack.c.l.b16 %v4350
    %v4718 = vunpack.c.h.b16 %v4350
    %v4719 = vunpack.c.l.b16 %v4351
    %v4720 = vunpack.c.h.b16 %v4351
    %v4721 = vunpack.c.l.b16 %v4352
    %v4722 = vunpack.c.h.b16 %v4352
    %v4723 = vunpack.c.l.b16 %v4353
    %v4724 = vunpack.c.h.b16 %v4353
    %v4725 = vunpack.c.l.b16 %v4354
    %v4726 = vunpack.c.h.b16 %v4354
    %v4727 = vunpack.c.l.b16 %v4355
    %v4728 = vunpack.c.h.b16 %v4355
    %v4729 = vunpack.c.l.b16 %v4356
    %v4730 = vunpack.c.h.b16 %v4356
    %v4731 = vunpack.c.l.b16 %v4357
    %v4732 = vunpack.c.h.b16 %v4357
    %v4733 = vunpack.c.l.b16 %v4358
    %v4734 = vunpack.c.h.b16 %v4358
    %v4735 = vunpack.c.l.b16 %v4359
    %v4736 = vunpack.c.h.b16 %v4359
    %v4737 = vunpack.c.l.b16 %v4360
    %v4738 = vunpack.c.h.b16 %v4360
    %v4739 = vunpack.c.l.b16 %v4361
    %v4740 = vunpack.c.h.b16 %v4361
    %v4741 = vunpack.c.l.b16 %v4362
    %v4742 = vunpack.c.h.b16 %v4362
    %v4743 = vunpack.c.l.b16 %v4363
    %v4744 = vunpack.c.h.b16 %v4363
    %v4745 = vunpack.c.l.b16 %v4364
    %v4746 = vunpack.c.h.b16 %v4364
    %v4747 = vunpack.c.l.b16 %v4365
    %v4748 = vunpack.c.h.b16 %v4365
    %v4749 = vunpack.c.l.b16 %v4366
    %v4750 = vunpack.c.h.b16 %v4366
    %v4751 = vunpack.c.l.b16 %v4367
    %v4752 = vunpack.c.h.b16 %v4367
    %v4753 = vunpack.c.l.b16 %v4368
    %v4754 = vunpack.c.h.b16 %v4368
    %v4755 = vunpack.c.l.b16 %v4369
    %v4756 = vunpack.c.h.b16 %v4369
    %v4757 = vunpack.c.l.b16 %v4370
    %v4758 = vunpack.c.h.b16 %v4370
    %v4759 = vunpack.c.l.b16 %v4371
    %v4760 = vunpack.c.h.b16 %v4371
    %v4761 = vunpack.c.l.b16 %v4372
    %v4762 = vunpack.c.h.b16 %v4372
    %v4763 = vunpack.c.l.b16 %v4373
    %v4764 = vunpack.c.h.b16 %v4373
    %v4765 = vunpack.c.l.b16 %v4374
    %v4766 = vunpack.c.h.b16 %v4374
    %v4767 = vunpack.c.l.b16 %v4375
    %v4768 = vunpack.c.h.b16 %v4375
    %v4769 = vunpack.c.l.b16 %v4376
    %v4770 = vunpack.c.h.b16 %v4376
    %v4771 = vunpack.c.l.b16 %v4377
    %v4772 = vunpack.c.h.b16 %v4377
    %v4773 = vunpack.c.l.b16 %v4378
    %v4774 = vunpack.c.h.b16 %v4378
    %v4775 = vpack.c.b16 %v4521, %v4519
    %v4776 = vpack.c.b16 %v4522, %v4520
    %v4777 = vpack.c.b16 %v4525, %v4523
    %v4778 = vpack.c.b16 %v4526, %v4524
    %v4779 = vpack.c.b16 %v4529, %v4527
    %v4780 = vpack.c.b16 %v4530, %v4528
    %v4781 = vpack.c.b16 %v4533, %v4531
    %v4782 = vpack.c.b16 %v4534, %v4532
    %v4783 = vpack.c.b16 %v4537, %v4535
    %v4784 = vpack.c.b16 %v4538, %v4536
    %v4785 = vpack.c.b16 %v4541, %v4539
    %v4786 = vpack.c.b16 %v4542, %v4540
    %v4787 = vpack.c.b16 %v4545, %v4543
    %v4788 = vpack.c.b16 %v4546, %v4544
    %v4789 = vpack.c.b16 %v4549, %v4547
    %v4790 = vpack.c.b16 %v4550, %v4548
    %v4791 = vpack.c.b16 %v4553, %v4551
    %v4792 = vpack.c.b16 %v4554, %v4552
    %v4793 = vpack.c.b16 %v4557, %v4555
    %v4794 = vpack.c.b16 %v4558, %v4556
    %v4795 = vpack.c.b16 %v4561, %v4559
    %v4796 = vpack.c.b16 %v4562, %v4560
    %v4797 = vpack.c.b16 %v4565, %v4563
    %v4798 = vpack.c.b16 %v4566, %v4564
    %v4799 = vpack.c.b16 %v4569, %v4567
    %v4800 = vpack.c.b16 %v4570, %v4568
    %v4801 = vpack.c.b16 %v4573, %v4571
    %v4802 = vpack.c.b16 %v4574, %v4572
    %v4803 = vpack.c.b16 %v4577, %v4575
    %v4804 = vpack.c.b16 %v4578, %v4576
    %v4805 = vpack.c.b16 %v4581, %v4579
    %v4806 = vpack.c.b16 %v4582, %v4580
    %v4807 = vpack.c.b16 %v4585, %v4583
    %v4808 = vpack.c.b16 %v4586, %v4584
    %v4809 = vpack.c.b16 %v4589, %v4587
    %v4810 = vpack.c.b16 %v4590, %v4588
    %v4811 = vpack.c.b16 %v4593, %v4591
    %v4812 = vpack.c.b16 %v4594, %v4592
    %v4813 = vpack.c.b16 %v4597, %v4595
    %v4814 = vpack.c.b16 %v4598, %v4596
    %v4815 = vpack.c.b16 %v4601, %v4599
    %v4816 = vpack.c.b16 %v4602, %v4600
    %v4817 = vpack.c.b16 %v4605, %v4603
    %v4818 = vpack.c.b16 %v4606, %v4604
    %v4819 = vpack.c.b16 %v4609, %v4607
    %v4820 = vpack.c.b16 %v4610, %v4608
    %v4821 = vpack.c.b16 %v4613, %v4611
    %v4822 = vpack.c.b16 %v4614, %v4612
    %v4823 = vpack.c.b16 %v4617, %v4615
    %v4824 = vpack.c.b16 %v4618, %v4616
    %v4825 = vpack.c.b16 %v4621, %v4619
    %v4826 = vpack.c.b16 %v4622, %v4620
    %v4827 = vpack.c.b16 %v4625, %v4623
    %v4828 = vpack.c.b16 %v4626, %v4624
    %v4829 = vpack.c.b16 %v4629, %v4627
    %v4830 = vpack.c.b16 %v4630, %v4628
    %v4831 = vpack.c.b16 %v4633, %v4631
    %v4832 = vpack.c.b16 %v4634, %v4632
    %v4833 = vpack.c.b16 %v4637, %v4635
    %v4834 = vpack.c.b16 %v4638, %v4636
    %v4835 = vpack.c.b16 %v4641, %v4639
    %v4836 = vpack.c.b16 %v4642, %v4640
    %v4837 = vpack.c.b16 %v4645, %v4643
    %v4838 = vpack.c.b16 %v4646, %v4644
    %v4839 = vpack.c.b16 %v4649, %v4647
    %v4840 = vpack.c.b16 %v4650, %v4648
    %v4841 = vpack.c.b16 %v4653, %v4651
    %v4842 = vpack.c.b16 %v4654, %v4652
    %v4843 = vpack.c.b16 %v4657, %v4655
    %v4844 = vpack.c.b16 %v4658, %v4656
    %v4845 = vpack.c.b16 %v4661, %v4659
    %v4846 = vpack.c.b16 %v4662, %v4660
    %v4847 = vpack.c.b16 %v4665, %v4663
    %v4848 = vpack.c.b16 %v4666, %v4664
    %v4849 = vpack.c.b16 %v4669, %v4667
    %v4850 = vpack.c.b16 %v4670, %v4668
    %v4851 = vpack.c.b16 %v4673, %v4671
    %v4852 = vpack.c.b16 %v4674, %v4672
    %v4853 = vpack.c.b16 %v4677, %v4675
    %v4854 = vpack.c.b16 %v4678, %v4676
    %v4855 = vpack.c.b16 %v4681, %v4679
    %v4856 = vpack.c.b16 %v4682, %v4680
    %v4857 = vpack.c.b16 %v4685, %v4683
    %v4858 = vpack.c.b16 %v4686, %v4684
    %v4859 = vpack.c.b16 %v4689, %v4687
    %v4860 = vpack.c.b16 %v4690, %v4688
    %v4861 = vpack.c.b16 %v4693, %v4691
    %v4862 = vpack.c.b16 %v4694, %v4692
    %v4863 = vpack.c.b16 %v4697, %v4695
    %v4864 = vpack.c.b16 %v4698, %v4696
    %v4865 = vpack.c.b16 %v4701, %v4699
    %v4866 = vpack.c.b16 %v4702, %v4700
    %v4867 = vpack.c.b16 %v4705, %v4703
    %v4868 = vpack.c.b16 %v4706, %v4704
    %v4869 = vpack.c.b16 %v4709, %v4707
    %v4870 = vpack.c.b16 %v4710, %v4708
    %v4871 = vpack.c.b16 %v4713, %v4711
    %v4872 = vpack.c.b16 %v4714, %v4712
    %v4873 = vpack.c.b16 %v4717, %v4715
    %v4874 = vpack.c.b16 %v4718, %v4716
    %v4875 = vpack.c.b16 %v4721, %v4719
    %v4876 = vpack.c.b16 %v4722, %v4720
    %v4877 = vpack.c.b16 %v4725, %v4723
    %v4878 = vpack.c.b16 %v4726, %v4724
    %v4879 = vpack.c.b16 %v4729, %v4727
    %v4880 = vpack.c.b16 %v4730, %v4728
    %v4881 = vpack.c.b16 %v4733, %v4731
    %v4882 = vpack.c.b16 %v4734, %v4732
    %v4883 = vpack.c.b16 %v4737, %v4735
    %v4884 = vpack.c.b16 %v4738, %v4736
    %v4885 = vpack.c.b16 %v4741, %v4739
    %v4886 = vpack.c.b16 %v4742, %v4740
    %v4887 = vpack.c.b16 %v4745, %v4743
    %v4888 = vpack.c.b16 %v4746, %v4744
    %v4889 = vpack.c.b16 %v4749, %v4747
    %v4890 = vpack.c.b16 %v4750, %v4748
    %v4891 = vpack.c.b16 %v4753, %v4751
    %v4892 = vpack.c.b16 %v4754, %v4752
    %v4893 = vpack.c.b16 %v4757, %v4755
    %v4894 = vpack.c.b16 %v4758, %v4756
    %v4895 = vpack.c.b16 %v4761, %v4759
    %v4896 = vpack.c.b16 %v4762, %v4760
    %v4897 = vpack.c.b16 %v4765, %v4763
    %v4898 = vpack.c.b16 %v4766, %v4764
    %v4899 = vpack.c.b16 %v4769, %v4767
    %v4900 = vpack.c.b16 %v4770, %v4768
    %v4901 = vpack.c.b16 %v4773, %v4771
    %v4902 = vpack.c.b16 %v4774, %v4772
    %5031 = vmatprep.subr.bf16.mxu0 %v4776
    %5032 = vmatpush1.bf16.msra.mxu0 %v4775
    %5033 = vmatprep.subr.bf16.mxu0 %v4778
    %5034 = vmatpush1.bf16.msra.mxu0 %v4777
    %5035 = vmatprep.subr.bf16.mxu0 %v4780
    %5036 = vmatpush1.bf16.msra.mxu0 %v4779
    %5037 = vmatprep.subr.bf16.mxu0 %v4782
    %5038 = vmatpush1.bf16.msra.mxu0 %v4781
    %5039 = vmatprep.subr.bf16.mxu0 %v4784
    %5040 = vmatpush1.bf16.msra.mxu0 %v4783
    %5041 = vmatprep.subr.bf16.mxu0 %v4786
    %5042 = vmatpush1.bf16.msra.mxu0 %v4785
    %5043 = vmatprep.subr.bf16.mxu0 %v4788
    %5044 = vmatpush1.bf16.msra.mxu0 %v4787
    %5045 = vmatprep.subr.bf16.mxu0 %v4790
    %5046 = vmatpush1.bf16.msra.mxu0 %v4789
    %5047 = vmatprep.subr.bf16.mxu0 %v4792
    %5048 = vmatpush1.bf16.msra.mxu0 %v4791
    %5049 = vmatprep.subr.bf16.mxu0 %v4794
    %5050 = vmatpush1.bf16.msra.mxu0 %v4793
    %5051 = vmatprep.subr.bf16.mxu0 %v4796
    %5052 = vmatpush1.bf16.msra.mxu0 %v4795
    %5053 = vmatprep.subr.bf16.mxu0 %v4798
    %5054 = vmatpush1.bf16.msra.mxu0 %v4797
    %5055 = vmatprep.subr.bf16.mxu0 %v4800
    %5056 = vmatpush1.bf16.msra.mxu0 %v4799
    %5057 = vmatprep.subr.bf16.mxu0 %v4802
    %5058 = vmatpush1.bf16.msra.mxu0 %v4801
    %5059 = vmatprep.subr.bf16.mxu0 %v4804
    %5060 = vmatpush1.bf16.msra.mxu0 %v4803
    %5061 = vmatprep.subr.bf16.mxu0 %v4806
    %5062 = vmatpush1.bf16.msra.mxu0 %v4805
    %5063 = vmatprep.mubr.bf16.mxu0 %v4060
    %5064 = vmatmul.mubr.bf16.gmra.mrb[0].mxu0 %v4059
    %v5065 = vpop.f32.mrb[0].mxu0
    %v5066 = vadd.f32 %v4384, %v5065
    %v5067 = vpop.f32.mrb[0].mxu0
    %v5068 = vadd.f32 %v4388, %v5067
    %v5069 = vpop.f32.mrb[0].mxu0
    %v5070 = vadd.f32 %v4384, %v5069
    %v5071 = vpop.f32.mrb[0].mxu0
    %v5072 = vadd.f32 %v4388, %v5071
    %5073 = vmatprep.mubr.bf16.mxu0 %v4068
    %5074 = vmatmul.mubr.bf16.gmra.mrb[0].mxu0 %v4067
    %v5075 = vpop.f32.mrb[0].mxu0
    %v5076 = vadd.f32 %v4384, %v5075
    %v5077 = vpop.f32.mrb[0].mxu0
    %v5078 = vadd.f32 %v4388, %v5077
    %v5079 = vpop.f32.mrb[0].mxu0
    %v5080 = vadd.f32 %v4384, %v5079
    %v5081 = vpop.f32.mrb[0].mxu0
    %v5082 = vadd.f32 %v4388, %v5081
    %5083 = vmatprep.mubr.bf16.mxu0 %v4076
    %5084 = vmatmul.mubr.bf16.gmra.mrb[0].mxu0 %v4075
    %v5085 = vpop.f32.mrb[0].mxu0
    %v5086 = vadd.f32 %v4384, %v5085
    %v5087 = vpop.f32.mrb[0].mxu0
    %v5088 = vadd.f32 %v4388, %v5087
    %v5089 = vpop.f32.mrb[0].mxu0
    %v5090 = vadd.f32 %v4384, %v5089
    %v5091 = vpop.f32.mrb[0].mxu0
    %v5092 = vadd.f32 %v4388, %v5091
    %5093 = vmatprep.mubr.bf16.mxu0 %v4084
    %5094 = vmatmul.mubr.bf16.gmra.mrb[0].mxu0 %v4083
    %v5095 = vpop.f32.mrb[0].mxu0
    %v5096 = vadd.f32 %v4384, %v5095
    %v5097 = vpop.f32.mrb[0].mxu0
    %v5098 = vadd.f32 %v4388, %v5097
    %v5099 = vpop.f32.mrb[0].mxu0
    %v5100 = vadd.f32 %v4384, %v5099
    %v5101 = vpop.f32.mrb[0].mxu0
    %v5102 = vadd.f32 %v4388, %v5101
    %5103 = vmatprep.mubr.bf16.mxu0 %v4092
    %5104 = vmatmul.mubr.bf16.gmra.mrb[0].mxu0 %v4091
    %v5105 = vpop.f32.mrb[0].mxu0
    %v5106 = vadd.f32 %v4384, %v5105
    %v5107 = vpop.f32.mrb[0].mxu0
    %v5108 = vadd.f32 %v4388, %v5107
    %v5109 = vpop.f32.mrb[0].mxu0
    %v5110 = vadd.f32 %v4384, %v5109
    %v5111 = vpop.f32.mrb[0].mxu0
    %v5112 = vadd.f32 %v4388, %v5111
    %5113 = vmatprep.mubr.bf16.mxu0 %v4100
    %5114 = vmatmul.mubr.bf16.gmra.mrb[0].mxu0 %v4099
    %v5115 = vpop.f32.mrb[0].mxu0
    %v5116 = vadd.f32 %v4384, %v5115
    %v5117 = vpop.f32.mrb[0].mxu0
    %v5118 = vadd.f32 %v4388, %v5117
    %v5119 = vpop.f32.mrb[0].mxu0
    %v5120 = vadd.f32 %v4384, %v5119
    %v5121 = vpop.f32.mrb[0].mxu0
    %v5122 = vadd.f32 %v4388, %v5121
    %5123 = vmatprep.mubr.bf16.mxu0 %v4108
    %5124 = vmatmul.mubr.bf16.gmra.mrb[0].mxu0 %v4107
    %v5125 = vpop.f32.mrb[0].mxu0
    %v5126 = vadd.f32 %v4384, %v5125
    %v5127 = vpop.f32.mrb[0].mxu0
    %v5128 = vadd.f32 %v4388, %v5127
    %v5129 = vpop.f32.mrb[0].mxu0
    %v5130 = vadd.f32 %v4384, %v5129
    %v5131 = vpop.f32.mrb[0].mxu0
    %v5132 = vadd.f32 %v4388, %v5131
    %5133 = vmatprep.mubr.bf16.mxu0 %v4116
    %5134 = vmatmul.mubr.bf16.gmra.mrb[0].mxu0 %v4115
    %v5135 = vpop.f32.mrb[0].mxu0
    %v5136 = vadd.f32 %v4384, %v5135
    %v5137 = vpop.f32.mrb[0].mxu0
    %v5138 = vadd.f32 %v4388, %v5137
    %v5139 = vpop.f32.mrb[0].mxu0
    %v5140 = vadd.f32 %v4384, %v5139
    %v5141 = vpop.f32.mrb[0].mxu0
    %v5142 = vadd.f32 %v4388, %v5141
    %5143 = vmatprep.mubr.bf16.mxu0 %v4124
    %5144 = vmatmul.mubr.bf16.gmra.mrb[0].mxu0 %v4123
    %v5145 = vpop.f32.mrb[0].mxu0
    %v5146 = vadd.f32 %v4384, %v5145
    %v5147 = vpop.f32.mrb[0].mxu0
    %v5148 = vadd.f32 %v4388, %v5147
    %v5149 = vpop.f32.mrb[0].mxu0
    %v5150 = vadd.f32 %v4384, %v5149
    %v5151 = vpop.f32.mrb[0].mxu0
    %v5152 = vadd.f32 %v4388, %v5151
    %5153 = vmatprep.mubr.bf16.mxu0 %v4132
    %5154 = vmatmul.mubr.bf16.gmra.mrb[0].mxu0 %v4131
    %v5155 = vpop.f32.mrb[0].mxu0
    %v5156 = vadd.f32 %v4384, %v5155
    %v5157 = vpop.f32.mrb[0].mxu0
    %v5158 = vadd.f32 %v4388, %v5157
    %v5159 = vpop.f32.mrb[0].mxu0
    %v5160 = vadd.f32 %v4384, %v5159
    %v5161 = vpop.f32.mrb[0].mxu0
    %v5162 = vadd.f32 %v4388, %v5161
    %5163 = vmatprep.mubr.bf16.mxu0 %v4140
    %5164 = vmatmul.mubr.bf16.gmra.mrb[0].mxu0 %v4139
    %v5165 = vpop.f32.mrb[0].mxu0
    %v5166 = vadd.f32 %v4384, %v5165
    %v5167 = vpop.f32.mrb[0].mxu0
    %v5168 = vadd.f32 %v4388, %v5167
    %v5169 = vpop.f32.mrb[0].mxu0
    %v5170 = vadd.f32 %v4384, %v5169
    %v5171 = vpop.f32.mrb[0].mxu0
    %v5172 = vadd.f32 %v4388, %v5171
    %5173 = vmatprep.mubr.bf16.mxu0 %v4148
    %5174 = vmatmul.mubr.bf16.gmra.mrb[0].mxu0 %v4147
    %v5175 = vpop.f32.mrb[0].mxu0
    %v5176 = vadd.f32 %v4384, %v5175
    %v5177 = vpop.f32.mrb[0].mxu0
    %v5178 = vadd.f32 %v4388, %v5177
    %v5179 = vpop.f32.mrb[0].mxu0
    %v5180 = vadd.f32 %v4384, %v5179
    %v5181 = vpop.f32.mrb[0].mxu0
    %v5182 = vadd.f32 %v4388, %v5181
    %5183 = vmatprep.mubr.bf16.mxu0 %v4156
    %5184 = vmatmul.mubr.bf16.gmra.mrb[0].mxu0 %v4155
    %v5185 = vpop.f32.mrb[0].mxu0
    %v5186 = vadd.f32 %v4384, %v5185
    %v5187 = vpop.f32.mrb[0].mxu0
    %v5188 = vadd.f32 %v4388, %v5187
    %v5189 = vpop.f32.mrb[0].mxu0
    %v5190 = vadd.f32 %v4384, %v5189
    %v5191 = vpop.f32.mrb[0].mxu0
    %v5192 = vadd.f32 %v4388, %v5191
    %5193 = vmatprep.mubr.bf16.mxu0 %v4164
    %5194 = vmatmul.mubr.bf16.gmra.mrb[0].mxu0 %v4163
    %v5195 = vpop.f32.mrb[0].mxu0
    %v5196 = vadd.f32 %v4384, %v5195
    %v5197 = vpop.f32.mrb[0].mxu0
    %v5198 = vadd.f32 %v4388, %v5197
    %v5199 = vpop.f32.mrb[0].mxu0
    %v5200 = vadd.f32 %v4384, %v5199
    %v5201 = vpop.f32.mrb[0].mxu0
    %v5202 = vadd.f32 %v4388, %v5201
    %5203 = vmatprep.mubr.bf16.mxu0 %v4172
    %5204 = vmatmul.mubr.bf16.gmra.mrb[0].mxu0 %v4171
    %v5205 = vpop.f32.mrb[0].mxu0
    %v5206 = vadd.f32 %v4384, %v5205
    %v5207 = vpop.f32.mrb[0].mxu0
    %v5208 = vadd.f32 %v4388, %v5207
    %v5209 = vpop.f32.mrb[0].mxu0
    %v5210 = vadd.f32 %v4384, %v5209
    %v5211 = vpop.f32.mrb[0].mxu0
    %v5212 = vadd.f32 %v4388, %v5211
    %5213 = vmatprep.mubr.bf16.mxu0 %v4180
    %5214 = vmatmul.mubr.bf16.gmra.mrb[0].mxu0 %v4179
    %v5215 = vpop.f32.mrb[0].mxu0
    %v5216 = vadd.f32 %v4384, %v5215
    %v5217 = vpop.f32.mrb[0].mxu0
    %v5218 = vadd.f32 %v4388, %v5217
    %v5219 = vpop.f32.mrb[0].mxu0
    %v5220 = vadd.f32 %v4384, %v5219
    %v5221 = vpop.f32.mrb[0].mxu0
    %v5222 = vadd.f32 %v4388, %v5221
    %5223 = vmatprep.mubr.bf16.mxu0 %v4188
    %5224 = vmatmul.mubr.bf16.gmra.mrb[0].mxu0 %v4187
    %v5225 = vpop.f32.mrb[0].mxu0
    %v5226 = vadd.f32 %v4384, %v5225
    %v5227 = vpop.f32.mrb[0].mxu0
    %v5228 = vadd.f32 %v4388, %v5227
    %v5229 = vpop.f32.mrb[0].mxu0
    %v5230 = vadd.f32 %v4384, %v5229
    %v5231 = vpop.f32.mrb[0].mxu0
    %v5232 = vadd.f32 %v4388, %v5231
    %5233 = vmatprep.mubr.bf16.mxu0 %v4196
    %5234 = vmatmul.mubr.bf16.gmra.mrb[0].mxu0 %v4195
    %v5235 = vpop.f32.mrb[0].mxu0
    %v5236 = vadd.f32 %v4384, %v5235
    %v5237 = vpop.f32.mrb[0].mxu0
    %v5238 = vadd.f32 %v4388, %v5237
    %v5239 = vpop.f32.mrb[0].mxu0
    %v5240 = vadd.f32 %v4384, %v5239
    %v5241 = vpop.f32.mrb[0].mxu0
    %v5242 = vadd.f32 %v4388, %v5241
    %5243 = vmatprep.mubr.bf16.mxu0 %v4204
    %5244 = vmatmul.mubr.bf16.gmra.mrb[0].mxu0 %v4203
    %v5245 = vpop.f32.mrb[0].mxu0
    %v5246 = vadd.f32 %v4384, %v5245
    %v5247 = vpop.f32.mrb[0].mxu0
    %v5248 = vadd.f32 %v4388, %v5247
    %v5249 = vpop.f32.mrb[0].mxu0
    %v5250 = vadd.f32 %v4384, %v5249
    %v5251 = vpop.f32.mrb[0].mxu0
    %v5252 = vadd.f32 %v4388, %v5251
    %5253 = vmatprep.mubr.bf16.mxu0 %v4212
    %5254 = vmatmul.mubr.bf16.gmra.mrb[0].mxu0 %v4211
    %v5255 = vpop.f32.mrb[0].mxu0
    %v5256 = vadd.f32 %v4384, %v5255
    %v5257 = vpop.f32.mrb[0].mxu0
    %v5258 = vadd.f32 %v4388, %v5257
    %v5259 = vpop.f32.mrb[0].mxu0
    %v5260 = vadd.f32 %v4384, %v5259
    %v5261 = vpop.f32.mrb[0].mxu0
    %v5262 = vadd.f32 %v4388, %v5261
    %5263 = vmatprep.mubr.bf16.mxu0 %v4220
    %5264 = vmatmul.mubr.bf16.gmra.mrb[0].mxu0 %v4219
    %v5265 = vpop.f32.mrb[0].mxu0
    %v5266 = vadd.f32 %v4384, %v5265
    %v5267 = vpop.f32.mrb[0].mxu0
    %v5268 = vadd.f32 %v4388, %v5267
    %v5269 = vpop.f32.mrb[0].mxu0
    %v5270 = vadd.f32 %v4384, %v5269
    %v5271 = vpop.f32.mrb[0].mxu0
    %v5272 = vadd.f32 %v4388, %v5271
    %5273 = vmatprep.mubr.bf16.mxu0 %v4228
    %5274 = vmatmul.mubr.bf16.gmra.mrb[0].mxu0 %v4227
    %v5275 = vpop.f32.mrb[0].mxu0
    %v5276 = vadd.f32 %v4384, %v5275
    %v5277 = vpop.f32.mrb[0].mxu0
    %v5278 = vadd.f32 %v4388, %v5277
    %v5279 = vpop.f32.mrb[0].mxu0
    %v5280 = vadd.f32 %v4384, %v5279
    %v5281 = vpop.f32.mrb[0].mxu0
    %v5282 = vadd.f32 %v4388, %v5281
    %5283 = vmatprep.mubr.bf16.mxu0 %v4236
    %5284 = vmatmul.mubr.bf16.gmra.mrb[0].mxu0 %v4235
    %v5285 = vpop.f32.mrb[0].mxu0
    %v5286 = vadd.f32 %v4384, %v5285
    %v5287 = vpop.f32.mrb[0].mxu0
    %v5288 = vadd.f32 %v4388, %v5287
    %v5289 = vpop.f32.mrb[0].mxu0
    %v5290 = vadd.f32 %v4384, %v5289
    %v5291 = vpop.f32.mrb[0].mxu0
    %v5292 = vadd.f32 %v4388, %v5291
    %5293 = vmatprep.mubr.bf16.mxu0 %v4244
    %5294 = vmatmul.mubr.bf16.gmra.mrb[0].mxu0 %v4243
    %v5295 = vpop.f32.mrb[0].mxu0
    %v5296 = vadd.f32 %v4384, %v5295
    %v5297 = vpop.f32.mrb[0].mxu0
    %v5298 = vadd.f32 %v4388, %v5297
    %v5299 = vpop.f32.mrb[0].mxu0
    %v5300 = vadd.f32 %v4384, %v5299
    %v5301 = vpop.f32.mrb[0].mxu0
    %v5302 = vadd.f32 %v4388, %v5301
    %5303 = vdwg.mxu0
    %5304 = vmatprep.subr.bf16.mxu0 %v4808
    %5305 = vmatpush1.bf16.msra.mxu0 %v4807
    %5306 = vmatprep.subr.bf16.mxu0 %v4810
    %5307 = vmatpush1.bf16.msra.mxu0 %v4809
    %5308 = vmatprep.subr.bf16.mxu0 %v4812
    %5309 = vmatpush1.bf16.msra.mxu0 %v4811
    %5310 = vmatprep.subr.bf16.mxu0 %v4814
    %5311 = vmatpush1.bf16.msra.mxu0 %v4813
    %5312 = vmatprep.subr.bf16.mxu0 %v4816
    %5313 = vmatpush1.bf16.msra.mxu0 %v4815
    %5314 = vmatprep.subr.bf16.mxu0 %v4818
    %5315 = vmatpush1.bf16.msra.mxu0 %v4817
    %5316 = vmatprep.subr.bf16.mxu0 %v4820
    %5317 = vmatpush1.bf16.msra.mxu0 %v4819
    %5318 = vmatprep.subr.bf16.mxu0 %v4822
    %5319 = vmatpush1.bf16.msra.mxu0 %v4821
    %5320 = vmatprep.subr.bf16.mxu0 %v4824
    %5321 = vmatpush1.bf16.msra.mxu0 %v4823
    %5322 = vmatprep.subr.bf16.mxu0 %v4826
    %5323 = vmatpush1.bf16.msra.mxu0 %v4825
    %5324 = vmatprep.subr.bf16.mxu0 %v4828
    %5325 = vmatpush1.bf16.msra.mxu0 %v4827
    %5326 = vmatprep.subr.bf16.mxu0 %v4830
    %5327 = vmatpush1.bf16.msra.mxu0 %v4829
    %5328 = vmatprep.subr.bf16.mxu0 %v4832
    %5329 = vmatpush1.bf16.msra.mxu0 %v4831
    %5330 = vmatprep.subr.bf16.mxu0 %v4834
    %5331 = vmatpush1.bf16.msra.mxu0 %v4833
    %5332 = vmatprep.subr.bf16.mxu0 %v4836
    %5333 = vmatpush1.bf16.msra.mxu0 %v4835
    %5334 = vmatprep.subr.bf16.mxu0 %v4838
    %5335 = vmatpush1.bf16.msra.mxu0 %v4837
    %5336 = vmatprep.mubr.bf16.mxu0 %v4062
    %5337 = vmatmul.mubr.bf16.gmra.mrb[0].mxu0 %v4061
    %v5338 = vpop.f32.mrb[0].mxu0
    %v5339 = vadd.f32 %v5066, %v5338
    %v5340 = vpop.f32.mrb[0].mxu0
    %v5341 = vadd.f32 %v5068, %v5340
    %v5342 = vpop.f32.mrb[0].mxu0
    %v5343 = vadd.f32 %v5070, %v5342
    %v5344 = vpop.f32.mrb[0].mxu0
    %v5345 = vadd.f32 %v5072, %v5344
    %5346 = vmatprep.mubr.bf16.mxu0 %v4070
    %5347 = vmatmul.mubr.bf16.gmra.mrb[0].mxu0 %v4069
    %v5348 = vpop.f32.mrb[0].mxu0
    %v5349 = vadd.f32 %v5076, %v5348
    %v5350 = vpop.f32.mrb[0].mxu0
    %v5351 = vadd.f32 %v5078, %v5350
    %v5352 = vpop.f32.mrb[0].mxu0
    %v5353 = vadd.f32 %v5080, %v5352
    %v5354 = vpop.f32.mrb[0].mxu0
    %v5355 = vadd.f32 %v5082, %v5354
    %5356 = vmatprep.mubr.bf16.mxu0 %v4078
    %5357 = vmatmul.mubr.bf16.gmra.mrb[0].mxu0 %v4077
    %v5358 = vpop.f32.mrb[0].mxu0
    %v5359 = vadd.f32 %v5086, %v5358
    %v5360 = vpop.f32.mrb[0].mxu0
    %v5361 = vadd.f32 %v5088, %v5360
    %v5362 = vpop.f32.mrb[0].mxu0
    %v5363 = vadd.f32 %v5090, %v5362
    %v5364 = vpop.f32.mrb[0].mxu0
    %v5365 = vadd.f32 %v5092, %v5364
    %5366 = vmatprep.mubr.bf16.mxu0 %v4086
    %5367 = vmatmul.mubr.bf16.gmra.mrb[0].mxu0 %v4085
    %v5368 = vpop.f32.mrb[0].mxu0
    %v5369 = vadd.f32 %v5096, %v5368
    %v5370 = vpop.f32.mrb[0].mxu0
    %v5371 = vadd.f32 %v5098, %v5370
    %v5372 = vpop.f32.mrb[0].mxu0
    %v5373 = vadd.f32 %v5100, %v5372
    %v5374 = vpop.f32.mrb[0].mxu0
    %v5375 = vadd.f32 %v5102, %v5374
    %5376 = vmatprep.mubr.bf16.mxu0 %v4094
    %5377 = vmatmul.mubr.bf16.gmra.mrb[0].mxu0 %v4093
    %v5378 = vpop.f32.mrb[0].mxu0
    %v5379 = vadd.f32 %v5106, %v5378
    %v5380 = vpop.f32.mrb[0].mxu0
    %v5381 = vadd.f32 %v5108, %v5380
    %v5382 = vpop.f32.mrb[0].mxu0
    %v5383 = vadd.f32 %v5110, %v5382
    %v5384 = vpop.f32.mrb[0].mxu0
    %v5385 = vadd.f32 %v5112, %v5384
    %5386 = vmatprep.mubr.bf16.mxu0 %v4102
    %5387 = vmatmul.mubr.bf16.gmra.mrb[0].mxu0 %v4101
    %v5388 = vpop.f32.mrb[0].mxu0
    %v5389 = vadd.f32 %v5116, %v5388
    %v5390 = vpop.f32.mrb[0].mxu0
    %v5391 = vadd.f32 %v5118, %v5390
    %v5392 = vpop.f32.mrb[0].mxu0
    %v5393 = vadd.f32 %v5120, %v5392
    %v5394 = vpop.f32.mrb[0].mxu0
    %v5395 = vadd.f32 %v5122, %v5394
    %5396 = vmatprep.mubr.bf16.mxu0 %v4110
    %5397 = vmatmul.mubr.bf16.gmra.mrb[0].mxu0 %v4109
    %v5398 = vpop.f32.mrb[0].mxu0
    %v5399 = vadd.f32 %v5126, %v5398
    %v5400 = vpop.f32.mrb[0].mxu0
    %v5401 = vadd.f32 %v5128, %v5400
    %v5402 = vpop.f32.mrb[0].mxu0
    %v5403 = vadd.f32 %v5130, %v5402
    %v5404 = vpop.f32.mrb[0].mxu0
    %v5405 = vadd.f32 %v5132, %v5404
    %5406 = vmatprep.mubr.bf16.mxu0 %v4118
    %5407 = vmatmul.mubr.bf16.gmra.mrb[0].mxu0 %v4117
    %v5408 = vpop.f32.mrb[0].mxu0
    %v5409 = vadd.f32 %v5136, %v5408
    %v5410 = vpop.f32.mrb[0].mxu0
    %v5411 = vadd.f32 %v5138, %v5410
    %v5412 = vpop.f32.mrb[0].mxu0
    %v5413 = vadd.f32 %v5140, %v5412
    %v5414 = vpop.f32.mrb[0].mxu0
    %v5415 = vadd.f32 %v5142, %v5414
    %5416 = vmatprep.mubr.bf16.mxu0 %v4126
    %5417 = vmatmul.mubr.bf16.gmra.mrb[0].mxu0 %v4125
    %v5418 = vpop.f32.mrb[0].mxu0
    %v5419 = vadd.f32 %v5146, %v5418
    %v5420 = vpop.f32.mrb[0].mxu0
    %v5421 = vadd.f32 %v5148, %v5420
    %v5422 = vpop.f32.mrb[0].mxu0
    %v5423 = vadd.f32 %v5150, %v5422
    %v5424 = vpop.f32.mrb[0].mxu0
    %v5425 = vadd.f32 %v5152, %v5424
    %5426 = vmatprep.mubr.bf16.mxu0 %v4134
    %5427 = vmatmul.mubr.bf16.gmra.mrb[0].mxu0 %v4133
    %v5428 = vpop.f32.mrb[0].mxu0
    %v5429 = vadd.f32 %v5156, %v5428
    %v5430 = vpop.f32.mrb[0].mxu0
    %v5431 = vadd.f32 %v5158, %v5430
    %v5432 = vpop.f32.mrb[0].mxu0
    %v5433 = vadd.f32 %v5160, %v5432
    %v5434 = vpop.f32.mrb[0].mxu0
    %v5435 = vadd.f32 %v5162, %v5434
    %5436 = vmatprep.mubr.bf16.mxu0 %v4142
    %5437 = vmatmul.mubr.bf16.gmra.mrb[0].mxu0 %v4141
    %v5438 = vpop.f32.mrb[0].mxu0
    %v5439 = vadd.f32 %v5166, %v5438
    %v5440 = vpop.f32.mrb[0].mxu0
    %v5441 = vadd.f32 %v5168, %v5440
    %v5442 = vpop.f32.mrb[0].mxu0
    %v5443 = vadd.f32 %v5170, %v5442
    %v5444 = vpop.f32.mrb[0].mxu0
    %v5445 = vadd.f32 %v5172, %v5444
    %5446 = vmatprep.mubr.bf16.mxu0 %v4150
    %5447 = vmatmul.mubr.bf16.gmra.mrb[0].mxu0 %v4149
    %v5448 = vpop.f32.mrb[0].mxu0
    %v5449 = vadd.f32 %v5176, %v5448
    %v5450 = vpop.f32.mrb[0].mxu0
    %v5451 = vadd.f32 %v5178, %v5450
    %v5452 = vpop.f32.mrb[0].mxu0
    %v5453 = vadd.f32 %v5180, %v5452
    %v5454 = vpop.f32.mrb[0].mxu0
    %v5455 = vadd.f32 %v5182, %v5454
    %5456 = vmatprep.mubr.bf16.mxu0 %v4158
    %5457 = vmatmul.mubr.bf16.gmra.mrb[0].mxu0 %v4157
    %v5458 = vpop.f32.mrb[0].mxu0
    %v5459 = vadd.f32 %v5186, %v5458
    %v5460 = vpop.f32.mrb[0].mxu0
    %v5461 = vadd.f32 %v5188, %v5460
    %v5462 = vpop.f32.mrb[0].mxu0
    %v5463 = vadd.f32 %v5190, %v5462
    %v5464 = vpop.f32.mrb[0].mxu0
    %v5465 = vadd.f32 %v5192, %v5464
    %5466 = vmatprep.mubr.bf16.mxu0 %v4166
    %5467 = vmatmul.mubr.bf16.gmra.mrb[0].mxu0 %v4165
    %v5468 = vpop.f32.mrb[0].mxu0
    %v5469 = vadd.f32 %v5196, %v5468
    %v5470 = vpop.f32.mrb[0].mxu0
    %v5471 = vadd.f32 %v5198, %v5470
    %v5472 = vpop.f32.mrb[0].mxu0
    %v5473 = vadd.f32 %v5200, %v5472
    %v5474 = vpop.f32.mrb[0].mxu0
    %v5475 = vadd.f32 %v5202, %v5474
    %5476 = vmatprep.mubr.bf16.mxu0 %v4174
    %5477 = vmatmul.mubr.bf16.gmra.mrb[0].mxu0 %v4173
    %v5478 = vpop.f32.mrb[0].mxu0
    %v5479 = vadd.f32 %v5206, %v5478
    %v5480 = vpop.f32.mrb[0].mxu0
    %v5481 = vadd.f32 %v5208, %v5480
    %v5482 = vpop.f32.mrb[0].mxu0
    %v5483 = vadd.f32 %v5210, %v5482
    %v5484 = vpop.f32.mrb[0].mxu0
    %v5485 = vadd.f32 %v5212, %v5484
    %5486 = vmatprep.mubr.bf16.mxu0 %v4182
    %5487 = vmatmul.mubr.bf16.gmra.mrb[0].mxu0 %v4181
    %v5488 = vpop.f32.mrb[0].mxu0
    %v5489 = vadd.f32 %v5216, %v5488
    %v5490 = vpop.f32.mrb[0].mxu0
    %v5491 = vadd.f32 %v5218, %v5490
    %v5492 = vpop.f32.mrb[0].mxu0
    %v5493 = vadd.f32 %v5220, %v5492
    %v5494 = vpop.f32.mrb[0].mxu0
    %v5495 = vadd.f32 %v5222, %v5494
    %5496 = vmatprep.mubr.bf16.mxu0 %v4190
    %5497 = vmatmul.mubr.bf16.gmra.mrb[0].mxu0 %v4189
    %v5498 = vpop.f32.mrb[0].mxu0
    %v5499 = vadd.f32 %v5226, %v5498
    %v5500 = vpop.f32.mrb[0].mxu0
    %v5501 = vadd.f32 %v5228, %v5500
    %v5502 = vpop.f32.mrb[0].mxu0
    %v5503 = vadd.f32 %v5230, %v5502
    %v5504 = vpop.f32.mrb[0].mxu0
    %v5505 = vadd.f32 %v5232, %v5504
    %5506 = vmatprep.mubr.bf16.mxu0 %v4198
    %5507 = vmatmul.mubr.bf16.gmra.mrb[0].mxu0 %v4197
    %v5508 = vpop.f32.mrb[0].mxu0
    %v5509 = vadd.f32 %v5236, %v5508
    %v5510 = vpop.f32.mrb[0].mxu0
    %v5511 = vadd.f32 %v5238, %v5510
    %v5512 = vpop.f32.mrb[0].mxu0
    %v5513 = vadd.f32 %v5240, %v5512
    %v5514 = vpop.f32.mrb[0].mxu0
    %v5515 = vadd.f32 %v5242, %v5514
    %5516 = vmatprep.mubr.bf16.mxu0 %v4206
    %5517 = vmatmul.mubr.bf16.gmra.mrb[0].mxu0 %v4205
    %v5518 = vpop.f32.mrb[0].mxu0
    %v5519 = vadd.f32 %v5246, %v5518
    %v5520 = vpop.f32.mrb[0].mxu0
    %v5521 = vadd.f32 %v5248, %v5520
    %v5522 = vpop.f32.mrb[0].mxu0
    %v5523 = vadd.f32 %v5250, %v5522
    %v5524 = vpop.f32.mrb[0].mxu0
    %v5525 = vadd.f32 %v5252, %v5524
    %5526 = vmatprep.mubr.bf16.mxu0 %v4214
    %5527 = vmatmul.mubr.bf16.gmra.mrb[0].mxu0 %v4213
    %v5528 = vpop.f32.mrb[0].mxu0
    %v5529 = vadd.f32 %v5256, %v5528
    %v5530 = vpop.f32.mrb[0].mxu0
    %v5531 = vadd.f32 %v5258, %v5530
    %v5532 = vpop.f32.mrb[0].mxu0
    %v5533 = vadd.f32 %v5260, %v5532
    %v5534 = vpop.f32.mrb[0].mxu0
    %v5535 = vadd.f32 %v5262, %v5534
    %5536 = vmatprep.mubr.bf16.mxu0 %v4222
    %5537 = vmatmul.mubr.bf16.gmra.mrb[0].mxu0 %v4221
    %v5538 = vpop.f32.mrb[0].mxu0
    %v5539 = vadd.f32 %v5266, %v5538
    %v5540 = vpop.f32.mrb[0].mxu0
    %v5541 = vadd.f32 %v5268, %v5540
    %v5542 = vpop.f32.mrb[0].mxu0
    %v5543 = vadd.f32 %v5270, %v5542
    %v5544 = vpop.f32.mrb[0].mxu0
    %v5545 = vadd.f32 %v5272, %v5544
    %5546 = vmatprep.mubr.bf16.mxu0 %v4230
    %5547 = vmatmul.mubr.bf16.gmra.mrb[0].mxu0 %v4229
    %v5548 = vpop.f32.mrb[0].mxu0
    %v5549 = vadd.f32 %v5276, %v5548
    %v5550 = vpop.f32.mrb[0].mxu0
    %v5551 = vadd.f32 %v5278, %v5550
    %v5552 = vpop.f32.mrb[0].mxu0
    %v5553 = vadd.f32 %v5280, %v5552
    %v5554 = vpop.f32.mrb[0].mxu0
    %v5555 = vadd.f32 %v5282, %v5554
    %5556 = vmatprep.mubr.bf16.mxu0 %v4238
    %5557 = vmatmul.mubr.bf16.gmra.mrb[0].mxu0 %v4237
    %v5558 = vpop.f32.mrb[0].mxu0
    %v5559 = vadd.f32 %v5286, %v5558
    %v5560 = vpop.f32.mrb[0].mxu0
    %v5561 = vadd.f32 %v5288, %v5560
    %v5562 = vpop.f32.mrb[0].mxu0
    %v5563 = vadd.f32 %v5290, %v5562
    %v5564 = vpop.f32.mrb[0].mxu0
    %v5565 = vadd.f32 %v5292, %v5564
    %5566 = vmatprep.mubr.bf16.mxu0 %v4246
    %5567 = vmatmul.mubr.bf16.gmra.mrb[0].mxu0 %v4245
    %v5568 = vpop.f32.mrb[0].mxu0
    %v5569 = vadd.f32 %v5296, %v5568
    %v5570 = vpop.f32.mrb[0].mxu0
    %v5571 = vadd.f32 %v5298, %v5570
    %v5572 = vpop.f32.mrb[0].mxu0
    %v5573 = vadd.f32 %v5300, %v5572
    %v5574 = vpop.f32.mrb[0].mxu0
    %v5575 = vadd.f32 %v5302, %v5574
    %5576 = vdwg.mxu0
    %5577 = vmatprep.subr.bf16.mxu0 %v4840
    %5578 = vmatpush1.bf16.msra.mxu0 %v4839
    %5579 = vmatprep.subr.bf16.mxu0 %v4842
    %5580 = vmatpush1.bf16.msra.mxu0 %v4841
    %5581 = vmatprep.subr.bf16.mxu0 %v4844
    %5582 = vmatpush1.bf16.msra.mxu0 %v4843
    %5583 = vmatprep.subr.bf16.mxu0 %v4846
    %5584 = vmatpush1.bf16.msra.mxu0 %v4845
    %5585 = vmatprep.subr.bf16.mxu0 %v4848
    %5586 = vmatpush1.bf16.msra.mxu0 %v4847
    %5587 = vmatprep.subr.bf16.mxu0 %v4850
    %5588 = vmatpush1.bf16.msra.mxu0 %v4849
    %5589 = vmatprep.subr.bf16.mxu0 %v4852
    %5590 = vmatpush1.bf16.msra.mxu0 %v4851
    %5591 = vmatprep.subr.bf16.mxu0 %v4854
    %5592 = vmatpush1.bf16.msra.mxu0 %v4853
    %5593 = vmatprep.subr.bf16.mxu0 %v4856
    %5594 = vmatpush1.bf16.msra.mxu0 %v4855
    %5595 = vmatprep.subr.bf16.mxu0 %v4858
    %5596 = vmatpush1.bf16.msra.mxu0 %v4857
    %5597 = vmatprep.subr.bf16.mxu0 %v4860
    %5598 = vmatpush1.bf16.msra.mxu0 %v4859
    %5599 = vmatprep.subr.bf16.mxu0 %v4862
    %5600 = vmatpush1.bf16.msra.mxu0 %v4861
    %5601 = vmatprep.subr.bf16.mxu0 %v4864
    %5602 = vmatpush1.bf16.msra.mxu0 %v4863
    %5603 = vmatprep.subr.bf16.mxu0 %v4866
    %5604 = vmatpush1.bf16.msra.mxu0 %v4865
    %5605 = vmatprep.subr.bf16.mxu0 %v4868
    %5606 = vmatpush1.bf16.msra.mxu0 %v4867
    %5607 = vmatprep.subr.bf16.mxu0 %v4870
    %5608 = vmatpush1.bf16.msra.mxu0 %v4869
    %5609 = vmatprep.mubr.bf16.mxu0 %v4064
    %5610 = vmatmul.mubr.bf16.gmra.mrb[0].mxu0 %v4063
    %v5611 = vpop.f32.mrb[0].mxu0
    %v5612 = vadd.f32 %v5339, %v5611
    %v5613 = vpop.f32.mrb[0].mxu0
    %v5614 = vadd.f32 %v5341, %v5613
    %v5615 = vpop.f32.mrb[0].mxu0
    %v5616 = vadd.f32 %v5343, %v5615
    %v5617 = vpop.f32.mrb[0].mxu0
    %v5618 = vadd.f32 %v5345, %v5617
    %5619 = vmatprep.mubr.bf16.mxu0 %v4072
    %5620 = vmatmul.mubr.bf16.gmra.mrb[0].mxu0 %v4071
    %v5621 = vpop.f32.mrb[0].mxu0
    %v5622 = vadd.f32 %v5349, %v5621
    %v5623 = vpop.f32.mrb[0].mxu0
    %v5624 = vadd.f32 %v5351, %v5623
    %v5625 = vpop.f32.mrb[0].mxu0
    %v5626 = vadd.f32 %v5353, %v5625
    %v5627 = vpop.f32.mrb[0].mxu0
    %v5628 = vadd.f32 %v5355, %v5627
    %5629 = vmatprep.mubr.bf16.mxu0 %v4080
    %5630 = vmatmul.mubr.bf16.gmra.mrb[0].mxu0 %v4079
    %v5631 = vpop.f32.mrb[0].mxu0
    %v5632 = vadd.f32 %v5359, %v5631
    %v5633 = vpop.f32.mrb[0].mxu0
    %v5634 = vadd.f32 %v5361, %v5633
    %v5635 = vpop.f32.mrb[0].mxu0
    %v5636 = vadd.f32 %v5363, %v5635
    %v5637 = vpop.f32.mrb[0].mxu0
    %v5638 = vadd.f32 %v5365, %v5637
    %5639 = vmatprep.mubr.bf16.mxu0 %v4088
    %5640 = vmatmul.mubr.bf16.gmra.mrb[0].mxu0 %v4087
    %v5641 = vpop.f32.mrb[0].mxu0
    %v5642 = vadd.f32 %v5369, %v5641
    %v5643 = vpop.f32.mrb[0].mxu0
    %v5644 = vadd.f32 %v5371, %v5643
    %v5645 = vpop.f32.mrb[0].mxu0
    %v5646 = vadd.f32 %v5373, %v5645
    %v5647 = vpop.f32.mrb[0].mxu0
    %v5648 = vadd.f32 %v5375, %v5647
    %5649 = vmatprep.mubr.bf16.mxu0 %v4096
    %5650 = vmatmul.mubr.bf16.gmra.mrb[0].mxu0 %v4095
    %v5651 = vpop.f32.mrb[0].mxu0
    %v5652 = vadd.f32 %v5379, %v5651
    %v5653 = vpop.f32.mrb[0].mxu0
    %v5654 = vadd.f32 %v5381, %v5653
    %v5655 = vpop.f32.mrb[0].mxu0
    %v5656 = vadd.f32 %v5383, %v5655
    %v5657 = vpop.f32.mrb[0].mxu0
    %v5658 = vadd.f32 %v5385, %v5657
    %5659 = vmatprep.mubr.bf16.mxu0 %v4104
    %5660 = vmatmul.mubr.bf16.gmra.mrb[0].mxu0 %v4103
    %v5661 = vpop.f32.mrb[0].mxu0
    %v5662 = vadd.f32 %v5389, %v5661
    %v5663 = vpop.f32.mrb[0].mxu0
    %v5664 = vadd.f32 %v5391, %v5663
    %v5665 = vpop.f32.mrb[0].mxu0
    %v5666 = vadd.f32 %v5393, %v5665
    %v5667 = vpop.f32.mrb[0].mxu0
    %v5668 = vadd.f32 %v5395, %v5667
    %5669 = vmatprep.mubr.bf16.mxu0 %v4112
    %5670 = vmatmul.mubr.bf16.gmra.mrb[0].mxu0 %v4111
    %v5671 = vpop.f32.mrb[0].mxu0
    %v5672 = vadd.f32 %v5399, %v5671
    %v5673 = vpop.f32.mrb[0].mxu0
    %v5674 = vadd.f32 %v5401, %v5673
    %v5675 = vpop.f32.mrb[0].mxu0
    %v5676 = vadd.f32 %v5403, %v5675
    %v5677 = vpop.f32.mrb[0].mxu0
    %v5678 = vadd.f32 %v5405, %v5677
    %5679 = vmatprep.mubr.bf16.mxu0 %v4120
    %5680 = vmatmul.mubr.bf16.gmra.mrb[0].mxu0 %v4119
    %v5681 = vpop.f32.mrb[0].mxu0
    %v5682 = vadd.f32 %v5409, %v5681
    %v5683 = vpop.f32.mrb[0].mxu0
    %v5684 = vadd.f32 %v5411, %v5683
    %v5685 = vpop.f32.mrb[0].mxu0
    %v5686 = vadd.f32 %v5413, %v5685
    %v5687 = vpop.f32.mrb[0].mxu0
    %v5688 = vadd.f32 %v5415, %v5687
    %5689 = vmatprep.mubr.bf16.mxu0 %v4128
    %5690 = vmatmul.mubr.bf16.gmra.mrb[0].mxu0 %v4127
    %v5691 = vpop.f32.mrb[0].mxu0
    %v5692 = vadd.f32 %v5419, %v5691
    %v5693 = vpop.f32.mrb[0].mxu0
    %v5694 = vadd.f32 %v5421, %v5693
    %v5695 = vpop.f32.mrb[0].mxu0
    %v5696 = vadd.f32 %v5423, %v5695
    %v5697 = vpop.f32.mrb[0].mxu0
    %v5698 = vadd.f32 %v5425, %v5697
    %5699 = vmatprep.mubr.bf16.mxu0 %v4136
    %5700 = vmatmul.mubr.bf16.gmra.mrb[0].mxu0 %v4135
    %v5701 = vpop.f32.mrb[0].mxu0
    %v5702 = vadd.f32 %v5429, %v5701
    %v5703 = vpop.f32.mrb[0].mxu0
    %v5704 = vadd.f32 %v5431, %v5703
    %v5705 = vpop.f32.mrb[0].mxu0
    %v5706 = vadd.f32 %v5433, %v5705
    %v5707 = vpop.f32.mrb[0].mxu0
    %v5708 = vadd.f32 %v5435, %v5707
    %5709 = vmatprep.mubr.bf16.mxu0 %v4144
    %5710 = vmatmul.mubr.bf16.gmra.mrb[0].mxu0 %v4143
    %v5711 = vpop.f32.mrb[0].mxu0
    %v5712 = vadd.f32 %v5439, %v5711
    %v5713 = vpop.f32.mrb[0].mxu0
    %v5714 = vadd.f32 %v5441, %v5713
    %v5715 = vpop.f32.mrb[0].mxu0
    %v5716 = vadd.f32 %v5443, %v5715
    %v5717 = vpop.f32.mrb[0].mxu0
    %v5718 = vadd.f32 %v5445, %v5717
    %5719 = vmatprep.mubr.bf16.mxu0 %v4152
    %5720 = vmatmul.mubr.bf16.gmra.mrb[0].mxu0 %v4151
    %v5721 = vpop.f32.mrb[0].mxu0
    %v5722 = vadd.f32 %v5449, %v5721
    %v5723 = vpop.f32.mrb[0].mxu0
    %v5724 = vadd.f32 %v5451, %v5723
    %v5725 = vpop.f32.mrb[0].mxu0
    %v5726 = vadd.f32 %v5453, %v5725
    %v5727 = vpop.f32.mrb[0].mxu0
    %v5728 = vadd.f32 %v5455, %v5727
    %5729 = vmatprep.mubr.bf16.mxu0 %v4160
    %5730 = vmatmul.mubr.bf16.gmra.mrb[0].mxu0 %v4159
    %v5731 = vpop.f32.mrb[0].mxu0
    %v5732 = vadd.f32 %v5459, %v5731
    %v5733 = vpop.f32.mrb[0].mxu0
    %v5734 = vadd.f32 %v5461, %v5733
    %v5735 = vpop.f32.mrb[0].mxu0
    %v5736 = vadd.f32 %v5463, %v5735
    %v5737 = vpop.f32.mrb[0].mxu0
    %v5738 = vadd.f32 %v5465, %v5737
    %5739 = vmatprep.mubr.bf16.mxu0 %v4168
    %5740 = vmatmul.mubr.bf16.gmra.mrb[0].mxu0 %v4167
    %v5741 = vpop.f32.mrb[0].mxu0
    %v5742 = vadd.f32 %v5469, %v5741
    %v5743 = vpop.f32.mrb[0].mxu0
    %v5744 = vadd.f32 %v5471, %v5743
    %v5745 = vpop.f32.mrb[0].mxu0
    %v5746 = vadd.f32 %v5473, %v5745
    %v5747 = vpop.f32.mrb[0].mxu0
    %v5748 = vadd.f32 %v5475, %v5747
    %5749 = vmatprep.mubr.bf16.mxu0 %v4176
    %5750 = vmatmul.mubr.bf16.gmra.mrb[0].mxu0 %v4175
    %v5751 = vpop.f32.mrb[0].mxu0
    %v5752 = vadd.f32 %v5479, %v5751
    %v5753 = vpop.f32.mrb[0].mxu0
    %v5754 = vadd.f32 %v5481, %v5753
    %v5755 = vpop.f32.mrb[0].mxu0
    %v5756 = vadd.f32 %v5483, %v5755
    %v5757 = vpop.f32.mrb[0].mxu0
    %v5758 = vadd.f32 %v5485, %v5757
    %5759 = vmatprep.mubr.bf16.mxu0 %v4184
    %5760 = vmatmul.mubr.bf16.gmra.mrb[0].mxu0 %v4183
    %v5761 = vpop.f32.mrb[0].mxu0
    %v5762 = vadd.f32 %v5489, %v5761
    %v5763 = vpop.f32.mrb[0].mxu0
    %v5764 = vadd.f32 %v5491, %v5763
    %v5765 = vpop.f32.mrb[0].mxu0
    %v5766 = vadd.f32 %v5493, %v5765
    %v5767 = vpop.f32.mrb[0].mxu0
    %v5768 = vadd.f32 %v5495, %v5767
    %5769 = vmatprep.mubr.bf16.mxu0 %v4192
    %5770 = vmatmul.mubr.bf16.gmra.mrb[0].mxu0 %v4191
    %v5771 = vpop.f32.mrb[0].mxu0
    %v5772 = vadd.f32 %v5499, %v5771
    %v5773 = vpop.f32.mrb[0].mxu0
    %v5774 = vadd.f32 %v5501, %v5773
    %v5775 = vpop.f32.mrb[0].mxu0
    %v5776 = vadd.f32 %v5503, %v5775
    %v5777 = vpop.f32.mrb[0].mxu0
    %v5778 = vadd.f32 %v5505, %v5777
    %5779 = vmatprep.mubr.bf16.mxu0 %v4200
    %5780 = vmatmul.mubr.bf16.gmra.mrb[0].mxu0 %v4199
    %v5781 = vpop.f32.mrb[0].mxu0
    %v5782 = vadd.f32 %v5509, %v5781
    %v5783 = vpop.f32.mrb[0].mxu0
    %v5784 = vadd.f32 %v5511, %v5783
    %v5785 = vpop.f32.mrb[0].mxu0
    %v5786 = vadd.f32 %v5513, %v5785
    %v5787 = vpop.f32.mrb[0].mxu0
    %v5788 = vadd.f32 %v5515, %v5787
    %5789 = vmatprep.mubr.bf16.mxu0 %v4208
    %5790 = vmatmul.mubr.bf16.gmra.mrb[0].mxu0 %v4207
    %v5791 = vpop.f32.mrb[0].mxu0
    %v5792 = vadd.f32 %v5519, %v5791
    %v5793 = vpop.f32.mrb[0].mxu0
    %v5794 = vadd.f32 %v5521, %v5793
    %v5795 = vpop.f32.mrb[0].mxu0
    %v5796 = vadd.f32 %v5523, %v5795
    %v5797 = vpop.f32.mrb[0].mxu0
    %v5798 = vadd.f32 %v5525, %v5797
    %5799 = vmatprep.mubr.bf16.mxu0 %v4216
    %5800 = vmatmul.mubr.bf16.gmra.mrb[0].mxu0 %v4215
    %v5801 = vpop.f32.mrb[0].mxu0
    %v5802 = vadd.f32 %v5529, %v5801
    %v5803 = vpop.f32.mrb[0].mxu0
    %v5804 = vadd.f32 %v5531, %v5803
    %v5805 = vpop.f32.mrb[0].mxu0
    %v5806 = vadd.f32 %v5533, %v5805
    %v5807 = vpop.f32.mrb[0].mxu0
    %v5808 = vadd.f32 %v5535, %v5807
    %5809 = vmatprep.mubr.bf16.mxu0 %v4224
    %5810 = vmatmul.mubr.bf16.gmra.mrb[0].mxu0 %v4223
    %v5811 = vpop.f32.mrb[0].mxu0
    %v5812 = vadd.f32 %v5539, %v5811
    %v5813 = vpop.f32.mrb[0].mxu0
    %v5814 = vadd.f32 %v5541, %v5813
    %v5815 = vpop.f32.mrb[0].mxu0
    %v5816 = vadd.f32 %v5543, %v5815
    %v5817 = vpop.f32.mrb[0].mxu0
    %v5818 = vadd.f32 %v5545, %v5817
    %5819 = vmatprep.mubr.bf16.mxu0 %v4232
    %5820 = vmatmul.mubr.bf16.gmra.mrb[0].mxu0 %v4231
    %v5821 = vpop.f32.mrb[0].mxu0
    %v5822 = vadd.f32 %v5549, %v5821
    %v5823 = vpop.f32.mrb[0].mxu0
    %v5824 = vadd.f32 %v5551, %v5823
    %v5825 = vpop.f32.mrb[0].mxu0
    %v5826 = vadd.f32 %v5553, %v5825
    %v5827 = vpop.f32.mrb[0].mxu0
    %v5828 = vadd.f32 %v5555, %v5827
    %5829 = vmatprep.mubr.bf16.mxu0 %v4240
    %5830 = vmatmul.mubr.bf16.gmra.mrb[0].mxu0 %v4239
    %v5831 = vpop.f32.mrb[0].mxu0
    %v5832 = vadd.f32 %v5559, %v5831
    %v5833 = vpop.f32.mrb[0].mxu0
    %v5834 = vadd.f32 %v5561, %v5833
    %v5835 = vpop.f32.mrb[0].mxu0
    %v5836 = vadd.f32 %v5563, %v5835
    %v5837 = vpop.f32.mrb[0].mxu0
    %v5838 = vadd.f32 %v5565, %v5837
    %5839 = vmatprep.mubr.bf16.mxu0 %v4248
    %5840 = vmatmul.mubr.bf16.gmra.mrb[0].mxu0 %v4247
    %v5841 = vpop.f32.mrb[0].mxu0
    %v5842 = vadd.f32 %v5569, %v5841
    %v5843 = vpop.f32.mrb[0].mxu0
    %v5844 = vadd.f32 %v5571, %v5843
    %v5845 = vpop.f32.mrb[0].mxu0
    %v5846 = vadd.f32 %v5573, %v5845
    %v5847 = vpop.f32.mrb[0].mxu0
    %v5848 = vadd.f32 %v5575, %v5847
    %5849 = vdwg.mxu0
    %5850 = vmatprep.subr.bf16.mxu0 %v4872
    %5851 = vmatpush1.bf16.msra.mxu0 %v4871
    %5852 = vmatprep.subr.bf16.mxu0 %v4874
    %5853 = vmatpush1.bf16.msra.mxu0 %v4873
    %5854 = vmatprep.subr.bf16.mxu0 %v4876
    %5855 = vmatpush1.bf16.msra.mxu0 %v4875
    %5856 = vmatprep.subr.bf16.mxu0 %v4878
    %5857 = vmatpush1.bf16.msra.mxu0 %v4877
    %5858 = vmatprep.subr.bf16.mxu0 %v4880
    %5859 = vmatpush1.bf16.msra.mxu0 %v4879
    %5860 = vmatprep.subr.bf16.mxu0 %v4882
    %5861 = vmatpush1.bf16.msra.mxu0 %v4881
    %5862 = vmatprep.subr.bf16.mxu0 %v4884
    %5863 = vmatpush1.bf16.msra.mxu0 %v4883
    %5864 = vmatprep.subr.bf16.mxu0 %v4886
    %5865 = vmatpush1.bf16.msra.mxu0 %v4885
    %5866 = vmatprep.subr.bf16.mxu0 %v4888
    %5867 = vmatpush1.bf16.msra.mxu0 %v4887
    %5868 = vmatprep.subr.bf16.mxu0 %v4890
    %5869 = vmatpush1.bf16.msra.mxu0 %v4889
    %5870 = vmatprep.subr.bf16.mxu0 %v4892
    %5871 = vmatpush1.bf16.msra.mxu0 %v4891
    %5872 = vmatprep.subr.bf16.mxu0 %v4894
    %5873 = vmatpush1.bf16.msra.mxu0 %v4893
    %5874 = vmatprep.subr.bf16.mxu0 %v4896
    %5875 = vmatpush1.bf16.msra.mxu0 %v4895
    %5876 = vmatprep.subr.bf16.mxu0 %v4898
    %5877 = vmatpush1.bf16.msra.mxu0 %v4897
    %5878 = vmatprep.subr.bf16.mxu0 %v4900
    %5879 = vmatpush1.bf16.msra.mxu0 %v4899
    %5880 = vmatprep.subr.bf16.mxu0 %v4902
    %5881 = vmatpush1.bf16.msra.mxu0 %v4901
    %5882 = vmatprep.mubr.bf16.mxu0 %v4066
    %5883 = vmatmul.mubr.bf16.gmra.mrb[0].mxu0 %v4065
    %v5884 = vpop.f32.mrb[0].mxu0
    %v5885 = vadd.f32 %v5612, %v5884
    %v5886 = vpop.f32.mrb[0].mxu0
    %v5887 = vadd.f32 %v5614, %v5886
    %v5888 = vpop.f32.mrb[0].mxu0
    %v5889 = vadd.f32 %v5616, %v5888
    %v5890 = vpop.f32.mrb[0].mxu0
    %v5891 = vadd.f32 %v5618, %v5890
    %5892 = vmatprep.mubr.bf16.mxu0 %v4074
    %5893 = vmatmul.mubr.bf16.gmra.mrb[0].mxu0 %v4073
    %v5894 = vpop.f32.mrb[0].mxu0
    %v5895 = vadd.f32 %v5622, %v5894
    %v5896 = vpop.f32.mrb[0].mxu0
    %v5897 = vadd.f32 %v5624, %v5896
    %v5898 = vpop.f32.mrb[0].mxu0
    %v5899 = vadd.f32 %v5626, %v5898
    %v5900 = vpop.f32.mrb[0].mxu0
    %v5901 = vadd.f32 %v5628, %v5900
    %5902 = vmatprep.mubr.bf16.mxu0 %v4082
    %5903 = vmatmul.mubr.bf16.gmra.mrb[0].mxu0 %v4081
    %v5904 = vpop.f32.mrb[0].mxu0
    %v5905 = vadd.f32 %v5632, %v5904
    %v5906 = vpop.f32.mrb[0].mxu0
    %v5907 = vadd.f32 %v5634, %v5906
    %v5908 = vpop.f32.mrb[0].mxu0
    %v5909 = vadd.f32 %v5636, %v5908
    %v5910 = vpop.f32.mrb[0].mxu0
    %v5911 = vadd.f32 %v5638, %v5910
    %5912 = vmatprep.mubr.bf16.mxu0 %v4090
    %5913 = vmatmul.mubr.bf16.gmra.mrb[0].mxu0 %v4089
    %v5914 = vpop.f32.mrb[0].mxu0
    %v5915 = vadd.f32 %v5642, %v5914
    %v5916 = vpop.f32.mrb[0].mxu0
    %v5917 = vadd.f32 %v5644, %v5916
    %v5918 = vpop.f32.mrb[0].mxu0
    %v5919 = vadd.f32 %v5646, %v5918
    %v5920 = vpop.f32.mrb[0].mxu0
    %v5921 = vadd.f32 %v5648, %v5920
    %5922 = vmatprep.mubr.bf16.mxu0 %v4098
    %5923 = vmatmul.mubr.bf16.gmra.mrb[0].mxu0 %v4097
    %v5924 = vpop.f32.mrb[0].mxu0
    %v5925 = vadd.f32 %v5652, %v5924
    %v5926 = vpop.f32.mrb[0].mxu0
    %v5927 = vadd.f32 %v5654, %v5926
    %v5928 = vpop.f32.mrb[0].mxu0
    %v5929 = vadd.f32 %v5656, %v5928
    %v5930 = vpop.f32.mrb[0].mxu0
    %v5931 = vadd.f32 %v5658, %v5930
    %5932 = vmatprep.mubr.bf16.mxu0 %v4106
    %5933 = vmatmul.mubr.bf16.gmra.mrb[0].mxu0 %v4105
    %v5934 = vpop.f32.mrb[0].mxu0
    %v5935 = vadd.f32 %v5662, %v5934
    %v5936 = vpop.f32.mrb[0].mxu0
    %v5937 = vadd.f32 %v5664, %v5936
    %v5938 = vpop.f32.mrb[0].mxu0
    %v5939 = vadd.f32 %v5666, %v5938
    %v5940 = vpop.f32.mrb[0].mxu0
    %v5941 = vadd.f32 %v5668, %v5940
    %5942 = vmatprep.mubr.bf16.mxu0 %v4114
    %5943 = vmatmul.mubr.bf16.gmra.mrb[0].mxu0 %v4113
    %v5944 = vpop.f32.mrb[0].mxu0
    %v5945 = vadd.f32 %v5672, %v5944
    %v5946 = vpop.f32.mrb[0].mxu0
    %v5947 = vadd.f32 %v5674, %v5946
    %v5948 = vpop.f32.mrb[0].mxu0
    %v5949 = vadd.f32 %v5676, %v5948
    %v5950 = vpop.f32.mrb[0].mxu0
    %v5951 = vadd.f32 %v5678, %v5950
    %5952 = vmatprep.mubr.bf16.mxu0 %v4122
    %5953 = vmatmul.mubr.bf16.gmra.mrb[0].mxu0 %v4121
    %v5954 = vpop.f32.mrb[0].mxu0
    %v5955 = vadd.f32 %v5682, %v5954
    %v5956 = vpop.f32.mrb[0].mxu0
    %v5957 = vadd.f32 %v5684, %v5956
    %v5958 = vpop.f32.mrb[0].mxu0
    %v5959 = vadd.f32 %v5686, %v5958
    %v5960 = vpop.f32.mrb[0].mxu0
    %v5961 = vadd.f32 %v5688, %v5960
    %5962 = vmatprep.mubr.bf16.mxu0 %v4130
    %5963 = vmatmul.mubr.bf16.gmra.mrb[0].mxu0 %v4129
    %v5964 = vpop.f32.mrb[0].mxu0
    %v5965 = vadd.f32 %v5692, %v5964
    %v5966 = vpop.f32.mrb[0].mxu0
    %v5967 = vadd.f32 %v5694, %v5966
    %v5968 = vpop.f32.mrb[0].mxu0
    %v5969 = vadd.f32 %v5696, %v5968
    %v5970 = vpop.f32.mrb[0].mxu0
    %v5971 = vadd.f32 %v5698, %v5970
    %5972 = vmatprep.mubr.bf16.mxu0 %v4138
    %5973 = vmatmul.mubr.bf16.gmra.mrb[0].mxu0 %v4137
    %v5974 = vpop.f32.mrb[0].mxu0
    %v5975 = vadd.f32 %v5702, %v5974
    %v5976 = vpop.f32.mrb[0].mxu0
    %v5977 = vadd.f32 %v5704, %v5976
    %v5978 = vpop.f32.mrb[0].mxu0
    %v5979 = vadd.f32 %v5706, %v5978
    %v5980 = vpop.f32.mrb[0].mxu0
    %v5981 = vadd.f32 %v5708, %v5980
    %5982 = vmatprep.mubr.bf16.mxu0 %v4146
    %5983 = vmatmul.mubr.bf16.gmra.mrb[0].mxu0 %v4145
    %v5984 = vpop.f32.mrb[0].mxu0
    %v5985 = vadd.f32 %v5712, %v5984
    %v5986 = vpop.f32.mrb[0].mxu0
    %v5987 = vadd.f32 %v5714, %v5986
    %v5988 = vpop.f32.mrb[0].mxu0
    %v5989 = vadd.f32 %v5716, %v5988
    %v5990 = vpop.f32.mrb[0].mxu0
    %v5991 = vadd.f32 %v5718, %v5990
    %5992 = vmatprep.mubr.bf16.mxu0 %v4154
    %5993 = vmatmul.mubr.bf16.gmra.mrb[0].mxu0 %v4153
    %v5994 = vpop.f32.mrb[0].mxu0
    %v5995 = vadd.f32 %v5722, %v5994
    %v5996 = vpop.f32.mrb[0].mxu0
    %v5997 = vadd.f32 %v5724, %v5996
    %v5998 = vpop.f32.mrb[0].mxu0
    %v5999 = vadd.f32 %v5726, %v5998
    %v6000 = vpop.f32.mrb[0].mxu0
    %v6001 = vadd.f32 %v5728, %v6000
    %6002 = vmatprep.mubr.bf16.mxu0 %v4162
    %6003 = vmatmul.mubr.bf16.gmra.mrb[0].mxu0 %v4161
    %v6004 = vpop.f32.mrb[0].mxu0
    %v6005 = vadd.f32 %v5732, %v6004
    %v6006 = vpop.f32.mrb[0].mxu0
    %v6007 = vadd.f32 %v5734, %v6006
    %v6008 = vpop.f32.mrb[0].mxu0
    %v6009 = vadd.f32 %v5736, %v6008
    %v6010 = vpop.f32.mrb[0].mxu0
    %v6011 = vadd.f32 %v5738, %v6010
    %6012 = vmatprep.mubr.bf16.mxu0 %v4170
    %6013 = vmatmul.mubr.bf16.gmra.mrb[0].mxu0 %v4169
    %v6014 = vpop.f32.mrb[0].mxu0
    %v6015 = vadd.f32 %v5742, %v6014
    %v6016 = vpop.f32.mrb[0].mxu0
    %v6017 = vadd.f32 %v5744, %v6016
    %v6018 = vpop.f32.mrb[0].mxu0
    %v6019 = vadd.f32 %v5746, %v6018
    %v6020 = vpop.f32.mrb[0].mxu0
    %v6021 = vadd.f32 %v5748, %v6020
    %6022 = vmatprep.mubr.bf16.mxu0 %v4178
    %6023 = vmatmul.mubr.bf16.gmra.mrb[0].mxu0 %v4177
    %v6024 = vpop.f32.mrb[0].mxu0
    %v6025 = vadd.f32 %v5752, %v6024
    %v6026 = vpop.f32.mrb[0].mxu0
    %v6027 = vadd.f32 %v5754, %v6026
    %v6028 = vpop.f32.mrb[0].mxu0
    %v6029 = vadd.f32 %v5756, %v6028
    %v6030 = vpop.f32.mrb[0].mxu0
    %v6031 = vadd.f32 %v5758, %v6030
    %6032 = vmatprep.mubr.bf16.mxu0 %v4186
    %6033 = vmatmul.mubr.bf16.gmra.mrb[0].mxu0 %v4185
    %v6034 = vpop.f32.mrb[0].mxu0
    %v6035 = vadd.f32 %v5762, %v6034
    %v6036 = vpop.f32.mrb[0].mxu0
    %v6037 = vadd.f32 %v5764, %v6036
    %v6038 = vpop.f32.mrb[0].mxu0
    %v6039 = vadd.f32 %v5766, %v6038
    %v6040 = vpop.f32.mrb[0].mxu0
    %v6041 = vadd.f32 %v5768, %v6040
    %6042 = vmatprep.mubr.bf16.mxu0 %v4194
    %6043 = vmatmul.mubr.bf16.gmra.mrb[0].mxu0 %v4193
    %v6044 = vpop.f32.mrb[0].mxu0
    %v6045 = vadd.f32 %v5772, %v6044
    %v6046 = vpop.f32.mrb[0].mxu0
    %v6047 = vadd.f32 %v5774, %v6046
    %v6048 = vpop.f32.mrb[0].mxu0
    %v6049 = vadd.f32 %v5776, %v6048
    %v6050 = vpop.f32.mrb[0].mxu0
    %v6051 = vadd.f32 %v5778, %v6050
    %6052 = vmatprep.mubr.bf16.mxu0 %v4202
    %6053 = vmatmul.mubr.bf16.gmra.mrb[0].mxu0 %v4201
    %v6054 = vpop.f32.mrb[0].mxu0
    %v6055 = vadd.f32 %v5782, %v6054
    %v6056 = vpop.f32.mrb[0].mxu0
    %v6057 = vadd.f32 %v5784, %v6056
    %v6058 = vpop.f32.mrb[0].mxu0
    %v6059 = vadd.f32 %v5786, %v6058
    %v6060 = vpop.f32.mrb[0].mxu0
    %v6061 = vadd.f32 %v5788, %v6060
    %6062 = vmatprep.mubr.bf16.mxu0 %v4210
    %6063 = vmatmul.mubr.bf16.gmra.mrb[0].mxu0 %v4209
    %v6064 = vpop.f32.mrb[0].mxu0
    %v6065 = vadd.f32 %v5792, %v6064
    %v6066 = vpop.f32.mrb[0].mxu0
    %v6067 = vadd.f32 %v5794, %v6066
    %v6068 = vpop.f32.mrb[0].mxu0
    %v6069 = vadd.f32 %v5796, %v6068
    %v6070 = vpop.f32.mrb[0].mxu0
    %v6071 = vadd.f32 %v5798, %v6070
    %6072 = vmatprep.mubr.bf16.mxu0 %v4218
    %6073 = vmatmul.mubr.bf16.gmra.mrb[0].mxu0 %v4217
    %v6074 = vpop.f32.mrb[0].mxu0
    %v6075 = vadd.f32 %v5802, %v6074
    %v6076 = vpop.f32.mrb[0].mxu0
    %v6077 = vadd.f32 %v5804, %v6076
    %v6078 = vpop.f32.mrb[0].mxu0
    %v6079 = vadd.f32 %v5806, %v6078
    %v6080 = vpop.f32.mrb[0].mxu0
    %v6081 = vadd.f32 %v5808, %v6080
    %6082 = vmatprep.mubr.bf16.mxu0 %v4226
    %6083 = vmatmul.mubr.bf16.gmra.mrb[0].mxu0 %v4225
    %v6084 = vpop.f32.mrb[0].mxu0
    %v6085 = vadd.f32 %v5812, %v6084
    %v6086 = vpop.f32.mrb[0].mxu0
    %v6087 = vadd.f32 %v5814, %v6086
    %v6088 = vpop.f32.mrb[0].mxu0
    %v6089 = vadd.f32 %v5816, %v6088
    %v6090 = vpop.f32.mrb[0].mxu0
    %v6091 = vadd.f32 %v5818, %v6090
    %6092 = vmatprep.mubr.bf16.mxu0 %v4234
    %6093 = vmatmul.mubr.bf16.gmra.mrb[0].mxu0 %v4233
    %v6094 = vpop.f32.mrb[0].mxu0
    %v6095 = vadd.f32 %v5822, %v6094
    %v6096 = vpop.f32.mrb[0].mxu0
    %v6097 = vadd.f32 %v5824, %v6096
    %v6098 = vpop.f32.mrb[0].mxu0
    %v6099 = vadd.f32 %v5826, %v6098
    %v6100 = vpop.f32.mrb[0].mxu0
    %v6101 = vadd.f32 %v5828, %v6100
    %6102 = vmatprep.mubr.bf16.mxu0 %v4242
    %6103 = vmatmul.mubr.bf16.gmra.mrb[0].mxu0 %v4241
    %v6104 = vpop.f32.mrb[0].mxu0
    %v6105 = vadd.f32 %v5832, %v6104
    %v6106 = vpop.f32.mrb[0].mxu0
    %v6107 = vadd.f32 %v5834, %v6106
    %v6108 = vpop.f32.mrb[0].mxu0
    %v6109 = vadd.f32 %v5836, %v6108
    %v6110 = vpop.f32.mrb[0].mxu0
    %v6111 = vadd.f32 %v5838, %v6110
    %6112 = vmatprep.mubr.bf16.mxu0 %v4250
    %6113 = vmatmul.mubr.bf16.gmra.mrb[0].mxu0 %v4249
    %v6114 = vpop.f32.mrb[0].mxu0
    %v6115 = vadd.f32 %v5842, %v6114
    %v6116 = vpop.f32.mrb[0].mxu0
    %v6117 = vadd.f32 %v5844, %v6116
    %v6118 = vpop.f32.mrb[0].mxu0
    %v6119 = vadd.f32 %v5846, %v6118
    %v6120 = vpop.f32.mrb[0].mxu0
    %v6121 = vadd.f32 %v5848, %v6120
    %6122 = vdwg.mxu0
    %v6123 = vadd.f32 %v5885, %v93
    %v6124 = vadd.f32 %v5887, %v94
    %v6125 = vadd.f32 %v5889, %v95
    %v6126 = vadd.f32 %v5891, %v96
    %v6127 = vadd.f32 %v5895, %v97
    %v6128 = vadd.f32 %v5897, %v98
    %v6129 = vadd.f32 %v5899, %v99
    %v6130 = vadd.f32 %v5901, %v100
    %v6131 = vadd.f32 %v5905, %v101
    %v6132 = vadd.f32 %v5907, %v102
    %v6133 = vadd.f32 %v5909, %v103
    %v6134 = vadd.f32 %v5911, %v104
    %v6135 = vadd.f32 %v5915, %v105
    %v6136 = vadd.f32 %v5917, %v106
    %v6137 = vadd.f32 %v5919, %v107
    %v6138 = vadd.f32 %v5921, %v108
    %v6139 = vadd.f32 %v5925, %v109
    %v6140 = vadd.f32 %v5927, %v110
    %v6141 = vadd.f32 %v5929, %v111
    %v6142 = vadd.f32 %v5931, %v112
    %v6143 = vadd.f32 %v5935, %v113
    %v6144 = vadd.f32 %v5937, %v114
    %v6145 = vadd.f32 %v5939, %v115
    %v6146 = vadd.f32 %v5941, %v116
    %v6147 = vadd.f32 %v5945, %v117
    %v6148 = vadd.f32 %v5947, %v118
    %v6149 = vadd.f32 %v5949, %v119
    %v6150 = vadd.f32 %v5951, %v120
    %v6151 = vadd.f32 %v5955, %v121
    %v6152 = vadd.f32 %v5957, %v122
    %v6153 = vadd.f32 %v5959, %v123
    %v6154 = vadd.f32 %v5961, %v124
    %v6155 = vadd.f32 %v5965, %v125
    %v6156 = vadd.f32 %v5967, %v126
    %v6157 = vadd.f32 %v5969, %v127
    %v6158 = vadd.f32 %v5971, %v128
    %v6159 = vadd.f32 %v5975, %v129
    %v6160 = vadd.f32 %v5977, %v130
    %v6161 = vadd.f32 %v5979, %v131
    %v6162 = vadd.f32 %v5981, %v132
    %v6163 = vadd.f32 %v5985, %v133
    %v6164 = vadd.f32 %v5987, %v134
    %v6165 = vadd.f32 %v5989, %v135
    %v6166 = vadd.f32 %v5991, %v136
    %v6167 = vadd.f32 %v5995, %v137
    %v6168 = vadd.f32 %v5997, %v138
    %v6169 = vadd.f32 %v5999, %v139
    %v6170 = vadd.f32 %v6001, %v140
    %v6171 = vadd.f32 %v6005, %v141
    %v6172 = vadd.f32 %v6007, %v142
    %v6173 = vadd.f32 %v6009, %v143
    %v6174 = vadd.f32 %v6011, %v144
    %v6175 = vadd.f32 %v6015, %v145
    %v6176 = vadd.f32 %v6017, %v146
    %v6177 = vadd.f32 %v6019, %v147
    %v6178 = vadd.f32 %v6021, %v148
    %v6179 = vadd.f32 %v6025, %v149
    %v6180 = vadd.f32 %v6027, %v150
    %v6181 = vadd.f32 %v6029, %v151
    %v6182 = vadd.f32 %v6031, %v152
    %v6183 = vadd.f32 %v6035, %v153
    %v6184 = vadd.f32 %v6037, %v154
    %v6185 = vadd.f32 %v6039, %v155
    %v6186 = vadd.f32 %v6041, %v156
    %v6187 = vadd.f32 %v6045, %v157
    %v6188 = vadd.f32 %v6047, %v158
    %v6189 = vadd.f32 %v6049, %v159
    %v6190 = vadd.f32 %v6051, %v160
    %v6191 = vadd.f32 %v6055, %v161
    %v6192 = vadd.f32 %v6057, %v162
    %v6193 = vadd.f32 %v6059, %v163
    %v6194 = vadd.f32 %v6061, %v164
    %v6195 = vadd.f32 %v6065, %v165
    %v6196 = vadd.f32 %v6067, %v166
    %v6197 = vadd.f32 %v6069, %v167
    %v6198 = vadd.f32 %v6071, %v168
    %v6199 = vadd.f32 %v6075, %v169
    %v6200 = vadd.f32 %v6077, %v170
    %v6201 = vadd.f32 %v6079, %v171
    %v6202 = vadd.f32 %v6081, %v172
    %v6203 = vadd.f32 %v6085, %v173
    %v6204 = vadd.f32 %v6087, %v174
    %v6205 = vadd.f32 %v6089, %v175
    %v6206 = vadd.f32 %v6091, %v176
    %v6207 = vadd.f32 %v6095, %v177
    %v6208 = vadd.f32 %v6097, %v178
    %v6209 = vadd.f32 %v6099, %v179
    %v6210 = vadd.f32 %v6101, %v180
    %v6211 = vadd.f32 %v6105, %v181
    %v6212 = vadd.f32 %v6107, %v182
    %v6213 = vadd.f32 %v6109, %v183
    %v6214 = vadd.f32 %v6111, %v184
    %v6215 = vadd.f32 %v6115, %v185
    %v6216 = vadd.f32 %v6117, %v186
    %v6217 = vadd.f32 %v6119, %v187
    %v6218 = vadd.f32 %v6121, %v188
    %v6219 = vadd.f32 %v6123, %v6124
    %6220 = vadd.xlane.f32.xlu0 %v6219
    %v6221 = vpop.xlane.xlu0 %6220
    %v6222 = vadd.f32 %v6125, %v6126
    %6223 = vadd.xlane.f32.xlu0 %v6222
    %v6224 = vpop.xlane.xlu0 %6223
    %v6225 = vadd.f32 %v6127, %v6128
    %6226 = vadd.xlane.f32.xlu0 %v6225
    %v6227 = vpop.xlane.xlu0 %6226
    %v6228 = vadd.f32 %v6129, %v6130
    %6229 = vadd.xlane.f32.xlu0 %v6228
    %v6230 = vpop.xlane.xlu0 %6229
    %v6231 = vadd.f32 %v6131, %v6132
    %6232 = vadd.xlane.f32.xlu0 %v6231
    %v6233 = vpop.xlane.xlu0 %6232
    %v6234 = vadd.f32 %v6133, %v6134
    %6235 = vadd.xlane.f32.xlu0 %v6234
    %v6236 = vpop.xlane.xlu0 %6235
    %v6237 = vadd.f32 %v6135, %v6136
    %6238 = vadd.xlane.f32.xlu0 %v6237
    %v6239 = vpop.xlane.xlu0 %6238
    %v6240 = vadd.f32 %v6137, %v6138
    %6241 = vadd.xlane.f32.xlu0 %v6240
    %v6242 = vpop.xlane.xlu0 %6241
    %v6243 = vadd.f32 %v6139, %v6140
    %6244 = vadd.xlane.f32.xlu0 %v6243
    %v6245 = vpop.xlane.xlu0 %6244
    %v6246 = vadd.f32 %v6141, %v6142
    %6247 = vadd.xlane.f32.xlu0 %v6246
    %v6248 = vpop.xlane.xlu0 %6247
    %v6249 = vadd.f32 %v6143, %v6144
    %6250 = vadd.xlane.f32.xlu0 %v6249
    %v6251 = vpop.xlane.xlu0 %6250
    %v6252 = vadd.f32 %v6145, %v6146
    %6253 = vadd.xlane.f32.xlu0 %v6252
    %v6254 = vpop.xlane.xlu0 %6253
    %v6255 = vadd.f32 %v6147, %v6148
    %6256 = vadd.xlane.f32.xlu0 %v6255
    %v6257 = vpop.xlane.xlu0 %6256
    %v6258 = vadd.f32 %v6149, %v6150
    %6259 = vadd.xlane.f32.xlu0 %v6258
    %v6260 = vpop.xlane.xlu0 %6259
    %v6261 = vadd.f32 %v6151, %v6152
    %6262 = vadd.xlane.f32.xlu0 %v6261
    %v6263 = vpop.xlane.xlu0 %6262
    %v6264 = vadd.f32 %v6153, %v6154
    %6265 = vadd.xlane.f32.xlu0 %v6264
    %v6266 = vpop.xlane.xlu0 %6265
    %v6267 = vadd.f32 %v6155, %v6156
    %6268 = vadd.xlane.f32.xlu0 %v6267
    %v6269 = vpop.xlane.xlu0 %6268
    %v6270 = vadd.f32 %v6157, %v6158
    %6271 = vadd.xlane.f32.xlu0 %v6270
    %v6272 = vpop.xlane.xlu0 %6271
    %v6273 = vadd.f32 %v6159, %v6160
    %6274 = vadd.xlane.f32.xlu0 %v6273
    %v6275 = vpop.xlane.xlu0 %6274
    %v6276 = vadd.f32 %v6161, %v6162
    %6277 = vadd.xlane.f32.xlu0 %v6276
    %v6278 = vpop.xlane.xlu0 %6277
    %v6279 = vadd.f32 %v6163, %v6164
    %6280 = vadd.xlane.f32.xlu0 %v6279
    %v6281 = vpop.xlane.xlu0 %6280
    %v6282 = vadd.f32 %v6165, %v6166
    %6283 = vadd.xlane.f32.xlu0 %v6282
    %v6284 = vpop.xlane.xlu0 %6283
    %v6285 = vadd.f32 %v6167, %v6168
    %6286 = vadd.xlane.f32.xlu0 %v6285
    %v6287 = vpop.xlane.xlu0 %6286
    %v6288 = vadd.f32 %v6169, %v6170
    %6289 = vadd.xlane.f32.xlu0 %v6288
    %v6290 = vpop.xlane.xlu0 %6289
    %v6291 = vadd.f32 %v6171, %v6172
    %6292 = vadd.xlane.f32.xlu0 %v6291
    %v6293 = vpop.xlane.xlu0 %6292
    %v6294 = vadd.f32 %v6173, %v6174
    %6295 = vadd.xlane.f32.xlu0 %v6294
    %v6296 = vpop.xlane.xlu0 %6295
    %v6297 = vadd.f32 %v6175, %v6176
    %6298 = vadd.xlane.f32.xlu0 %v6297
    %v6299 = vpop.xlane.xlu0 %6298
    %v6300 = vadd.f32 %v6177, %v6178
    %6301 = vadd.xlane.f32.xlu0 %v6300
    %v6302 = vpop.xlane.xlu0 %6301
    %v6303 = vadd.f32 %v6179, %v6180
    %6304 = vadd.xlane.f32.xlu0 %v6303
    %v6305 = vpop.xlane.xlu0 %6304
    %v6306 = vadd.f32 %v6181, %v6182
    %6307 = vadd.xlane.f32.xlu0 %v6306
    %v6308 = vpop.xlane.xlu0 %6307
    %v6309 = vadd.f32 %v6183, %v6184
    %6310 = vadd.xlane.f32.xlu0 %v6309
    %v6311 = vpop.xlane.xlu0 %6310
    %v6312 = vadd.f32 %v6185, %v6186
    %6313 = vadd.xlane.f32.xlu0 %v6312
    %v6314 = vpop.xlane.xlu0 %6313
    %v6315 = vadd.f32 %v6187, %v6188
    %6316 = vadd.xlane.f32.xlu0 %v6315
    %v6317 = vpop.xlane.xlu0 %6316
    %v6318 = vadd.f32 %v6189, %v6190
    %6319 = vadd.xlane.f32.xlu0 %v6318
    %v6320 = vpop.xlane.xlu0 %6319
    %v6321 = vadd.f32 %v6191, %v6192
    %6322 = vadd.xlane.f32.xlu0 %v6321
    %v6323 = vpop.xlane.xlu0 %6322
    %v6324 = vadd.f32 %v6193, %v6194
    %6325 = vadd.xlane.f32.xlu0 %v6324
    %v6326 = vpop.xlane.xlu0 %6325
    %v6327 = vadd.f32 %v6195, %v6196
    %6328 = vadd.xlane.f32.xlu0 %v6327
    %v6329 = vpop.xlane.xlu0 %6328
    %v6330 = vadd.f32 %v6197, %v6198
    %6331 = vadd.xlane.f32.xlu0 %v6330
    %v6332 = vpop.xlane.xlu0 %6331
    %v6333 = vadd.f32 %v6199, %v6200
    %6334 = vadd.xlane.f32.xlu0 %v6333
    %v6335 = vpop.xlane.xlu0 %6334
    %v6336 = vadd.f32 %v6201, %v6202
    %6337 = vadd.xlane.f32.xlu0 %v6336
    %v6338 = vpop.xlane.xlu0 %6337
    %v6339 = vadd.f32 %v6203, %v6204
    %6340 = vadd.xlane.f32.xlu0 %v6339
    %v6341 = vpop.xlane.xlu0 %6340
    %v6342 = vadd.f32 %v6205, %v6206
    %6343 = vadd.xlane.f32.xlu0 %v6342
    %v6344 = vpop.xlane.xlu0 %6343
    %v6345 = vadd.f32 %v6207, %v6208
    %6346 = vadd.xlane.f32.xlu0 %v6345
    %v6347 = vpop.xlane.xlu0 %6346
    %v6348 = vadd.f32 %v6209, %v6210
    %6349 = vadd.xlane.f32.xlu0 %v6348
    %v6350 = vpop.xlane.xlu0 %6349
    %v6351 = vadd.f32 %v6211, %v6212
    %6352 = vadd.xlane.f32.xlu0 %v6351
    %v6353 = vpop.xlane.xlu0 %6352
    %v6354 = vadd.f32 %v6213, %v6214
    %6355 = vadd.xlane.f32.xlu0 %v6354
    %v6356 = vpop.xlane.xlu0 %6355
    %v6357 = vadd.f32 %v6215, %v6216
    %6358 = vadd.xlane.f32.xlu0 %v6357
    %v6359 = vpop.xlane.xlu0 %6358
    %v6360 = vadd.f32 %v6217, %v6218
    %6361 = vadd.xlane.f32.xlu0 %v6360
    %v6362 = vpop.xlane.xlu0 %6361
    %v6363 = vrcp.pop 256.0
    %v6364 = vmul.f32 %v6221, %v6363
    %v6365 = vmul.f32 %v6224, %v6363
    %v6366 = vmul.f32 %v6227, %v6363
    %v6367 = vmul.f32 %v6230, %v6363
    %v6368 = vmul.f32 %v6233, %v6363
    %v6369 = vmul.f32 %v6236, %v6363
    %v6370 = vmul.f32 %v6239, %v6363
    %v6371 = vmul.f32 %v6242, %v6363
    %v6372 = vmul.f32 %v6245, %v6363
    %v6373 = vmul.f32 %v6248, %v6363
    %v6374 = vmul.f32 %v6251, %v6363
    %v6375 = vmul.f32 %v6254, %v6363
    %v6376 = vmul.f32 %v6257, %v6363
    %v6377 = vmul.f32 %v6260, %v6363
    %v6378 = vmul.f32 %v6263, %v6363
    %v6379 = vmul.f32 %v6266, %v6363
    %v6380 = vmul.f32 %v6269, %v6363
    %v6381 = vmul.f32 %v6272, %v6363
    %v6382 = vmul.f32 %v6275, %v6363
    %v6383 = vmul.f32 %v6278, %v6363
    %v6384 = vmul.f32 %v6281, %v6363
    %v6385 = vmul.f32 %v6284, %v6363
    %v6386 = vmul.f32 %v6287, %v6363
    %v6387 = vmul.f32 %v6290, %v6363
    %v6388 = vmul.f32 %v6293, %v6363
    %v6389 = vmul.f32 %v6296, %v6363
    %v6390 = vmul.f32 %v6299, %v6363
    %v6391 = vmul.f32 %v6302, %v6363
    %v6392 = vmul.f32 %v6305, %v6363
    %v6393 = vmul.f32 %v6308, %v6363
    %v6394 = vmul.f32 %v6311, %v6363
    %v6395 = vmul.f32 %v6314, %v6363
    %v6396 = vmul.f32 %v6317, %v6363
    %v6397 = vmul.f32 %v6320, %v6363
    %v6398 = vmul.f32 %v6323, %v6363
    %v6399 = vmul.f32 %v6326, %v6363
    %v6400 = vmul.f32 %v6329, %v6363
    %v6401 = vmul.f32 %v6332, %v6363
    %v6402 = vmul.f32 %v6335, %v6363
    %v6403 = vmul.f32 %v6338, %v6363
    %v6404 = vmul.f32 %v6341, %v6363
    %v6405 = vmul.f32 %v6344, %v6363
    %v6406 = vmul.f32 %v6347, %v6363
    %v6407 = vmul.f32 %v6350, %v6363
    %v6408 = vmul.f32 %v6353, %v6363
    %v6409 = vmul.f32 %v6356, %v6363
    %v6410 = vmul.f32 %v6359, %v6363
    %v6411 = vmul.f32 %v6362, %v6363
    %v6412 = vmul.f32 %v6123, %v6123
    %v6413 = vmul.f32 %v6124, %v6124
    %v6414 = vmul.f32 %v6125, %v6125
    %v6415 = vmul.f32 %v6126, %v6126
    %v6416 = vmul.f32 %v6127, %v6127
    %v6417 = vmul.f32 %v6128, %v6128
    %v6418 = vmul.f32 %v6129, %v6129
    %v6419 = vmul.f32 %v6130, %v6130
    %v6420 = vmul.f32 %v6131, %v6131
    %v6421 = vmul.f32 %v6132, %v6132
    %v6422 = vmul.f32 %v6133, %v6133
    %v6423 = vmul.f32 %v6134, %v6134
    %v6424 = vmul.f32 %v6135, %v6135
    %v6425 = vmul.f32 %v6136, %v6136
    %v6426 = vmul.f32 %v6137, %v6137
    %v6427 = vmul.f32 %v6138, %v6138
    %v6428 = vmul.f32 %v6139, %v6139
    %v6429 = vmul.f32 %v6140, %v6140
    %v6430 = vmul.f32 %v6141, %v6141
    %v6431 = vmul.f32 %v6142, %v6142
    %v6432 = vmul.f32 %v6143, %v6143
    %v6433 = vmul.f32 %v6144, %v6144
    %v6434 = vmul.f32 %v6145, %v6145
    %v6435 = vmul.f32 %v6146, %v6146
    %v6436 = vmul.f32 %v6147, %v6147
    %v6437 = vmul.f32 %v6148, %v6148
    %v6438 = vmul.f32 %v6149, %v6149
    %v6439 = vmul.f32 %v6150, %v6150
    %v6440 = vmul.f32 %v6151, %v6151
    %v6441 = vmul.f32 %v6152, %v6152
    %v6442 = vmul.f32 %v6153, %v6153
    %v6443 = vmul.f32 %v6154, %v6154
    %v6444 = vmul.f32 %v6155, %v6155
    %v6445 = vmul.f32 %v6156, %v6156
    %v6446 = vmul.f32 %v6157, %v6157
    %v6447 = vmul.f32 %v6158, %v6158
    %v6448 = vmul.f32 %v6159, %v6159
    %v6449 = vmul.f32 %v6160, %v6160
    %v6450 = vmul.f32 %v6161, %v6161
    %v6451 = vmul.f32 %v6162, %v6162
    %v6452 = vmul.f32 %v6163, %v6163
    %v6453 = vmul.f32 %v6164, %v6164
    %v6454 = vmul.f32 %v6165, %v6165
    %v6455 = vmul.f32 %v6166, %v6166
    %v6456 = vmul.f32 %v6167, %v6167
    %v6457 = vmul.f32 %v6168, %v6168
    %v6458 = vmul.f32 %v6169, %v6169
    %v6459 = vmul.f32 %v6170, %v6170
    %v6460 = vmul.f32 %v6171, %v6171
    %v6461 = vmul.f32 %v6172, %v6172
    %v6462 = vmul.f32 %v6173, %v6173
    %v6463 = vmul.f32 %v6174, %v6174
    %v6464 = vmul.f32 %v6175, %v6175
    %v6465 = vmul.f32 %v6176, %v6176
    %v6466 = vmul.f32 %v6177, %v6177
    %v6467 = vmul.f32 %v6178, %v6178
    %v6468 = vmul.f32 %v6179, %v6179
    %v6469 = vmul.f32 %v6180, %v6180
    %v6470 = vmul.f32 %v6181, %v6181
    %v6471 = vmul.f32 %v6182, %v6182
    %v6472 = vmul.f32 %v6183, %v6183
    %v6473 = vmul.f32 %v6184, %v6184
    %v6474 = vmul.f32 %v6185, %v6185
    %v6475 = vmul.f32 %v6186, %v6186
    %v6476 = vmul.f32 %v6187, %v6187
    %v6477 = vmul.f32 %v6188, %v6188
    %v6478 = vmul.f32 %v6189, %v6189
    %v6479 = vmul.f32 %v6190, %v6190
    %v6480 = vmul.f32 %v6191, %v6191
    %v6481 = vmul.f32 %v6192, %v6192
    %v6482 = vmul.f32 %v6193, %v6193
    %v6483 = vmul.f32 %v6194, %v6194
    %v6484 = vmul.f32 %v6195, %v6195
    %v6485 = vmul.f32 %v6196, %v6196
    %v6486 = vmul.f32 %v6197, %v6197
    %v6487 = vmul.f32 %v6198, %v6198
    %v6488 = vmul.f32 %v6199, %v6199
    %v6489 = vmul.f32 %v6200, %v6200
    %v6490 = vmul.f32 %v6201, %v6201
    %v6491 = vmul.f32 %v6202, %v6202
    %v6492 = vmul.f32 %v6203, %v6203
    %v6493 = vmul.f32 %v6204, %v6204
    %v6494 = vmul.f32 %v6205, %v6205
    %v6495 = vmul.f32 %v6206, %v6206
    %v6496 = vmul.f32 %v6207, %v6207
    %v6497 = vmul.f32 %v6208, %v6208
    %v6498 = vmul.f32 %v6209, %v6209
    %v6499 = vmul.f32 %v6210, %v6210
    %v6500 = vmul.f32 %v6211, %v6211
    %v6501 = vmul.f32 %v6212, %v6212
    %v6502 = vmul.f32 %v6213, %v6213
    %v6503 = vmul.f32 %v6214, %v6214
    %v6504 = vmul.f32 %v6215, %v6215
    %v6505 = vmul.f32 %v6216, %v6216
    %v6506 = vmul.f32 %v6217, %v6217
    %v6507 = vmul.f32 %v6218, %v6218
    %v6508 = vadd.f32 %v6412, %v6413
    %6509 = vadd.xlane.f32.xlu0 %v6508
    %v6510 = vpop.xlane.xlu0 %6509
    %v6511 = vadd.f32 %v6414, %v6415
    %6512 = vadd.xlane.f32.xlu0 %v6511
    %v6513 = vpop.xlane.xlu0 %6512
    %v6514 = vadd.f32 %v6416, %v6417
    %6515 = vadd.xlane.f32.xlu0 %v6514
    %v6516 = vpop.xlane.xlu0 %6515
    %v6517 = vadd.f32 %v6418, %v6419
    %6518 = vadd.xlane.f32.xlu0 %v6517
    %v6519 = vpop.xlane.xlu0 %6518
    %v6520 = vadd.f32 %v6420, %v6421
    %6521 = vadd.xlane.f32.xlu0 %v6520
    %v6522 = vpop.xlane.xlu0 %6521
    %v6523 = vadd.f32 %v6422, %v6423
    %6524 = vadd.xlane.f32.xlu0 %v6523
    %v6525 = vpop.xlane.xlu0 %6524
    %v6526 = vadd.f32 %v6424, %v6425
    %6527 = vadd.xlane.f32.xlu0 %v6526
    %v6528 = vpop.xlane.xlu0 %6527
    %v6529 = vadd.f32 %v6426, %v6427
    %6530 = vadd.xlane.f32.xlu0 %v6529
    %v6531 = vpop.xlane.xlu0 %6530
    %v6532 = vadd.f32 %v6428, %v6429
    %6533 = vadd.xlane.f32.xlu0 %v6532
    %v6534 = vpop.xlane.xlu0 %6533
    %v6535 = vadd.f32 %v6430, %v6431
    %6536 = vadd.xlane.f32.xlu0 %v6535
    %v6537 = vpop.xlane.xlu0 %6536
    %v6538 = vadd.f32 %v6432, %v6433
    %6539 = vadd.xlane.f32.xlu0 %v6538
    %v6540 = vpop.xlane.xlu0 %6539
    %v6541 = vadd.f32 %v6434, %v6435
    %6542 = vadd.xlane.f32.xlu0 %v6541
    %v6543 = vpop.xlane.xlu0 %6542
    %v6544 = vadd.f32 %v6436, %v6437
    %6545 = vadd.xlane.f32.xlu0 %v6544
    %v6546 = vpop.xlane.xlu0 %6545
    %v6547 = vadd.f32 %v6438, %v6439
    %6548 = vadd.xlane.f32.xlu0 %v6547
    %v6549 = vpop.xlane.xlu0 %6548
    %v6550 = vadd.f32 %v6440, %v6441
    %6551 = vadd.xlane.f32.xlu0 %v6550
    %v6552 = vpop.xlane.xlu0 %6551
    %v6553 = vadd.f32 %v6442, %v6443
    %6554 = vadd.xlane.f32.xlu0 %v6553
    %v6555 = vpop.xlane.xlu0 %6554
    %v6556 = vadd.f32 %v6444, %v6445
    %6557 = vadd.xlane.f32.xlu0 %v6556
    %v6558 = vpop.xlane.xlu0 %6557
    %v6559 = vadd.f32 %v6446, %v6447
    %6560 = vadd.xlane.f32.xlu0 %v6559
    %v6561 = vpop.xlane.xlu0 %6560
    %v6562 = vadd.f32 %v6448, %v6449
    %6563 = vadd.xlane.f32.xlu0 %v6562
    %v6564 = vpop.xlane.xlu0 %6563
    %v6565 = vadd.f32 %v6450, %v6451
    %6566 = vadd.xlane.f32.xlu0 %v6565
    %v6567 = vpop.xlane.xlu0 %6566
    %v6568 = vadd.f32 %v6452, %v6453
    %6569 = vadd.xlane.f32.xlu0 %v6568
    %v6570 = vpop.xlane.xlu0 %6569
    %v6571 = vadd.f32 %v6454, %v6455
    %6572 = vadd.xlane.f32.xlu0 %v6571
    %v6573 = vpop.xlane.xlu0 %6572
    %v6574 = vadd.f32 %v6456, %v6457
    %6575 = vadd.xlane.f32.xlu0 %v6574
    %v6576 = vpop.xlane.xlu0 %6575
    %v6577 = vadd.f32 %v6458, %v6459
    %6578 = vadd.xlane.f32.xlu0 %v6577
    %v6579 = vpop.xlane.xlu0 %6578
    %v6580 = vadd.f32 %v6460, %v6461
    %6581 = vadd.xlane.f32.xlu0 %v6580
    %v6582 = vpop.xlane.xlu0 %6581
    %v6583 = vadd.f32 %v6462, %v6463
    %6584 = vadd.xlane.f32.xlu0 %v6583
    %v6585 = vpop.xlane.xlu0 %6584
    %v6586 = vadd.f32 %v6464, %v6465
    %6587 = vadd.xlane.f32.xlu0 %v6586
    %v6588 = vpop.xlane.xlu0 %6587
    %v6589 = vadd.f32 %v6466, %v6467
    %6590 = vadd.xlane.f32.xlu0 %v6589
    %v6591 = vpop.xlane.xlu0 %6590
    %v6592 = vadd.f32 %v6468, %v6469
    %6593 = vadd.xlane.f32.xlu0 %v6592
    %v6594 = vpop.xlane.xlu0 %6593
    %v6595 = vadd.f32 %v6470, %v6471
    %6596 = vadd.xlane.f32.xlu0 %v6595
    %v6597 = vpop.xlane.xlu0 %6596
    %v6598 = vadd.f32 %v6472, %v6473
    %6599 = vadd.xlane.f32.xlu0 %v6598
    %v6600 = vpop.xlane.xlu0 %6599
    %v6601 = vadd.f32 %v6474, %v6475
    %6602 = vadd.xlane.f32.xlu0 %v6601
    %v6603 = vpop.xlane.xlu0 %6602
    %v6604 = vadd.f32 %v6476, %v6477
    %6605 = vadd.xlane.f32.xlu0 %v6604
    %v6606 = vpop.xlane.xlu0 %6605
    %v6607 = vadd.f32 %v6478, %v6479
    %6608 = vadd.xlane.f32.xlu0 %v6607
    %v6609 = vpop.xlane.xlu0 %6608
    %v6610 = vadd.f32 %v6480, %v6481
    %6611 = vadd.xlane.f32.xlu0 %v6610
    %v6612 = vpop.xlane.xlu0 %6611
    %v6613 = vadd.f32 %v6482, %v6483
    %6614 = vadd.xlane.f32.xlu0 %v6613
    %v6615 = vpop.xlane.xlu0 %6614
    %v6616 = vadd.f32 %v6484, %v6485
    %6617 = vadd.xlane.f32.xlu0 %v6616
    %v6618 = vpop.xlane.xlu0 %6617
    %v6619 = vadd.f32 %v6486, %v6487
    %6620 = vadd.xlane.f32.xlu0 %v6619
    %v6621 = vpop.xlane.xlu0 %6620
    %v6622 = vadd.f32 %v6488, %v6489
    %6623 = vadd.xlane.f32.xlu0 %v6622
    %v6624 = vpop.xlane.xlu0 %6623
    %v6625 = vadd.f32 %v6490, %v6491
    %6626 = vadd.xlane.f32.xlu0 %v6625
    %v6627 = vpop.xlane.xlu0 %6626
    %v6628 = vadd.f32 %v6492, %v6493
    %6629 = vadd.xlane.f32.xlu0 %v6628
    %v6630 = vpop.xlane.xlu0 %6629
    %v6631 = vadd.f32 %v6494, %v6495
    %6632 = vadd.xlane.f32.xlu0 %v6631
    %v6633 = vpop.xlane.xlu0 %6632
    %v6634 = vadd.f32 %v6496, %v6497
    %6635 = vadd.xlane.f32.xlu0 %v6634
    %v6636 = vpop.xlane.xlu0 %6635
    %v6637 = vadd.f32 %v6498, %v6499
    %6638 = vadd.xlane.f32.xlu0 %v6637
    %v6639 = vpop.xlane.xlu0 %6638
    %v6640 = vadd.f32 %v6500, %v6501
    %6641 = vadd.xlane.f32.xlu0 %v6640
    %v6642 = vpop.xlane.xlu0 %6641
    %v6643 = vadd.f32 %v6502, %v6503
    %6644 = vadd.xlane.f32.xlu0 %v6643
    %v6645 = vpop.xlane.xlu0 %6644
    %v6646 = vadd.f32 %v6504, %v6505
    %6647 = vadd.xlane.f32.xlu0 %v6646
    %v6648 = vpop.xlane.xlu0 %6647
    %v6649 = vadd.f32 %v6506, %v6507
    %6650 = vadd.xlane.f32.xlu0 %v6649
    %v6651 = vpop.xlane.xlu0 %6650
    %v6652 = vmul.f32 %v6510, %v6363
    %v6653 = vmul.f32 %v6513, %v6363
    %v6654 = vmul.f32 %v6516, %v6363
    %v6655 = vmul.f32 %v6519, %v6363
    %v6656 = vmul.f32 %v6522, %v6363
    %v6657 = vmul.f32 %v6525, %v6363
    %v6658 = vmul.f32 %v6528, %v6363
    %v6659 = vmul.f32 %v6531, %v6363
    %v6660 = vmul.f32 %v6534, %v6363
    %v6661 = vmul.f32 %v6537, %v6363
    %v6662 = vmul.f32 %v6540, %v6363
    %v6663 = vmul.f32 %v6543, %v6363
    %v6664 = vmul.f32 %v6546, %v6363
    %v6665 = vmul.f32 %v6549, %v6363
    %v6666 = vmul.f32 %v6552, %v6363
    %v6667 = vmul.f32 %v6555, %v6363
    %v6668 = vmul.f32 %v6558, %v6363
    %v6669 = vmul.f32 %v6561, %v6363
    %v6670 = vmul.f32 %v6564, %v6363
    %v6671 = vmul.f32 %v6567, %v6363
    %v6672 = vmul.f32 %v6570, %v6363
    %v6673 = vmul.f32 %v6573, %v6363
    %v6674 = vmul.f32 %v6576, %v6363
    %v6675 = vmul.f32 %v6579, %v6363
    %v6676 = vmul.f32 %v6582, %v6363
    %v6677 = vmul.f32 %v6585, %v6363
    %v6678 = vmul.f32 %v6588, %v6363
    %v6679 = vmul.f32 %v6591, %v6363
    %v6680 = vmul.f32 %v6594, %v6363
    %v6681 = vmul.f32 %v6597, %v6363
    %v6682 = vmul.f32 %v6600, %v6363
    %v6683 = vmul.f32 %v6603, %v6363
    %v6684 = vmul.f32 %v6606, %v6363
    %v6685 = vmul.f32 %v6609, %v6363
    %v6686 = vmul.f32 %v6612, %v6363
    %v6687 = vmul.f32 %v6615, %v6363
    %v6688 = vmul.f32 %v6618, %v6363
    %v6689 = vmul.f32 %v6621, %v6363
    %v6690 = vmul.f32 %v6624, %v6363
    %v6691 = vmul.f32 %v6627, %v6363
    %v6692 = vmul.f32 %v6630, %v6363
    %v6693 = vmul.f32 %v6633, %v6363
    %v6694 = vmul.f32 %v6636, %v6363
    %v6695 = vmul.f32 %v6639, %v6363
    %v6696 = vmul.f32 %v6642, %v6363
    %v6697 = vmul.f32 %v6645, %v6363
    %v6698 = vmul.f32 %v6648, %v6363
    %v6699 = vmul.f32 %v6651, %v6363
    %v6700 = vmul.f32 %v6364, %v6364
    %v6701 = vmul.f32 %v6365, %v6365
    %v6702 = vmul.f32 %v6366, %v6366
    %v6703 = vmul.f32 %v6367, %v6367
    %v6704 = vmul.f32 %v6368, %v6368
    %v6705 = vmul.f32 %v6369, %v6369
    %v6706 = vmul.f32 %v6370, %v6370
    %v6707 = vmul.f32 %v6371, %v6371
    %v6708 = vmul.f32 %v6372, %v6372
    %v6709 = vmul.f32 %v6373, %v6373
    %v6710 = vmul.f32 %v6374, %v6374
    %v6711 = vmul.f32 %v6375, %v6375
    %v6712 = vmul.f32 %v6376, %v6376
    %v6713 = vmul.f32 %v6377, %v6377
    %v6714 = vmul.f32 %v6378, %v6378
    %v6715 = vmul.f32 %v6379, %v6379
    %v6716 = vmul.f32 %v6380, %v6380
    %v6717 = vmul.f32 %v6381, %v6381
    %v6718 = vmul.f32 %v6382, %v6382
    %v6719 = vmul.f32 %v6383, %v6383
    %v6720 = vmul.f32 %v6384, %v6384
    %v6721 = vmul.f32 %v6385, %v6385
    %v6722 = vmul.f32 %v6386, %v6386
    %v6723 = vmul.f32 %v6387, %v6387
    %v6724 = vmul.f32 %v6388, %v6388
    %v6725 = vmul.f32 %v6389, %v6389
    %v6726 = vmul.f32 %v6390, %v6390
    %v6727 = vmul.f32 %v6391, %v6391
    %v6728 = vmul.f32 %v6392, %v6392
    %v6729 = vmul.f32 %v6393, %v6393
    %v6730 = vmul.f32 %v6394, %v6394
    %v6731 = vmul.f32 %v6395, %v6395
    %v6732 = vmul.f32 %v6396, %v6396
    %v6733 = vmul.f32 %v6397, %v6397
    %v6734 = vmul.f32 %v6398, %v6398
    %v6735 = vmul.f32 %v6399, %v6399
    %v6736 = vmul.f32 %v6400, %v6400
    %v6737 = vmul.f32 %v6401, %v6401
    %v6738 = vmul.f32 %v6402, %v6402
    %v6739 = vmul.f32 %v6403, %v6403
    %v6740 = vmul.f32 %v6404, %v6404
    %v6741 = vmul.f32 %v6405, %v6405
    %v6742 = vmul.f32 %v6406, %v6406
    %v6743 = vmul.f32 %v6407, %v6407
    %v6744 = vmul.f32 %v6408, %v6408
    %v6745 = vmul.f32 %v6409, %v6409
    %v6746 = vmul.f32 %v6410, %v6410
    %v6747 = vmul.f32 %v6411, %v6411
    %v6748 = vsub.f32 %v6652, %v6700
    %v6749 = vsub.f32 %v6653, %v6701
    %v6750 = vsub.f32 %v6654, %v6702
    %v6751 = vsub.f32 %v6655, %v6703
    %v6752 = vsub.f32 %v6656, %v6704
    %v6753 = vsub.f32 %v6657, %v6705
    %v6754 = vsub.f32 %v6658, %v6706
    %v6755 = vsub.f32 %v6659, %v6707
    %v6756 = vsub.f32 %v6660, %v6708
    %v6757 = vsub.f32 %v6661, %v6709
    %v6758 = vsub.f32 %v6662, %v6710
    %v6759 = vsub.f32 %v6663, %v6711
    %v6760 = vsub.f32 %v6664, %v6712
    %v6761 = vsub.f32 %v6665, %v6713
    %v6762 = vsub.f32 %v6666, %v6714
    %v6763 = vsub.f32 %v6667, %v6715
    %v6764 = vsub.f32 %v6668, %v6716
    %v6765 = vsub.f32 %v6669, %v6717
    %v6766 = vsub.f32 %v6670, %v6718
    %v6767 = vsub.f32 %v6671, %v6719
    %v6768 = vsub.f32 %v6672, %v6720
    %v6769 = vsub.f32 %v6673, %v6721
    %v6770 = vsub.f32 %v6674, %v6722
    %v6771 = vsub.f32 %v6675, %v6723
    %v6772 = vsub.f32 %v6676, %v6724
    %v6773 = vsub.f32 %v6677, %v6725
    %v6774 = vsub.f32 %v6678, %v6726
    %v6775 = vsub.f32 %v6679, %v6727
    %v6776 = vsub.f32 %v6680, %v6728
    %v6777 = vsub.f32 %v6681, %v6729
    %v6778 = vsub.f32 %v6682, %v6730
    %v6779 = vsub.f32 %v6683, %v6731
    %v6780 = vsub.f32 %v6684, %v6732
    %v6781 = vsub.f32 %v6685, %v6733
    %v6782 = vsub.f32 %v6686, %v6734
    %v6783 = vsub.f32 %v6687, %v6735
    %v6784 = vsub.f32 %v6688, %v6736
    %v6785 = vsub.f32 %v6689, %v6737
    %v6786 = vsub.f32 %v6690, %v6738
    %v6787 = vsub.f32 %v6691, %v6739
    %v6788 = vsub.f32 %v6692, %v6740
    %v6789 = vsub.f32 %v6693, %v6741
    %v6790 = vsub.f32 %v6694, %v6742
    %v6791 = vsub.f32 %v6695, %v6743
    %v6792 = vsub.f32 %v6696, %v6744
    %v6793 = vsub.f32 %v6697, %v6745
    %v6794 = vsub.f32 %v6698, %v6746
    %v6795 = vsub.f32 %v6699, %v6747
    %v6796 = vmax.f32 %v6748, 0.0
    %v6797 = vmax.f32 %v6749, 0.0
    %v6798 = vmax.f32 %v6750, 0.0
    %v6799 = vmax.f32 %v6751, 0.0
    %v6800 = vmax.f32 %v6752, 0.0
    %v6801 = vmax.f32 %v6753, 0.0
    %v6802 = vmax.f32 %v6754, 0.0
    %v6803 = vmax.f32 %v6755, 0.0
    %v6804 = vmax.f32 %v6756, 0.0
    %v6805 = vmax.f32 %v6757, 0.0
    %v6806 = vmax.f32 %v6758, 0.0
    %v6807 = vmax.f32 %v6759, 0.0
    %v6808 = vmax.f32 %v6760, 0.0
    %v6809 = vmax.f32 %v6761, 0.0
    %v6810 = vmax.f32 %v6762, 0.0
    %v6811 = vmax.f32 %v6763, 0.0
    %v6812 = vmax.f32 %v6764, 0.0
    %v6813 = vmax.f32 %v6765, 0.0
    %v6814 = vmax.f32 %v6766, 0.0
    %v6815 = vmax.f32 %v6767, 0.0
    %v6816 = vmax.f32 %v6768, 0.0
    %v6817 = vmax.f32 %v6769, 0.0
    %v6818 = vmax.f32 %v6770, 0.0
    %v6819 = vmax.f32 %v6771, 0.0
    %v6820 = vmax.f32 %v6772, 0.0
    %v6821 = vmax.f32 %v6773, 0.0
    %v6822 = vmax.f32 %v6774, 0.0
    %v6823 = vmax.f32 %v6775, 0.0
    %v6824 = vmax.f32 %v6776, 0.0
    %v6825 = vmax.f32 %v6777, 0.0
    %v6826 = vmax.f32 %v6778, 0.0
    %v6827 = vmax.f32 %v6779, 0.0
    %v6828 = vmax.f32 %v6780, 0.0
    %v6829 = vmax.f32 %v6781, 0.0
    %v6830 = vmax.f32 %v6782, 0.0
    %v6831 = vmax.f32 %v6783, 0.0
    %v6832 = vmax.f32 %v6784, 0.0
    %v6833 = vmax.f32 %v6785, 0.0
    %v6834 = vmax.f32 %v6786, 0.0
    %v6835 = vmax.f32 %v6787, 0.0
    %v6836 = vmax.f32 %v6788, 0.0
    %v6837 = vmax.f32 %v6789, 0.0
    %v6838 = vmax.f32 %v6790, 0.0
    %v6839 = vmax.f32 %v6791, 0.0
    %v6840 = vmax.f32 %v6792, 0.0
    %v6841 = vmax.f32 %v6793, 0.0
    %v6842 = vmax.f32 %v6794, 0.0
    %v6843 = vmax.f32 %v6795, 0.0
    %v6844 = vsub.f32 %v6123, %v6364
    %v6845 = vsub.f32 %v6124, %v6364
    %v6846 = vsub.f32 %v6125, %v6365
    %v6847 = vsub.f32 %v6126, %v6365
    %v6848 = vsub.f32 %v6127, %v6366
    %v6849 = vsub.f32 %v6128, %v6366
    %v6850 = vsub.f32 %v6129, %v6367
    %v6851 = vsub.f32 %v6130, %v6367
    %v6852 = vsub.f32 %v6131, %v6368
    %v6853 = vsub.f32 %v6132, %v6368
    %v6854 = vsub.f32 %v6133, %v6369
    %v6855 = vsub.f32 %v6134, %v6369
    %v6856 = vsub.f32 %v6135, %v6370
    %v6857 = vsub.f32 %v6136, %v6370
    %v6858 = vsub.f32 %v6137, %v6371
    %v6859 = vsub.f32 %v6138, %v6371
    %v6860 = vsub.f32 %v6139, %v6372
    %v6861 = vsub.f32 %v6140, %v6372
    %v6862 = vsub.f32 %v6141, %v6373
    %v6863 = vsub.f32 %v6142, %v6373
    %v6864 = vsub.f32 %v6143, %v6374
    %v6865 = vsub.f32 %v6144, %v6374
    %v6866 = vsub.f32 %v6145, %v6375
    %v6867 = vsub.f32 %v6146, %v6375
    %v6868 = vsub.f32 %v6147, %v6376
    %v6869 = vsub.f32 %v6148, %v6376
    %v6870 = vsub.f32 %v6149, %v6377
    %v6871 = vsub.f32 %v6150, %v6377
    %v6872 = vsub.f32 %v6151, %v6378
    %v6873 = vsub.f32 %v6152, %v6378
    %v6874 = vsub.f32 %v6153, %v6379
    %v6875 = vsub.f32 %v6154, %v6379
    %v6876 = vsub.f32 %v6155, %v6380
    %v6877 = vsub.f32 %v6156, %v6380
    %v6878 = vsub.f32 %v6157, %v6381
    %v6879 = vsub.f32 %v6158, %v6381
    %v6880 = vsub.f32 %v6159, %v6382
    %v6881 = vsub.f32 %v6160, %v6382
    %v6882 = vsub.f32 %v6161, %v6383
    %v6883 = vsub.f32 %v6162, %v6383
    %v6884 = vsub.f32 %v6163, %v6384
    %v6885 = vsub.f32 %v6164, %v6384
    %v6886 = vsub.f32 %v6165, %v6385
    %v6887 = vsub.f32 %v6166, %v6385
    %v6888 = vsub.f32 %v6167, %v6386
    %v6889 = vsub.f32 %v6168, %v6386
    %v6890 = vsub.f32 %v6169, %v6387
    %v6891 = vsub.f32 %v6170, %v6387
    %v6892 = vsub.f32 %v6171, %v6388
    %v6893 = vsub.f32 %v6172, %v6388
    %v6894 = vsub.f32 %v6173, %v6389
    %v6895 = vsub.f32 %v6174, %v6389
    %v6896 = vsub.f32 %v6175, %v6390
    %v6897 = vsub.f32 %v6176, %v6390
    %v6898 = vsub.f32 %v6177, %v6391
    %v6899 = vsub.f32 %v6178, %v6391
    %v6900 = vsub.f32 %v6179, %v6392
    %v6901 = vsub.f32 %v6180, %v6392
    %v6902 = vsub.f32 %v6181, %v6393
    %v6903 = vsub.f32 %v6182, %v6393
    %v6904 = vsub.f32 %v6183, %v6394
    %v6905 = vsub.f32 %v6184, %v6394
    %v6906 = vsub.f32 %v6185, %v6395
    %v6907 = vsub.f32 %v6186, %v6395
    %v6908 = vsub.f32 %v6187, %v6396
    %v6909 = vsub.f32 %v6188, %v6396
    %v6910 = vsub.f32 %v6189, %v6397
    %v6911 = vsub.f32 %v6190, %v6397
    %v6912 = vsub.f32 %v6191, %v6398
    %v6913 = vsub.f32 %v6192, %v6398
    %v6914 = vsub.f32 %v6193, %v6399
    %v6915 = vsub.f32 %v6194, %v6399
    %v6916 = vsub.f32 %v6195, %v6400
    %v6917 = vsub.f32 %v6196, %v6400
    %v6918 = vsub.f32 %v6197, %v6401
    %v6919 = vsub.f32 %v6198, %v6401
    %v6920 = vsub.f32 %v6199, %v6402
    %v6921 = vsub.f32 %v6200, %v6402
    %v6922 = vsub.f32 %v6201, %v6403
    %v6923 = vsub.f32 %v6202, %v6403
    %v6924 = vsub.f32 %v6203, %v6404
    %v6925 = vsub.f32 %v6204, %v6404
    %v6926 = vsub.f32 %v6205, %v6405
    %v6927 = vsub.f32 %v6206, %v6405
    %v6928 = vsub.f32 %v6207, %v6406
    %v6929 = vsub.f32 %v6208, %v6406
    %v6930 = vsub.f32 %v6209, %v6407
    %v6931 = vsub.f32 %v6210, %v6407
    %v6932 = vsub.f32 %v6211, %v6408
    %v6933 = vsub.f32 %v6212, %v6408
    %v6934 = vsub.f32 %v6213, %v6409
    %v6935 = vsub.f32 %v6214, %v6409
    %v6936 = vsub.f32 %v6215, %v6410
    %v6937 = vsub.f32 %v6216, %v6410
    %v6938 = vsub.f32 %v6217, %v6411
    %v6939 = vsub.f32 %v6218, %v6411
    %v6940 = vadd.f32 %v6796, 1e-12
    %v6941 = vadd.f32 %v6797, 1e-12
    %v6942 = vadd.f32 %v6798, 1e-12
    %v6943 = vadd.f32 %v6799, 1e-12
    %v6944 = vadd.f32 %v6800, 1e-12
    %v6945 = vadd.f32 %v6801, 1e-12
    %v6946 = vadd.f32 %v6802, 1e-12
    %v6947 = vadd.f32 %v6803, 1e-12
    %v6948 = vadd.f32 %v6804, 1e-12
    %v6949 = vadd.f32 %v6805, 1e-12
    %v6950 = vadd.f32 %v6806, 1e-12
    %v6951 = vadd.f32 %v6807, 1e-12
    %v6952 = vadd.f32 %v6808, 1e-12
    %v6953 = vadd.f32 %v6809, 1e-12
    %v6954 = vadd.f32 %v6810, 1e-12
    %v6955 = vadd.f32 %v6811, 1e-12
    %v6956 = vadd.f32 %v6812, 1e-12
    %v6957 = vadd.f32 %v6813, 1e-12
    %v6958 = vadd.f32 %v6814, 1e-12
    %v6959 = vadd.f32 %v6815, 1e-12
    %v6960 = vadd.f32 %v6816, 1e-12
    %v6961 = vadd.f32 %v6817, 1e-12
    %v6962 = vadd.f32 %v6818, 1e-12
    %v6963 = vadd.f32 %v6819, 1e-12
    %v6964 = vadd.f32 %v6820, 1e-12
    %v6965 = vadd.f32 %v6821, 1e-12
    %v6966 = vadd.f32 %v6822, 1e-12
    %v6967 = vadd.f32 %v6823, 1e-12
    %v6968 = vadd.f32 %v6824, 1e-12
    %v6969 = vadd.f32 %v6825, 1e-12
    %v6970 = vadd.f32 %v6826, 1e-12
    %v6971 = vadd.f32 %v6827, 1e-12
    %v6972 = vadd.f32 %v6828, 1e-12
    %v6973 = vadd.f32 %v6829, 1e-12
    %v6974 = vadd.f32 %v6830, 1e-12
    %v6975 = vadd.f32 %v6831, 1e-12
    %v6976 = vadd.f32 %v6832, 1e-12
    %v6977 = vadd.f32 %v6833, 1e-12
    %v6978 = vadd.f32 %v6834, 1e-12
    %v6979 = vadd.f32 %v6835, 1e-12
    %v6980 = vadd.f32 %v6836, 1e-12
    %v6981 = vadd.f32 %v6837, 1e-12
    %v6982 = vadd.f32 %v6838, 1e-12
    %v6983 = vadd.f32 %v6839, 1e-12
    %v6984 = vadd.f32 %v6840, 1e-12
    %v6985 = vadd.f32 %v6841, 1e-12
    %v6986 = vadd.f32 %v6842, 1e-12
    %v6987 = vadd.f32 %v6843, 1e-12
    %v6988 = vrsqrt.pop %v6940
    %v6989 = vrsqrt.pop %v6941
    %v6990 = vrsqrt.pop %v6942
    %v6991 = vrsqrt.pop %v6943
    %v6992 = vrsqrt.pop %v6944
    %v6993 = vrsqrt.pop %v6945
    %v6994 = vrsqrt.pop %v6946
    %v6995 = vrsqrt.pop %v6947
    %v6996 = vrsqrt.pop %v6948
    %v6997 = vrsqrt.pop %v6949
    %v6998 = vrsqrt.pop %v6950
    %v6999 = vrsqrt.pop %v6951
    %v7000 = vrsqrt.pop %v6952
    %v7001 = vrsqrt.pop %v6953
    %v7002 = vrsqrt.pop %v6954
    %v7003 = vrsqrt.pop %v6955
    %v7004 = vrsqrt.pop %v6956
    %v7005 = vrsqrt.pop %v6957
    %v7006 = vrsqrt.pop %v6958
    %v7007 = vrsqrt.pop %v6959
    %v7008 = vrsqrt.pop %v6960
    %v7009 = vrsqrt.pop %v6961
    %v7010 = vrsqrt.pop %v6962
    %v7011 = vrsqrt.pop %v6963
    %v7012 = vrsqrt.pop %v6964
    %v7013 = vrsqrt.pop %v6965
    %v7014 = vrsqrt.pop %v6966
    %v7015 = vrsqrt.pop %v6967
    %v7016 = vrsqrt.pop %v6968
    %v7017 = vrsqrt.pop %v6969
    %v7018 = vrsqrt.pop %v6970
    %v7019 = vrsqrt.pop %v6971
    %v7020 = vrsqrt.pop %v6972
    %v7021 = vrsqrt.pop %v6973
    %v7022 = vrsqrt.pop %v6974
    %v7023 = vrsqrt.pop %v6975
    %v7024 = vrsqrt.pop %v6976
    %v7025 = vrsqrt.pop %v6977
    %v7026 = vrsqrt.pop %v6978
    %v7027 = vrsqrt.pop %v6979
    %v7028 = vrsqrt.pop %v6980
    %v7029 = vrsqrt.pop %v6981
    %v7030 = vrsqrt.pop %v6982
    %v7031 = vrsqrt.pop %v6983
    %v7032 = vrsqrt.pop %v6984
    %v7033 = vrsqrt.pop %v6985
    %v7034 = vrsqrt.pop %v6986
    %v7035 = vrsqrt.pop %v6987
    %v7036 = vmul.f32 %v6844, %v6988
    %v7037 = vmul.f32 %v6845, %v6988
    %v7038 = vmul.f32 %v6846, %v6989
    %v7039 = vmul.f32 %v6847, %v6989
    %v7040 = vmul.f32 %v6848, %v6990
    %v7041 = vmul.f32 %v6849, %v6990
    %v7042 = vmul.f32 %v6850, %v6991
    %v7043 = vmul.f32 %v6851, %v6991
    %v7044 = vmul.f32 %v6852, %v6992
    %v7045 = vmul.f32 %v6853, %v6992
    %v7046 = vmul.f32 %v6854, %v6993
    %v7047 = vmul.f32 %v6855, %v6993
    %v7048 = vmul.f32 %v6856, %v6994
    %v7049 = vmul.f32 %v6857, %v6994
    %v7050 = vmul.f32 %v6858, %v6995
    %v7051 = vmul.f32 %v6859, %v6995
    %v7052 = vmul.f32 %v6860, %v6996
    %v7053 = vmul.f32 %v6861, %v6996
    %v7054 = vmul.f32 %v6862, %v6997
    %v7055 = vmul.f32 %v6863, %v6997
    %v7056 = vmul.f32 %v6864, %v6998
    %v7057 = vmul.f32 %v6865, %v6998
    %v7058 = vmul.f32 %v6866, %v6999
    %v7059 = vmul.f32 %v6867, %v6999
    %v7060 = vmul.f32 %v6868, %v7000
    %v7061 = vmul.f32 %v6869, %v7000
    %v7062 = vmul.f32 %v6870, %v7001
    %v7063 = vmul.f32 %v6871, %v7001
    %v7064 = vmul.f32 %v6872, %v7002
    %v7065 = vmul.f32 %v6873, %v7002
    %v7066 = vmul.f32 %v6874, %v7003
    %v7067 = vmul.f32 %v6875, %v7003
    %v7068 = vmul.f32 %v6876, %v7004
    %v7069 = vmul.f32 %v6877, %v7004
    %v7070 = vmul.f32 %v6878, %v7005
    %v7071 = vmul.f32 %v6879, %v7005
    %v7072 = vmul.f32 %v6880, %v7006
    %v7073 = vmul.f32 %v6881, %v7006
    %v7074 = vmul.f32 %v6882, %v7007
    %v7075 = vmul.f32 %v6883, %v7007
    %v7076 = vmul.f32 %v6884, %v7008
    %v7077 = vmul.f32 %v6885, %v7008
    %v7078 = vmul.f32 %v6886, %v7009
    %v7079 = vmul.f32 %v6887, %v7009
    %v7080 = vmul.f32 %v6888, %v7010
    %v7081 = vmul.f32 %v6889, %v7010
    %v7082 = vmul.f32 %v6890, %v7011
    %v7083 = vmul.f32 %v6891, %v7011
    %v7084 = vmul.f32 %v6892, %v7012
    %v7085 = vmul.f32 %v6893, %v7012
    %v7086 = vmul.f32 %v6894, %v7013
    %v7087 = vmul.f32 %v6895, %v7013
    %v7088 = vmul.f32 %v6896, %v7014
    %v7089 = vmul.f32 %v6897, %v7014
    %v7090 = vmul.f32 %v6898, %v7015
    %v7091 = vmul.f32 %v6899, %v7015
    %v7092 = vmul.f32 %v6900, %v7016
    %v7093 = vmul.f32 %v6901, %v7016
    %v7094 = vmul.f32 %v6902, %v7017
    %v7095 = vmul.f32 %v6903, %v7017
    %v7096 = vmul.f32 %v6904, %v7018
    %v7097 = vmul.f32 %v6905, %v7018
    %v7098 = vmul.f32 %v6906, %v7019
    %v7099 = vmul.f32 %v6907, %v7019
    %v7100 = vmul.f32 %v6908, %v7020
    %v7101 = vmul.f32 %v6909, %v7020
    %v7102 = vmul.f32 %v6910, %v7021
    %v7103 = vmul.f32 %v6911, %v7021
    %v7104 = vmul.f32 %v6912, %v7022
    %v7105 = vmul.f32 %v6913, %v7022
    %v7106 = vmul.f32 %v6914, %v7023
    %v7107 = vmul.f32 %v6915, %v7023
    %v7108 = vmul.f32 %v6916, %v7024
    %v7109 = vmul.f32 %v6917, %v7024
    %v7110 = vmul.f32 %v6918, %v7025
    %v7111 = vmul.f32 %v6919, %v7025
    %v7112 = vmul.f32 %v6920, %v7026
    %v7113 = vmul.f32 %v6921, %v7026
    %v7114 = vmul.f32 %v6922, %v7027
    %v7115 = vmul.f32 %v6923, %v7027
    %v7116 = vmul.f32 %v6924, %v7028
    %v7117 = vmul.f32 %v6925, %v7028
    %v7118 = vmul.f32 %v6926, %v7029
    %v7119 = vmul.f32 %v6927, %v7029
    %v7120 = vmul.f32 %v6928, %v7030
    %v7121 = vmul.f32 %v6929, %v7030
    %v7122 = vmul.f32 %v6930, %v7031
    %v7123 = vmul.f32 %v6931, %v7031
    %v7124 = vmul.f32 %v6932, %v7032
    %v7125 = vmul.f32 %v6933, %v7032
    %v7126 = vmul.f32 %v6934, %v7033
    %v7127 = vmul.f32 %v6935, %v7033
    %v7128 = vmul.f32 %v6936, %v7034
    %v7129 = vmul.f32 %v6937, %v7034
    %v7130 = vmul.f32 %v6938, %v7035
    %v7131 = vmul.f32 %v6939, %v7035
    %v7132 = vld [vmem:[#allocation10] sm:$0xff]
    %v7133 = vld [vmem:[#allocation10 + $0x8] sm:$0xff]
    %v7134 = vld [vmem:[#allocation10 + $0x10] sm:$0xff]
    %v7135 = vld [vmem:[#allocation10 + $0x18] sm:$0xff]
    %v7136 = vld [vmem:[#allocation10 + $0x20] sm:$0xff]
    %v7137 = vld [vmem:[#allocation10 + $0x28] sm:$0xff]
    %v7138 = vld [vmem:[#allocation10 + $0x30] sm:$0xff]
    %v7139 = vld [vmem:[#allocation10 + $0x38] sm:$0xff]
    %v7140 = vld [vmem:[#allocation10 + $0x40] sm:$0xff]
    %v7141 = vld [vmem:[#allocation10 + $0x48] sm:$0xff]
    %v7142 = vld [vmem:[#allocation10 + $0x50] sm:$0xff]
    %v7143 = vld [vmem:[#allocation10 + $0x58] sm:$0xff]
    %v7144 = vld [vmem:[#allocation10 + $0x60] sm:$0xff]
    %v7145 = vld [vmem:[#allocation10 + $0x68] sm:$0xff]
    %v7146 = vld [vmem:[#allocation10 + $0x70] sm:$0xff]
    %v7147 = vld [vmem:[#allocation10 + $0x78] sm:$0xff]
    %v7148 = vld [vmem:[#allocation10 + $0x80] sm:$0xff]
    %v7149 = vld [vmem:[#allocation10 + $0x88] sm:$0xff]
    %v7150 = vld [vmem:[#allocation10 + $0x90] sm:$0xff]
    %v7151 = vld [vmem:[#allocation10 + $0x98] sm:$0xff]
    %v7152 = vld [vmem:[#allocation10 + $0xa0] sm:$0xff]
    %v7153 = vld [vmem:[#allocation10 + $0xa8] sm:$0xff]
    %v7154 = vld [vmem:[#allocation10 + $0xb0] sm:$0xff]
    %v7155 = vld [vmem:[#allocation10 + $0xb8] sm:$0xff]
    %v7156 = vld [vmem:[#allocation10 + $0xc0] sm:$0xff]
    %v7157 = vld [vmem:[#allocation10 + $0xc8] sm:$0xff]
    %v7158 = vld [vmem:[#allocation10 + $0xd0] sm:$0xff]
    %v7159 = vld [vmem:[#allocation10 + $0xd8] sm:$0xff]
    %v7160 = vld [vmem:[#allocation10 + $0xe0] sm:$0xff]
    %v7161 = vld [vmem:[#allocation10 + $0xe8] sm:$0xff]
    %v7162 = vld [vmem:[#allocation10 + $0xf0] sm:$0xff]
    %v7163 = vld [vmem:[#allocation10 + $0xf8] sm:$0xff]
    %v7164 = vld [vmem:[#allocation10 + $0x100] sm:$0xff]
    %v7165 = vld [vmem:[#allocation10 + $0x108] sm:$0xff]
    %v7166 = vld [vmem:[#allocation10 + $0x110] sm:$0xff]
    %v7167 = vld [vmem:[#allocation10 + $0x118] sm:$0xff]
    %v7168 = vld [vmem:[#allocation10 + $0x120] sm:$0xff]
    %v7169 = vld [vmem:[#allocation10 + $0x128] sm:$0xff]
    %v7170 = vld [vmem:[#allocation10 + $0x130] sm:$0xff]
    %v7171 = vld [vmem:[#allocation10 + $0x138] sm:$0xff]
    %v7172 = vld [vmem:[#allocation10 + $0x140] sm:$0xff]
    %v7173 = vld [vmem:[#allocation10 + $0x148] sm:$0xff]
    %v7174 = vld [vmem:[#allocation10 + $0x150] sm:$0xff]
    %v7175 = vld [vmem:[#allocation10 + $0x158] sm:$0xff]
    %v7176 = vld [vmem:[#allocation10 + $0x160] sm:$0xff]
    %v7177 = vld [vmem:[#allocation10 + $0x168] sm:$0xff]
    %v7178 = vld [vmem:[#allocation10 + $0x170] sm:$0xff]
    %v7179 = vld [vmem:[#allocation10 + $0x178] sm:$0xff]
    %v7180 = vld [vmem:[#allocation10 + $0x180] sm:$0xff]
    %v7181 = vld [vmem:[#allocation10 + $0x188] sm:$0xff]
    %v7182 = vld [vmem:[#allocation10 + $0x190] sm:$0xff]
    %v7183 = vld [vmem:[#allocation10 + $0x198] sm:$0xff]
    %v7184 = vld [vmem:[#allocation10 + $0x1a0] sm:$0xff]
    %v7185 = vld [vmem:[#allocation10 + $0x1a8] sm:$0xff]
    %v7186 = vld [vmem:[#allocation10 + $0x1b0] sm:$0xff]
    %v7187 = vld [vmem:[#allocation10 + $0x1b8] sm:$0xff]
    %v7188 = vld [vmem:[#allocation10 + $0x1c0] sm:$0xff]
    %v7189 = vld [vmem:[#allocation10 + $0x1c8] sm:$0xff]
    %v7190 = vld [vmem:[#allocation10 + $0x1d0] sm:$0xff]
    %v7191 = vld [vmem:[#allocation10 + $0x1d8] sm:$0xff]
    %v7192 = vld [vmem:[#allocation10 + $0x1e0] sm:$0xff]
    %v7193 = vld [vmem:[#allocation10 + $0x1e8] sm:$0xff]
    %v7194 = vld [vmem:[#allocation10 + $0x1f0] sm:$0xff]
    %v7195 = vld [vmem:[#allocation10 + $0x1f8] sm:$0xff]
    %v7196 = vld [vmem:[%s6] sm:$0x3]
    %v7198 = vlaneseq
    %v7199 = vshrl.u32 %v7198, 7
    %v7200 = vsub.s32 0, %v7199
    %v7201 = vrot.slane %v7196, %v7200
    %v7202 = vlaneseq
    %v7203 = vshrl.u32 %v7202, 7
    %v7204 = vsub.s32 1, %v7203
    %v7205 = vrot.slane %v7196, %v7204
    %7208 = vmatprep.subr.mxu0 %v7133
    %7209 = vmatpush1.msra.mxu0 %v7132
    %7210 = vmatprep.subr.mxu0 %v7135
    %7211 = vmatpush1.msra.mxu0 %v7134
    %7212 = vmatprep.subr.mxu0 %v7137
    %7213 = vmatpush1.msra.mxu0 %v7136
    %7214 = vmatprep.subr.mxu0 %v7139
    %7215 = vmatpush1.msra.mxu0 %v7138
    %7216 = vmatprep.subr.mxu0 %v7141
    %7217 = vmatpush1.msra.mxu0 %v7140
    %7218 = vmatprep.subr.mxu0 %v7143
    %7219 = vmatpush1.msra.mxu0 %v7142
    %7220 = vmatprep.subr.mxu0 %v7145
    %7221 = vmatpush1.msra.mxu0 %v7144
    %7222 = vmatprep.subr.mxu0 %v7147
    %7223 = vmatpush1.msra.mxu0 %v7146
    %7224 = vmatprep.subr.mxu0 %v7149
    %7225 = vmatpush1.msra.mxu0 %v7148
    %7226 = vmatprep.subr.mxu0 %v7151
    %7227 = vmatpush1.msra.mxu0 %v7150
    %7228 = vmatprep.subr.mxu0 %v7153
    %7229 = vmatpush1.msra.mxu0 %v7152
    %7230 = vmatprep.subr.mxu0 %v7155
    %7231 = vmatpush1.msra.mxu0 %v7154
    %7232 = vmatprep.subr.mxu0 %v7157
    %7233 = vmatpush1.msra.mxu0 %v7156
    %7234 = vmatprep.subr.mxu0 %v7159
    %7235 = vmatpush1.msra.mxu0 %v7158
    %7236 = vmatprep.subr.mxu0 %v7161
    %7237 = vmatpush1.msra.mxu0 %v7160
    %7238 = vmatprep.subr.mxu0 %v7163
    %7239 = vmatpush1.msra.mxu0 %v7162
    %7240 = vmatprep.subr.mxu0 %v7165
    %7241 = vmatpush1.msra.mxu0 %v7164
    %7242 = vmatprep.subr.mxu0 %v7167
    %7243 = vmatpush1.msra.mxu0 %v7166
    %7244 = vmatprep.subr.mxu0 %v7169
    %7245 = vmatpush1.msra.mxu0 %v7168
    %7246 = vmatprep.subr.mxu0 %v7171
    %7247 = vmatpush1.msra.mxu0 %v7170
    %7248 = vmatprep.subr.mxu0 %v7173
    %7249 = vmatpush1.msra.mxu0 %v7172
    %7250 = vmatprep.subr.mxu0 %v7175
    %7251 = vmatpush1.msra.mxu0 %v7174
    %7252 = vmatprep.subr.mxu0 %v7177
    %7253 = vmatpush1.msra.mxu0 %v7176
    %7254 = vmatprep.subr.mxu0 %v7179
    %7255 = vmatpush1.msra.mxu0 %v7178
    %7256 = vmatprep.subr.mxu0 %v7181
    %7257 = vmatpush1.msra.mxu0 %v7180
    %7258 = vmatprep.subr.mxu0 %v7183
    %7259 = vmatpush1.msra.mxu0 %v7182
    %7260 = vmatprep.subr.mxu0 %v7185
    %7261 = vmatpush1.msra.mxu0 %v7184
    %7262 = vmatprep.subr.mxu0 %v7187
    %7263 = vmatpush1.msra.mxu0 %v7186
    %7264 = vmatprep.subr.mxu0 %v7189
    %7265 = vmatpush1.msra.mxu0 %v7188
    %7266 = vmatprep.subr.mxu0 %v7191
    %7267 = vmatpush1.msra.mxu0 %v7190
    %7268 = vmatprep.subr.mxu0 %v7193
    %7269 = vmatpush1.msra.mxu0 %v7192
    %7270 = vmatprep.subr.mxu0 %v7195
    %7271 = vmatpush1.msra.mxu0 %v7194
    %7272 = vmatprep.mubr.f32.mxu0 %v7037
    %7273 = vmatmul.mubr.f32.gmra.mrb[0].mxu0 %v7036
    %v7274 = vpop.f32.mrb[0].mxu0
    %v7275 = vadd.f32 %v7201, %v7274
    %v7276 = vpop.f32.mrb[0].mxu0
    %v7277 = vadd.f32 %v7205, %v7276
    %7278 = vmatprep.mubr.f32.mxu0 %v7039
    %7279 = vmatmul.mubr.f32.gmra.mrb[0].mxu0 %v7038
    %v7280 = vpop.f32.mrb[0].mxu0
    %v7281 = vadd.f32 %v7201, %v7280
    %v7282 = vpop.f32.mrb[0].mxu0
    %v7283 = vadd.f32 %v7205, %v7282
    %7284 = vmatprep.mubr.f32.mxu0 %v7041
    %7285 = vmatmul.mubr.f32.gmra.mrb[0].mxu0 %v7040
    %v7286 = vpop.f32.mrb[0].mxu0
    %v7287 = vadd.f32 %v7201, %v7286
    %v7288 = vpop.f32.mrb[0].mxu0
    %v7289 = vadd.f32 %v7205, %v7288
    %7290 = vmatprep.mubr.f32.mxu0 %v7043
    %7291 = vmatmul.mubr.f32.gmra.mrb[0].mxu0 %v7042
    %v7292 = vpop.f32.mrb[0].mxu0
    %v7293 = vadd.f32 %v7201, %v7292
    %v7294 = vpop.f32.mrb[0].mxu0
    %v7295 = vadd.f32 %v7205, %v7294
    %7296 = vmatprep.mubr.f32.mxu0 %v7045
    %7297 = vmatmul.mubr.f32.gmra.mrb[0].mxu0 %v7044
    %v7298 = vpop.f32.mrb[0].mxu0
    %v7299 = vadd.f32 %v7201, %v7298
    %v7300 = vpop.f32.mrb[0].mxu0
    %v7301 = vadd.f32 %v7205, %v7300
    %7302 = vmatprep.mubr.f32.mxu0 %v7047
    %7303 = vmatmul.mubr.f32.gmra.mrb[0].mxu0 %v7046
    %v7304 = vpop.f32.mrb[0].mxu0
    %v7305 = vadd.f32 %v7201, %v7304
    %v7306 = vpop.f32.mrb[0].mxu0
    %v7307 = vadd.f32 %v7205, %v7306
    %7308 = vmatprep.mubr.f32.mxu0 %v7049
    %7309 = vmatmul.mubr.f32.gmra.mrb[0].mxu0 %v7048
    %v7310 = vpop.f32.mrb[0].mxu0
    %v7311 = vadd.f32 %v7201, %v7310
    %v7312 = vpop.f32.mrb[0].mxu0
    %v7313 = vadd.f32 %v7205, %v7312
    %7314 = vmatprep.mubr.f32.mxu0 %v7051
    %7315 = vmatmul.mubr.f32.gmra.mrb[0].mxu0 %v7050
    %v7316 = vpop.f32.mrb[0].mxu0
    %v7317 = vadd.f32 %v7201, %v7316
    %v7318 = vpop.f32.mrb[0].mxu0
    %v7319 = vadd.f32 %v7205, %v7318
    %7320 = vmatprep.mubr.f32.mxu0 %v7053
    %7321 = vmatmul.mubr.f32.gmra.mrb[0].mxu0 %v7052
    %v7322 = vpop.f32.mrb[0].mxu0
    %v7323 = vadd.f32 %v7201, %v7322
    %v7324 = vpop.f32.mrb[0].mxu0
    %v7325 = vadd.f32 %v7205, %v7324
    %7326 = vmatprep.mubr.f32.mxu0 %v7055
    %7327 = vmatmul.mubr.f32.gmra.mrb[0].mxu0 %v7054
    %v7328 = vpop.f32.mrb[0].mxu0
    %v7329 = vadd.f32 %v7201, %v7328
    %v7330 = vpop.f32.mrb[0].mxu0
    %v7331 = vadd.f32 %v7205, %v7330
    %7332 = vmatprep.mubr.f32.mxu0 %v7057
    %7333 = vmatmul.mubr.f32.gmra.mrb[0].mxu0 %v7056
    %v7334 = vpop.f32.mrb[0].mxu0
    %v7335 = vadd.f32 %v7201, %v7334
    %v7336 = vpop.f32.mrb[0].mxu0
    %v7337 = vadd.f32 %v7205, %v7336
    %7338 = vmatprep.mubr.f32.mxu0 %v7059
    %7339 = vmatmul.mubr.f32.gmra.mrb[0].mxu0 %v7058
    %v7340 = vpop.f32.mrb[0].mxu0
    %v7341 = vadd.f32 %v7201, %v7340
    %v7342 = vpop.f32.mrb[0].mxu0
    %v7343 = vadd.f32 %v7205, %v7342
    %7344 = vmatprep.mubr.f32.mxu0 %v7061
    %7345 = vmatmul.mubr.f32.gmra.mrb[0].mxu0 %v7060
    %v7346 = vpop.f32.mrb[0].mxu0
    %v7347 = vadd.f32 %v7201, %v7346
    %v7348 = vpop.f32.mrb[0].mxu0
    %v7349 = vadd.f32 %v7205, %v7348
    %7350 = vmatprep.mubr.f32.mxu0 %v7063
    %7351 = vmatmul.mubr.f32.gmra.mrb[0].mxu0 %v7062
    %v7352 = vpop.f32.mrb[0].mxu0
    %v7353 = vadd.f32 %v7201, %v7352
    %v7354 = vpop.f32.mrb[0].mxu0
    %v7355 = vadd.f32 %v7205, %v7354
    %7356 = vmatprep.mubr.f32.mxu0 %v7065
    %7357 = vmatmul.mubr.f32.gmra.mrb[0].mxu0 %v7064
    %v7358 = vpop.f32.mrb[0].mxu0
    %v7359 = vadd.f32 %v7201, %v7358
    %v7360 = vpop.f32.mrb[0].mxu0
    %v7361 = vadd.f32 %v7205, %v7360
    %7362 = vmatprep.mubr.f32.mxu0 %v7067
    %7363 = vmatmul.mubr.f32.gmra.mrb[0].mxu0 %v7066
    %v7364 = vpop.f32.mrb[0].mxu0
    %v7365 = vadd.f32 %v7201, %v7364
    %v7366 = vpop.f32.mrb[0].mxu0
    %v7367 = vadd.f32 %v7205, %v7366
    %7368 = vmatprep.mubr.f32.mxu0 %v7069
    %7369 = vmatmul.mubr.f32.gmra.mrb[0].mxu0 %v7068
    %v7370 = vpop.f32.mrb[0].mxu0
    %v7371 = vadd.f32 %v7201, %v7370
    %v7372 = vpop.f32.mrb[0].mxu0
    %v7373 = vadd.f32 %v7205, %v7372
    %7374 = vmatprep.mubr.f32.mxu0 %v7071
    %7375 = vmatmul.mubr.f32.gmra.mrb[0].mxu0 %v7070
    %v7376 = vpop.f32.mrb[0].mxu0
    %v7377 = vadd.f32 %v7201, %v7376
    %v7378 = vpop.f32.mrb[0].mxu0
    %v7379 = vadd.f32 %v7205, %v7378
    %7380 = vmatprep.mubr.f32.mxu0 %v7073
    %7381 = vmatmul.mubr.f32.gmra.mrb[0].mxu0 %v7072
    %v7382 = vpop.f32.mrb[0].mxu0
    %v7383 = vadd.f32 %v7201, %v7382
    %v7384 = vpop.f32.mrb[0].mxu0
    %v7385 = vadd.f32 %v7205, %v7384
    %7386 = vmatprep.mubr.f32.mxu0 %v7075
    %7387 = vmatmul.mubr.f32.gmra.mrb[0].mxu0 %v7074
    %v7388 = vpop.f32.mrb[0].mxu0
    %v7389 = vadd.f32 %v7201, %v7388
    %v7390 = vpop.f32.mrb[0].mxu0
    %v7391 = vadd.f32 %v7205, %v7390
    %7392 = vmatprep.mubr.f32.mxu0 %v7077
    %7393 = vmatmul.mubr.f32.gmra.mrb[0].mxu0 %v7076
    %v7394 = vpop.f32.mrb[0].mxu0
    %v7395 = vadd.f32 %v7201, %v7394
    %v7396 = vpop.f32.mrb[0].mxu0
    %v7397 = vadd.f32 %v7205, %v7396
    %7398 = vmatprep.mubr.f32.mxu0 %v7079
    %7399 = vmatmul.mubr.f32.gmra.mrb[0].mxu0 %v7078
    %v7400 = vpop.f32.mrb[0].mxu0
    %v7401 = vadd.f32 %v7201, %v7400
    %v7402 = vpop.f32.mrb[0].mxu0
    %v7403 = vadd.f32 %v7205, %v7402
    %7404 = vmatprep.mubr.f32.mxu0 %v7081
    %7405 = vmatmul.mubr.f32.gmra.mrb[0].mxu0 %v7080
    %v7406 = vpop.f32.mrb[0].mxu0
    %v7407 = vadd.f32 %v7201, %v7406
    %v7408 = vpop.f32.mrb[0].mxu0
    %v7409 = vadd.f32 %v7205, %v7408
    %7410 = vmatprep.mubr.f32.mxu0 %v7083
    %7411 = vmatmul.mubr.f32.gmra.mrb[0].mxu0 %v7082
    %v7412 = vpop.f32.mrb[0].mxu0
    %v7413 = vadd.f32 %v7201, %v7412
    %v7414 = vpop.f32.mrb[0].mxu0
    %v7415 = vadd.f32 %v7205, %v7414
    %7416 = vmatprep.mubr.f32.mxu0 %v7085
    %7417 = vmatmul.mubr.f32.gmra.mrb[0].mxu0 %v7084
    %v7418 = vpop.f32.mrb[0].mxu0
    %v7419 = vadd.f32 %v7201, %v7418
    %v7420 = vpop.f32.mrb[0].mxu0
    %v7421 = vadd.f32 %v7205, %v7420
    %7422 = vmatprep.mubr.f32.mxu0 %v7087
    %7423 = vmatmul.mubr.f32.gmra.mrb[0].mxu0 %v7086
    %v7424 = vpop.f32.mrb[0].mxu0
    %v7425 = vadd.f32 %v7201, %v7424
    %v7426 = vpop.f32.mrb[0].mxu0
    %v7427 = vadd.f32 %v7205, %v7426
    %7428 = vmatprep.mubr.f32.mxu0 %v7089
    %7429 = vmatmul.mubr.f32.gmra.mrb[0].mxu0 %v7088
    %v7430 = vpop.f32.mrb[0].mxu0
    %v7431 = vadd.f32 %v7201, %v7430
    %v7432 = vpop.f32.mrb[0].mxu0
    %v7433 = vadd.f32 %v7205, %v7432
    %7434 = vmatprep.mubr.f32.mxu0 %v7091
    %7435 = vmatmul.mubr.f32.gmra.mrb[0].mxu0 %v7090
    %v7436 = vpop.f32.mrb[0].mxu0
    %v7437 = vadd.f32 %v7201, %v7436
    %v7438 = vpop.f32.mrb[0].mxu0
    %v7439 = vadd.f32 %v7205, %v7438
    %7440 = vmatprep.mubr.f32.mxu0 %v7093
    %7441 = vmatmul.mubr.f32.gmra.mrb[0].mxu0 %v7092
    %v7442 = vpop.f32.mrb[0].mxu0
    %v7443 = vadd.f32 %v7201, %v7442
    %v7444 = vpop.f32.mrb[0].mxu0
    %v7445 = vadd.f32 %v7205, %v7444
    %7446 = vmatprep.mubr.f32.mxu0 %v7095
    %7447 = vmatmul.mubr.f32.gmra.mrb[0].mxu0 %v7094
    %v7448 = vpop.f32.mrb[0].mxu0
    %v7449 = vadd.f32 %v7201, %v7448
    %v7450 = vpop.f32.mrb[0].mxu0
    %v7451 = vadd.f32 %v7205, %v7450
    %7452 = vmatprep.mubr.f32.mxu0 %v7097
    %7453 = vmatmul.mubr.f32.gmra.mrb[0].mxu0 %v7096
    %v7454 = vpop.f32.mrb[0].mxu0
    %v7455 = vadd.f32 %v7201, %v7454
    %v7456 = vpop.f32.mrb[0].mxu0
    %v7457 = vadd.f32 %v7205, %v7456
    %7458 = vmatprep.mubr.f32.mxu0 %v7099
    %7459 = vmatmul.mubr.f32.gmra.mrb[0].mxu0 %v7098
    %v7460 = vpop.f32.mrb[0].mxu0
    %v7461 = vadd.f32 %v7201, %v7460
    %v7462 = vpop.f32.mrb[0].mxu0
    %v7463 = vadd.f32 %v7205, %v7462
    %7464 = vmatprep.mubr.f32.mxu0 %v7101
    %7465 = vmatmul.mubr.f32.gmra.mrb[0].mxu0 %v7100
    %v7466 = vpop.f32.mrb[0].mxu0
    %v7467 = vadd.f32 %v7201, %v7466
    %v7468 = vpop.f32.mrb[0].mxu0
    %v7469 = vadd.f32 %v7205, %v7468
    %7470 = vmatprep.mubr.f32.mxu0 %v7103
    %7471 = vmatmul.mubr.f32.gmra.mrb[0].mxu0 %v7102
    %v7472 = vpop.f32.mrb[0].mxu0
    %v7473 = vadd.f32 %v7201, %v7472
    %v7474 = vpop.f32.mrb[0].mxu0
    %v7475 = vadd.f32 %v7205, %v7474
    %7476 = vmatprep.mubr.f32.mxu0 %v7105
    %7477 = vmatmul.mubr.f32.gmra.mrb[0].mxu0 %v7104
    %v7478 = vpop.f32.mrb[0].mxu0
    %v7479 = vadd.f32 %v7201, %v7478
    %v7480 = vpop.f32.mrb[0].mxu0
    %v7481 = vadd.f32 %v7205, %v7480
    %7482 = vmatprep.mubr.f32.mxu0 %v7107
    %7483 = vmatmul.mubr.f32.gmra.mrb[0].mxu0 %v7106
    %v7484 = vpop.f32.mrb[0].mxu0
    %v7485 = vadd.f32 %v7201, %v7484
    %v7486 = vpop.f32.mrb[0].mxu0
    %v7487 = vadd.f32 %v7205, %v7486
    %7488 = vmatprep.mubr.f32.mxu0 %v7109
    %7489 = vmatmul.mubr.f32.gmra.mrb[0].mxu0 %v7108
    %v7490 = vpop.f32.mrb[0].mxu0
    %v7491 = vadd.f32 %v7201, %v7490
    %v7492 = vpop.f32.mrb[0].mxu0
    %v7493 = vadd.f32 %v7205, %v7492
    %7494 = vmatprep.mubr.f32.mxu0 %v7111
    %7495 = vmatmul.mubr.f32.gmra.mrb[0].mxu0 %v7110
    %v7496 = vpop.f32.mrb[0].mxu0
    %v7497 = vadd.f32 %v7201, %v7496
    %v7498 = vpop.f32.mrb[0].mxu0
    %v7499 = vadd.f32 %v7205, %v7498
    %7500 = vmatprep.mubr.f32.mxu0 %v7113
    %7501 = vmatmul.mubr.f32.gmra.mrb[0].mxu0 %v7112
    %v7502 = vpop.f32.mrb[0].mxu0
    %v7503 = vadd.f32 %v7201, %v7502
    %v7504 = vpop.f32.mrb[0].mxu0
    %v7505 = vadd.f32 %v7205, %v7504
    %7506 = vmatprep.mubr.f32.mxu0 %v7115
    %7507 = vmatmul.mubr.f32.gmra.mrb[0].mxu0 %v7114
    %v7508 = vpop.f32.mrb[0].mxu0
    %v7509 = vadd.f32 %v7201, %v7508
    %v7510 = vpop.f32.mrb[0].mxu0
    %v7511 = vadd.f32 %v7205, %v7510
    %7512 = vmatprep.mubr.f32.mxu0 %v7117
    %7513 = vmatmul.mubr.f32.gmra.mrb[0].mxu0 %v7116
    %v7514 = vpop.f32.mrb[0].mxu0
    %v7515 = vadd.f32 %v7201, %v7514
    %v7516 = vpop.f32.mrb[0].mxu0
    %v7517 = vadd.f32 %v7205, %v7516
    %7518 = vmatprep.mubr.f32.mxu0 %v7119
    %7519 = vmatmul.mubr.f32.gmra.mrb[0].mxu0 %v7118
    %v7520 = vpop.f32.mrb[0].mxu0
    %v7521 = vadd.f32 %v7201, %v7520
    %v7522 = vpop.f32.mrb[0].mxu0
    %v7523 = vadd.f32 %v7205, %v7522
    %7524 = vmatprep.mubr.f32.mxu0 %v7121
    %7525 = vmatmul.mubr.f32.gmra.mrb[0].mxu0 %v7120
    %v7526 = vpop.f32.mrb[0].mxu0
    %v7527 = vadd.f32 %v7201, %v7526
    %v7528 = vpop.f32.mrb[0].mxu0
    %v7529 = vadd.f32 %v7205, %v7528
    %7530 = vmatprep.mubr.f32.mxu0 %v7123
    %7531 = vmatmul.mubr.f32.gmra.mrb[0].mxu0 %v7122
    %v7532 = vpop.f32.mrb[0].mxu0
    %v7533 = vadd.f32 %v7201, %v7532
    %v7534 = vpop.f32.mrb[0].mxu0
    %v7535 = vadd.f32 %v7205, %v7534
    %7536 = vmatprep.mubr.f32.mxu0 %v7125
    %7537 = vmatmul.mubr.f32.gmra.mrb[0].mxu0 %v7124
    %v7538 = vpop.f32.mrb[0].mxu0
    %v7539 = vadd.f32 %v7201, %v7538
    %v7540 = vpop.f32.mrb[0].mxu0
    %v7541 = vadd.f32 %v7205, %v7540
    %7542 = vmatprep.mubr.f32.mxu0 %v7127
    %7543 = vmatmul.mubr.f32.gmra.mrb[0].mxu0 %v7126
    %v7544 = vpop.f32.mrb[0].mxu0
    %v7545 = vadd.f32 %v7201, %v7544
    %v7546 = vpop.f32.mrb[0].mxu0
    %v7547 = vadd.f32 %v7205, %v7546
    %7548 = vmatprep.mubr.f32.mxu0 %v7129
    %7549 = vmatmul.mubr.f32.gmra.mrb[0].mxu0 %v7128
    %v7550 = vpop.f32.mrb[0].mxu0
    %v7551 = vadd.f32 %v7201, %v7550
    %v7552 = vpop.f32.mrb[0].mxu0
    %v7553 = vadd.f32 %v7205, %v7552
    %7554 = vmatprep.mubr.f32.mxu0 %v7131
    %7555 = vmatmul.mubr.f32.gmra.mrb[0].mxu0 %v7130
    %v7556 = vpop.f32.mrb[0].mxu0
    %v7557 = vadd.f32 %v7201, %v7556
    %v7558 = vpop.f32.mrb[0].mxu0
    %v7559 = vadd.f32 %v7205, %v7558
    %7560 = vdwg.mxu0
    %7561 = vst [vmem:[#allocation11] sm:$0xff] %v7275
    %7562 = vst [vmem:[#allocation11 + $0x8] sm:$0xff] %v7277
    %7563 = vst [vmem:[#allocation11 + $0x10] sm:$0xff] %v7281
    %7564 = vst [vmem:[#allocation11 + $0x18] sm:$0xff] %v7283
    %7565 = vst [vmem:[#allocation11 + $0x20] sm:$0xff] %v7287
    %7566 = vst [vmem:[#allocation11 + $0x28] sm:$0xff] %v7289
    %7567 = vst [vmem:[#allocation11 + $0x30] sm:$0xff] %v7293
    %7568 = vst [vmem:[#allocation11 + $0x38] sm:$0xff] %v7295
    %7569 = vst [vmem:[#allocation11 + $0x40] sm:$0xff] %v7299
    %7570 = vst [vmem:[#allocation11 + $0x48] sm:$0xff] %v7301
    %7571 = vst [vmem:[#allocation11 + $0x50] sm:$0xff] %v7305
    %7572 = vst [vmem:[#allocation11 + $0x58] sm:$0xff] %v7307
    %7573 = vst [vmem:[#allocation11 + $0x60] sm:$0xff] %v7311
    %7574 = vst [vmem:[#allocation11 + $0x68] sm:$0xff] %v7313
    %7575 = vst [vmem:[#allocation11 + $0x70] sm:$0xff] %v7317
    %7576 = vst [vmem:[#allocation11 + $0x78] sm:$0xff] %v7319
    %7577 = vst [vmem:[#allocation11 + $0x80] sm:$0xff] %v7323
    %7578 = vst [vmem:[#allocation11 + $0x88] sm:$0xff] %v7325
    %7579 = vst [vmem:[#allocation11 + $0x90] sm:$0xff] %v7329
    %7580 = vst [vmem:[#allocation11 + $0x98] sm:$0xff] %v7331
    %7581 = vst [vmem:[#allocation11 + $0xa0] sm:$0xff] %v7335
    %7582 = vst [vmem:[#allocation11 + $0xa8] sm:$0xff] %v7337
    %7583 = vst [vmem:[#allocation11 + $0xb0] sm:$0xff] %v7341
    %7584 = vst [vmem:[#allocation11 + $0xb8] sm:$0xff] %v7343
    %7585 = vst [vmem:[#allocation11 + $0xc0] sm:$0xff] %v7347
    %7586 = vst [vmem:[#allocation11 + $0xc8] sm:$0xff] %v7349
    %7587 = vst [vmem:[#allocation11 + $0xd0] sm:$0xff] %v7353
    %7588 = vst [vmem:[#allocation11 + $0xd8] sm:$0xff] %v7355
    %7589 = vst [vmem:[#allocation11 + $0xe0] sm:$0xff] %v7359
    %7590 = vst [vmem:[#allocation11 + $0xe8] sm:$0xff] %v7361
    %7591 = vst [vmem:[#allocation11 + $0xf0] sm:$0xff] %v7365
    %7592 = vst [vmem:[#allocation11 + $0xf8] sm:$0xff] %v7367
    %7593 = vst [vmem:[#allocation11 + $0x100] sm:$0xff] %v7371
    %7594 = vst [vmem:[#allocation11 + $0x108] sm:$0xff] %v7373
    %7595 = vst [vmem:[#allocation11 + $0x110] sm:$0xff] %v7377
    %7596 = vst [vmem:[#allocation11 + $0x118] sm:$0xff] %v7379
    %7597 = vst [vmem:[#allocation11 + $0x120] sm:$0xff] %v7383
    %7598 = vst [vmem:[#allocation11 + $0x128] sm:$0xff] %v7385
    %7599 = vst [vmem:[#allocation11 + $0x130] sm:$0xff] %v7389
    %7600 = vst [vmem:[#allocation11 + $0x138] sm:$0xff] %v7391
    %7601 = vst [vmem:[#allocation11 + $0x140] sm:$0xff] %v7395
    %7602 = vst [vmem:[#allocation11 + $0x148] sm:$0xff] %v7397
    %7603 = vst [vmem:[#allocation11 + $0x150] sm:$0xff] %v7401
    %7604 = vst [vmem:[#allocation11 + $0x158] sm:$0xff] %v7403
    %7605 = vst [vmem:[#allocation11 + $0x160] sm:$0xff] %v7407
    %7606 = vst [vmem:[#allocation11 + $0x168] sm:$0xff] %v7409
    %7607 = vst [vmem:[#allocation11 + $0x170] sm:$0xff] %v7413
    %7608 = vst [vmem:[#allocation11 + $0x178] sm:$0xff] %v7415
    %7609 = vst [vmem:[#allocation11 + $0x180] sm:$0xff] %v7419
    %7610 = vst [vmem:[#allocation11 + $0x188] sm:$0xff] %v7421
    %7611 = vst [vmem:[#allocation11 + $0x190] sm:$0xff] %v7425
    %7612 = vst [vmem:[#allocation11 + $0x198] sm:$0xff] %v7427
    %7613 = vst [vmem:[#allocation11 + $0x1a0] sm:$0xff] %v7431
    %7614 = vst [vmem:[#allocation11 + $0x1a8] sm:$0xff] %v7433
    %7615 = vst [vmem:[#allocation11 + $0x1b0] sm:$0xff] %v7437
    %7616 = vst [vmem:[#allocation11 + $0x1b8] sm:$0xff] %v7439
    %7617 = vst [vmem:[#allocation11 + $0x1c0] sm:$0xff] %v7443
    %7618 = vst [vmem:[#allocation11 + $0x1c8] sm:$0xff] %v7445
    %7619 = vst [vmem:[#allocation11 + $0x1d0] sm:$0xff] %v7449
    %7620 = vst [vmem:[#allocation11 + $0x1d8] sm:$0xff] %v7451
    %7621 = vst [vmem:[#allocation11 + $0x1e0] sm:$0xff] %v7455
    %7622 = vst [vmem:[#allocation11 + $0x1e8] sm:$0xff] %v7457
    %7623 = vst [vmem:[#allocation11 + $0x1f0] sm:$0xff] %v7461
    %7624 = vst [vmem:[#allocation11 + $0x1f8] sm:$0xff] %v7463
    %7625 = vst [vmem:[#allocation11 + $0x200] sm:$0xff] %v7467
    %7626 = vst [vmem:[#allocation11 + $0x208] sm:$0xff] %v7469
    %7627 = vst [vmem:[#allocation11 + $0x210] sm:$0xff] %v7473
    %7628 = vst [vmem:[#allocation11 + $0x218] sm:$0xff] %v7475
    %7629 = vst [vmem:[#allocation11 + $0x220] sm:$0xff] %v7479
    %7630 = vst [vmem:[#allocation11 + $0x228] sm:$0xff] %v7481
    %7631 = vst [vmem:[#allocation11 + $0x230] sm:$0xff] %v7485
    %7632 = vst [vmem:[#allocation11 + $0x238] sm:$0xff] %v7487
    %7633 = vst [vmem:[#allocation11 + $0x240] sm:$0xff] %v7491
    %7634 = vst [vmem:[#allocation11 + $0x248] sm:$0xff] %v7493
    %7635 = vst [vmem:[#allocation11 + $0x250] sm:$0xff] %v7497
    %7636 = vst [vmem:[#allocation11 + $0x258] sm:$0xff] %v7499
    %7637 = vst [vmem:[#allocation11 + $0x260] sm:$0xff] %v7503
    %7638 = vst [vmem:[#allocation11 + $0x268] sm:$0xff] %v7505
    %7639 = vst [vmem:[#allocation11 + $0x270] sm:$0xff] %v7509
    %7640 = vst [vmem:[#allocation11 + $0x278] sm:$0xff] %v7511
    %7641 = vst [vmem:[#allocation11 + $0x280] sm:$0xff] %v7515
    %7642 = vst [vmem:[#allocation11 + $0x288] sm:$0xff] %v7517
    %7643 = vst [vmem:[#allocation11 + $0x290] sm:$0xff] %v7521
    %7644 = vst [vmem:[#allocation11 + $0x298] sm:$0xff] %v7523
    %7645 = vst [vmem:[#allocation11 + $0x2a0] sm:$0xff] %v7527
    %7646 = vst [vmem:[#allocation11 + $0x2a8] sm:$0xff] %v7529
    %7647 = vst [vmem:[#allocation11 + $0x2b0] sm:$0xff] %v7533
    %7648 = vst [vmem:[#allocation11 + $0x2b8] sm:$0xff] %v7535
    %7649 = vst [vmem:[#allocation11 + $0x2c0] sm:$0xff] %v7539
    %7650 = vst [vmem:[#allocation11 + $0x2c8] sm:$0xff] %v7541
    %7651 = vst [vmem:[#allocation11 + $0x2d0] sm:$0xff] %v7545
    %7652 = vst [vmem:[#allocation11 + $0x2d8] sm:$0xff] %v7547
    %7653 = vst [vmem:[#allocation11 + $0x2e0] sm:$0xff] %v7551
    %7654 = vst [vmem:[#allocation11 + $0x2e8] sm:$0xff] %v7553
    %7655 = vst [vmem:[#allocation11 + $0x2f0] sm:$0xff] %v7557
    %7656 = vst [vmem:[#allocation11 + $0x2f8] sm:$0xff] %v7559
    // Predicated region
    $region50: #{tpu_custom_call.1} parent=1 // pred_check
      _
    $region51: #{tpu_custom_call.1} parent=1 // pred_check_branch
      %7658 = sbr.rel (0) target = $region53
    $region52: #{tpu_custom_call.1} parent=1 // pred_region
      %s7660 = ssub.s32 12288, 12288
      %7661 = vsyncadd [#allocation4], %s7660
      %s7662 = sshll.u32 [#allocation11], 4
      %s7663 = int_to_ptr.vmem [resolvable:$true] %s7662
      %7668 = dma.vmem_to_hbm [thread:$0]  %s7663, 12288, %s7, [#allocation4], 256, 256, 16
    $region53: #{tpu_custom_call.1} parent=1 // pred_fallthru
      _
    // Predicated region
    $region54: #{tpu_custom_call.1} parent=1 // pred_check
      _
    $region55: #{tpu_custom_call.1} parent=1 // pred_check_branch
      %7670 = sbr.rel (0) target = $region57
    $region56: #{tpu_custom_call.1} parent=1 // pred_region
      %7671 = dma.done [#allocation4], 12288
    $region57: #{tpu_custom_call.1} parent=1 // pred_fallthru
      _
    %7672 = vsyncpa [#allocation3], 1
    %7673 = vsyncpa [#allocation6], 1
    %7674 = vsyncpa [#allocation9], 1
    %7675 = vsyncpa [#allocation4], 1

</llo_original>
